<compile_context>
chip_gen: v7x
topology: tpu7x:2x2x1
jax: 0.10.0
libtpu: 0.0.40
codegen_flags: <defaults>
</compile_context>

<pallas_src>
import functools
import math

import jax
import jax.numpy as jnp
import numpy as np
from jax import lax
from jax.experimental import pallas as pl
from jax.experimental.pallas import tpu as pltpu  # noqa: F401  (kept for TPU-specific tuning hooks)

HIDDEN = 48
INTERMEDIATE = 4 * HIDDEN          # 192
NUM_HEADS = 4
HEAD_DIM = HIDDEN // NUM_HEADS     # 12
ALL_HEAD = NUM_HEADS * HEAD_DIM    # 48
NUM_LAYERS = 4
LN_EPS = 1e-5                      # torch.nn.LayerNorm default
_INV_SQRT2 = 1.0 / math.sqrt(2.0)

# 128-lane aligned packing of the fused QKV projection.
Q_OFF, K_OFF, V_OFF = 0, 128, 256
QKV_WIDTH = 384
NEG_INF = -1e30


def _layernorm(z, gamma, beta):
    mu = jnp.mean(z, axis=-1, keepdims=True)
    var = jnp.mean((z - mu) ** 2, axis=-1, keepdims=True)     # biased, like torch
    return (z - mu) * lax.rsqrt(var + LN_EPS) * gamma + beta


def _encoder_kernel(x_ref, sp_ref, wqkv_ref, wo_ref, w1_ref, w2_ref, o_ref,
                    *, batch, seq):
    """Single invocation: all batches, all 4 encoder blocks."""
    bs = batch * seq
    x = x_ref[...]                                            # (B*S, HIDDEN) f32

    # Block-diagonal additive mask so both batches share the same score/PV
    # matmuls. Built once (hoisted); no integer division (iota + compares only).
    rb = lax.broadcasted_iota(jnp.int32, (bs, bs), 0)
    cb = lax.broadcasted_iota(jnp.int32, (bs, bs), 1)
    same = jnp.zeros((bs, bs), jnp.bool_)
    for b in range(batch):                                    # trace-time loop (B=2)
        lo, hi = b * seq, (b + 1) * seq
        blk = (rb >= lo) & (rb < hi) & (cb >= lo) & (cb < hi)
        same = same | blk
    mask_bias = jnp.where(same, 0.0, NEG_INF).astype(jnp.float32)

    for l in range(NUM_LAYERS):                               # static unroll (4)
        sp = sp_ref[l]                                        # (8, QKV_WIDTH) small-params slab
        b_qkv = sp[0:1, :]                                    # (1, 384)
        b_o   = sp[1:2, 0:HIDDEN]
        b_fc1 = sp[2:3, 0:INTERMEDIATE]
        b_fc2 = sp[3:4, 0:HIDDEN]
        g1, b1 = sp[4:5, 0:HIDDEN], sp[5:6, 0:HIDDEN]
        g2, b2 = sp[6:7, 0:HIDDEN], sp[7:8, 0:HIDDEN]

        # ---------------- attention branch ----------------
        h = _layernorm(x, g1, b1)
        # Fused QKV projection (Q weights already carry the 1/sqrt(d) scale);
        # Q/K/V segments start on 128-lane boundaries.
        qkv = jnp.dot(h, wqkv_ref[l], preferred_element_type=jnp.float32) + b_qkv
        q_all = qkv[:, Q_OFF:Q_OFF + ALL_HEAD]
        k_all = qkv[:, K_OFF:K_OFF + ALL_HEAD]
        v_all = qkv[:, V_OFF:V_OFF + ALL_HEAD]

        heads = []
        for hh in range(NUM_HEADS):                           # static unroll (4)
            sl = slice(hh * HEAD_DIM, (hh + 1) * HEAD_DIM)
            q, k, v = q_all[:, sl], k_all[:, sl], v_all[:, sl]
            # scores = q @ k^T over all B*S rows; cross-batch entries masked out.
            scores = lax.dot_general(q, k, (((1,), (1,)), ((), ())),
                                     preferred_element_type=jnp.float32)  # (BS, BS)
            scores = scores + mask_bias
            m = jnp.max(scores, axis=-1, keepdims=True)
            e = jnp.exp(scores - m)
            denom = jnp.sum(e, axis=-1, keepdims=True)
            p = e * pl.reciprocal(denom, approx=True)
            # attention_probs_dropout_prob = 0.0 -> identity
            heads.append(jnp.dot(p, v, preferred_element_type=jnp.float32))  # (BS, d)

        ctx = jnp.concatenate(heads, axis=-1)                 # (BS, ALL_HEAD)
        attn_out = jnp.dot(ctx, wo_ref[l],
                           preferred_element_type=jnp.float32) + b_o
        # hidden_dropout_prob = 0.0 -> identity
        x = x + attn_out                                      # residual 1

        # ---------------- MLP branch ----------------
        h2 = _layernorm(x, g2, b2)
        z = jnp.dot(h2, w1_ref[l], preferred_element_type=jnp.float32) + b_fc1
        z = 0.5 * z * (1.0 + lax.erf(z * _INV_SQRT2))         # exact GELU (nn.GELU())
        z = jnp.dot(z, w2_ref[l], preferred_element_type=jnp.float32) + b_fc2
        x = x + z                                             # residual 2

    o_ref[...] = x


def encoder_forward(x, packed):
    """x: (B, S, HIDDEN) float32; packed: dict of per-layer stacked weights."""
    B, S, _ = x.shape
    bs = B * S
    x2d = x.reshape(bs, HIDDEN)

    flops = NUM_LAYERS * (
        2 * bs * (HIDDEN * QKV_WIDTH + ALL_HEAD * HIDDEN
                  + HIDDEN * INTERMEDIATE + INTERMEDIATE * HIDDEN)
        + 4 * NUM_HEADS * bs * bs * HEAD_DIM)                  # scores + PV
    transcendentals = NUM_LAYERS * (NUM_HEADS * bs * bs + bs * INTERMEDIATE + 4 * bs)
    bytes_accessed = 4 * int(packed["small"].size + packed["w_qkv"].size
                             + packed["w_o"].size + packed["w_fc1"].size
                             + packed["w_fc2"].size + 2 * x2d.size)

    y2d = pl.pallas_call(
        functools.partial(_encoder_kernel, batch=B, seq=S),
        out_shape=jax.ShapeDtypeStruct((bs, HIDDEN), jnp.float32),
        cost_estimate=pl.CostEstimate(flops=int(flops),
                                      transcendentals=int(transcendentals),
                                      bytes_accessed=bytes_accessed),
    )(x2d, packed["small"], packed["w_qkv"], packed["w_o"],
      packed["w_fc1"], packed["w_fc2"])
    return y2d.reshape(B, S, HIDDEN)


def _init_raw_params(key):
    """Deterministic synthetic weights in the PyTorch module's natural layout."""
    keys = jax.random.split(key, 16)
    s = 0.02
    rnd = lambda k, shp: s * jax.random.normal(k, shp, jnp.float32)
    return dict(
        ln1_g=1.0 + 0.1 * jax.random.normal(keys[0], (NUM_LAYERS, HIDDEN), jnp.float32),
        ln1_b=0.1 * jax.random.normal(keys[1], (NUM_LAYERS, HIDDEN), jnp.float32),
        wq=rnd(keys[2], (NUM_LAYERS, NUM_HEADS, HIDDEN, HEAD_DIM)),
        bq=rnd(keys[3], (NUM_LAYERS, NUM_HEADS, HEAD_DIM)),
        wk=rnd(keys[4], (NUM_LAYERS, NUM_HEADS, HIDDEN, HEAD_DIM)),
        bk=rnd(keys[5], (NUM_LAYERS, NUM_HEADS, HEAD_DIM)),
        wv=rnd(keys[6], (NUM_LAYERS, NUM_HEADS, HIDDEN, HEAD_DIM)),
        bv=rnd(keys[7], (NUM_LAYERS, NUM_HEADS, HEAD_DIM)),
        wo=rnd(keys[8], (NUM_LAYERS, ALL_HEAD, HIDDEN)),
        bo=rnd(keys[9], (NUM_LAYERS, HIDDEN)),
        ln2_g=1.0 + 0.1 * jax.random.normal(keys[10], (NUM_LAYERS, HIDDEN), jnp.float32),
        ln2_b=0.1 * jax.random.normal(keys[11], (NUM_LAYERS, HIDDEN), jnp.float32),
        w1=rnd(keys[12], (NUM_LAYERS, HIDDEN, INTERMEDIATE)),
        b1=rnd(keys[13], (NUM_LAYERS, INTERMEDIATE)),
        w2=rnd(keys[14], (NUM_LAYERS, INTERMEDIATE, HIDDEN)),
        b2=rnd(keys[15], (NUM_LAYERS, HIDDEN)),
    )


def _pack_params(raw):
    """Host-side packing: fuse per-head QKV weights with 128-lane-aligned Q/K/V
    segments, fold the 1/sqrt(d) scale into Q, and pack all small per-layer
    vectors (biases + LN params) into one (L, 8, 384) slab."""
    scale = 1.0 / math.sqrt(HEAD_DIM)

    def merge_w(w):   # (L, H, HIDDEN, D) -> (L, HIDDEN, H*D)
        return jnp.transpose(w, (0, 2, 1, 3)).reshape(NUM_LAYERS, HIDDEN, ALL_HEAD)

    def merge_b(b):   # (L, H, D) -> (L, H*D)
        return b.reshape(NUM_LAYERS, ALL_HEAD)

    w_qkv = jnp.zeros((NUM_LAYERS, HIDDEN, QKV_WIDTH), jnp.float32)
    w_qkv = w_qkv.at[:, :, Q_OFF:Q_OFF + ALL_HEAD].set(merge_w(raw["wq"]) * scale)
    w_qkv = w_qkv.at[:, :, K_OFF:K_OFF + ALL_HEAD].set(merge_w(raw["wk"]))
    w_qkv = w_qkv.at[:, :, V_OFF:V_OFF + ALL_HEAD].set(merge_w(raw["wv"]))

    small = jnp.zeros((NUM_LAYERS, 8, QKV_WIDTH), jnp.float32)
    small = small.at[:, 0, Q_OFF:Q_OFF + ALL_HEAD].set(merge_b(raw["bq"]) * scale)
    small = small.at[:, 0, K_OFF:K_OFF + ALL_HEAD].set(merge_b(raw["bk"]))
    small = small.at[:, 0, V_OFF:V_OFF + ALL_HEAD].set(merge_b(raw["bv"]))
    small = small.at[:, 1, 0:HIDDEN].set(raw["bo"])
    small = small.at[:, 2, 0:INTERMEDIATE].set(raw["b1"])
    small = small.at[:, 3, 0:HIDDEN].set(raw["b2"])
    small = small.at[:, 4, 0:HIDDEN].set(raw["ln1_g"])
    small = small.at[:, 5, 0:HIDDEN].set(raw["ln1_b"])
    small = small.at[:, 6, 0:HIDDEN].set(raw["ln2_g"])
    small = small.at[:, 7, 0:HIDDEN].set(raw["ln2_b"])

    return dict(small=small, w_qkv=w_qkv, w_o=raw["wo"],
                w_fc1=raw["w1"], w_fc2=raw["w2"])


def _reference(x, raw):
    """Pure-JAX reference reproducing the PyTorch Encoder forward exactly."""
    def layernorm(z, g, b):
        mu = jnp.mean(z, -1, keepdims=True)
        var = jnp.mean((z - mu) ** 2, -1, keepdims=True)
        return (z - mu) / jnp.sqrt(var + LN_EPS) * g + b

    for l in range(NUM_LAYERS):
        h = layernorm(x, raw["ln1_g"][l], raw["ln1_b"][l])
        outs = []
        for hh in range(NUM_HEADS):
            q = h @ raw["wq"][l, hh] + raw["bq"][l, hh]
            k = h @ raw["wk"][l, hh] + raw["bk"][l, hh]
            v = h @ raw["wv"][l, hh] + raw["bv"][l, hh]
            scores = jnp.einsum("bsd,btd->bst", q, k) / math.sqrt(HEAD_DIM)
            probs = jax.nn.softmax(scores, axis=-1)
            outs.append(jnp.einsum("bst,btd->bsd", probs, v))
        ctx = jnp.concatenate(outs, axis=-1)
        x = x + ctx @ raw["wo"][l] + raw["bo"][l]
        h2 = layernorm(x, raw["ln2_g"][l], raw["ln2_b"][l])
        z = h2 @ raw["w1"][l] + raw["b1"][l]
        z = 0.5 * z * (1.0 + jax.lax.erf(z / math.sqrt(2.0)))      # exact GELU
        z = z @ raw["w2"][l] + raw["b2"][l]
        x = x + z
    return x


if __name__ == "__main__":
    key = jax.random.PRNGKey(0)
    kx, kp = jax.random.split(key)

    B, S = 2, 8
    x = jax.random.normal(kx, (B, S, HIDDEN), jnp.float32)
    raw = _init_raw_params(kp)
    packed = _pack_params(raw)

    out = jax.block_until_ready(encoder_forward(x, packed))
    ref = _reference(x, raw)
    np.testing.assert_allclose(np.asarray(out), np.asarray(ref), atol=2e-3, rtol=2e-3)

    print("KERNEL_OK")
</pallas_src>

<mosaic_0001>
module attributes {stable_mosaic.version = 11 : i64} {
  func.func @_encoder_kernel(%arg0: memref<16x48xf32, #tpu.memory_space<vmem>>, %arg1: memref<4x8x384xf32, #tpu.memory_space<vmem>>, %arg2: memref<4x48x384xf32, #tpu.memory_space<vmem>>, %arg3: memref<4x48x48xf32, #tpu.memory_space<vmem>>, %arg4: memref<4x48x192xf32, #tpu.memory_space<vmem>>, %arg5: memref<4x192x48xf32, #tpu.memory_space<vmem>>, %arg6: memref<16x48xf32, #tpu.memory_space<vmem>>) attributes {dimension_semantics = [], scalar_prefetch = 0 : i64, scratch_operands = 0 : i64, tpu.core_type = #tpu.core_type<tc>} {
    %c0 = arith.constant 0 : index
    %c0_0 = arith.constant 0 : index
    %0 = vector.load %arg0[%c0, %c0_0] : memref<16x48xf32, #tpu.memory_space<vmem>>, vector<16x48xf32>
    %1 = tpu.iota {dimensions = array<i32: 0>} : vector<16x16xi32>
    %2 = tpu.iota {dimensions = array<i32: 1>} : vector<16x16xi32>
    %false = arith.constant false
    %3 = vector.broadcast %false : i1 to vector<16x16xi1>
    %c0_i32 = arith.constant 0 : i32
    %4 = vector.broadcast %c0_i32 : i32 to vector<16x16xi32>
    %5 = arith.cmpi sge, %1, %4 : vector<16x16xi32>
    %c8_i32 = arith.constant 8 : i32
    %6 = vector.broadcast %c8_i32 : i32 to vector<16x16xi32>
    %7 = arith.cmpi slt, %1, %6 : vector<16x16xi32>
    %8 = arith.andi %5, %7 : vector<16x16xi1>
    %c0_i32_1 = arith.constant 0 : i32
    %9 = vector.broadcast %c0_i32_1 : i32 to vector<16x16xi32>
    %10 = arith.cmpi sge, %2, %9 : vector<16x16xi32>
    %11 = arith.andi %8, %10 : vector<16x16xi1>
    %c8_i32_2 = arith.constant 8 : i32
    %12 = vector.broadcast %c8_i32_2 : i32 to vector<16x16xi32>
    %13 = arith.cmpi slt, %2, %12 : vector<16x16xi32>
    %14 = arith.andi %11, %13 : vector<16x16xi1>
    %15 = arith.ori %3, %14 : vector<16x16xi1>
    %c8_i32_3 = arith.constant 8 : i32
    %16 = vector.broadcast %c8_i32_3 : i32 to vector<16x16xi32>
    %17 = arith.cmpi sge, %1, %16 : vector<16x16xi32>
    %c16_i32 = arith.constant 16 : i32
    %18 = vector.broadcast %c16_i32 : i32 to vector<16x16xi32>
    %19 = arith.cmpi slt, %1, %18 : vector<16x16xi32>
    %20 = arith.andi %17, %19 : vector<16x16xi1>
    %c8_i32_4 = arith.constant 8 : i32
    %21 = vector.broadcast %c8_i32_4 : i32 to vector<16x16xi32>
    %22 = arith.cmpi sge, %2, %21 : vector<16x16xi32>
    %23 = arith.andi %20, %22 : vector<16x16xi1>
    %c16_i32_5 = arith.constant 16 : i32
    %24 = vector.broadcast %c16_i32_5 : i32 to vector<16x16xi32>
    %25 = arith.cmpi slt, %2, %24 : vector<16x16xi32>
    %26 = arith.andi %23, %25 : vector<16x16xi1>
    %27 = arith.ori %15, %26 : vector<16x16xi1>
    %cst = arith.constant 0.000000e+00 : f32
    %cst_6 = arith.constant -1.000000e+30 : f32
    %28 = vector.broadcast %cst : f32 to vector<16x16xf32>
    %29 = vector.broadcast %cst_6 : f32 to vector<16x16xf32>
    %30 = arith.select %27, %28, %29 : vector<16x16xi1>, vector<16x16xf32>
    %c0_7 = arith.constant 0 : index
    %c0_8 = arith.constant 0 : index
    %c0_9 = arith.constant 0 : index
    %31 = vector.load %arg1[%c0_7, %c0_8, %c0_9] : memref<4x8x384xf32, #tpu.memory_space<vmem>>, vector<1x8x384xf32>
    %32 = vector.shape_cast %31 : vector<1x8x384xf32> to vector<8x384xf32>
    %33 = vector.extract_strided_slice %32 {offsets = [0, 0], sizes = [1, 384], strides = [1, 1]} : vector<8x384xf32> to vector<1x384xf32>
    %34 = vector.extract_strided_slice %32 {offsets = [1, 0], sizes = [1, 48], strides = [1, 1]} : vector<8x384xf32> to vector<1x48xf32>
    %35 = vector.extract_strided_slice %32 {offsets = [2, 0], sizes = [1, 192], strides = [1, 1]} : vector<8x384xf32> to vector<1x192xf32>
    %36 = vector.extract_strided_slice %32 {offsets = [3, 0], sizes = [1, 48], strides = [1, 1]} : vector<8x384xf32> to vector<1x48xf32>
    %37 = vector.extract_strided_slice %32 {offsets = [4, 0], sizes = [1, 48], strides = [1, 1]} : vector<8x384xf32> to vector<1x48xf32>
    %38 = vector.extract_strided_slice %32 {offsets = [5, 0], sizes = [1, 48], strides = [1, 1]} : vector<8x384xf32> to vector<1x48xf32>
    %39 = vector.extract_strided_slice %32 {offsets = [6, 0], sizes = [1, 48], strides = [1, 1]} : vector<8x384xf32> to vector<1x48xf32>
    %40 = vector.extract_strided_slice %32 {offsets = [7, 0], sizes = [1, 48], strides = [1, 1]} : vector<8x384xf32> to vector<1x48xf32>
    %cst_10 = arith.constant dense<0.000000e+00> : vector<16xf32>
    %41 = vector.multi_reduction <add>, %0, %cst_10 [1] : vector<16x48xf32> to vector<16xf32>
    %42 = vector.shape_cast %41 : vector<16xf32> to vector<16x1xf32>
    %cst_11 = arith.constant 4.800000e+01 : f32
    %43 = vector.broadcast %cst_11 : f32 to vector<16x1xf32>
    %44 = arith.divf %42, %43 : vector<16x1xf32>
    %45 = vector.broadcast %44 : vector<16x1xf32> to vector<16x48xf32>
    %46 = arith.subf %0, %45 : vector<16x48xf32>
    %47 = arith.mulf %46, %46 : vector<16x48xf32>
    %cst_12 = arith.constant dense<0.000000e+00> : vector<16xf32>
    %48 = vector.multi_reduction <add>, %47, %cst_12 [1] : vector<16x48xf32> to vector<16xf32>
    %49 = vector.shape_cast %48 : vector<16xf32> to vector<16x1xf32>
    %cst_13 = arith.constant 4.800000e+01 : f32
    %50 = vector.broadcast %cst_13 : f32 to vector<16x1xf32>
    %51 = arith.divf %49, %50 : vector<16x1xf32>
    %52 = vector.broadcast %44 : vector<16x1xf32> to vector<16x48xf32>
    %53 = arith.subf %0, %52 : vector<16x48xf32>
    %cst_14 = arith.constant 9.99999974E-6 : f32
    %54 = vector.broadcast %cst_14 : f32 to vector<16x1xf32>
    %55 = arith.addf %51, %54 : vector<16x1xf32>
    %56 = math.rsqrt %55 : vector<16x1xf32>
    %57 = vector.broadcast %56 : vector<16x1xf32> to vector<16x48xf32>
    %58 = arith.mulf %53, %57 : vector<16x48xf32>
    %59 = vector.broadcast %37 : vector<1x48xf32> to vector<16x48xf32>
    %60 = arith.mulf %58, %59 : vector<16x48xf32>
    %61 = vector.broadcast %38 : vector<1x48xf32> to vector<16x48xf32>
    %62 = arith.addf %60, %61 : vector<16x48xf32>
    %c0_15 = arith.constant 0 : index
    %c0_16 = arith.constant 0 : index
    %c0_17 = arith.constant 0 : index
    %63 = vector.load %arg2[%c0_15, %c0_16, %c0_17] : memref<4x48x384xf32, #tpu.memory_space<vmem>>, vector<1x48x384xf32>
    %64 = vector.shape_cast %63 : vector<1x48x384xf32> to vector<48x384xf32>
    %cst_18 = arith.constant dense<0.000000e+00> : vector<16x384xf32>
    %65 = tpu.matmul %62, %64, %cst_18 {dimension_numbers = #tpu.dot_dimension_numbers<[1], [0], [0], [1], [0, 0, 1, 1], [], []>} : vector<16x48xf32>, vector<48x384xf32>, vector<16x384xf32> -> vector<16x384xf32>
    %66 = vector.broadcast %33 : vector<1x384xf32> to vector<16x384xf32>
    %67 = arith.addf %65, %66 : vector<16x384xf32>
    %68 = vector.extract_strided_slice %67 {offsets = [0, 0], sizes = [16, 48], strides = [1, 1]} : vector<16x384xf32> to vector<16x48xf32>
    %69 = vector.extract_strided_slice %67 {offsets = [0, 128], sizes = [16, 48], strides = [1, 1]} : vector<16x384xf32> to vector<16x48xf32>
    %70 = vector.extract_strided_slice %67 {offsets = [0, 256], sizes = [16, 48], strides = [1, 1]} : vector<16x384xf32> to vector<16x48xf32>
    %71 = vector.extract_strided_slice %68 {offsets = [0, 0], sizes = [16, 12], strides = [1, 1]} : vector<16x48xf32> to vector<16x12xf32>
    %72 = vector.extract_strided_slice %69 {offsets = [0, 0], sizes = [16, 12], strides = [1, 1]} : vector<16x48xf32> to vector<16x12xf32>
    %73 = vector.extract_strided_slice %70 {offsets = [0, 0], sizes = [16, 12], strides = [1, 1]} : vector<16x48xf32> to vector<16x12xf32>
    %cst_19 = arith.constant dense<0.000000e+00> : vector<16x16xf32>
    %74 = tpu.matmul %71, %72, %cst_19 {dimension_numbers = #tpu.dot_dimension_numbers<[1], [1], [0], [0], [0, 0, 1, 0], [], []>} : vector<16x12xf32>, vector<16x12xf32>, vector<16x16xf32> -> vector<16x16xf32>
    %75 = arith.addf %74, %30 : vector<16x16xf32>
    %cst_20 = arith.constant dense<0xFF800000> : vector<16xf32>
    %76 = vector.multi_reduction <maximumf>, %75, %cst_20 [1] : vector<16x16xf32> to vector<16xf32>
    %77 = vector.shape_cast %76 : vector<16xf32> to vector<16x1xf32>
    %78 = vector.broadcast %77 : vector<16x1xf32> to vector<16x16xf32>
    %79 = arith.subf %75, %78 : vector<16x16xf32>
    %80 = math.exp %79 : vector<16x16xf32>
    %cst_21 = arith.constant dense<0.000000e+00> : vector<16xf32>
    %81 = vector.multi_reduction <add>, %80, %cst_21 [1] : vector<16x16xf32> to vector<16xf32>
    %82 = vector.shape_cast %81 : vector<16xf32> to vector<16x1xf32>
    %83 = tpu.reciprocal %82 {approx = true} : vector<16x1xf32> -> vector<16x1xf32>
    %84 = vector.broadcast %83 : vector<16x1xf32> to vector<16x16xf32>
    %85 = arith.mulf %80, %84 : vector<16x16xf32>
    %cst_22 = arith.constant dense<0.000000e+00> : vector<16x12xf32>
    %86 = tpu.matmul %85, %73, %cst_22 {dimension_numbers = #tpu.dot_dimension_numbers<[1], [0], [0], [1], [0, 0, 1, 1], [], []>} : vector<16x16xf32>, vector<16x12xf32>, vector<16x12xf32> -> vector<16x12xf32>
    %87 = vector.extract_strided_slice %68 {offsets = [0, 12], sizes = [16, 12], strides = [1, 1]} : vector<16x48xf32> to vector<16x12xf32>
    %88 = vector.extract_strided_slice %69 {offsets = [0, 12], sizes = [16, 12], strides = [1, 1]} : vector<16x48xf32> to vector<16x12xf32>
    %89 = vector.extract_strided_slice %70 {offsets = [0, 12], sizes = [16, 12], strides = [1, 1]} : vector<16x48xf32> to vector<16x12xf32>
    %cst_23 = arith.constant dense<0.000000e+00> : vector<16x16xf32>
    %90 = tpu.matmul %87, %88, %cst_23 {dimension_numbers = #tpu.dot_dimension_numbers<[1], [1], [0], [0], [0, 0, 1, 0], [], []>} : vector<16x12xf32>, vector<16x12xf32>, vector<16x16xf32> -> vector<16x16xf32>
    %91 = arith.addf %90, %30 : vector<16x16xf32>
    %cst_24 = arith.constant dense<0xFF800000> : vector<16xf32>
    %92 = vector.multi_reduction <maximumf>, %91, %cst_24 [1] : vector<16x16xf32> to vector<16xf32>
    %93 = vector.shape_cast %92 : vector<16xf32> to vector<16x1xf32>
    %94 = vector.broadcast %93 : vector<16x1xf32> to vector<16x16xf32>
    %95 = arith.subf %91, %94 : vector<16x16xf32>
    %96 = math.exp %95 : vector<16x16xf32>
    %cst_25 = arith.constant dense<0.000000e+00> : vector<16xf32>
    %97 = vector.multi_reduction <add>, %96, %cst_25 [1] : vector<16x16xf32> to vector<16xf32>
    %98 = vector.shape_cast %97 : vector<16xf32> to vector<16x1xf32>
    %99 = tpu.reciprocal %98 {approx = true} : vector<16x1xf32> -> vector<16x1xf32>
    %100 = vector.broadcast %99 : vector<16x1xf32> to vector<16x16xf32>
    %101 = arith.mulf %96, %100 : vector<16x16xf32>
    %cst_26 = arith.constant dense<0.000000e+00> : vector<16x12xf32>
    %102 = tpu.matmul %101, %89, %cst_26 {dimension_numbers = #tpu.dot_dimension_numbers<[1], [0], [0], [1], [0, 0, 1, 1], [], []>} : vector<16x16xf32>, vector<16x12xf32>, vector<16x12xf32> -> vector<16x12xf32>
    %103 = vector.extract_strided_slice %68 {offsets = [0, 24], sizes = [16, 12], strides = [1, 1]} : vector<16x48xf32> to vector<16x12xf32>
    %104 = vector.extract_strided_slice %69 {offsets = [0, 24], sizes = [16, 12], strides = [1, 1]} : vector<16x48xf32> to vector<16x12xf32>
    %105 = vector.extract_strided_slice %70 {offsets = [0, 24], sizes = [16, 12], strides = [1, 1]} : vector<16x48xf32> to vector<16x12xf32>
    %cst_27 = arith.constant dense<0.000000e+00> : vector<16x16xf32>
    %106 = tpu.matmul %103, %104, %cst_27 {dimension_numbers = #tpu.dot_dimension_numbers<[1], [1], [0], [0], [0, 0, 1, 0], [], []>} : vector<16x12xf32>, vector<16x12xf32>, vector<16x16xf32> -> vector<16x16xf32>
    %107 = arith.addf %106, %30 : vector<16x16xf32>
    %cst_28 = arith.constant dense<0xFF800000> : vector<16xf32>
    %108 = vector.multi_reduction <maximumf>, %107, %cst_28 [1] : vector<16x16xf32> to vector<16xf32>
    %109 = vector.shape_cast %108 : vector<16xf32> to vector<16x1xf32>
    %110 = vector.broadcast %109 : vector<16x1xf32> to vector<16x16xf32>
    %111 = arith.subf %107, %110 : vector<16x16xf32>
    %112 = math.exp %111 : vector<16x16xf32>
    %cst_29 = arith.constant dense<0.000000e+00> : vector<16xf32>
    %113 = vector.multi_reduction <add>, %112, %cst_29 [1] : vector<16x16xf32> to vector<16xf32>
    %114 = vector.shape_cast %113 : vector<16xf32> to vector<16x1xf32>
    %115 = tpu.reciprocal %114 {approx = true} : vector<16x1xf32> -> vector<16x1xf32>
    %116 = vector.broadcast %115 : vector<16x1xf32> to vector<16x16xf32>
    %117 = arith.mulf %112, %116 : vector<16x16xf32>
    %cst_30 = arith.constant dense<0.000000e+00> : vector<16x12xf32>
    %118 = tpu.matmul %117, %105, %cst_30 {dimension_numbers = #tpu.dot_dimension_numbers<[1], [0], [0], [1], [0, 0, 1, 1], [], []>} : vector<16x16xf32>, vector<16x12xf32>, vector<16x12xf32> -> vector<16x12xf32>
    %119 = vector.extract_strided_slice %68 {offsets = [0, 36], sizes = [16, 12], strides = [1, 1]} : vector<16x48xf32> to vector<16x12xf32>
    %120 = vector.extract_strided_slice %69 {offsets = [0, 36], sizes = [16, 12], strides = [1, 1]} : vector<16x48xf32> to vector<16x12xf32>
    %121 = vector.extract_strided_slice %70 {offsets = [0, 36], sizes = [16, 12], strides = [1, 1]} : vector<16x48xf32> to vector<16x12xf32>
    %cst_31 = arith.constant dense<0.000000e+00> : vector<16x16xf32>
    %122 = tpu.matmul %119, %120, %cst_31 {dimension_numbers = #tpu.dot_dimension_numbers<[1], [1], [0], [0], [0, 0, 1, 0], [], []>} : vector<16x12xf32>, vector<16x12xf32>, vector<16x16xf32> -> vector<16x16xf32>
    %123 = arith.addf %122, %30 : vector<16x16xf32>
    %cst_32 = arith.constant dense<0xFF800000> : vector<16xf32>
    %124 = vector.multi_reduction <maximumf>, %123, %cst_32 [1] : vector<16x16xf32> to vector<16xf32>
    %125 = vector.shape_cast %124 : vector<16xf32> to vector<16x1xf32>
    %126 = vector.broadcast %125 : vector<16x1xf32> to vector<16x16xf32>
    %127 = arith.subf %123, %126 : vector<16x16xf32>
    %128 = math.exp %127 : vector<16x16xf32>
    %cst_33 = arith.constant dense<0.000000e+00> : vector<16xf32>
    %129 = vector.multi_reduction <add>, %128, %cst_33 [1] : vector<16x16xf32> to vector<16xf32>
    %130 = vector.shape_cast %129 : vector<16xf32> to vector<16x1xf32>
    %131 = tpu.reciprocal %130 {approx = true} : vector<16x1xf32> -> vector<16x1xf32>
    %132 = vector.broadcast %131 : vector<16x1xf32> to vector<16x16xf32>
    %133 = arith.mulf %128, %132 : vector<16x16xf32>
    %cst_34 = arith.constant dense<0.000000e+00> : vector<16x12xf32>
    %134 = tpu.matmul %133, %121, %cst_34 {dimension_numbers = #tpu.dot_dimension_numbers<[1], [0], [0], [1], [0, 0, 1, 1], [], []>} : vector<16x16xf32>, vector<16x12xf32>, vector<16x12xf32> -> vector<16x12xf32>
    %135 = tpu.concatenate %86, %102, %118, %134 in 1 : vector<16x12xf32>, vector<16x12xf32>, vector<16x12xf32>, vector<16x12xf32> -> vector<16x48xf32>
    %c0_35 = arith.constant 0 : index
    %c0_36 = arith.constant 0 : index
    %c0_37 = arith.constant 0 : index
    %136 = vector.load %arg3[%c0_35, %c0_36, %c0_37] : memref<4x48x48xf32, #tpu.memory_space<vmem>>, vector<1x48x48xf32>
    %137 = vector.shape_cast %136 : vector<1x48x48xf32> to vector<48x48xf32>
    %cst_38 = arith.constant dense<0.000000e+00> : vector<16x48xf32>
    %138 = tpu.matmul %135, %137, %cst_38 {dimension_numbers = #tpu.dot_dimension_numbers<[1], [0], [0], [1], [0, 0, 1, 1], [], []>} : vector<16x48xf32>, vector<48x48xf32>, vector<16x48xf32> -> vector<16x48xf32>
    %139 = vector.broadcast %34 : vector<1x48xf32> to vector<16x48xf32>
    %140 = arith.addf %138, %139 : vector<16x48xf32>
    %141 = arith.addf %0, %140 : vector<16x48xf32>
    %cst_39 = arith.constant dense<0.000000e+00> : vector<16xf32>
    %142 = vector.multi_reduction <add>, %141, %cst_39 [1] : vector<16x48xf32> to vector<16xf32>
    %143 = vector.shape_cast %142 : vector<16xf32> to vector<16x1xf32>
    %cst_40 = arith.constant 4.800000e+01 : f32
    %144 = vector.broadcast %cst_40 : f32 to vector<16x1xf32>
    %145 = arith.divf %143, %144 : vector<16x1xf32>
    %146 = vector.broadcast %145 : vector<16x1xf32> to vector<16x48xf32>
    %147 = arith.subf %141, %146 : vector<16x48xf32>
    %148 = arith.mulf %147, %147 : vector<16x48xf32>
    %cst_41 = arith.constant dense<0.000000e+00> : vector<16xf32>
    %149 = vector.multi_reduction <add>, %148, %cst_41 [1] : vector<16x48xf32> to vector<16xf32>
    %150 = vector.shape_cast %149 : vector<16xf32> to vector<16x1xf32>
    %cst_42 = arith.constant 4.800000e+01 : f32
    %151 = vector.broadcast %cst_42 : f32 to vector<16x1xf32>
    %152 = arith.divf %150, %151 : vector<16x1xf32>
    %153 = vector.broadcast %145 : vector<16x1xf32> to vector<16x48xf32>
    %154 = arith.subf %141, %153 : vector<16x48xf32>
    %cst_43 = arith.constant 9.99999974E-6 : f32
    %155 = vector.broadcast %cst_43 : f32 to vector<16x1xf32>
    %156 = arith.addf %152, %155 : vector<16x1xf32>
    %157 = math.rsqrt %156 : vector<16x1xf32>
    %158 = vector.broadcast %157 : vector<16x1xf32> to vector<16x48xf32>
    %159 = arith.mulf %154, %158 : vector<16x48xf32>
    %160 = vector.broadcast %39 : vector<1x48xf32> to vector<16x48xf32>
    %161 = arith.mulf %159, %160 : vector<16x48xf32>
    %162 = vector.broadcast %40 : vector<1x48xf32> to vector<16x48xf32>
    %163 = arith.addf %161, %162 : vector<16x48xf32>
    %c0_44 = arith.constant 0 : index
    %c0_45 = arith.constant 0 : index
    %c0_46 = arith.constant 0 : index
    %164 = vector.load %arg4[%c0_44, %c0_45, %c0_46] : memref<4x48x192xf32, #tpu.memory_space<vmem>>, vector<1x48x192xf32>
    %165 = vector.shape_cast %164 : vector<1x48x192xf32> to vector<48x192xf32>
    %cst_47 = arith.constant dense<0.000000e+00> : vector<16x192xf32>
    %166 = tpu.matmul %163, %165, %cst_47 {dimension_numbers = #tpu.dot_dimension_numbers<[1], [0], [0], [1], [0, 0, 1, 1], [], []>} : vector<16x48xf32>, vector<48x192xf32>, vector<16x192xf32> -> vector<16x192xf32>
    %167 = vector.broadcast %35 : vector<1x192xf32> to vector<16x192xf32>
    %168 = arith.addf %166, %167 : vector<16x192xf32>
    %cst_48 = arith.constant 5.000000e-01 : f32
    %169 = vector.broadcast %cst_48 : f32 to vector<16x192xf32>
    %170 = arith.mulf %169, %168 : vector<16x192xf32>
    %cst_49 = arith.constant 0.707106769 : f32
    %171 = vector.broadcast %cst_49 : f32 to vector<16x192xf32>
    %172 = arith.mulf %168, %171 : vector<16x192xf32>
    %173 = math.erf %172 : vector<16x192xf32>
    %cst_50 = arith.constant 1.000000e+00 : f32
    %174 = vector.broadcast %cst_50 : f32 to vector<16x192xf32>
    %175 = arith.addf %174, %173 : vector<16x192xf32>
    %176 = arith.mulf %170, %175 : vector<16x192xf32>
    %c0_51 = arith.constant 0 : index
    %c0_52 = arith.constant 0 : index
    %c0_53 = arith.constant 0 : index
    %177 = vector.load %arg5[%c0_51, %c0_52, %c0_53] : memref<4x192x48xf32, #tpu.memory_space<vmem>>, vector<1x192x48xf32>
    %178 = vector.shape_cast %177 : vector<1x192x48xf32> to vector<192x48xf32>
    %cst_54 = arith.constant dense<0.000000e+00> : vector<16x48xf32>
    %179 = tpu.matmul %176, %178, %cst_54 {dimension_numbers = #tpu.dot_dimension_numbers<[1], [0], [0], [1], [0, 0, 1, 1], [], []>} : vector<16x192xf32>, vector<192x48xf32>, vector<16x48xf32> -> vector<16x48xf32>
    %180 = vector.broadcast %36 : vector<1x48xf32> to vector<16x48xf32>
    %181 = arith.addf %179, %180 : vector<16x48xf32>
    %182 = arith.addf %141, %181 : vector<16x48xf32>
    %c1 = arith.constant 1 : index
    %c0_55 = arith.constant 0 : index
    %c0_56 = arith.constant 0 : index
    %183 = vector.load %arg1[%c1, %c0_55, %c0_56] : memref<4x8x384xf32, #tpu.memory_space<vmem>>, vector<1x8x384xf32>
    %184 = vector.shape_cast %183 : vector<1x8x384xf32> to vector<8x384xf32>
    %185 = vector.extract_strided_slice %184 {offsets = [0, 0], sizes = [1, 384], strides = [1, 1]} : vector<8x384xf32> to vector<1x384xf32>
    %186 = vector.extract_strided_slice %184 {offsets = [1, 0], sizes = [1, 48], strides = [1, 1]} : vector<8x384xf32> to vector<1x48xf32>
    %187 = vector.extract_strided_slice %184 {offsets = [2, 0], sizes = [1, 192], strides = [1, 1]} : vector<8x384xf32> to vector<1x192xf32>
    %188 = vector.extract_strided_slice %184 {offsets = [3, 0], sizes = [1, 48], strides = [1, 1]} : vector<8x384xf32> to vector<1x48xf32>
    %189 = vector.extract_strided_slice %184 {offsets = [4, 0], sizes = [1, 48], strides = [1, 1]} : vector<8x384xf32> to vector<1x48xf32>
    %190 = vector.extract_strided_slice %184 {offsets = [5, 0], sizes = [1, 48], strides = [1, 1]} : vector<8x384xf32> to vector<1x48xf32>
    %191 = vector.extract_strided_slice %184 {offsets = [6, 0], sizes = [1, 48], strides = [1, 1]} : vector<8x384xf32> to vector<1x48xf32>
    %192 = vector.extract_strided_slice %184 {offsets = [7, 0], sizes = [1, 48], strides = [1, 1]} : vector<8x384xf32> to vector<1x48xf32>
    %cst_57 = arith.constant dense<0.000000e+00> : vector<16xf32>
    %193 = vector.multi_reduction <add>, %182, %cst_57 [1] : vector<16x48xf32> to vector<16xf32>
    %194 = vector.shape_cast %193 : vector<16xf32> to vector<16x1xf32>
    %cst_58 = arith.constant 4.800000e+01 : f32
    %195 = vector.broadcast %cst_58 : f32 to vector<16x1xf32>
    %196 = arith.divf %194, %195 : vector<16x1xf32>
    %197 = vector.broadcast %196 : vector<16x1xf32> to vector<16x48xf32>
    %198 = arith.subf %182, %197 : vector<16x48xf32>
    %199 = arith.mulf %198, %198 : vector<16x48xf32>
    %cst_59 = arith.constant dense<0.000000e+00> : vector<16xf32>
    %200 = vector.multi_reduction <add>, %199, %cst_59 [1] : vector<16x48xf32> to vector<16xf32>
    %201 = vector.shape_cast %200 : vector<16xf32> to vector<16x1xf32>
    %cst_60 = arith.constant 4.800000e+01 : f32
    %202 = vector.broadcast %cst_60 : f32 to vector<16x1xf32>
    %203 = arith.divf %201, %202 : vector<16x1xf32>
    %204 = vector.broadcast %196 : vector<16x1xf32> to vector<16x48xf32>
    %205 = arith.subf %182, %204 : vector<16x48xf32>
    %cst_61 = arith.constant 9.99999974E-6 : f32
    %206 = vector.broadcast %cst_61 : f32 to vector<16x1xf32>
    %207 = arith.addf %203, %206 : vector<16x1xf32>
    %208 = math.rsqrt %207 : vector<16x1xf32>
    %209 = vector.broadcast %208 : vector<16x1xf32> to vector<16x48xf32>
    %210 = arith.mulf %205, %209 : vector<16x48xf32>
    %211 = vector.broadcast %189 : vector<1x48xf32> to vector<16x48xf32>
    %212 = arith.mulf %210, %211 : vector<16x48xf32>
    %213 = vector.broadcast %190 : vector<1x48xf32> to vector<16x48xf32>
    %214 = arith.addf %212, %213 : vector<16x48xf32>
    %c1_62 = arith.constant 1 : index
    %c0_63 = arith.constant 0 : index
    %c0_64 = arith.constant 0 : index
    %215 = vector.load %arg2[%c1_62, %c0_63, %c0_64] : memref<4x48x384xf32, #tpu.memory_space<vmem>>, vector<1x48x384xf32>
    %216 = vector.shape_cast %215 : vector<1x48x384xf32> to vector<48x384xf32>
    %cst_65 = arith.constant dense<0.000000e+00> : vector<16x384xf32>
    %217 = tpu.matmul %214, %216, %cst_65 {dimension_numbers = #tpu.dot_dimension_numbers<[1], [0], [0], [1], [0, 0, 1, 1], [], []>} : vector<16x48xf32>, vector<48x384xf32>, vector<16x384xf32> -> vector<16x384xf32>
    %218 = vector.broadcast %185 : vector<1x384xf32> to vector<16x384xf32>
    %219 = arith.addf %217, %218 : vector<16x384xf32>
    %220 = vector.extract_strided_slice %219 {offsets = [0, 0], sizes = [16, 48], strides = [1, 1]} : vector<16x384xf32> to vector<16x48xf32>
    %221 = vector.extract_strided_slice %219 {offsets = [0, 128], sizes = [16, 48], strides = [1, 1]} : vector<16x384xf32> to vector<16x48xf32>
    %222 = vector.extract_strided_slice %219 {offsets = [0, 256], sizes = [16, 48], strides = [1, 1]} : vector<16x384xf32> to vector<16x48xf32>
    %223 = vector.extract_strided_slice %220 {offsets = [0, 0], sizes = [16, 12], strides = [1, 1]} : vector<16x48xf32> to vector<16x12xf32>
    %224 = vector.extract_strided_slice %221 {offsets = [0, 0], sizes = [16, 12], strides = [1, 1]} : vector<16x48xf32> to vector<16x12xf32>
    %225 = vector.extract_strided_slice %222 {offsets = [0, 0], sizes = [16, 12], strides = [1, 1]} : vector<16x48xf32> to vector<16x12xf32>
    %cst_66 = arith.constant dense<0.000000e+00> : vector<16x16xf32>
    %226 = tpu.matmul %223, %224, %cst_66 {dimension_numbers = #tpu.dot_dimension_numbers<[1], [1], [0], [0], [0, 0, 1, 0], [], []>} : vector<16x12xf32>, vector<16x12xf32>, vector<16x16xf32> -> vector<16x16xf32>
    %227 = arith.addf %226, %30 : vector<16x16xf32>
    %cst_67 = arith.constant dense<0xFF800000> : vector<16xf32>
    %228 = vector.multi_reduction <maximumf>, %227, %cst_67 [1] : vector<16x16xf32> to vector<16xf32>
    %229 = vector.shape_cast %228 : vector<16xf32> to vector<16x1xf32>
    %230 = vector.broadcast %229 : vector<16x1xf32> to vector<16x16xf32>
    %231 = arith.subf %227, %230 : vector<16x16xf32>
    %232 = math.exp %231 : vector<16x16xf32>
    %cst_68 = arith.constant dense<0.000000e+00> : vector<16xf32>
    %233 = vector.multi_reduction <add>, %232, %cst_68 [1] : vector<16x16xf32> to vector<16xf32>
    %234 = vector.shape_cast %233 : vector<16xf32> to vector<16x1xf32>
    %235 = tpu.reciprocal %234 {approx = true} : vector<16x1xf32> -> vector<16x1xf32>
    %236 = vector.broadcast %235 : vector<16x1xf32> to vector<16x16xf32>
    %237 = arith.mulf %232, %236 : vector<16x16xf32>
    %cst_69 = arith.constant dense<0.000000e+00> : vector<16x12xf32>
    %238 = tpu.matmul %237, %225, %cst_69 {dimension_numbers = #tpu.dot_dimension_numbers<[1], [0], [0], [1], [0, 0, 1, 1], [], []>} : vector<16x16xf32>, vector<16x12xf32>, vector<16x12xf32> -> vector<16x12xf32>
    %239 = vector.extract_strided_slice %220 {offsets = [0, 12], sizes = [16, 12], strides = [1, 1]} : vector<16x48xf32> to vector<16x12xf32>
    %240 = vector.extract_strided_slice %221 {offsets = [0, 12], sizes = [16, 12], strides = [1, 1]} : vector<16x48xf32> to vector<16x12xf32>
    %241 = vector.extract_strided_slice %222 {offsets = [0, 12], sizes = [16, 12], strides = [1, 1]} : vector<16x48xf32> to vector<16x12xf32>
    %cst_70 = arith.constant dense<0.000000e+00> : vector<16x16xf32>
    %242 = tpu.matmul %239, %240, %cst_70 {dimension_numbers = #tpu.dot_dimension_numbers<[1], [1], [0], [0], [0, 0, 1, 0], [], []>} : vector<16x12xf32>, vector<16x12xf32>, vector<16x16xf32> -> vector<16x16xf32>
    %243 = arith.addf %242, %30 : vector<16x16xf32>
    %cst_71 = arith.constant dense<0xFF800000> : vector<16xf32>
    %244 = vector.multi_reduction <maximumf>, %243, %cst_71 [1] : vector<16x16xf32> to vector<16xf32>
    %245 = vector.shape_cast %244 : vector<16xf32> to vector<16x1xf32>
    %246 = vector.broadcast %245 : vector<16x1xf32> to vector<16x16xf32>
    %247 = arith.subf %243, %246 : vector<16x16xf32>
    %248 = math.exp %247 : vector<16x16xf32>
    %cst_72 = arith.constant dense<0.000000e+00> : vector<16xf32>
    %249 = vector.multi_reduction <add>, %248, %cst_72 [1] : vector<16x16xf32> to vector<16xf32>
    %250 = vector.shape_cast %249 : vector<16xf32> to vector<16x1xf32>
    %251 = tpu.reciprocal %250 {approx = true} : vector<16x1xf32> -> vector<16x1xf32>
    %252 = vector.broadcast %251 : vector<16x1xf32> to vector<16x16xf32>
    %253 = arith.mulf %248, %252 : vector<16x16xf32>
    %cst_73 = arith.constant dense<0.000000e+00> : vector<16x12xf32>
    %254 = tpu.matmul %253, %241, %cst_73 {dimension_numbers = #tpu.dot_dimension_numbers<[1], [0], [0], [1], [0, 0, 1, 1], [], []>} : vector<16x16xf32>, vector<16x12xf32>, vector<16x12xf32> -> vector<16x12xf32>
    %255 = vector.extract_strided_slice %220 {offsets = [0, 24], sizes = [16, 12], strides = [1, 1]} : vector<16x48xf32> to vector<16x12xf32>
    %256 = vector.extract_strided_slice %221 {offsets = [0, 24], sizes = [16, 12], strides = [1, 1]} : vector<16x48xf32> to vector<16x12xf32>
    %257 = vector.extract_strided_slice %222 {offsets = [0, 24], sizes = [16, 12], strides = [1, 1]} : vector<16x48xf32> to vector<16x12xf32>
    %cst_74 = arith.constant dense<0.000000e+00> : vector<16x16xf32>
    %258 = tpu.matmul %255, %256, %cst_74 {dimension_numbers = #tpu.dot_dimension_numbers<[1], [1], [0], [0], [0, 0, 1, 0], [], []>} : vector<16x12xf32>, vector<16x12xf32>, vector<16x16xf32> -> vector<16x16xf32>
    %259 = arith.addf %258, %30 : vector<16x16xf32>
    %cst_75 = arith.constant dense<0xFF800000> : vector<16xf32>
    %260 = vector.multi_reduction <maximumf>, %259, %cst_75 [1] : vector<16x16xf32> to vector<16xf32>
    %261 = vector.shape_cast %260 : vector<16xf32> to vector<16x1xf32>
    %262 = vector.broadcast %261 : vector<16x1xf32> to vector<16x16xf32>
    %263 = arith.subf %259, %262 : vector<16x16xf32>
    %264 = math.exp %263 : vector<16x16xf32>
    %cst_76 = arith.constant dense<0.000000e+00> : vector<16xf32>
    %265 = vector.multi_reduction <add>, %264, %cst_76 [1] : vector<16x16xf32> to vector<16xf32>
    %266 = vector.shape_cast %265 : vector<16xf32> to vector<16x1xf32>
    %267 = tpu.reciprocal %266 {approx = true} : vector<16x1xf32> -> vector<16x1xf32>
    %268 = vector.broadcast %267 : vector<16x1xf32> to vector<16x16xf32>
    %269 = arith.mulf %264, %268 : vector<16x16xf32>
    %cst_77 = arith.constant dense<0.000000e+00> : vector<16x12xf32>
    %270 = tpu.matmul %269, %257, %cst_77 {dimension_numbers = #tpu.dot_dimension_numbers<[1], [0], [0], [1], [0, 0, 1, 1], [], []>} : vector<16x16xf32>, vector<16x12xf32>, vector<16x12xf32> -> vector<16x12xf32>
    %271 = vector.extract_strided_slice %220 {offsets = [0, 36], sizes = [16, 12], strides = [1, 1]} : vector<16x48xf32> to vector<16x12xf32>
    %272 = vector.extract_strided_slice %221 {offsets = [0, 36], sizes = [16, 12], strides = [1, 1]} : vector<16x48xf32> to vector<16x12xf32>
    %273 = vector.extract_strided_slice %222 {offsets = [0, 36], sizes = [16, 12], strides = [1, 1]} : vector<16x48xf32> to vector<16x12xf32>
    %cst_78 = arith.constant dense<0.000000e+00> : vector<16x16xf32>
    %274 = tpu.matmul %271, %272, %cst_78 {dimension_numbers = #tpu.dot_dimension_numbers<[1], [1], [0], [0], [0, 0, 1, 0], [], []>} : vector<16x12xf32>, vector<16x12xf32>, vector<16x16xf32> -> vector<16x16xf32>
    %275 = arith.addf %274, %30 : vector<16x16xf32>
    %cst_79 = arith.constant dense<0xFF800000> : vector<16xf32>
    %276 = vector.multi_reduction <maximumf>, %275, %cst_79 [1] : vector<16x16xf32> to vector<16xf32>
    %277 = vector.shape_cast %276 : vector<16xf32> to vector<16x1xf32>
    %278 = vector.broadcast %277 : vector<16x1xf32> to vector<16x16xf32>
    %279 = arith.subf %275, %278 : vector<16x16xf32>
    %280 = math.exp %279 : vector<16x16xf32>
    %cst_80 = arith.constant dense<0.000000e+00> : vector<16xf32>
    %281 = vector.multi_reduction <add>, %280, %cst_80 [1] : vector<16x16xf32> to vector<16xf32>
    %282 = vector.shape_cast %281 : vector<16xf32> to vector<16x1xf32>
    %283 = tpu.reciprocal %282 {approx = true} : vector<16x1xf32> -> vector<16x1xf32>
    %284 = vector.broadcast %283 : vector<16x1xf32> to vector<16x16xf32>
    %285 = arith.mulf %280, %284 : vector<16x16xf32>
    %cst_81 = arith.constant dense<0.000000e+00> : vector<16x12xf32>
    %286 = tpu.matmul %285, %273, %cst_81 {dimension_numbers = #tpu.dot_dimension_numbers<[1], [0], [0], [1], [0, 0, 1, 1], [], []>} : vector<16x16xf32>, vector<16x12xf32>, vector<16x12xf32> -> vector<16x12xf32>
    %287 = tpu.concatenate %238, %254, %270, %286 in 1 : vector<16x12xf32>, vector<16x12xf32>, vector<16x12xf32>, vector<16x12xf32> -> vector<16x48xf32>
    %c1_82 = arith.constant 1 : index
    %c0_83 = arith.constant 0 : index
    %c0_84 = arith.constant 0 : index
    %288 = vector.load %arg3[%c1_82, %c0_83, %c0_84] : memref<4x48x48xf32, #tpu.memory_space<vmem>>, vector<1x48x48xf32>
    %289 = vector.shape_cast %288 : vector<1x48x48xf32> to vector<48x48xf32>
    %cst_85 = arith.constant dense<0.000000e+00> : vector<16x48xf32>
    %290 = tpu.matmul %287, %289, %cst_85 {dimension_numbers = #tpu.dot_dimension_numbers<[1], [0], [0], [1], [0, 0, 1, 1], [], []>} : vector<16x48xf32>, vector<48x48xf32>, vector<16x48xf32> -> vector<16x48xf32>
    %291 = vector.broadcast %186 : vector<1x48xf32> to vector<16x48xf32>
    %292 = arith.addf %290, %291 : vector<16x48xf32>
    %293 = arith.addf %182, %292 : vector<16x48xf32>
    %cst_86 = arith.constant dense<0.000000e+00> : vector<16xf32>
    %294 = vector.multi_reduction <add>, %293, %cst_86 [1] : vector<16x48xf32> to vector<16xf32>
    %295 = vector.shape_cast %294 : vector<16xf32> to vector<16x1xf32>
    %cst_87 = arith.constant 4.800000e+01 : f32
    %296 = vector.broadcast %cst_87 : f32 to vector<16x1xf32>
    %297 = arith.divf %295, %296 : vector<16x1xf32>
    %298 = vector.broadcast %297 : vector<16x1xf32> to vector<16x48xf32>
    %299 = arith.subf %293, %298 : vector<16x48xf32>
    %300 = arith.mulf %299, %299 : vector<16x48xf32>
    %cst_88 = arith.constant dense<0.000000e+00> : vector<16xf32>
    %301 = vector.multi_reduction <add>, %300, %cst_88 [1] : vector<16x48xf32> to vector<16xf32>
    %302 = vector.shape_cast %301 : vector<16xf32> to vector<16x1xf32>
    %cst_89 = arith.constant 4.800000e+01 : f32
    %303 = vector.broadcast %cst_89 : f32 to vector<16x1xf32>
    %304 = arith.divf %302, %303 : vector<16x1xf32>
    %305 = vector.broadcast %297 : vector<16x1xf32> to vector<16x48xf32>
    %306 = arith.subf %293, %305 : vector<16x48xf32>
    %cst_90 = arith.constant 9.99999974E-6 : f32
    %307 = vector.broadcast %cst_90 : f32 to vector<16x1xf32>
    %308 = arith.addf %304, %307 : vector<16x1xf32>
    %309 = math.rsqrt %308 : vector<16x1xf32>
    %310 = vector.broadcast %309 : vector<16x1xf32> to vector<16x48xf32>
    %311 = arith.mulf %306, %310 : vector<16x48xf32>
    %312 = vector.broadcast %191 : vector<1x48xf32> to vector<16x48xf32>
    %313 = arith.mulf %311, %312 : vector<16x48xf32>
    %314 = vector.broadcast %192 : vector<1x48xf32> to vector<16x48xf32>
    %315 = arith.addf %313, %314 : vector<16x48xf32>
    %c1_91 = arith.constant 1 : index
    %c0_92 = arith.constant 0 : index
    %c0_93 = arith.constant 0 : index
    %316 = vector.load %arg4[%c1_91, %c0_92, %c0_93] : memref<4x48x192xf32, #tpu.memory_space<vmem>>, vector<1x48x192xf32>
    %317 = vector.shape_cast %316 : vector<1x48x192xf32> to vector<48x192xf32>
    %cst_94 = arith.constant dense<0.000000e+00> : vector<16x192xf32>
    %318 = tpu.matmul %315, %317, %cst_94 {dimension_numbers = #tpu.dot_dimension_numbers<[1], [0], [0], [1], [0, 0, 1, 1], [], []>} : vector<16x48xf32>, vector<48x192xf32>, vector<16x192xf32> -> vector<16x192xf32>
    %319 = vector.broadcast %187 : vector<1x192xf32> to vector<16x192xf32>
    %320 = arith.addf %318, %319 : vector<16x192xf32>
    %cst_95 = arith.constant 5.000000e-01 : f32
    %321 = vector.broadcast %cst_95 : f32 to vector<16x192xf32>
    %322 = arith.mulf %321, %320 : vector<16x192xf32>
    %cst_96 = arith.constant 0.707106769 : f32
    %323 = vector.broadcast %cst_96 : f32 to vector<16x192xf32>
    %324 = arith.mulf %320, %323 : vector<16x192xf32>
    %325 = math.erf %324 : vector<16x192xf32>
    %cst_97 = arith.constant 1.000000e+00 : f32
    %326 = vector.broadcast %cst_97 : f32 to vector<16x192xf32>
    %327 = arith.addf %326, %325 : vector<16x192xf32>
    %328 = arith.mulf %322, %327 : vector<16x192xf32>
    %c1_98 = arith.constant 1 : index
    %c0_99 = arith.constant 0 : index
    %c0_100 = arith.constant 0 : index
    %329 = vector.load %arg5[%c1_98, %c0_99, %c0_100] : memref<4x192x48xf32, #tpu.memory_space<vmem>>, vector<1x192x48xf32>
    %330 = vector.shape_cast %329 : vector<1x192x48xf32> to vector<192x48xf32>
    %cst_101 = arith.constant dense<0.000000e+00> : vector<16x48xf32>
    %331 = tpu.matmul %328, %330, %cst_101 {dimension_numbers = #tpu.dot_dimension_numbers<[1], [0], [0], [1], [0, 0, 1, 1], [], []>} : vector<16x192xf32>, vector<192x48xf32>, vector<16x48xf32> -> vector<16x48xf32>
    %332 = vector.broadcast %188 : vector<1x48xf32> to vector<16x48xf32>
    %333 = arith.addf %331, %332 : vector<16x48xf32>
    %334 = arith.addf %293, %333 : vector<16x48xf32>
    %c2 = arith.constant 2 : index
    %c0_102 = arith.constant 0 : index
    %c0_103 = arith.constant 0 : index
    %335 = vector.load %arg1[%c2, %c0_102, %c0_103] : memref<4x8x384xf32, #tpu.memory_space<vmem>>, vector<1x8x384xf32>
    %336 = vector.shape_cast %335 : vector<1x8x384xf32> to vector<8x384xf32>
    %337 = vector.extract_strided_slice %336 {offsets = [0, 0], sizes = [1, 384], strides = [1, 1]} : vector<8x384xf32> to vector<1x384xf32>
    %338 = vector.extract_strided_slice %336 {offsets = [1, 0], sizes = [1, 48], strides = [1, 1]} : vector<8x384xf32> to vector<1x48xf32>
    %339 = vector.extract_strided_slice %336 {offsets = [2, 0], sizes = [1, 192], strides = [1, 1]} : vector<8x384xf32> to vector<1x192xf32>
    %340 = vector.extract_strided_slice %336 {offsets = [3, 0], sizes = [1, 48], strides = [1, 1]} : vector<8x384xf32> to vector<1x48xf32>
    %341 = vector.extract_strided_slice %336 {offsets = [4, 0], sizes = [1, 48], strides = [1, 1]} : vector<8x384xf32> to vector<1x48xf32>
    %342 = vector.extract_strided_slice %336 {offsets = [5, 0], sizes = [1, 48], strides = [1, 1]} : vector<8x384xf32> to vector<1x48xf32>
    %343 = vector.extract_strided_slice %336 {offsets = [6, 0], sizes = [1, 48], strides = [1, 1]} : vector<8x384xf32> to vector<1x48xf32>
    %344 = vector.extract_strided_slice %336 {offsets = [7, 0], sizes = [1, 48], strides = [1, 1]} : vector<8x384xf32> to vector<1x48xf32>
    %cst_104 = arith.constant dense<0.000000e+00> : vector<16xf32>
    %345 = vector.multi_reduction <add>, %334, %cst_104 [1] : vector<16x48xf32> to vector<16xf32>
    %346 = vector.shape_cast %345 : vector<16xf32> to vector<16x1xf32>
    %cst_105 = arith.constant 4.800000e+01 : f32
    %347 = vector.broadcast %cst_105 : f32 to vector<16x1xf32>
    %348 = arith.divf %346, %347 : vector<16x1xf32>
    %349 = vector.broadcast %348 : vector<16x1xf32> to vector<16x48xf32>
    %350 = arith.subf %334, %349 : vector<16x48xf32>
    %351 = arith.mulf %350, %350 : vector<16x48xf32>
    %cst_106 = arith.constant dense<0.000000e+00> : vector<16xf32>
    %352 = vector.multi_reduction <add>, %351, %cst_106 [1] : vector<16x48xf32> to vector<16xf32>
    %353 = vector.shape_cast %352 : vector<16xf32> to vector<16x1xf32>
    %cst_107 = arith.constant 4.800000e+01 : f32
    %354 = vector.broadcast %cst_107 : f32 to vector<16x1xf32>
    %355 = arith.divf %353, %354 : vector<16x1xf32>
    %356 = vector.broadcast %348 : vector<16x1xf32> to vector<16x48xf32>
    %357 = arith.subf %334, %356 : vector<16x48xf32>
    %cst_108 = arith.constant 9.99999974E-6 : f32
    %358 = vector.broadcast %cst_108 : f32 to vector<16x1xf32>
    %359 = arith.addf %355, %358 : vector<16x1xf32>
    %360 = math.rsqrt %359 : vector<16x1xf32>
    %361 = vector.broadcast %360 : vector<16x1xf32> to vector<16x48xf32>
    %362 = arith.mulf %357, %361 : vector<16x48xf32>
    %363 = vector.broadcast %341 : vector<1x48xf32> to vector<16x48xf32>
    %364 = arith.mulf %362, %363 : vector<16x48xf32>
    %365 = vector.broadcast %342 : vector<1x48xf32> to vector<16x48xf32>
    %366 = arith.addf %364, %365 : vector<16x48xf32>
    %c2_109 = arith.constant 2 : index
    %c0_110 = arith.constant 0 : index
    %c0_111 = arith.constant 0 : index
    %367 = vector.load %arg2[%c2_109, %c0_110, %c0_111] : memref<4x48x384xf32, #tpu.memory_space<vmem>>, vector<1x48x384xf32>
    %368 = vector.shape_cast %367 : vector<1x48x384xf32> to vector<48x384xf32>
    %cst_112 = arith.constant dense<0.000000e+00> : vector<16x384xf32>
    %369 = tpu.matmul %366, %368, %cst_112 {dimension_numbers = #tpu.dot_dimension_numbers<[1], [0], [0], [1], [0, 0, 1, 1], [], []>} : vector<16x48xf32>, vector<48x384xf32>, vector<16x384xf32> -> vector<16x384xf32>
    %370 = vector.broadcast %337 : vector<1x384xf32> to vector<16x384xf32>
    %371 = arith.addf %369, %370 : vector<16x384xf32>
    %372 = vector.extract_strided_slice %371 {offsets = [0, 0], sizes = [16, 48], strides = [1, 1]} : vector<16x384xf32> to vector<16x48xf32>
    %373 = vector.extract_strided_slice %371 {offsets = [0, 128], sizes = [16, 48], strides = [1, 1]} : vector<16x384xf32> to vector<16x48xf32>
    %374 = vector.extract_strided_slice %371 {offsets = [0, 256], sizes = [16, 48], strides = [1, 1]} : vector<16x384xf32> to vector<16x48xf32>
    %375 = vector.extract_strided_slice %372 {offsets = [0, 0], sizes = [16, 12], strides = [1, 1]} : vector<16x48xf32> to vector<16x12xf32>
    %376 = vector.extract_strided_slice %373 {offsets = [0, 0], sizes = [16, 12], strides = [1, 1]} : vector<16x48xf32> to vector<16x12xf32>
    %377 = vector.extract_strided_slice %374 {offsets = [0, 0], sizes = [16, 12], strides = [1, 1]} : vector<16x48xf32> to vector<16x12xf32>
    %cst_113 = arith.constant dense<0.000000e+00> : vector<16x16xf32>
    %378 = tpu.matmul %375, %376, %cst_113 {dimension_numbers = #tpu.dot_dimension_numbers<[1], [1], [0], [0], [0, 0, 1, 0], [], []>} : vector<16x12xf32>, vector<16x12xf32>, vector<16x16xf32> -> vector<16x16xf32>
    %379 = arith.addf %378, %30 : vector<16x16xf32>
    %cst_114 = arith.constant dense<0xFF800000> : vector<16xf32>
    %380 = vector.multi_reduction <maximumf>, %379, %cst_114 [1] : vector<16x16xf32> to vector<16xf32>
    %381 = vector.shape_cast %380 : vector<16xf32> to vector<16x1xf32>
    %382 = vector.broadcast %381 : vector<16x1xf32> to vector<16x16xf32>
    %383 = arith.subf %379, %382 : vector<16x16xf32>
    %384 = math.exp %383 : vector<16x16xf32>
    %cst_115 = arith.constant dense<0.000000e+00> : vector<16xf32>
    %385 = vector.multi_reduction <add>, %384, %cst_115 [1] : vector<16x16xf32> to vector<16xf32>
    %386 = vector.shape_cast %385 : vector<16xf32> to vector<16x1xf32>
    %387 = tpu.reciprocal %386 {approx = true} : vector<16x1xf32> -> vector<16x1xf32>
    %388 = vector.broadcast %387 : vector<16x1xf32> to vector<16x16xf32>
    %389 = arith.mulf %384, %388 : vector<16x16xf32>
    %cst_116 = arith.constant dense<0.000000e+00> : vector<16x12xf32>
    %390 = tpu.matmul %389, %377, %cst_116 {dimension_numbers = #tpu.dot_dimension_numbers<[1], [0], [0], [1], [0, 0, 1, 1], [], []>} : vector<16x16xf32>, vector<16x12xf32>, vector<16x12xf32> -> vector<16x12xf32>
    %391 = vector.extract_strided_slice %372 {offsets = [0, 12], sizes = [16, 12], strides = [1, 1]} : vector<16x48xf32> to vector<16x12xf32>
    %392 = vector.extract_strided_slice %373 {offsets = [0, 12], sizes = [16, 12], strides = [1, 1]} : vector<16x48xf32> to vector<16x12xf32>
    %393 = vector.extract_strided_slice %374 {offsets = [0, 12], sizes = [16, 12], strides = [1, 1]} : vector<16x48xf32> to vector<16x12xf32>
    %cst_117 = arith.constant dense<0.000000e+00> : vector<16x16xf32>
    %394 = tpu.matmul %391, %392, %cst_117 {dimension_numbers = #tpu.dot_dimension_numbers<[1], [1], [0], [0], [0, 0, 1, 0], [], []>} : vector<16x12xf32>, vector<16x12xf32>, vector<16x16xf32> -> vector<16x16xf32>
    %395 = arith.addf %394, %30 : vector<16x16xf32>
    %cst_118 = arith.constant dense<0xFF800000> : vector<16xf32>
    %396 = vector.multi_reduction <maximumf>, %395, %cst_118 [1] : vector<16x16xf32> to vector<16xf32>
    %397 = vector.shape_cast %396 : vector<16xf32> to vector<16x1xf32>
    %398 = vector.broadcast %397 : vector<16x1xf32> to vector<16x16xf32>
    %399 = arith.subf %395, %398 : vector<16x16xf32>
    %400 = math.exp %399 : vector<16x16xf32>
    %cst_119 = arith.constant dense<0.000000e+00> : vector<16xf32>
    %401 = vector.multi_reduction <add>, %400, %cst_119 [1] : vector<16x16xf32> to vector<16xf32>
    %402 = vector.shape_cast %401 : vector<16xf32> to vector<16x1xf32>
    %403 = tpu.reciprocal %402 {approx = true} : vector<16x1xf32> -> vector<16x1xf32>
    %404 = vector.broadcast %403 : vector<16x1xf32> to vector<16x16xf32>
    %405 = arith.mulf %400, %404 : vector<16x16xf32>
    %cst_120 = arith.constant dense<0.000000e+00> : vector<16x12xf32>
    %406 = tpu.matmul %405, %393, %cst_120 {dimension_numbers = #tpu.dot_dimension_numbers<[1], [0], [0], [1], [0, 0, 1, 1], [], []>} : vector<16x16xf32>, vector<16x12xf32>, vector<16x12xf32> -> vector<16x12xf32>
    %407 = vector.extract_strided_slice %372 {offsets = [0, 24], sizes = [16, 12], strides = [1, 1]} : vector<16x48xf32> to vector<16x12xf32>
    %408 = vector.extract_strided_slice %373 {offsets = [0, 24], sizes = [16, 12], strides = [1, 1]} : vector<16x48xf32> to vector<16x12xf32>
    %409 = vector.extract_strided_slice %374 {offsets = [0, 24], sizes = [16, 12], strides = [1, 1]} : vector<16x48xf32> to vector<16x12xf32>
    %cst_121 = arith.constant dense<0.000000e+00> : vector<16x16xf32>
    %410 = tpu.matmul %407, %408, %cst_121 {dimension_numbers = #tpu.dot_dimension_numbers<[1], [1], [0], [0], [0, 0, 1, 0], [], []>} : vector<16x12xf32>, vector<16x12xf32>, vector<16x16xf32> -> vector<16x16xf32>
    %411 = arith.addf %410, %30 : vector<16x16xf32>
    %cst_122 = arith.constant dense<0xFF800000> : vector<16xf32>
    %412 = vector.multi_reduction <maximumf>, %411, %cst_122 [1] : vector<16x16xf32> to vector<16xf32>
    %413 = vector.shape_cast %412 : vector<16xf32> to vector<16x1xf32>
    %414 = vector.broadcast %413 : vector<16x1xf32> to vector<16x16xf32>
    %415 = arith.subf %411, %414 : vector<16x16xf32>
    %416 = math.exp %415 : vector<16x16xf32>
    %cst_123 = arith.constant dense<0.000000e+00> : vector<16xf32>
    %417 = vector.multi_reduction <add>, %416, %cst_123 [1] : vector<16x16xf32> to vector<16xf32>
    %418 = vector.shape_cast %417 : vector<16xf32> to vector<16x1xf32>
    %419 = tpu.reciprocal %418 {approx = true} : vector<16x1xf32> -> vector<16x1xf32>
    %420 = vector.broadcast %419 : vector<16x1xf32> to vector<16x16xf32>
    %421 = arith.mulf %416, %420 : vector<16x16xf32>
    %cst_124 = arith.constant dense<0.000000e+00> : vector<16x12xf32>
    %422 = tpu.matmul %421, %409, %cst_124 {dimension_numbers = #tpu.dot_dimension_numbers<[1], [0], [0], [1], [0, 0, 1, 1], [], []>} : vector<16x16xf32>, vector<16x12xf32>, vector<16x12xf32> -> vector<16x12xf32>
    %423 = vector.extract_strided_slice %372 {offsets = [0, 36], sizes = [16, 12], strides = [1, 1]} : vector<16x48xf32> to vector<16x12xf32>
    %424 = vector.extract_strided_slice %373 {offsets = [0, 36], sizes = [16, 12], strides = [1, 1]} : vector<16x48xf32> to vector<16x12xf32>
    %425 = vector.extract_strided_slice %374 {offsets = [0, 36], sizes = [16, 12], strides = [1, 1]} : vector<16x48xf32> to vector<16x12xf32>
    %cst_125 = arith.constant dense<0.000000e+00> : vector<16x16xf32>
    %426 = tpu.matmul %423, %424, %cst_125 {dimension_numbers = #tpu.dot_dimension_numbers<[1], [1], [0], [0], [0, 0, 1, 0], [], []>} : vector<16x12xf32>, vector<16x12xf32>, vector<16x16xf32> -> vector<16x16xf32>
    %427 = arith.addf %426, %30 : vector<16x16xf32>
    %cst_126 = arith.constant dense<0xFF800000> : vector<16xf32>
    %428 = vector.multi_reduction <maximumf>, %427, %cst_126 [1] : vector<16x16xf32> to vector<16xf32>
    %429 = vector.shape_cast %428 : vector<16xf32> to vector<16x1xf32>
    %430 = vector.broadcast %429 : vector<16x1xf32> to vector<16x16xf32>
    %431 = arith.subf %427, %430 : vector<16x16xf32>
    %432 = math.exp %431 : vector<16x16xf32>
    %cst_127 = arith.constant dense<0.000000e+00> : vector<16xf32>
    %433 = vector.multi_reduction <add>, %432, %cst_127 [1] : vector<16x16xf32> to vector<16xf32>
    %434 = vector.shape_cast %433 : vector<16xf32> to vector<16x1xf32>
    %435 = tpu.reciprocal %434 {approx = true} : vector<16x1xf32> -> vector<16x1xf32>
    %436 = vector.broadcast %435 : vector<16x1xf32> to vector<16x16xf32>
    %437 = arith.mulf %432, %436 : vector<16x16xf32>
    %cst_128 = arith.constant dense<0.000000e+00> : vector<16x12xf32>
    %438 = tpu.matmul %437, %425, %cst_128 {dimension_numbers = #tpu.dot_dimension_numbers<[1], [0], [0], [1], [0, 0, 1, 1], [], []>} : vector<16x16xf32>, vector<16x12xf32>, vector<16x12xf32> -> vector<16x12xf32>
    %439 = tpu.concatenate %390, %406, %422, %438 in 1 : vector<16x12xf32>, vector<16x12xf32>, vector<16x12xf32>, vector<16x12xf32> -> vector<16x48xf32>
    %c2_129 = arith.constant 2 : index
    %c0_130 = arith.constant 0 : index
    %c0_131 = arith.constant 0 : index
    %440 = vector.load %arg3[%c2_129, %c0_130, %c0_131] : memref<4x48x48xf32, #tpu.memory_space<vmem>>, vector<1x48x48xf32>
    %441 = vector.shape_cast %440 : vector<1x48x48xf32> to vector<48x48xf32>
    %cst_132 = arith.constant dense<0.000000e+00> : vector<16x48xf32>
    %442 = tpu.matmul %439, %441, %cst_132 {dimension_numbers = #tpu.dot_dimension_numbers<[1], [0], [0], [1], [0, 0, 1, 1], [], []>} : vector<16x48xf32>, vector<48x48xf32>, vector<16x48xf32> -> vector<16x48xf32>
    %443 = vector.broadcast %338 : vector<1x48xf32> to vector<16x48xf32>
    %444 = arith.addf %442, %443 : vector<16x48xf32>
    %445 = arith.addf %334, %444 : vector<16x48xf32>
    %cst_133 = arith.constant dense<0.000000e+00> : vector<16xf32>
    %446 = vector.multi_reduction <add>, %445, %cst_133 [1] : vector<16x48xf32> to vector<16xf32>
    %447 = vector.shape_cast %446 : vector<16xf32> to vector<16x1xf32>
    %cst_134 = arith.constant 4.800000e+01 : f32
    %448 = vector.broadcast %cst_134 : f32 to vector<16x1xf32>
    %449 = arith.divf %447, %448 : vector<16x1xf32>
    %450 = vector.broadcast %449 : vector<16x1xf32> to vector<16x48xf32>
    %451 = arith.subf %445, %450 : vector<16x48xf32>
    %452 = arith.mulf %451, %451 : vector<16x48xf32>
    %cst_135 = arith.constant dense<0.000000e+00> : vector<16xf32>
    %453 = vector.multi_reduction <add>, %452, %cst_135 [1] : vector<16x48xf32> to vector<16xf32>
    %454 = vector.shape_cast %453 : vector<16xf32> to vector<16x1xf32>
    %cst_136 = arith.constant 4.800000e+01 : f32
    %455 = vector.broadcast %cst_136 : f32 to vector<16x1xf32>
    %456 = arith.divf %454, %455 : vector<16x1xf32>
    %457 = vector.broadcast %449 : vector<16x1xf32> to vector<16x48xf32>
    %458 = arith.subf %445, %457 : vector<16x48xf32>
    %cst_137 = arith.constant 9.99999974E-6 : f32
    %459 = vector.broadcast %cst_137 : f32 to vector<16x1xf32>
    %460 = arith.addf %456, %459 : vector<16x1xf32>
    %461 = math.rsqrt %460 : vector<16x1xf32>
    %462 = vector.broadcast %461 : vector<16x1xf32> to vector<16x48xf32>
    %463 = arith.mulf %458, %462 : vector<16x48xf32>
    %464 = vector.broadcast %343 : vector<1x48xf32> to vector<16x48xf32>
    %465 = arith.mulf %463, %464 : vector<16x48xf32>
    %466 = vector.broadcast %344 : vector<1x48xf32> to vector<16x48xf32>
    %467 = arith.addf %465, %466 : vector<16x48xf32>
    %c2_138 = arith.constant 2 : index
    %c0_139 = arith.constant 0 : index
    %c0_140 = arith.constant 0 : index
    %468 = vector.load %arg4[%c2_138, %c0_139, %c0_140] : memref<4x48x192xf32, #tpu.memory_space<vmem>>, vector<1x48x192xf32>
    %469 = vector.shape_cast %468 : vector<1x48x192xf32> to vector<48x192xf32>
    %cst_141 = arith.constant dense<0.000000e+00> : vector<16x192xf32>
    %470 = tpu.matmul %467, %469, %cst_141 {dimension_numbers = #tpu.dot_dimension_numbers<[1], [0], [0], [1], [0, 0, 1, 1], [], []>} : vector<16x48xf32>, vector<48x192xf32>, vector<16x192xf32> -> vector<16x192xf32>
    %471 = vector.broadcast %339 : vector<1x192xf32> to vector<16x192xf32>
    %472 = arith.addf %470, %471 : vector<16x192xf32>
    %cst_142 = arith.constant 5.000000e-01 : f32
    %473 = vector.broadcast %cst_142 : f32 to vector<16x192xf32>
    %474 = arith.mulf %473, %472 : vector<16x192xf32>
    %cst_143 = arith.constant 0.707106769 : f32
    %475 = vector.broadcast %cst_143 : f32 to vector<16x192xf32>
    %476 = arith.mulf %472, %475 : vector<16x192xf32>
    %477 = math.erf %476 : vector<16x192xf32>
    %cst_144 = arith.constant 1.000000e+00 : f32
    %478 = vector.broadcast %cst_144 : f32 to vector<16x192xf32>
    %479 = arith.addf %478, %477 : vector<16x192xf32>
    %480 = arith.mulf %474, %479 : vector<16x192xf32>
    %c2_145 = arith.constant 2 : index
    %c0_146 = arith.constant 0 : index
    %c0_147 = arith.constant 0 : index
    %481 = vector.load %arg5[%c2_145, %c0_146, %c0_147] : memref<4x192x48xf32, #tpu.memory_space<vmem>>, vector<1x192x48xf32>
    %482 = vector.shape_cast %481 : vector<1x192x48xf32> to vector<192x48xf32>
    %cst_148 = arith.constant dense<0.000000e+00> : vector<16x48xf32>
    %483 = tpu.matmul %480, %482, %cst_148 {dimension_numbers = #tpu.dot_dimension_numbers<[1], [0], [0], [1], [0, 0, 1, 1], [], []>} : vector<16x192xf32>, vector<192x48xf32>, vector<16x48xf32> -> vector<16x48xf32>
    %484 = vector.broadcast %340 : vector<1x48xf32> to vector<16x48xf32>
    %485 = arith.addf %483, %484 : vector<16x48xf32>
    %486 = arith.addf %445, %485 : vector<16x48xf32>
    %c3 = arith.constant 3 : index
    %c0_149 = arith.constant 0 : index
    %c0_150 = arith.constant 0 : index
    %487 = vector.load %arg1[%c3, %c0_149, %c0_150] : memref<4x8x384xf32, #tpu.memory_space<vmem>>, vector<1x8x384xf32>
    %488 = vector.shape_cast %487 : vector<1x8x384xf32> to vector<8x384xf32>
    %489 = vector.extract_strided_slice %488 {offsets = [0, 0], sizes = [1, 384], strides = [1, 1]} : vector<8x384xf32> to vector<1x384xf32>
    %490 = vector.extract_strided_slice %488 {offsets = [1, 0], sizes = [1, 48], strides = [1, 1]} : vector<8x384xf32> to vector<1x48xf32>
    %491 = vector.extract_strided_slice %488 {offsets = [2, 0], sizes = [1, 192], strides = [1, 1]} : vector<8x384xf32> to vector<1x192xf32>
    %492 = vector.extract_strided_slice %488 {offsets = [3, 0], sizes = [1, 48], strides = [1, 1]} : vector<8x384xf32> to vector<1x48xf32>
    %493 = vector.extract_strided_slice %488 {offsets = [4, 0], sizes = [1, 48], strides = [1, 1]} : vector<8x384xf32> to vector<1x48xf32>
    %494 = vector.extract_strided_slice %488 {offsets = [5, 0], sizes = [1, 48], strides = [1, 1]} : vector<8x384xf32> to vector<1x48xf32>
    %495 = vector.extract_strided_slice %488 {offsets = [6, 0], sizes = [1, 48], strides = [1, 1]} : vector<8x384xf32> to vector<1x48xf32>
    %496 = vector.extract_strided_slice %488 {offsets = [7, 0], sizes = [1, 48], strides = [1, 1]} : vector<8x384xf32> to vector<1x48xf32>
    %cst_151 = arith.constant dense<0.000000e+00> : vector<16xf32>
    %497 = vector.multi_reduction <add>, %486, %cst_151 [1] : vector<16x48xf32> to vector<16xf32>
    %498 = vector.shape_cast %497 : vector<16xf32> to vector<16x1xf32>
    %cst_152 = arith.constant 4.800000e+01 : f32
    %499 = vector.broadcast %cst_152 : f32 to vector<16x1xf32>
    %500 = arith.divf %498, %499 : vector<16x1xf32>
    %501 = vector.broadcast %500 : vector<16x1xf32> to vector<16x48xf32>
    %502 = arith.subf %486, %501 : vector<16x48xf32>
    %503 = arith.mulf %502, %502 : vector<16x48xf32>
    %cst_153 = arith.constant dense<0.000000e+00> : vector<16xf32>
    %504 = vector.multi_reduction <add>, %503, %cst_153 [1] : vector<16x48xf32> to vector<16xf32>
    %505 = vector.shape_cast %504 : vector<16xf32> to vector<16x1xf32>
    %cst_154 = arith.constant 4.800000e+01 : f32
    %506 = vector.broadcast %cst_154 : f32 to vector<16x1xf32>
    %507 = arith.divf %505, %506 : vector<16x1xf32>
    %508 = vector.broadcast %500 : vector<16x1xf32> to vector<16x48xf32>
    %509 = arith.subf %486, %508 : vector<16x48xf32>
    %cst_155 = arith.constant 9.99999974E-6 : f32
    %510 = vector.broadcast %cst_155 : f32 to vector<16x1xf32>
    %511 = arith.addf %507, %510 : vector<16x1xf32>
    %512 = math.rsqrt %511 : vector<16x1xf32>
    %513 = vector.broadcast %512 : vector<16x1xf32> to vector<16x48xf32>
    %514 = arith.mulf %509, %513 : vector<16x48xf32>
    %515 = vector.broadcast %493 : vector<1x48xf32> to vector<16x48xf32>
    %516 = arith.mulf %514, %515 : vector<16x48xf32>
    %517 = vector.broadcast %494 : vector<1x48xf32> to vector<16x48xf32>
    %518 = arith.addf %516, %517 : vector<16x48xf32>
    %c3_156 = arith.constant 3 : index
    %c0_157 = arith.constant 0 : index
    %c0_158 = arith.constant 0 : index
    %519 = vector.load %arg2[%c3_156, %c0_157, %c0_158] : memref<4x48x384xf32, #tpu.memory_space<vmem>>, vector<1x48x384xf32>
    %520 = vector.shape_cast %519 : vector<1x48x384xf32> to vector<48x384xf32>
    %cst_159 = arith.constant dense<0.000000e+00> : vector<16x384xf32>
    %521 = tpu.matmul %518, %520, %cst_159 {dimension_numbers = #tpu.dot_dimension_numbers<[1], [0], [0], [1], [0, 0, 1, 1], [], []>} : vector<16x48xf32>, vector<48x384xf32>, vector<16x384xf32> -> vector<16x384xf32>
    %522 = vector.broadcast %489 : vector<1x384xf32> to vector<16x384xf32>
    %523 = arith.addf %521, %522 : vector<16x384xf32>
    %524 = vector.extract_strided_slice %523 {offsets = [0, 0], sizes = [16, 48], strides = [1, 1]} : vector<16x384xf32> to vector<16x48xf32>
    %525 = vector.extract_strided_slice %523 {offsets = [0, 128], sizes = [16, 48], strides = [1, 1]} : vector<16x384xf32> to vector<16x48xf32>
    %526 = vector.extract_strided_slice %523 {offsets = [0, 256], sizes = [16, 48], strides = [1, 1]} : vector<16x384xf32> to vector<16x48xf32>
    %527 = vector.extract_strided_slice %524 {offsets = [0, 0], sizes = [16, 12], strides = [1, 1]} : vector<16x48xf32> to vector<16x12xf32>
    %528 = vector.extract_strided_slice %525 {offsets = [0, 0], sizes = [16, 12], strides = [1, 1]} : vector<16x48xf32> to vector<16x12xf32>
    %529 = vector.extract_strided_slice %526 {offsets = [0, 0], sizes = [16, 12], strides = [1, 1]} : vector<16x48xf32> to vector<16x12xf32>
    %cst_160 = arith.constant dense<0.000000e+00> : vector<16x16xf32>
    %530 = tpu.matmul %527, %528, %cst_160 {dimension_numbers = #tpu.dot_dimension_numbers<[1], [1], [0], [0], [0, 0, 1, 0], [], []>} : vector<16x12xf32>, vector<16x12xf32>, vector<16x16xf32> -> vector<16x16xf32>
    %531 = arith.addf %530, %30 : vector<16x16xf32>
    %cst_161 = arith.constant dense<0xFF800000> : vector<16xf32>
    %532 = vector.multi_reduction <maximumf>, %531, %cst_161 [1] : vector<16x16xf32> to vector<16xf32>
    %533 = vector.shape_cast %532 : vector<16xf32> to vector<16x1xf32>
    %534 = vector.broadcast %533 : vector<16x1xf32> to vector<16x16xf32>
    %535 = arith.subf %531, %534 : vector<16x16xf32>
    %536 = math.exp %535 : vector<16x16xf32>
    %cst_162 = arith.constant dense<0.000000e+00> : vector<16xf32>
    %537 = vector.multi_reduction <add>, %536, %cst_162 [1] : vector<16x16xf32> to vector<16xf32>
    %538 = vector.shape_cast %537 : vector<16xf32> to vector<16x1xf32>
    %539 = tpu.reciprocal %538 {approx = true} : vector<16x1xf32> -> vector<16x1xf32>
    %540 = vector.broadcast %539 : vector<16x1xf32> to vector<16x16xf32>
    %541 = arith.mulf %536, %540 : vector<16x16xf32>
    %cst_163 = arith.constant dense<0.000000e+00> : vector<16x12xf32>
    %542 = tpu.matmul %541, %529, %cst_163 {dimension_numbers = #tpu.dot_dimension_numbers<[1], [0], [0], [1], [0, 0, 1, 1], [], []>} : vector<16x16xf32>, vector<16x12xf32>, vector<16x12xf32> -> vector<16x12xf32>
    %543 = vector.extract_strided_slice %524 {offsets = [0, 12], sizes = [16, 12], strides = [1, 1]} : vector<16x48xf32> to vector<16x12xf32>
    %544 = vector.extract_strided_slice %525 {offsets = [0, 12], sizes = [16, 12], strides = [1, 1]} : vector<16x48xf32> to vector<16x12xf32>
    %545 = vector.extract_strided_slice %526 {offsets = [0, 12], sizes = [16, 12], strides = [1, 1]} : vector<16x48xf32> to vector<16x12xf32>
    %cst_164 = arith.constant dense<0.000000e+00> : vector<16x16xf32>
    %546 = tpu.matmul %543, %544, %cst_164 {dimension_numbers = #tpu.dot_dimension_numbers<[1], [1], [0], [0], [0, 0, 1, 0], [], []>} : vector<16x12xf32>, vector<16x12xf32>, vector<16x16xf32> -> vector<16x16xf32>
    %547 = arith.addf %546, %30 : vector<16x16xf32>
    %cst_165 = arith.constant dense<0xFF800000> : vector<16xf32>
    %548 = vector.multi_reduction <maximumf>, %547, %cst_165 [1] : vector<16x16xf32> to vector<16xf32>
    %549 = vector.shape_cast %548 : vector<16xf32> to vector<16x1xf32>
    %550 = vector.broadcast %549 : vector<16x1xf32> to vector<16x16xf32>
    %551 = arith.subf %547, %550 : vector<16x16xf32>
    %552 = math.exp %551 : vector<16x16xf32>
    %cst_166 = arith.constant dense<0.000000e+00> : vector<16xf32>
    %553 = vector.multi_reduction <add>, %552, %cst_166 [1] : vector<16x16xf32> to vector<16xf32>
    %554 = vector.shape_cast %553 : vector<16xf32> to vector<16x1xf32>
    %555 = tpu.reciprocal %554 {approx = true} : vector<16x1xf32> -> vector<16x1xf32>
    %556 = vector.broadcast %555 : vector<16x1xf32> to vector<16x16xf32>
    %557 = arith.mulf %552, %556 : vector<16x16xf32>
    %cst_167 = arith.constant dense<0.000000e+00> : vector<16x12xf32>
    %558 = tpu.matmul %557, %545, %cst_167 {dimension_numbers = #tpu.dot_dimension_numbers<[1], [0], [0], [1], [0, 0, 1, 1], [], []>} : vector<16x16xf32>, vector<16x12xf32>, vector<16x12xf32> -> vector<16x12xf32>
    %559 = vector.extract_strided_slice %524 {offsets = [0, 24], sizes = [16, 12], strides = [1, 1]} : vector<16x48xf32> to vector<16x12xf32>
    %560 = vector.extract_strided_slice %525 {offsets = [0, 24], sizes = [16, 12], strides = [1, 1]} : vector<16x48xf32> to vector<16x12xf32>
    %561 = vector.extract_strided_slice %526 {offsets = [0, 24], sizes = [16, 12], strides = [1, 1]} : vector<16x48xf32> to vector<16x12xf32>
    %cst_168 = arith.constant dense<0.000000e+00> : vector<16x16xf32>
    %562 = tpu.matmul %559, %560, %cst_168 {dimension_numbers = #tpu.dot_dimension_numbers<[1], [1], [0], [0], [0, 0, 1, 0], [], []>} : vector<16x12xf32>, vector<16x12xf32>, vector<16x16xf32> -> vector<16x16xf32>
    %563 = arith.addf %562, %30 : vector<16x16xf32>
    %cst_169 = arith.constant dense<0xFF800000> : vector<16xf32>
    %564 = vector.multi_reduction <maximumf>, %563, %cst_169 [1] : vector<16x16xf32> to vector<16xf32>
    %565 = vector.shape_cast %564 : vector<16xf32> to vector<16x1xf32>
    %566 = vector.broadcast %565 : vector<16x1xf32> to vector<16x16xf32>
    %567 = arith.subf %563, %566 : vector<16x16xf32>
    %568 = math.exp %567 : vector<16x16xf32>
    %cst_170 = arith.constant dense<0.000000e+00> : vector<16xf32>
    %569 = vector.multi_reduction <add>, %568, %cst_170 [1] : vector<16x16xf32> to vector<16xf32>
    %570 = vector.shape_cast %569 : vector<16xf32> to vector<16x1xf32>
    %571 = tpu.reciprocal %570 {approx = true} : vector<16x1xf32> -> vector<16x1xf32>
    %572 = vector.broadcast %571 : vector<16x1xf32> to vector<16x16xf32>
    %573 = arith.mulf %568, %572 : vector<16x16xf32>
    %cst_171 = arith.constant dense<0.000000e+00> : vector<16x12xf32>
    %574 = tpu.matmul %573, %561, %cst_171 {dimension_numbers = #tpu.dot_dimension_numbers<[1], [0], [0], [1], [0, 0, 1, 1], [], []>} : vector<16x16xf32>, vector<16x12xf32>, vector<16x12xf32> -> vector<16x12xf32>
    %575 = vector.extract_strided_slice %524 {offsets = [0, 36], sizes = [16, 12], strides = [1, 1]} : vector<16x48xf32> to vector<16x12xf32>
    %576 = vector.extract_strided_slice %525 {offsets = [0, 36], sizes = [16, 12], strides = [1, 1]} : vector<16x48xf32> to vector<16x12xf32>
    %577 = vector.extract_strided_slice %526 {offsets = [0, 36], sizes = [16, 12], strides = [1, 1]} : vector<16x48xf32> to vector<16x12xf32>
    %cst_172 = arith.constant dense<0.000000e+00> : vector<16x16xf32>
    %578 = tpu.matmul %575, %576, %cst_172 {dimension_numbers = #tpu.dot_dimension_numbers<[1], [1], [0], [0], [0, 0, 1, 0], [], []>} : vector<16x12xf32>, vector<16x12xf32>, vector<16x16xf32> -> vector<16x16xf32>
    %579 = arith.addf %578, %30 : vector<16x16xf32>
    %cst_173 = arith.constant dense<0xFF800000> : vector<16xf32>
    %580 = vector.multi_reduction <maximumf>, %579, %cst_173 [1] : vector<16x16xf32> to vector<16xf32>
    %581 = vector.shape_cast %580 : vector<16xf32> to vector<16x1xf32>
    %582 = vector.broadcast %581 : vector<16x1xf32> to vector<16x16xf32>
    %583 = arith.subf %579, %582 : vector<16x16xf32>
    %584 = math.exp %583 : vector<16x16xf32>
    %cst_174 = arith.constant dense<0.000000e+00> : vector<16xf32>
    %585 = vector.multi_reduction <add>, %584, %cst_174 [1] : vector<16x16xf32> to vector<16xf32>
    %586 = vector.shape_cast %585 : vector<16xf32> to vector<16x1xf32>
    %587 = tpu.reciprocal %586 {approx = true} : vector<16x1xf32> -> vector<16x1xf32>
    %588 = vector.broadcast %587 : vector<16x1xf32> to vector<16x16xf32>
    %589 = arith.mulf %584, %588 : vector<16x16xf32>
    %cst_175 = arith.constant dense<0.000000e+00> : vector<16x12xf32>
    %590 = tpu.matmul %589, %577, %cst_175 {dimension_numbers = #tpu.dot_dimension_numbers<[1], [0], [0], [1], [0, 0, 1, 1], [], []>} : vector<16x16xf32>, vector<16x12xf32>, vector<16x12xf32> -> vector<16x12xf32>
    %591 = tpu.concatenate %542, %558, %574, %590 in 1 : vector<16x12xf32>, vector<16x12xf32>, vector<16x12xf32>, vector<16x12xf32> -> vector<16x48xf32>
    %c3_176 = arith.constant 3 : index
    %c0_177 = arith.constant 0 : index
    %c0_178 = arith.constant 0 : index
    %592 = vector.load %arg3[%c3_176, %c0_177, %c0_178] : memref<4x48x48xf32, #tpu.memory_space<vmem>>, vector<1x48x48xf32>
    %593 = vector.shape_cast %592 : vector<1x48x48xf32> to vector<48x48xf32>
    %cst_179 = arith.constant dense<0.000000e+00> : vector<16x48xf32>
    %594 = tpu.matmul %591, %593, %cst_179 {dimension_numbers = #tpu.dot_dimension_numbers<[1], [0], [0], [1], [0, 0, 1, 1], [], []>} : vector<16x48xf32>, vector<48x48xf32>, vector<16x48xf32> -> vector<16x48xf32>
    %595 = vector.broadcast %490 : vector<1x48xf32> to vector<16x48xf32>
    %596 = arith.addf %594, %595 : vector<16x48xf32>
    %597 = arith.addf %486, %596 : vector<16x48xf32>
    %cst_180 = arith.constant dense<0.000000e+00> : vector<16xf32>
    %598 = vector.multi_reduction <add>, %597, %cst_180 [1] : vector<16x48xf32> to vector<16xf32>
    %599 = vector.shape_cast %598 : vector<16xf32> to vector<16x1xf32>
    %cst_181 = arith.constant 4.800000e+01 : f32
    %600 = vector.broadcast %cst_181 : f32 to vector<16x1xf32>
    %601 = arith.divf %599, %600 : vector<16x1xf32>
    %602 = vector.broadcast %601 : vector<16x1xf32> to vector<16x48xf32>
    %603 = arith.subf %597, %602 : vector<16x48xf32>
    %604 = arith.mulf %603, %603 : vector<16x48xf32>
    %cst_182 = arith.constant dense<0.000000e+00> : vector<16xf32>
    %605 = vector.multi_reduction <add>, %604, %cst_182 [1] : vector<16x48xf32> to vector<16xf32>
    %606 = vector.shape_cast %605 : vector<16xf32> to vector<16x1xf32>
    %cst_183 = arith.constant 4.800000e+01 : f32
    %607 = vector.broadcast %cst_183 : f32 to vector<16x1xf32>
    %608 = arith.divf %606, %607 : vector<16x1xf32>
    %609 = vector.broadcast %601 : vector<16x1xf32> to vector<16x48xf32>
    %610 = arith.subf %597, %609 : vector<16x48xf32>
    %cst_184 = arith.constant 9.99999974E-6 : f32
    %611 = vector.broadcast %cst_184 : f32 to vector<16x1xf32>
    %612 = arith.addf %608, %611 : vector<16x1xf32>
    %613 = math.rsqrt %612 : vector<16x1xf32>
    %614 = vector.broadcast %613 : vector<16x1xf32> to vector<16x48xf32>
    %615 = arith.mulf %610, %614 : vector<16x48xf32>
    %616 = vector.broadcast %495 : vector<1x48xf32> to vector<16x48xf32>
    %617 = arith.mulf %615, %616 : vector<16x48xf32>
    %618 = vector.broadcast %496 : vector<1x48xf32> to vector<16x48xf32>
    %619 = arith.addf %617, %618 : vector<16x48xf32>
    %c3_185 = arith.constant 3 : index
    %c0_186 = arith.constant 0 : index
    %c0_187 = arith.constant 0 : index
    %620 = vector.load %arg4[%c3_185, %c0_186, %c0_187] : memref<4x48x192xf32, #tpu.memory_space<vmem>>, vector<1x48x192xf32>
    %621 = vector.shape_cast %620 : vector<1x48x192xf32> to vector<48x192xf32>
    %cst_188 = arith.constant dense<0.000000e+00> : vector<16x192xf32>
    %622 = tpu.matmul %619, %621, %cst_188 {dimension_numbers = #tpu.dot_dimension_numbers<[1], [0], [0], [1], [0, 0, 1, 1], [], []>} : vector<16x48xf32>, vector<48x192xf32>, vector<16x192xf32> -> vector<16x192xf32>
    %623 = vector.broadcast %491 : vector<1x192xf32> to vector<16x192xf32>
    %624 = arith.addf %622, %623 : vector<16x192xf32>
    %cst_189 = arith.constant 5.000000e-01 : f32
    %625 = vector.broadcast %cst_189 : f32 to vector<16x192xf32>
    %626 = arith.mulf %625, %624 : vector<16x192xf32>
    %cst_190 = arith.constant 0.707106769 : f32
    %627 = vector.broadcast %cst_190 : f32 to vector<16x192xf32>
    %628 = arith.mulf %624, %627 : vector<16x192xf32>
    %629 = math.erf %628 : vector<16x192xf32>
    %cst_191 = arith.constant 1.000000e+00 : f32
    %630 = vector.broadcast %cst_191 : f32 to vector<16x192xf32>
    %631 = arith.addf %630, %629 : vector<16x192xf32>
    %632 = arith.mulf %626, %631 : vector<16x192xf32>
    %c3_192 = arith.constant 3 : index
    %c0_193 = arith.constant 0 : index
    %c0_194 = arith.constant 0 : index
    %633 = vector.load %arg5[%c3_192, %c0_193, %c0_194] : memref<4x192x48xf32, #tpu.memory_space<vmem>>, vector<1x192x48xf32>
    %634 = vector.shape_cast %633 : vector<1x192x48xf32> to vector<192x48xf32>
    %cst_195 = arith.constant dense<0.000000e+00> : vector<16x48xf32>
    %635 = tpu.matmul %632, %634, %cst_195 {dimension_numbers = #tpu.dot_dimension_numbers<[1], [0], [0], [1], [0, 0, 1, 1], [], []>} : vector<16x192xf32>, vector<192x48xf32>, vector<16x48xf32> -> vector<16x48xf32>
    %636 = vector.broadcast %492 : vector<1x48xf32> to vector<16x48xf32>
    %637 = arith.addf %635, %636 : vector<16x48xf32>
    %638 = arith.addf %597, %637 : vector<16x48xf32>
    %c0_196 = arith.constant 0 : index
    %c0_197 = arith.constant 0 : index
    %639 = vector.load %arg6[%c0_196, %c0_197] : memref<16x48xf32, #tpu.memory_space<vmem>>, vector<16x48xf32>
    tpu.vector_store %arg6[%c0_196, %c0_197], %638 {strides = array<i32>} : memref<16x48xf32, #tpu.memory_space<vmem>>, vector<16x48xf32>,
    return
  }
}

</mosaic_0001>

<llo_original>
// kernel: tpu_custom_call.1
$region0: #{tpu_custom_call.1}
  #allocation0 [shape = 'u32[]', space=smem, size = 0x4, offset = 0x4, fixed_abs, tag = 'smem constant byte address 0x4 - core index']
  #allocation1 [shape = 'u32[144,128]{1,0:T(1,128)}', space=vmem, size = 0x12000, scoped, tag = 'internal scratch']
  %s0 = inlined_call_operand.hbm [shape: f32[16,48], index: 0, kind: input, shape index: {}]
  %s1 = inlined_call_operand.hbm [shape: f32[4,8,384], index: 1, kind: input, shape index: {}]
  %s2 = inlined_call_operand.vmem [shape: f32[4,48,384], index: 2, kind: input, shape index: {}]
  %s3 = inlined_call_operand.vmem [shape: f32[4,48,48], index: 3, kind: input, shape index: {}]
  %s4 = inlined_call_operand.vmem [shape: f32[4,48,192], index: 4, kind: input, shape index: {}]
  %s5 = inlined_call_operand.vmem [shape: f32[4,192,48], index: 5, kind: input, shape index: {}]
  %s6 = inlined_call_operand.hbm [shape: f32[16,48], index: 6, kind: output, shape index: {}]
  %s7 = sld [smem:[#allocation0]]
  $region42: #{tpu_custom_call.1} parent=0
    _
  %s9 = ssub.s32 1, %s7
  %s10 = scalar_select 0, %s9, %s7
  $region1: #{tpu_custom_call.1} parent=0
    #allocation2 [shape = 'u8[8192]{0}', space=vmem, size = 0x2000, scoped, tag = 'input window, operand 0, single buffered']
    #allocation3 [shape = 's32[1]{0}', space=sflag, size = 0x4, scoped, tag = 'scoped memory for tpu_custom_call.1']
    #allocation4 [shape = 's32[1]{0}', space=sflag, size = 0x4, scoped, tag = 'scoped memory for tpu_custom_call.1']
    #allocation5 [shape = 'u8[49152]{0}', space=vmem, size = 0xc000, scoped, tag = 'input window, operand 1, single buffered']
    #allocation6 [shape = 's32[1]{0}', space=sflag, size = 0x4, scoped, tag = 'scoped memory for tpu_custom_call.1']
    #allocation7 [shape = 'u8[8192]{0}', space=vmem, size = 0x2000, scoped, tag = 'output window, operand 0, single buffered']
    %11 = vsyncpa [#allocation3], 0
    %12 = vsyncpa [#allocation6], 0
    %13 = vsyncpa [#allocation4], 0
    // Predicated region
    $region2: #{tpu_custom_call.1} parent=1 // pred_check
      _
    $region3: #{tpu_custom_call.1} parent=1 // pred_check_branch
      %15 = sbr.rel (0) target = $region5
    $region4: #{tpu_custom_call.1} parent=1 // pred_region
      %s17 = ssub.s32 256, 256
      %18 = vsyncadd [#allocation3], %s17
      %s19 = sshll.u32 [#allocation2], 4
      %s20 = int_to_ptr.vmem [resolvable:$true] %s19
      %25 = dma.hbm_to_vmem [thread:$0]  %s0, 256, %s20, [#allocation3], 128, 128, 8
    $region5: #{tpu_custom_call.1} parent=1 // pred_fallthru
      _
    // Predicated region
    $region6: #{tpu_custom_call.1} parent=1 // pred_check
      _
    $region7: #{tpu_custom_call.1} parent=1 // pred_check_branch
      %27 = sbr.rel (0) target = $region9
    $region8: #{tpu_custom_call.1} parent=1 // pred_region
      %s29 = ssub.s32 1536, 1536
      %30 = vsyncadd [#allocation6], %s29
      %s31 = sshll.u32 [#allocation5], 4
      %s32 = int_to_ptr.vmem [resolvable:$true] %s31
      %37 = dma.hbm_to_vmem [thread:$0]  %s1, 1536, %s32, [#allocation6], 384, 384, 24
    $region9: #{tpu_custom_call.1} parent=1 // pred_fallthru
      _
    // Predicated region
    $region10: #{tpu_custom_call.1} parent=1 // pred_check
      _
    $region11: #{tpu_custom_call.1} parent=1 // pred_check_branch
      %39 = sbr.rel (0) target = $region13
    $region12: #{tpu_custom_call.1} parent=1 // pred_region
      _
    $region13: #{tpu_custom_call.1} parent=1 // pred_fallthru
      _
    // Predicated region
    $region14: #{tpu_custom_call.1} parent=1 // pred_check
      _
    $region15: #{tpu_custom_call.1} parent=1 // pred_check_branch
      %41 = sbr.rel (0) target = $region17
    $region16: #{tpu_custom_call.1} parent=1 // pred_region
      _
    $region17: #{tpu_custom_call.1} parent=1 // pred_fallthru
      _
    // Predicated region
    $region18: #{tpu_custom_call.1} parent=1 // pred_check
      _
    $region19: #{tpu_custom_call.1} parent=1 // pred_check_branch
      %43 = sbr.rel (0) target = $region21
    $region20: #{tpu_custom_call.1} parent=1 // pred_region
      _
    $region21: #{tpu_custom_call.1} parent=1 // pred_fallthru
      _
    // Predicated region
    $region22: #{tpu_custom_call.1} parent=1 // pred_check
      _
    $region23: #{tpu_custom_call.1} parent=1 // pred_check_branch
      %45 = sbr.rel (0) target = $region25
    $region24: #{tpu_custom_call.1} parent=1 // pred_region
      _
    $region25: #{tpu_custom_call.1} parent=1 // pred_fallthru
      _
    // Predicated region
    $region26: #{tpu_custom_call.1} parent=1 // pred_check
      _
    $region27: #{tpu_custom_call.1} parent=1 // pred_check_branch
      %47 = sbr.rel (0) target = $region29
    $region28: #{tpu_custom_call.1} parent=1 // pred_region
      %48 = dma.done [#allocation3], 256
    $region29: #{tpu_custom_call.1} parent=1 // pred_fallthru
      _
    // Predicated region
    $region30: #{tpu_custom_call.1} parent=1 // pred_check
      _
    $region31: #{tpu_custom_call.1} parent=1 // pred_check_branch
      %50 = sbr.rel (0) target = $region33
    $region32: #{tpu_custom_call.1} parent=1 // pred_region
      %51 = dma.done [#allocation6], 1536
    $region33: #{tpu_custom_call.1} parent=1 // pred_fallthru
      _
    %v52 = vld [vmem:[#allocation2] sm:$0xff]
    %v53 = vld [vmem:[#allocation2 + $0x8] sm:$0xff]
    %v54 = vlaneseq
    %v55 = vshrl.u32 %v54, 7
    %v56 = vadd.s32 %v55, 8
    %v57 = vlaneseq
    %v58 = vand.u32 %v57, 127
    %vm59 = vcmp.ge.s32.totalorder %v55, 0
    %vm60 = vcmp.ge.s32.totalorder %v56, 0
    %vm61 = vcmp.lt.s32.totalorder %v55, 8
    %vm62 = vcmp.lt.s32.totalorder %v56, 8
    %vm63 = vmand %vm59, %vm61
    %vm64 = vmand %vm60, %vm62
    %vm65 = vcmp.ge.s32.totalorder %v58, 0
    %vm66 = vmand %vm63, %vm65
    %vm67 = vmand %vm64, %vm65
    %vm68 = vcmp.lt.s32.totalorder %v58, 8
    %vm69 = vmand %vm66, %vm68
    %vm70 = vmand %vm67, %vm68
    %vm71 = vcmp.ge.s32.totalorder %v55, 8
    %vm72 = vcmp.ge.s32.totalorder %v56, 8
    %vm73 = vcmp.lt.s32.totalorder %v55, 16
    %vm74 = vcmp.lt.s32.totalorder %v56, 16
    %vm75 = vmand %vm71, %vm73
    %vm76 = vmand %vm72, %vm74
    %vm77 = vcmp.ge.s32.totalorder %v58, 8
    %vm78 = vmand %vm75, %vm77
    %vm79 = vmand %vm76, %vm77
    %vm80 = vcmp.lt.s32.totalorder %v58, 16
    %vm81 = vmand %vm78, %vm80
    %vm82 = vmand %vm79, %vm80
    %vm83 = vmor %vm69, %vm81
    %vm84 = vmor %vm70, %vm82
    %v85 = vsel %vm83, 0.0, -1e+30
    %v86 = vsel %vm84, 0.0, -1e+30
    %v87 = vld [vmem:[#allocation5] sm:$0xff]
    %v88 = vld [vmem:[#allocation5 + $0x8] sm:$0xff]
    %v89 = vld [vmem:[#allocation5 + $0x10] sm:$0xff]
    %vm90 = vcmask 392192
    %v91 = vsel %vm90, %v52, 0.0
    %92 = vadd.xlane.f32.xlu0 %v91
    %v93 = vpop.xlane.xlu0 %92
    %v94 = vsel %vm90, %v53, 0.0
    %95 = vadd.xlane.f32.xlu0 %v94
    %v96 = vpop.xlane.xlu0 %95
    %v97 = vrcp.pop 48.0
    %v98 = vmul.f32 %v93, %v97
    %v99 = vmul.f32 %v96, %v97
    %v100 = vsub.f32 %v52, %v98
    %v101 = vsub.f32 %v53, %v99
    %v102 = vmul.f32 %v100, %v100
    %v103 = vmul.f32 %v101, %v101
    %v104 = vsel %vm90, %v102, 0.0
    %105 = vadd.xlane.f32.xlu0 %v104
    %v106 = vpop.xlane.xlu0 %105
    %v107 = vsel %vm90, %v103, 0.0
    %108 = vadd.xlane.f32.xlu0 %v107
    %v109 = vpop.xlane.xlu0 %108
    %v110 = vmul.f32 %v106, %v97
    %v111 = vmul.f32 %v109, %v97
    %v112 = vadd.f32 %v110, 1e-05
    %v113 = vadd.f32 %v111, 1e-05
    %v114 = vrsqrt.pop %v112
    %v115 = vrsqrt.pop %v113
    %v116 = vmul.f32 %v100, %v114
    %v117 = vmul.f32 %v101, %v115
    %v118 = vlaneseq
    %v119 = vshrl.u32 %v118, 7
    %v120 = vsub.s32 4, %v119
    %v121 = vrot.slane %v87, %v120
    %v122 = vmul.f32 %v116, %v121
    %v123 = vmul.f32 %v117, %v121
    %v124 = vlaneseq
    %v125 = vshrl.u32 %v124, 7
    %v126 = vsub.s32 5, %v125
    %v127 = vrot.slane %v87, %v126
    %v128 = vadd.f32 %v122, %v127
    %v129 = vadd.f32 %v123, %v127
    %v130 = vld [vmem:[%s2] sm:$0xff]
    %v131 = vld [vmem:[%s2 + $0x8] sm:$0xff]
    %v132 = vld [vmem:[%s2 + $0x10] sm:$0xff]
    %v133 = vld [vmem:[%s2 + $0x18] sm:$0xff]
    %v134 = vld [vmem:[%s2 + $0x20] sm:$0xff]
    %v135 = vld [vmem:[%s2 + $0x28] sm:$0xff]
    %v136 = vld [vmem:[%s2 + $0x30] sm:$0xff]
    %v137 = vld [vmem:[%s2 + $0x38] sm:$0xff]
    %v138 = vld [vmem:[%s2 + $0x40] sm:$0xff]
    %v139 = vld [vmem:[%s2 + $0x48] sm:$0xff]
    %v140 = vld [vmem:[%s2 + $0x50] sm:$0xff]
    %v141 = vld [vmem:[%s2 + $0x58] sm:$0xff]
    %v142 = vld [vmem:[%s2 + $0x60] sm:$0xff]
    %v143 = vld [vmem:[%s2 + $0x68] sm:$0xff]
    %v144 = vld [vmem:[%s2 + $0x70] sm:$0xff]
    %v145 = vld [vmem:[%s2 + $0x78] sm:$0xff]
    %v146 = vld [vmem:[%s2 + $0x80] sm:$0xff]
    %v147 = vld [vmem:[%s2 + $0x88] sm:$0xff]
    %v148 = vlaneseq
    %v149 = vshrl.u32 %v148, 7
    %v150 = vsub.s32 0, %v149
    %v151 = vrot.slane %v87, %v150
    %v152 = vlaneseq
    %v153 = vshrl.u32 %v152, 7
    %v154 = vsub.s32 0, %v153
    %v155 = vrot.slane %v88, %v154
    %v156 = vlaneseq
    %v157 = vshrl.u32 %v156, 7
    %v158 = vsub.s32 0, %v157
    %v159 = vrot.slane %v89, %v158
    %v161 = vsel %vm90, %v128, 0
    %v164 = vsel %vm90, %v129, 0
    %166 = vmatprep.subr.mxu0 %v131
    %167 = vmatpush1.msra.mxu0 %v130
    %168 = vmatprep.subr.mxu0 %v134
    %169 = vmatpush1.msra.mxu0 %v133
    %170 = vmatprep.subr.mxu0 %v137
    %171 = vmatpush1.msra.mxu0 %v136
    %172 = vmatprep.subr.mxu0 %v140
    %173 = vmatpush1.msra.mxu0 %v139
    %174 = vmatprep.subr.mxu0 %v143
    %175 = vmatpush1.msra.mxu0 %v142
    %176 = vmatprep.subr.mxu0 %v146
    %177 = vmatpush1.msra.mxu0 %v145
    %178 = vmatprep.subr.mxu0 0.0
    %179 = vmatpush1.msra.mxu0 0.0
    %180 = vmatprep.subr.mxu0 0.0
    %181 = vmatpush1.msra.mxu0 0.0
    %182 = vmatprep.subr.mxu0 0.0
    %183 = vmatpush1.msra.mxu0 0.0
    %184 = vmatprep.subr.mxu0 0.0
    %185 = vmatpush1.msra.mxu0 0.0
    %186 = vmatprep.subr.mxu0 0.0
    %187 = vmatpush1.msra.mxu0 0.0
    %188 = vmatprep.subr.mxu0 0.0
    %189 = vmatpush1.msra.mxu0 0.0
    %190 = vmatprep.subr.mxu0 0.0
    %191 = vmatpush1.msra.mxu0 0.0
    %192 = vmatprep.subr.mxu0 0.0
    %193 = vmatpush1.msra.mxu0 0.0
    %194 = vmatprep.subr.mxu0 0.0
    %195 = vmatpush1.msra.mxu0 0.0
    %196 = vmatprep.subr.mxu0 0.0
    %197 = vmatpush1.msra.mxu0 0.0
    %198 = vmatprep.subr.mxu0 0.0
    %199 = vmatpush1.msra.mxu0 0.0
    %200 = vmatprep.subr.mxu0 0.0
    %201 = vmatpush1.msra.mxu0 0.0
    %202 = vmatprep.subr.mxu0 0.0
    %203 = vmatpush1.msra.mxu0 0.0
    %204 = vmatprep.subr.mxu0 0.0
    %205 = vmatpush1.msra.mxu0 0.0
    %206 = vmatprep.subr.mxu0 0.0
    %207 = vmatpush1.msra.mxu0 0.0
    %208 = vmatprep.subr.mxu0 0.0
    %209 = vmatpush1.msra.mxu0 0.0
    %210 = vmatprep.subr.mxu0 0.0
    %211 = vmatpush1.msra.mxu0 0.0
    %212 = vmatprep.subr.mxu0 0.0
    %213 = vmatpush1.msra.mxu0 0.0
    %214 = vmatprep.subr.mxu0 0.0
    %215 = vmatpush1.msra.mxu0 0.0
    %216 = vmatprep.subr.mxu0 0.0
    %217 = vmatpush1.msra.mxu0 0.0
    %218 = vmatprep.subr.mxu0 0.0
    %219 = vmatpush1.msra.mxu0 0.0
    %220 = vmatprep.subr.mxu0 0.0
    %221 = vmatpush1.msra.mxu0 0.0
    %222 = vmatprep.subr.mxu0 0.0
    %223 = vmatpush1.msra.mxu0 0.0
    %224 = vmatprep.subr.mxu0 0.0
    %225 = vmatpush1.msra.mxu0 0.0
    %226 = vmatprep.subr.mxu0 0.0
    %227 = vmatpush1.msra.mxu0 0.0
    %228 = vmatprep.subr.mxu0 0.0
    %229 = vmatpush1.msra.mxu0 0.0
    %230 = vmatprep.mubr.f32.mxu0 0.0
    %231 = vmatmul.mubr.f32.gmra.mrb[0].mxu0 %v161
    %v232 = vpop.f32.mrb[0].mxu0
    %v233 = vadd.f32 %v151, %v232
    %v234 = vpop.f32.mrb[0].mxu0
    %v235 = vadd.f32 %v155, %v234
    %236 = vmatprep.mubr.f32.mxu0 0.0
    %237 = vmatmul.mubr.f32.gmra.mrb[0].mxu0 %v164
    %v238 = vpop.f32.mrb[0].mxu0
    %v239 = vadd.f32 %v151, %v238
    %v240 = vpop.f32.mrb[0].mxu0
    %v241 = vadd.f32 %v155, %v240
    %242 = vdwg.mxu0
    %243 = vmatprep.subr.mxu0 0.0
    %244 = vmatpush1.msra.mxu0 %v132
    %245 = vmatprep.subr.mxu0 0.0
    %246 = vmatpush1.msra.mxu0 %v135
    %247 = vmatprep.subr.mxu0 0.0
    %248 = vmatpush1.msra.mxu0 %v138
    %249 = vmatprep.subr.mxu0 0.0
    %250 = vmatpush1.msra.mxu0 %v141
    %251 = vmatprep.subr.mxu0 0.0
    %252 = vmatpush1.msra.mxu0 %v144
    %253 = vmatprep.subr.mxu0 0.0
    %254 = vmatpush1.msra.mxu0 %v147
    %255 = vmatprep.subr.mxu0 0.0
    %256 = vmatpush1.msra.mxu0 0.0
    %257 = vmatprep.subr.mxu0 0.0
    %258 = vmatpush1.msra.mxu0 0.0
    %259 = vmatprep.subr.mxu0 0.0
    %260 = vmatpush1.msra.mxu0 0.0
    %261 = vmatprep.subr.mxu0 0.0
    %262 = vmatpush1.msra.mxu0 0.0
    %263 = vmatprep.subr.mxu0 0.0
    %264 = vmatpush1.msra.mxu0 0.0
    %265 = vmatprep.subr.mxu0 0.0
    %266 = vmatpush1.msra.mxu0 0.0
    %267 = vmatprep.subr.mxu0 0.0
    %268 = vmatpush1.msra.mxu0 0.0
    %269 = vmatprep.subr.mxu0 0.0
    %270 = vmatpush1.msra.mxu0 0.0
    %271 = vmatprep.subr.mxu0 0.0
    %272 = vmatpush1.msra.mxu0 0.0
    %273 = vmatprep.subr.mxu0 0.0
    %274 = vmatpush1.msra.mxu0 0.0
    %275 = vmatprep.subr.mxu0 0.0
    %276 = vmatpush1.msra.mxu0 0.0
    %277 = vmatprep.subr.mxu0 0.0
    %278 = vmatpush1.msra.mxu0 0.0
    %279 = vmatprep.subr.mxu0 0.0
    %280 = vmatpush1.msra.mxu0 0.0
    %281 = vmatprep.subr.mxu0 0.0
    %282 = vmatpush1.msra.mxu0 0.0
    %283 = vmatprep.subr.mxu0 0.0
    %284 = vmatpush1.msra.mxu0 0.0
    %285 = vmatprep.subr.mxu0 0.0
    %286 = vmatpush1.msra.mxu0 0.0
    %287 = vmatprep.subr.mxu0 0.0
    %288 = vmatpush1.msra.mxu0 0.0
    %289 = vmatprep.subr.mxu0 0.0
    %290 = vmatpush1.msra.mxu0 0.0
    %291 = vmatprep.subr.mxu0 0.0
    %292 = vmatpush1.msra.mxu0 0.0
    %293 = vmatprep.subr.mxu0 0.0
    %294 = vmatpush1.msra.mxu0 0.0
    %295 = vmatprep.subr.mxu0 0.0
    %296 = vmatpush1.msra.mxu0 0.0
    %297 = vmatprep.subr.mxu0 0.0
    %298 = vmatpush1.msra.mxu0 0.0
    %299 = vmatprep.subr.mxu0 0.0
    %300 = vmatpush1.msra.mxu0 0.0
    %301 = vmatprep.subr.mxu0 0.0
    %302 = vmatpush1.msra.mxu0 0.0
    %303 = vmatprep.subr.mxu0 0.0
    %304 = vmatpush1.msra.mxu0 0.0
    %305 = vmatprep.subr.mxu0 0.0
    %306 = vmatpush1.msra.mxu0 0.0
    %307 = vmatprep.mubr.f32.mxu0 0.0
    %308 = vmatmul.mubr.f32.gmra.mrb[0].mxu0 %v161
    %v309 = vpop.f32.mrb[0].mxu0
    %v310 = vadd.f32 %v159, %v309
    %v311 = vpop.f32.mrb[0].mxu0
    %312 = vmatprep.mubr.f32.mxu0 0.0
    %313 = vmatmul.mubr.f32.gmra.mrb[0].mxu0 %v164
    %v314 = vpop.f32.mrb[0].mxu0
    %v315 = vadd.f32 %v159, %v314
    %v316 = vpop.f32.mrb[0].mxu0
    %317 = vdwg.mxu0
    %vm318 = vcmask 97280
    %v320 = vsel %vm318, %v233, 0
    %v323 = vsel %vm318, %v239, 0
    %v326 = vsel %vm318, %v235, 0
    %v329 = vsel %vm318, %v241, 0
    %331 = vmatprep.subr.mxu0 0.0
    %332 = vmatpush1.xpose.msra.mxu0 %v326
    %333 = vmatprep.subr.mxu0 0.0
    %334 = vmatpush1.xpose.msra.mxu0 %v329
    %335 = vmatprep.subr.mxu0 0.0
    %336 = vmatpush1.xpose.msra.mxu0 0.0
    %337 = vmatprep.subr.mxu0 0.0
    %338 = vmatpush1.xpose.msra.mxu0 0.0
    %339 = vmatprep.subr.mxu0 0.0
    %340 = vmatpush1.xpose.msra.mxu0 0.0
    %341 = vmatprep.subr.mxu0 0.0
    %342 = vmatpush1.xpose.msra.mxu0 0.0
    %343 = vmatprep.subr.mxu0 0.0
    %344 = vmatpush1.xpose.msra.mxu0 0.0
    %345 = vmatprep.subr.mxu0 0.0
    %346 = vmatpush1.xpose.msra.mxu0 0.0
    %347 = vmatprep.subr.mxu0 0.0
    %348 = vmatpush1.xpose.msra.mxu0 0.0
    %349 = vmatprep.subr.mxu0 0.0
    %350 = vmatpush1.xpose.msra.mxu0 0.0
    %351 = vmatprep.subr.mxu0 0.0
    %352 = vmatpush1.xpose.msra.mxu0 0.0
    %353 = vmatprep.subr.mxu0 0.0
    %354 = vmatpush1.xpose.msra.mxu0 0.0
    %355 = vmatprep.subr.mxu0 0.0
    %356 = vmatpush1.xpose.msra.mxu0 0.0
    %357 = vmatprep.subr.mxu0 0.0
    %358 = vmatpush1.xpose.msra.mxu0 0.0
    %359 = vmatprep.subr.mxu0 0.0
    %360 = vmatpush1.xpose.msra.mxu0 0.0
    %361 = vmatprep.subr.mxu0 0.0
    %362 = vmatpush1.xpose.msra.mxu0 0.0
    %363 = vmatprep.subr.mxu0 0.0
    %364 = vmatpush1.xpose.msra.mxu0 0.0
    %365 = vmatprep.subr.mxu0 0.0
    %366 = vmatpush1.xpose.msra.mxu0 0.0
    %367 = vmatprep.subr.mxu0 0.0
    %368 = vmatpush1.xpose.msra.mxu0 0.0
    %369 = vmatprep.subr.mxu0 0.0
    %370 = vmatpush1.xpose.msra.mxu0 0.0
    %371 = vmatprep.subr.mxu0 0.0
    %372 = vmatpush1.xpose.msra.mxu0 0.0
    %373 = vmatprep.subr.mxu0 0.0
    %374 = vmatpush1.xpose.msra.mxu0 0.0
    %375 = vmatprep.subr.mxu0 0.0
    %376 = vmatpush1.xpose.msra.mxu0 0.0
    %377 = vmatprep.subr.mxu0 0.0
    %378 = vmatpush1.xpose.msra.mxu0 0.0
    %379 = vmatprep.subr.mxu0 0.0
    %380 = vmatpush1.xpose.msra.mxu0 0.0
    %381 = vmatprep.subr.mxu0 0.0
    %382 = vmatpush1.xpose.msra.mxu0 0.0
    %383 = vmatprep.subr.mxu0 0.0
    %384 = vmatpush1.xpose.msra.mxu0 0.0
    %385 = vmatprep.subr.mxu0 0.0
    %386 = vmatpush1.xpose.msra.mxu0 0.0
    %387 = vmatprep.subr.mxu0 0.0
    %388 = vmatpush1.xpose.msra.mxu0 0.0
    %389 = vmatprep.subr.mxu0 0.0
    %390 = vmatpush1.xpose.msra.mxu0 0.0
    %391 = vmatprep.subr.mxu0 0.0
    %392 = vmatpush1.xpose.msra.mxu0 0.0
    %393 = vmatprep.subr.mxu0 0.0
    %394 = vmatpush1.xpose.msra.mxu0 0.0
    %395 = vmatprep.mubr.f32.mxu0 0.0
    %396 = vmatmul.mubr.f32.gmra.mrb[0].mxu0 %v320
    %v397 = vpop.f32.mrb[0].mxu0
    %v398 = vadd.f32 %v85, %v397
    %v399 = vpop.f32.mrb[0].mxu0
    %400 = vmatprep.mubr.f32.mxu0 0.0
    %401 = vmatmul.mubr.f32.gmra.mrb[0].mxu0 %v323
    %v402 = vpop.f32.mrb[0].mxu0
    %v403 = vadd.f32 %v86, %v402
    %v404 = vpop.f32.mrb[0].mxu0
    %405 = vdwg.mxu0
    %vm406 = vcmask 130048
    %v407 = vsel %vm406, %v398, -inf
    %408 = vmax.xlane.f32.xlu0 %v407
    %v409 = vpop.xlane.xlu0 %408
    %v410 = vsel %vm406, %v403, -inf
    %411 = vmax.xlane.f32.xlu0 %v410
    %v412 = vpop.xlane.xlu0 %411
    %v413 = vsub.f32 %v398, %v409
    %v414 = vsub.f32 %v403, %v412
    %v415 = vmul.f32 %v413, 1.442695
    %v416 = vpow.pop %v415
    %v417 = vmul.f32 %v414, 1.442695
    %v418 = vpow.pop %v417
    %v419 = vsel %vm406, %v416, 0.0
    %420 = vadd.xlane.f32.xlu0 %v419
    %v421 = vpop.xlane.xlu0 %420
    %v422 = vsel %vm406, %v418, 0.0
    %423 = vadd.xlane.f32.xlu0 %v422
    %v424 = vpop.xlane.xlu0 %423
    %v425 = vrcp.pop %v421
    %v426 = vrcp.pop %v424
    %v427 = vmul.f32 %v416, %v425
    %v428 = vmul.f32 %v418, %v426
    %v430 = vsel %vm406, %v427, 0
    %v433 = vsel %vm406, %v428, 0
    %435 = vmatprep.subr.mxu0 0.0
    %436 = vmatpush1.msra.mxu0 %v310
    %437 = vmatprep.subr.mxu0 0.0
    %438 = vmatpush1.msra.mxu0 %v315
    %439 = vmatprep.subr.mxu0 0.0
    %440 = vmatpush1.msra.mxu0 0.0
    %441 = vmatprep.subr.mxu0 0.0
    %442 = vmatpush1.msra.mxu0 0.0
    %443 = vmatprep.subr.mxu0 0.0
    %444 = vmatpush1.msra.mxu0 0.0
    %445 = vmatprep.subr.mxu0 0.0
    %446 = vmatpush1.msra.mxu0 0.0
    %447 = vmatprep.subr.mxu0 0.0
    %448 = vmatpush1.msra.mxu0 0.0
    %449 = vmatprep.subr.mxu0 0.0
    %450 = vmatpush1.msra.mxu0 0.0
    %451 = vmatprep.subr.mxu0 0.0
    %452 = vmatpush1.msra.mxu0 0.0
    %453 = vmatprep.subr.mxu0 0.0
    %454 = vmatpush1.msra.mxu0 0.0
    %455 = vmatprep.subr.mxu0 0.0
    %456 = vmatpush1.msra.mxu0 0.0
    %457 = vmatprep.subr.mxu0 0.0
    %458 = vmatpush1.msra.mxu0 0.0
    %459 = vmatprep.subr.mxu0 0.0
    %460 = vmatpush1.msra.mxu0 0.0
    %461 = vmatprep.subr.mxu0 0.0
    %462 = vmatpush1.msra.mxu0 0.0
    %463 = vmatprep.subr.mxu0 0.0
    %464 = vmatpush1.msra.mxu0 0.0
    %465 = vmatprep.subr.mxu0 0.0
    %466 = vmatpush1.msra.mxu0 0.0
    %467 = vmatprep.subr.mxu0 0.0
    %468 = vmatpush1.msra.mxu0 0.0
    %469 = vmatprep.subr.mxu0 0.0
    %470 = vmatpush1.msra.mxu0 0.0
    %471 = vmatprep.subr.mxu0 0.0
    %472 = vmatpush1.msra.mxu0 0.0
    %473 = vmatprep.subr.mxu0 0.0
    %474 = vmatpush1.msra.mxu0 0.0
    %475 = vmatprep.subr.mxu0 0.0
    %476 = vmatpush1.msra.mxu0 0.0
    %477 = vmatprep.subr.mxu0 0.0
    %478 = vmatpush1.msra.mxu0 0.0
    %479 = vmatprep.subr.mxu0 0.0
    %480 = vmatpush1.msra.mxu0 0.0
    %481 = vmatprep.subr.mxu0 0.0
    %482 = vmatpush1.msra.mxu0 0.0
    %483 = vmatprep.subr.mxu0 0.0
    %484 = vmatpush1.msra.mxu0 0.0
    %485 = vmatprep.subr.mxu0 0.0
    %486 = vmatpush1.msra.mxu0 0.0
    %487 = vmatprep.subr.mxu0 0.0
    %488 = vmatpush1.msra.mxu0 0.0
    %489 = vmatprep.subr.mxu0 0.0
    %490 = vmatpush1.msra.mxu0 0.0
    %491 = vmatprep.subr.mxu0 0.0
    %492 = vmatpush1.msra.mxu0 0.0
    %493 = vmatprep.subr.mxu0 0.0
    %494 = vmatpush1.msra.mxu0 0.0
    %495 = vmatprep.subr.mxu0 0.0
    %496 = vmatpush1.msra.mxu0 0.0
    %497 = vmatprep.subr.mxu0 0.0
    %498 = vmatpush1.msra.mxu0 0.0
    %499 = vmatprep.mubr.f32.mxu0 0.0
    %500 = vmatmul.mubr.f32.gmra.mrb[0].mxu0 %v430
    %v501 = vpop.f32.mrb[0].mxu0
    %v502 = vadd.f32 0.0, %v501
    %v503 = vpop.f32.mrb[0].mxu0
    %504 = vmatprep.mubr.f32.mxu0 0.0
    %505 = vmatmul.mubr.f32.gmra.mrb[0].mxu0 %v433
    %v506 = vpop.f32.mrb[0].mxu0
    %v507 = vadd.f32 0.0, %v506
    %v508 = vpop.f32.mrb[0].mxu0
    %509 = vdwg.mxu0
    %510 = vrot.lane.b32.xlu0 %v233, 116
    %v511 = vpop.permute.xlu0 %510
    %512 = vrot.lane.b32.xlu0 %v239, 116
    %v513 = vpop.permute.xlu0 %512
    %514 = vrot.lane.b32.xlu0 %v235, 116
    %v515 = vpop.permute.xlu0 %514
    %516 = vrot.lane.b32.xlu0 %v241, 116
    %v517 = vpop.permute.xlu0 %516
    %v518 = vsel %vm318, %v511, 0
    %v520 = vsel %vm318, %v513, 0
    %v522 = vsel %vm318, %v515, 0
    %v524 = vsel %vm318, %v517, 0
    %526 = vmatprep.subr.mxu0 0.0
    %527 = vmatpush1.xpose.msra.mxu0 %v522
    %528 = vmatprep.subr.mxu0 0.0
    %529 = vmatpush1.xpose.msra.mxu0 %v524
    %530 = vmatprep.subr.mxu0 0.0
    %531 = vmatpush1.xpose.msra.mxu0 0.0
    %532 = vmatprep.subr.mxu0 0.0
    %533 = vmatpush1.xpose.msra.mxu0 0.0
    %534 = vmatprep.subr.mxu0 0.0
    %535 = vmatpush1.xpose.msra.mxu0 0.0
    %536 = vmatprep.subr.mxu0 0.0
    %537 = vmatpush1.xpose.msra.mxu0 0.0
    %538 = vmatprep.subr.mxu0 0.0
    %539 = vmatpush1.xpose.msra.mxu0 0.0
    %540 = vmatprep.subr.mxu0 0.0
    %541 = vmatpush1.xpose.msra.mxu0 0.0
    %542 = vmatprep.subr.mxu0 0.0
    %543 = vmatpush1.xpose.msra.mxu0 0.0
    %544 = vmatprep.subr.mxu0 0.0
    %545 = vmatpush1.xpose.msra.mxu0 0.0
    %546 = vmatprep.subr.mxu0 0.0
    %547 = vmatpush1.xpose.msra.mxu0 0.0
    %548 = vmatprep.subr.mxu0 0.0
    %549 = vmatpush1.xpose.msra.mxu0 0.0
    %550 = vmatprep.subr.mxu0 0.0
    %551 = vmatpush1.xpose.msra.mxu0 0.0
    %552 = vmatprep.subr.mxu0 0.0
    %553 = vmatpush1.xpose.msra.mxu0 0.0
    %554 = vmatprep.subr.mxu0 0.0
    %555 = vmatpush1.xpose.msra.mxu0 0.0
    %556 = vmatprep.subr.mxu0 0.0
    %557 = vmatpush1.xpose.msra.mxu0 0.0
    %558 = vmatprep.subr.mxu0 0.0
    %559 = vmatpush1.xpose.msra.mxu0 0.0
    %560 = vmatprep.subr.mxu0 0.0
    %561 = vmatpush1.xpose.msra.mxu0 0.0
    %562 = vmatprep.subr.mxu0 0.0
    %563 = vmatpush1.xpose.msra.mxu0 0.0
    %564 = vmatprep.subr.mxu0 0.0
    %565 = vmatpush1.xpose.msra.mxu0 0.0
    %566 = vmatprep.subr.mxu0 0.0
    %567 = vmatpush1.xpose.msra.mxu0 0.0
    %568 = vmatprep.subr.mxu0 0.0
    %569 = vmatpush1.xpose.msra.mxu0 0.0
    %570 = vmatprep.subr.mxu0 0.0
    %571 = vmatpush1.xpose.msra.mxu0 0.0
    %572 = vmatprep.subr.mxu0 0.0
    %573 = vmatpush1.xpose.msra.mxu0 0.0
    %574 = vmatprep.subr.mxu0 0.0
    %575 = vmatpush1.xpose.msra.mxu0 0.0
    %576 = vmatprep.subr.mxu0 0.0
    %577 = vmatpush1.xpose.msra.mxu0 0.0
    %578 = vmatprep.subr.mxu0 0.0
    %579 = vmatpush1.xpose.msra.mxu0 0.0
    %580 = vmatprep.subr.mxu0 0.0
    %581 = vmatpush1.xpose.msra.mxu0 0.0
    %582 = vmatprep.subr.mxu0 0.0
    %583 = vmatpush1.xpose.msra.mxu0 0.0
    %584 = vmatprep.subr.mxu0 0.0
    %585 = vmatpush1.xpose.msra.mxu0 0.0
    %586 = vmatprep.subr.mxu0 0.0
    %587 = vmatpush1.xpose.msra.mxu0 0.0
    %588 = vmatprep.subr.mxu0 0.0
    %589 = vmatpush1.xpose.msra.mxu0 0.0
    %590 = vmatprep.mubr.f32.mxu0 0.0
    %591 = vmatmul.mubr.f32.gmra.mrb[0].mxu0 %v518
    %v592 = vpop.f32.mrb[0].mxu0
    %v593 = vadd.f32 %v85, %v592
    %v594 = vpop.f32.mrb[0].mxu0
    %595 = vmatprep.mubr.f32.mxu0 0.0
    %596 = vmatmul.mubr.f32.gmra.mrb[0].mxu0 %v520
    %v597 = vpop.f32.mrb[0].mxu0
    %v598 = vadd.f32 %v86, %v597
    %v599 = vpop.f32.mrb[0].mxu0
    %600 = vdwg.mxu0
    %v601 = vsel %vm406, %v593, -inf
    %602 = vmax.xlane.f32.xlu0 %v601
    %v603 = vpop.xlane.xlu0 %602
    %v604 = vsel %vm406, %v598, -inf
    %605 = vmax.xlane.f32.xlu0 %v604
    %v606 = vpop.xlane.xlu0 %605
    %v607 = vsub.f32 %v593, %v603
    %v608 = vsub.f32 %v598, %v606
    %v609 = vmul.f32 %v607, 1.442695
    %v610 = vpow.pop %v609
    %v611 = vmul.f32 %v608, 1.442695
    %v612 = vpow.pop %v611
    %v613 = vsel %vm406, %v610, 0.0
    %614 = vadd.xlane.f32.xlu0 %v613
    %v615 = vpop.xlane.xlu0 %614
    %v616 = vsel %vm406, %v612, 0.0
    %617 = vadd.xlane.f32.xlu0 %v616
    %v618 = vpop.xlane.xlu0 %617
    %v619 = vrcp.pop %v615
    %v620 = vrcp.pop %v618
    %v621 = vmul.f32 %v610, %v619
    %v622 = vmul.f32 %v612, %v620
    %625 = vrot.lane.b32.xlu0 %v310, 116
    %v626 = vpop.permute.xlu0 %625
    %627 = vrot.lane.b32.xlu0 %v315, 116
    %v628 = vpop.permute.xlu0 %627
    %v632 = vsel %vm406, %v621, 0
    %v635 = vsel %vm406, %v622, 0
    %637 = vmatprep.subr.mxu0 0.0
    %638 = vmatpush1.msra.mxu0 %v626
    %639 = vmatprep.subr.mxu0 0.0
    %640 = vmatpush1.msra.mxu0 %v628
    %641 = vmatprep.subr.mxu0 0.0
    %642 = vmatpush1.msra.mxu0 0.0
    %643 = vmatprep.subr.mxu0 0.0
    %644 = vmatpush1.msra.mxu0 0.0
    %645 = vmatprep.subr.mxu0 0.0
    %646 = vmatpush1.msra.mxu0 0.0
    %647 = vmatprep.subr.mxu0 0.0
    %648 = vmatpush1.msra.mxu0 0.0
    %649 = vmatprep.subr.mxu0 0.0
    %650 = vmatpush1.msra.mxu0 0.0
    %651 = vmatprep.subr.mxu0 0.0
    %652 = vmatpush1.msra.mxu0 0.0
    %653 = vmatprep.subr.mxu0 0.0
    %654 = vmatpush1.msra.mxu0 0.0
    %655 = vmatprep.subr.mxu0 0.0
    %656 = vmatpush1.msra.mxu0 0.0
    %657 = vmatprep.subr.mxu0 0.0
    %658 = vmatpush1.msra.mxu0 0.0
    %659 = vmatprep.subr.mxu0 0.0
    %660 = vmatpush1.msra.mxu0 0.0
    %661 = vmatprep.subr.mxu0 0.0
    %662 = vmatpush1.msra.mxu0 0.0
    %663 = vmatprep.subr.mxu0 0.0
    %664 = vmatpush1.msra.mxu0 0.0
    %665 = vmatprep.subr.mxu0 0.0
    %666 = vmatpush1.msra.mxu0 0.0
    %667 = vmatprep.subr.mxu0 0.0
    %668 = vmatpush1.msra.mxu0 0.0
    %669 = vmatprep.subr.mxu0 0.0
    %670 = vmatpush1.msra.mxu0 0.0
    %671 = vmatprep.subr.mxu0 0.0
    %672 = vmatpush1.msra.mxu0 0.0
    %673 = vmatprep.subr.mxu0 0.0
    %674 = vmatpush1.msra.mxu0 0.0
    %675 = vmatprep.subr.mxu0 0.0
    %676 = vmatpush1.msra.mxu0 0.0
    %677 = vmatprep.subr.mxu0 0.0
    %678 = vmatpush1.msra.mxu0 0.0
    %679 = vmatprep.subr.mxu0 0.0
    %680 = vmatpush1.msra.mxu0 0.0
    %681 = vmatprep.subr.mxu0 0.0
    %682 = vmatpush1.msra.mxu0 0.0
    %683 = vmatprep.subr.mxu0 0.0
    %684 = vmatpush1.msra.mxu0 0.0
    %685 = vmatprep.subr.mxu0 0.0
    %686 = vmatpush1.msra.mxu0 0.0
    %687 = vmatprep.subr.mxu0 0.0
    %688 = vmatpush1.msra.mxu0 0.0
    %689 = vmatprep.subr.mxu0 0.0
    %690 = vmatpush1.msra.mxu0 0.0
    %691 = vmatprep.subr.mxu0 0.0
    %692 = vmatpush1.msra.mxu0 0.0
    %693 = vmatprep.subr.mxu0 0.0
    %694 = vmatpush1.msra.mxu0 0.0
    %695 = vmatprep.subr.mxu0 0.0
    %696 = vmatpush1.msra.mxu0 0.0
    %697 = vmatprep.subr.mxu0 0.0
    %698 = vmatpush1.msra.mxu0 0.0
    %699 = vmatprep.subr.mxu0 0.0
    %700 = vmatpush1.msra.mxu0 0.0
    %701 = vmatprep.mubr.f32.mxu0 0.0
    %702 = vmatmul.mubr.f32.gmra.mrb[0].mxu0 %v632
    %v703 = vpop.f32.mrb[0].mxu0
    %v704 = vadd.f32 0.0, %v703
    %v705 = vpop.f32.mrb[0].mxu0
    %706 = vmatprep.mubr.f32.mxu0 0.0
    %707 = vmatmul.mubr.f32.gmra.mrb[0].mxu0 %v635
    %v708 = vpop.f32.mrb[0].mxu0
    %v709 = vadd.f32 0.0, %v708
    %v710 = vpop.f32.mrb[0].mxu0
    %711 = vdwg.mxu0
    %712 = vrot.lane.b32.xlu0 %v233, 104
    %v713 = vpop.permute.xlu0 %712
    %714 = vrot.lane.b32.xlu0 %v239, 104
    %v715 = vpop.permute.xlu0 %714
    %716 = vrot.lane.b32.xlu0 %v235, 104
    %v717 = vpop.permute.xlu0 %716
    %718 = vrot.lane.b32.xlu0 %v241, 104
    %v719 = vpop.permute.xlu0 %718
    %v720 = vsel %vm318, %v713, 0
    %v722 = vsel %vm318, %v715, 0
    %v724 = vsel %vm318, %v717, 0
    %v726 = vsel %vm318, %v719, 0
    %728 = vmatprep.subr.mxu0 0.0
    %729 = vmatpush1.xpose.msra.mxu0 %v724
    %730 = vmatprep.subr.mxu0 0.0
    %731 = vmatpush1.xpose.msra.mxu0 %v726
    %732 = vmatprep.subr.mxu0 0.0
    %733 = vmatpush1.xpose.msra.mxu0 0.0
    %734 = vmatprep.subr.mxu0 0.0
    %735 = vmatpush1.xpose.msra.mxu0 0.0
    %736 = vmatprep.subr.mxu0 0.0
    %737 = vmatpush1.xpose.msra.mxu0 0.0
    %738 = vmatprep.subr.mxu0 0.0
    %739 = vmatpush1.xpose.msra.mxu0 0.0
    %740 = vmatprep.subr.mxu0 0.0
    %741 = vmatpush1.xpose.msra.mxu0 0.0
    %742 = vmatprep.subr.mxu0 0.0
    %743 = vmatpush1.xpose.msra.mxu0 0.0
    %744 = vmatprep.subr.mxu0 0.0
    %745 = vmatpush1.xpose.msra.mxu0 0.0
    %746 = vmatprep.subr.mxu0 0.0
    %747 = vmatpush1.xpose.msra.mxu0 0.0
    %748 = vmatprep.subr.mxu0 0.0
    %749 = vmatpush1.xpose.msra.mxu0 0.0
    %750 = vmatprep.subr.mxu0 0.0
    %751 = vmatpush1.xpose.msra.mxu0 0.0
    %752 = vmatprep.subr.mxu0 0.0
    %753 = vmatpush1.xpose.msra.mxu0 0.0
    %754 = vmatprep.subr.mxu0 0.0
    %755 = vmatpush1.xpose.msra.mxu0 0.0
    %756 = vmatprep.subr.mxu0 0.0
    %757 = vmatpush1.xpose.msra.mxu0 0.0
    %758 = vmatprep.subr.mxu0 0.0
    %759 = vmatpush1.xpose.msra.mxu0 0.0
    %760 = vmatprep.subr.mxu0 0.0
    %761 = vmatpush1.xpose.msra.mxu0 0.0
    %762 = vmatprep.subr.mxu0 0.0
    %763 = vmatpush1.xpose.msra.mxu0 0.0
    %764 = vmatprep.subr.mxu0 0.0
    %765 = vmatpush1.xpose.msra.mxu0 0.0
    %766 = vmatprep.subr.mxu0 0.0
    %767 = vmatpush1.xpose.msra.mxu0 0.0
    %768 = vmatprep.subr.mxu0 0.0
    %769 = vmatpush1.xpose.msra.mxu0 0.0
    %770 = vmatprep.subr.mxu0 0.0
    %771 = vmatpush1.xpose.msra.mxu0 0.0
    %772 = vmatprep.subr.mxu0 0.0
    %773 = vmatpush1.xpose.msra.mxu0 0.0
    %774 = vmatprep.subr.mxu0 0.0
    %775 = vmatpush1.xpose.msra.mxu0 0.0
    %776 = vmatprep.subr.mxu0 0.0
    %777 = vmatpush1.xpose.msra.mxu0 0.0
    %778 = vmatprep.subr.mxu0 0.0
    %779 = vmatpush1.xpose.msra.mxu0 0.0
    %780 = vmatprep.subr.mxu0 0.0
    %781 = vmatpush1.xpose.msra.mxu0 0.0
    %782 = vmatprep.subr.mxu0 0.0
    %783 = vmatpush1.xpose.msra.mxu0 0.0
    %784 = vmatprep.subr.mxu0 0.0
    %785 = vmatpush1.xpose.msra.mxu0 0.0
    %786 = vmatprep.subr.mxu0 0.0
    %787 = vmatpush1.xpose.msra.mxu0 0.0
    %788 = vmatprep.subr.mxu0 0.0
    %789 = vmatpush1.xpose.msra.mxu0 0.0
    %790 = vmatprep.subr.mxu0 0.0
    %791 = vmatpush1.xpose.msra.mxu0 0.0
    %792 = vmatprep.mubr.f32.mxu0 0.0
    %793 = vmatmul.mubr.f32.gmra.mrb[0].mxu0 %v720
    %v794 = vpop.f32.mrb[0].mxu0
    %v795 = vadd.f32 %v85, %v794
    %v796 = vpop.f32.mrb[0].mxu0
    %797 = vmatprep.mubr.f32.mxu0 0.0
    %798 = vmatmul.mubr.f32.gmra.mrb[0].mxu0 %v722
    %v799 = vpop.f32.mrb[0].mxu0
    %v800 = vadd.f32 %v86, %v799
    %v801 = vpop.f32.mrb[0].mxu0
    %802 = vdwg.mxu0
    %v803 = vsel %vm406, %v795, -inf
    %804 = vmax.xlane.f32.xlu0 %v803
    %v805 = vpop.xlane.xlu0 %804
    %v806 = vsel %vm406, %v800, -inf
    %807 = vmax.xlane.f32.xlu0 %v806
    %v808 = vpop.xlane.xlu0 %807
    %v809 = vsub.f32 %v795, %v805
    %v810 = vsub.f32 %v800, %v808
    %v811 = vmul.f32 %v809, 1.442695
    %v812 = vpow.pop %v811
    %v813 = vmul.f32 %v810, 1.442695
    %v814 = vpow.pop %v813
    %v815 = vsel %vm406, %v812, 0.0
    %816 = vadd.xlane.f32.xlu0 %v815
    %v817 = vpop.xlane.xlu0 %816
    %v818 = vsel %vm406, %v814, 0.0
    %819 = vadd.xlane.f32.xlu0 %v818
    %v820 = vpop.xlane.xlu0 %819
    %v821 = vrcp.pop %v817
    %v822 = vrcp.pop %v820
    %v823 = vmul.f32 %v812, %v821
    %v824 = vmul.f32 %v814, %v822
    %825 = vrot.lane.b32.xlu0 %v310, 104
    %v826 = vpop.permute.xlu0 %825
    %827 = vrot.lane.b32.xlu0 %v315, 104
    %v828 = vpop.permute.xlu0 %827
    %v832 = vsel %vm406, %v823, 0
    %v835 = vsel %vm406, %v824, 0
    %837 = vmatprep.subr.mxu0 0.0
    %838 = vmatpush1.msra.mxu0 %v826
    %839 = vmatprep.subr.mxu0 0.0
    %840 = vmatpush1.msra.mxu0 %v828
    %841 = vmatprep.subr.mxu0 0.0
    %842 = vmatpush1.msra.mxu0 0.0
    %843 = vmatprep.subr.mxu0 0.0
    %844 = vmatpush1.msra.mxu0 0.0
    %845 = vmatprep.subr.mxu0 0.0
    %846 = vmatpush1.msra.mxu0 0.0
    %847 = vmatprep.subr.mxu0 0.0
    %848 = vmatpush1.msra.mxu0 0.0
    %849 = vmatprep.subr.mxu0 0.0
    %850 = vmatpush1.msra.mxu0 0.0
    %851 = vmatprep.subr.mxu0 0.0
    %852 = vmatpush1.msra.mxu0 0.0
    %853 = vmatprep.subr.mxu0 0.0
    %854 = vmatpush1.msra.mxu0 0.0
    %855 = vmatprep.subr.mxu0 0.0
    %856 = vmatpush1.msra.mxu0 0.0
    %857 = vmatprep.subr.mxu0 0.0
    %858 = vmatpush1.msra.mxu0 0.0
    %859 = vmatprep.subr.mxu0 0.0
    %860 = vmatpush1.msra.mxu0 0.0
    %861 = vmatprep.subr.mxu0 0.0
    %862 = vmatpush1.msra.mxu0 0.0
    %863 = vmatprep.subr.mxu0 0.0
    %864 = vmatpush1.msra.mxu0 0.0
    %865 = vmatprep.subr.mxu0 0.0
    %866 = vmatpush1.msra.mxu0 0.0
    %867 = vmatprep.subr.mxu0 0.0
    %868 = vmatpush1.msra.mxu0 0.0
    %869 = vmatprep.subr.mxu0 0.0
    %870 = vmatpush1.msra.mxu0 0.0
    %871 = vmatprep.subr.mxu0 0.0
    %872 = vmatpush1.msra.mxu0 0.0
    %873 = vmatprep.subr.mxu0 0.0
    %874 = vmatpush1.msra.mxu0 0.0
    %875 = vmatprep.subr.mxu0 0.0
    %876 = vmatpush1.msra.mxu0 0.0
    %877 = vmatprep.subr.mxu0 0.0
    %878 = vmatpush1.msra.mxu0 0.0
    %879 = vmatprep.subr.mxu0 0.0
    %880 = vmatpush1.msra.mxu0 0.0
    %881 = vmatprep.subr.mxu0 0.0
    %882 = vmatpush1.msra.mxu0 0.0
    %883 = vmatprep.subr.mxu0 0.0
    %884 = vmatpush1.msra.mxu0 0.0
    %885 = vmatprep.subr.mxu0 0.0
    %886 = vmatpush1.msra.mxu0 0.0
    %887 = vmatprep.subr.mxu0 0.0
    %888 = vmatpush1.msra.mxu0 0.0
    %889 = vmatprep.subr.mxu0 0.0
    %890 = vmatpush1.msra.mxu0 0.0
    %891 = vmatprep.subr.mxu0 0.0
    %892 = vmatpush1.msra.mxu0 0.0
    %893 = vmatprep.subr.mxu0 0.0
    %894 = vmatpush1.msra.mxu0 0.0
    %895 = vmatprep.subr.mxu0 0.0
    %896 = vmatpush1.msra.mxu0 0.0
    %897 = vmatprep.subr.mxu0 0.0
    %898 = vmatpush1.msra.mxu0 0.0
    %899 = vmatprep.subr.mxu0 0.0
    %900 = vmatpush1.msra.mxu0 0.0
    %901 = vmatprep.mubr.f32.mxu0 0.0
    %902 = vmatmul.mubr.f32.gmra.mrb[0].mxu0 %v832
    %v903 = vpop.f32.mrb[0].mxu0
    %v904 = vadd.f32 0.0, %v903
    %v905 = vpop.f32.mrb[0].mxu0
    %906 = vmatprep.mubr.f32.mxu0 0.0
    %907 = vmatmul.mubr.f32.gmra.mrb[0].mxu0 %v835
    %v908 = vpop.f32.mrb[0].mxu0
    %v909 = vadd.f32 0.0, %v908
    %v910 = vpop.f32.mrb[0].mxu0
    %911 = vdwg.mxu0
    %912 = vrot.lane.b32.xlu0 %v233, 92
    %v913 = vpop.permute.xlu0 %912
    %914 = vrot.lane.b32.xlu0 %v239, 92
    %v915 = vpop.permute.xlu0 %914
    %916 = vrot.lane.b32.xlu0 %v235, 92
    %v917 = vpop.permute.xlu0 %916
    %918 = vrot.lane.b32.xlu0 %v241, 92
    %v919 = vpop.permute.xlu0 %918
    %v920 = vsel %vm318, %v913, 0
    %v922 = vsel %vm318, %v915, 0
    %v924 = vsel %vm318, %v917, 0
    %v926 = vsel %vm318, %v919, 0
    %928 = vmatprep.subr.mxu0 0.0
    %929 = vmatpush1.xpose.msra.mxu0 %v924
    %930 = vmatprep.subr.mxu0 0.0
    %931 = vmatpush1.xpose.msra.mxu0 %v926
    %932 = vmatprep.subr.mxu0 0.0
    %933 = vmatpush1.xpose.msra.mxu0 0.0
    %934 = vmatprep.subr.mxu0 0.0
    %935 = vmatpush1.xpose.msra.mxu0 0.0
    %936 = vmatprep.subr.mxu0 0.0
    %937 = vmatpush1.xpose.msra.mxu0 0.0
    %938 = vmatprep.subr.mxu0 0.0
    %939 = vmatpush1.xpose.msra.mxu0 0.0
    %940 = vmatprep.subr.mxu0 0.0
    %941 = vmatpush1.xpose.msra.mxu0 0.0
    %942 = vmatprep.subr.mxu0 0.0
    %943 = vmatpush1.xpose.msra.mxu0 0.0
    %944 = vmatprep.subr.mxu0 0.0
    %945 = vmatpush1.xpose.msra.mxu0 0.0
    %946 = vmatprep.subr.mxu0 0.0
    %947 = vmatpush1.xpose.msra.mxu0 0.0
    %948 = vmatprep.subr.mxu0 0.0
    %949 = vmatpush1.xpose.msra.mxu0 0.0
    %950 = vmatprep.subr.mxu0 0.0
    %951 = vmatpush1.xpose.msra.mxu0 0.0
    %952 = vmatprep.subr.mxu0 0.0
    %953 = vmatpush1.xpose.msra.mxu0 0.0
    %954 = vmatprep.subr.mxu0 0.0
    %955 = vmatpush1.xpose.msra.mxu0 0.0
    %956 = vmatprep.subr.mxu0 0.0
    %957 = vmatpush1.xpose.msra.mxu0 0.0
    %958 = vmatprep.subr.mxu0 0.0
    %959 = vmatpush1.xpose.msra.mxu0 0.0
    %960 = vmatprep.subr.mxu0 0.0
    %961 = vmatpush1.xpose.msra.mxu0 0.0
    %962 = vmatprep.subr.mxu0 0.0
    %963 = vmatpush1.xpose.msra.mxu0 0.0
    %964 = vmatprep.subr.mxu0 0.0
    %965 = vmatpush1.xpose.msra.mxu0 0.0
    %966 = vmatprep.subr.mxu0 0.0
    %967 = vmatpush1.xpose.msra.mxu0 0.0
    %968 = vmatprep.subr.mxu0 0.0
    %969 = vmatpush1.xpose.msra.mxu0 0.0
    %970 = vmatprep.subr.mxu0 0.0
    %971 = vmatpush1.xpose.msra.mxu0 0.0
    %972 = vmatprep.subr.mxu0 0.0
    %973 = vmatpush1.xpose.msra.mxu0 0.0
    %974 = vmatprep.subr.mxu0 0.0
    %975 = vmatpush1.xpose.msra.mxu0 0.0
    %976 = vmatprep.subr.mxu0 0.0
    %977 = vmatpush1.xpose.msra.mxu0 0.0
    %978 = vmatprep.subr.mxu0 0.0
    %979 = vmatpush1.xpose.msra.mxu0 0.0
    %980 = vmatprep.subr.mxu0 0.0
    %981 = vmatpush1.xpose.msra.mxu0 0.0
    %982 = vmatprep.subr.mxu0 0.0
    %983 = vmatpush1.xpose.msra.mxu0 0.0
    %984 = vmatprep.subr.mxu0 0.0
    %985 = vmatpush1.xpose.msra.mxu0 0.0
    %986 = vmatprep.subr.mxu0 0.0
    %987 = vmatpush1.xpose.msra.mxu0 0.0
    %988 = vmatprep.subr.mxu0 0.0
    %989 = vmatpush1.xpose.msra.mxu0 0.0
    %990 = vmatprep.subr.mxu0 0.0
    %991 = vmatpush1.xpose.msra.mxu0 0.0
    %992 = vmatprep.mubr.f32.mxu0 0.0
    %993 = vmatmul.mubr.f32.gmra.mrb[0].mxu0 %v920
    %v994 = vpop.f32.mrb[0].mxu0
    %v995 = vadd.f32 %v85, %v994
    %v996 = vpop.f32.mrb[0].mxu0
    %997 = vmatprep.mubr.f32.mxu0 0.0
    %998 = vmatmul.mubr.f32.gmra.mrb[0].mxu0 %v922
    %v999 = vpop.f32.mrb[0].mxu0
    %v1000 = vadd.f32 %v86, %v999
    %v1001 = vpop.f32.mrb[0].mxu0
    %1002 = vdwg.mxu0
    %v1003 = vsel %vm406, %v995, -inf
    %1004 = vmax.xlane.f32.xlu0 %v1003
    %v1005 = vpop.xlane.xlu0 %1004
    %v1006 = vsel %vm406, %v1000, -inf
    %1007 = vmax.xlane.f32.xlu0 %v1006
    %v1008 = vpop.xlane.xlu0 %1007
    %v1009 = vsub.f32 %v995, %v1005
    %v1010 = vsub.f32 %v1000, %v1008
    %v1011 = vmul.f32 %v1009, 1.442695
    %v1012 = vpow.pop %v1011
    %v1013 = vmul.f32 %v1010, 1.442695
    %v1014 = vpow.pop %v1013
    %v1015 = vsel %vm406, %v1012, 0.0
    %1016 = vadd.xlane.f32.xlu0 %v1015
    %v1017 = vpop.xlane.xlu0 %1016
    %v1018 = vsel %vm406, %v1014, 0.0
    %1019 = vadd.xlane.f32.xlu0 %v1018
    %v1020 = vpop.xlane.xlu0 %1019
    %v1021 = vrcp.pop %v1017
    %v1022 = vrcp.pop %v1020
    %v1023 = vmul.f32 %v1012, %v1021
    %v1024 = vmul.f32 %v1014, %v1022
    %1025 = vrot.lane.b32.xlu0 %v310, 92
    %v1026 = vpop.permute.xlu0 %1025
    %1027 = vrot.lane.b32.xlu0 %v315, 92
    %v1028 = vpop.permute.xlu0 %1027
    %v1032 = vsel %vm406, %v1023, 0
    %v1035 = vsel %vm406, %v1024, 0
    %1037 = vmatprep.subr.mxu0 0.0
    %1038 = vmatpush1.msra.mxu0 %v1026
    %1039 = vmatprep.subr.mxu0 0.0
    %1040 = vmatpush1.msra.mxu0 %v1028
    %1041 = vmatprep.subr.mxu0 0.0
    %1042 = vmatpush1.msra.mxu0 0.0
    %1043 = vmatprep.subr.mxu0 0.0
    %1044 = vmatpush1.msra.mxu0 0.0
    %1045 = vmatprep.subr.mxu0 0.0
    %1046 = vmatpush1.msra.mxu0 0.0
    %1047 = vmatprep.subr.mxu0 0.0
    %1048 = vmatpush1.msra.mxu0 0.0
    %1049 = vmatprep.subr.mxu0 0.0
    %1050 = vmatpush1.msra.mxu0 0.0
    %1051 = vmatprep.subr.mxu0 0.0
    %1052 = vmatpush1.msra.mxu0 0.0
    %1053 = vmatprep.subr.mxu0 0.0
    %1054 = vmatpush1.msra.mxu0 0.0
    %1055 = vmatprep.subr.mxu0 0.0
    %1056 = vmatpush1.msra.mxu0 0.0
    %1057 = vmatprep.subr.mxu0 0.0
    %1058 = vmatpush1.msra.mxu0 0.0
    %1059 = vmatprep.subr.mxu0 0.0
    %1060 = vmatpush1.msra.mxu0 0.0
    %1061 = vmatprep.subr.mxu0 0.0
    %1062 = vmatpush1.msra.mxu0 0.0
    %1063 = vmatprep.subr.mxu0 0.0
    %1064 = vmatpush1.msra.mxu0 0.0
    %1065 = vmatprep.subr.mxu0 0.0
    %1066 = vmatpush1.msra.mxu0 0.0
    %1067 = vmatprep.subr.mxu0 0.0
    %1068 = vmatpush1.msra.mxu0 0.0
    %1069 = vmatprep.subr.mxu0 0.0
    %1070 = vmatpush1.msra.mxu0 0.0
    %1071 = vmatprep.subr.mxu0 0.0
    %1072 = vmatpush1.msra.mxu0 0.0
    %1073 = vmatprep.subr.mxu0 0.0
    %1074 = vmatpush1.msra.mxu0 0.0
    %1075 = vmatprep.subr.mxu0 0.0
    %1076 = vmatpush1.msra.mxu0 0.0
    %1077 = vmatprep.subr.mxu0 0.0
    %1078 = vmatpush1.msra.mxu0 0.0
    %1079 = vmatprep.subr.mxu0 0.0
    %1080 = vmatpush1.msra.mxu0 0.0
    %1081 = vmatprep.subr.mxu0 0.0
    %1082 = vmatpush1.msra.mxu0 0.0
    %1083 = vmatprep.subr.mxu0 0.0
    %1084 = vmatpush1.msra.mxu0 0.0
    %1085 = vmatprep.subr.mxu0 0.0
    %1086 = vmatpush1.msra.mxu0 0.0
    %1087 = vmatprep.subr.mxu0 0.0
    %1088 = vmatpush1.msra.mxu0 0.0
    %1089 = vmatprep.subr.mxu0 0.0
    %1090 = vmatpush1.msra.mxu0 0.0
    %1091 = vmatprep.subr.mxu0 0.0
    %1092 = vmatpush1.msra.mxu0 0.0
    %1093 = vmatprep.subr.mxu0 0.0
    %1094 = vmatpush1.msra.mxu0 0.0
    %1095 = vmatprep.subr.mxu0 0.0
    %1096 = vmatpush1.msra.mxu0 0.0
    %1097 = vmatprep.subr.mxu0 0.0
    %1098 = vmatpush1.msra.mxu0 0.0
    %1099 = vmatprep.subr.mxu0 0.0
    %1100 = vmatpush1.msra.mxu0 0.0
    %1101 = vmatprep.mubr.f32.mxu0 0.0
    %1102 = vmatmul.mubr.f32.gmra.mrb[0].mxu0 %v1032
    %v1103 = vpop.f32.mrb[0].mxu0
    %v1104 = vadd.f32 0.0, %v1103
    %v1105 = vpop.f32.mrb[0].mxu0
    %1106 = vmatprep.mubr.f32.mxu0 0.0
    %1107 = vmatmul.mubr.f32.gmra.mrb[0].mxu0 %v1035
    %v1108 = vpop.f32.mrb[0].mxu0
    %v1109 = vadd.f32 0.0, %v1108
    %v1110 = vpop.f32.mrb[0].mxu0
    %1111 = vdwg.mxu0
    %1114 = vrot.lane.b32.xlu0 %v704, 12
    %v1115 = vpop.permute.xlu0 %1114
    %1116 = vrot.lane.b32.xlu0 %v709, 12
    %v1117 = vpop.permute.xlu0 %1116
    %1122 = vrot.lane.b32.xlu0 %v904, 24
    %v1123 = vpop.permute.xlu0 %1122
    %1124 = vrot.lane.b32.xlu0 %v909, 24
    %v1125 = vpop.permute.xlu0 %1124
    %1130 = vrot.lane.b32.xlu0 %v1104, 36
    %v1131 = vpop.permute.xlu0 %1130
    %1132 = vrot.lane.b32.xlu0 %v1109, 36
    %v1133 = vpop.permute.xlu0 %1132
    %v1136 = vsel %vm318, %v502, %v1115
    %v1137 = vsel %vm318, %v507, %v1117
    %vm1138 = vcmask 195584
    %v1139 = vsel %vm1138, %v1136, %v1123
    %v1140 = vsel %vm1138, %v1137, %v1125
    %vm1141 = vcmask 293888
    %v1142 = vsel %vm1141, %v1139, %v1131
    %v1143 = vsel %vm1141, %v1140, %v1133
    %v1144 = vld [vmem:[%s3] sm:$0xff]
    %v1145 = vld [vmem:[%s3 + $0x8] sm:$0xff]
    %v1146 = vld [vmem:[%s3 + $0x10] sm:$0xff]
    %v1147 = vld [vmem:[%s3 + $0x18] sm:$0xff]
    %v1148 = vld [vmem:[%s3 + $0x20] sm:$0xff]
    %v1149 = vld [vmem:[%s3 + $0x28] sm:$0xff]
    %v1150 = vlaneseq
    %v1151 = vshrl.u32 %v1150, 7
    %v1152 = vsub.s32 1, %v1151
    %v1153 = vrot.slane %v87, %v1152
    %v1155 = vsel %vm90, %v1142, 0
    %v1158 = vsel %vm90, %v1143, 0
    %1160 = vmatprep.subr.mxu0 0.0
    %1161 = vmatpush1.msra.mxu0 %v1144
    %1162 = vmatprep.subr.mxu0 0.0
    %1163 = vmatpush1.msra.mxu0 %v1145
    %1164 = vmatprep.subr.mxu0 0.0
    %1165 = vmatpush1.msra.mxu0 %v1146
    %1166 = vmatprep.subr.mxu0 0.0
    %1167 = vmatpush1.msra.mxu0 %v1147
    %1168 = vmatprep.subr.mxu0 0.0
    %1169 = vmatpush1.msra.mxu0 %v1148
    %1170 = vmatprep.subr.mxu0 0.0
    %1171 = vmatpush1.msra.mxu0 %v1149
    %1172 = vmatprep.subr.mxu0 0.0
    %1173 = vmatpush1.msra.mxu0 0.0
    %1174 = vmatprep.subr.mxu0 0.0
    %1175 = vmatpush1.msra.mxu0 0.0
    %1176 = vmatprep.subr.mxu0 0.0
    %1177 = vmatpush1.msra.mxu0 0.0
    %1178 = vmatprep.subr.mxu0 0.0
    %1179 = vmatpush1.msra.mxu0 0.0
    %1180 = vmatprep.subr.mxu0 0.0
    %1181 = vmatpush1.msra.mxu0 0.0
    %1182 = vmatprep.subr.mxu0 0.0
    %1183 = vmatpush1.msra.mxu0 0.0
    %1184 = vmatprep.subr.mxu0 0.0
    %1185 = vmatpush1.msra.mxu0 0.0
    %1186 = vmatprep.subr.mxu0 0.0
    %1187 = vmatpush1.msra.mxu0 0.0
    %1188 = vmatprep.subr.mxu0 0.0
    %1189 = vmatpush1.msra.mxu0 0.0
    %1190 = vmatprep.subr.mxu0 0.0
    %1191 = vmatpush1.msra.mxu0 0.0
    %1192 = vmatprep.subr.mxu0 0.0
    %1193 = vmatpush1.msra.mxu0 0.0
    %1194 = vmatprep.subr.mxu0 0.0
    %1195 = vmatpush1.msra.mxu0 0.0
    %1196 = vmatprep.subr.mxu0 0.0
    %1197 = vmatpush1.msra.mxu0 0.0
    %1198 = vmatprep.subr.mxu0 0.0
    %1199 = vmatpush1.msra.mxu0 0.0
    %1200 = vmatprep.subr.mxu0 0.0
    %1201 = vmatpush1.msra.mxu0 0.0
    %1202 = vmatprep.subr.mxu0 0.0
    %1203 = vmatpush1.msra.mxu0 0.0
    %1204 = vmatprep.subr.mxu0 0.0
    %1205 = vmatpush1.msra.mxu0 0.0
    %1206 = vmatprep.subr.mxu0 0.0
    %1207 = vmatpush1.msra.mxu0 0.0
    %1208 = vmatprep.subr.mxu0 0.0
    %1209 = vmatpush1.msra.mxu0 0.0
    %1210 = vmatprep.subr.mxu0 0.0
    %1211 = vmatpush1.msra.mxu0 0.0
    %1212 = vmatprep.subr.mxu0 0.0
    %1213 = vmatpush1.msra.mxu0 0.0
    %1214 = vmatprep.subr.mxu0 0.0
    %1215 = vmatpush1.msra.mxu0 0.0
    %1216 = vmatprep.subr.mxu0 0.0
    %1217 = vmatpush1.msra.mxu0 0.0
    %1218 = vmatprep.subr.mxu0 0.0
    %1219 = vmatpush1.msra.mxu0 0.0
    %1220 = vmatprep.subr.mxu0 0.0
    %1221 = vmatpush1.msra.mxu0 0.0
    %1222 = vmatprep.subr.mxu0 0.0
    %1223 = vmatpush1.msra.mxu0 0.0
    %1224 = vmatprep.mubr.f32.mxu0 0.0
    %1225 = vmatmul.mubr.f32.gmra.mrb[0].mxu0 %v1155
    %v1226 = vpop.f32.mrb[0].mxu0
    %v1227 = vadd.f32 %v1153, %v1226
    %v1228 = vpop.f32.mrb[0].mxu0
    %1229 = vmatprep.mubr.f32.mxu0 0.0
    %1230 = vmatmul.mubr.f32.gmra.mrb[0].mxu0 %v1158
    %v1231 = vpop.f32.mrb[0].mxu0
    %v1232 = vadd.f32 %v1153, %v1231
    %v1233 = vpop.f32.mrb[0].mxu0
    %1234 = vdwg.mxu0
    %v1235 = vadd.f32 %v52, %v1227
    %v1236 = vadd.f32 %v53, %v1232
    %v1237 = vsel %vm90, %v1235, 0.0
    %1238 = vadd.xlane.f32.xlu0 %v1237
    %v1239 = vpop.xlane.xlu0 %1238
    %v1240 = vsel %vm90, %v1236, 0.0
    %1241 = vadd.xlane.f32.xlu0 %v1240
    %v1242 = vpop.xlane.xlu0 %1241
    %v1243 = vmul.f32 %v1239, %v97
    %v1244 = vmul.f32 %v1242, %v97
    %v1245 = vsub.f32 %v1235, %v1243
    %v1246 = vsub.f32 %v1236, %v1244
    %v1247 = vmul.f32 %v1245, %v1245
    %v1248 = vmul.f32 %v1246, %v1246
    %v1249 = vsel %vm90, %v1247, 0.0
    %1250 = vadd.xlane.f32.xlu0 %v1249
    %v1251 = vpop.xlane.xlu0 %1250
    %v1252 = vsel %vm90, %v1248, 0.0
    %1253 = vadd.xlane.f32.xlu0 %v1252
    %v1254 = vpop.xlane.xlu0 %1253
    %v1255 = vmul.f32 %v1251, %v97
    %v1256 = vmul.f32 %v1254, %v97
    %v1257 = vadd.f32 %v1255, 1e-05
    %v1258 = vadd.f32 %v1256, 1e-05
    %v1259 = vrsqrt.pop %v1257
    %v1260 = vrsqrt.pop %v1258
    %v1261 = vmul.f32 %v1245, %v1259
    %v1262 = vmul.f32 %v1246, %v1260
    %v1263 = vlaneseq
    %v1264 = vshrl.u32 %v1263, 7
    %v1265 = vsub.s32 6, %v1264
    %v1266 = vrot.slane %v87, %v1265
    %v1267 = vmul.f32 %v1261, %v1266
    %v1268 = vmul.f32 %v1262, %v1266
    %v1269 = vlaneseq
    %v1270 = vshrl.u32 %v1269, 7
    %v1271 = vsub.s32 7, %v1270
    %v1272 = vrot.slane %v87, %v1271
    %v1273 = vadd.f32 %v1267, %v1272
    %v1274 = vadd.f32 %v1268, %v1272
    %v1275 = vld [vmem:[%s4] sm:$0xff]
    %v1276 = vld [vmem:[%s4 + $0x8] sm:$0xff]
    %v1277 = vld [vmem:[%s4 + $0x10] sm:$0xff]
    %v1278 = vld [vmem:[%s4 + $0x18] sm:$0xff]
    %v1279 = vld [vmem:[%s4 + $0x20] sm:$0xff]
    %v1280 = vld [vmem:[%s4 + $0x28] sm:$0xff]
    %v1281 = vld [vmem:[%s4 + $0x30] sm:$0xff]
    %v1282 = vld [vmem:[%s4 + $0x38] sm:$0xff]
    %v1283 = vld [vmem:[%s4 + $0x40] sm:$0xff]
    %v1284 = vld [vmem:[%s4 + $0x48] sm:$0xff]
    %v1285 = vld [vmem:[%s4 + $0x50] sm:$0xff]
    %v1286 = vld [vmem:[%s4 + $0x58] sm:$0xff]
    %v1287 = vlaneseq
    %v1288 = vshrl.u32 %v1287, 7
    %v1289 = vsub.s32 2, %v1288
    %v1290 = vrot.slane %v87, %v1289
    %v1291 = vlaneseq
    %v1292 = vshrl.u32 %v1291, 7
    %v1293 = vsub.s32 2, %v1292
    %v1294 = vrot.slane %v88, %v1293
    %v1296 = vsel %vm90, %v1273, 0
    %v1299 = vsel %vm90, %v1274, 0
    %1301 = vmatprep.subr.mxu0 %v1276
    %1302 = vmatpush1.msra.mxu0 %v1275
    %1303 = vmatprep.subr.mxu0 %v1278
    %1304 = vmatpush1.msra.mxu0 %v1277
    %1305 = vmatprep.subr.mxu0 %v1280
    %1306 = vmatpush1.msra.mxu0 %v1279
    %1307 = vmatprep.subr.mxu0 %v1282
    %1308 = vmatpush1.msra.mxu0 %v1281
    %1309 = vmatprep.subr.mxu0 %v1284
    %1310 = vmatpush1.msra.mxu0 %v1283
    %1311 = vmatprep.subr.mxu0 %v1286
    %1312 = vmatpush1.msra.mxu0 %v1285
    %1313 = vmatprep.subr.mxu0 0.0
    %1314 = vmatpush1.msra.mxu0 0.0
    %1315 = vmatprep.subr.mxu0 0.0
    %1316 = vmatpush1.msra.mxu0 0.0
    %1317 = vmatprep.subr.mxu0 0.0
    %1318 = vmatpush1.msra.mxu0 0.0
    %1319 = vmatprep.subr.mxu0 0.0
    %1320 = vmatpush1.msra.mxu0 0.0
    %1321 = vmatprep.subr.mxu0 0.0
    %1322 = vmatpush1.msra.mxu0 0.0
    %1323 = vmatprep.subr.mxu0 0.0
    %1324 = vmatpush1.msra.mxu0 0.0
    %1325 = vmatprep.subr.mxu0 0.0
    %1326 = vmatpush1.msra.mxu0 0.0
    %1327 = vmatprep.subr.mxu0 0.0
    %1328 = vmatpush1.msra.mxu0 0.0
    %1329 = vmatprep.subr.mxu0 0.0
    %1330 = vmatpush1.msra.mxu0 0.0
    %1331 = vmatprep.subr.mxu0 0.0
    %1332 = vmatpush1.msra.mxu0 0.0
    %1333 = vmatprep.subr.mxu0 0.0
    %1334 = vmatpush1.msra.mxu0 0.0
    %1335 = vmatprep.subr.mxu0 0.0
    %1336 = vmatpush1.msra.mxu0 0.0
    %1337 = vmatprep.subr.mxu0 0.0
    %1338 = vmatpush1.msra.mxu0 0.0
    %1339 = vmatprep.subr.mxu0 0.0
    %1340 = vmatpush1.msra.mxu0 0.0
    %1341 = vmatprep.subr.mxu0 0.0
    %1342 = vmatpush1.msra.mxu0 0.0
    %1343 = vmatprep.subr.mxu0 0.0
    %1344 = vmatpush1.msra.mxu0 0.0
    %1345 = vmatprep.subr.mxu0 0.0
    %1346 = vmatpush1.msra.mxu0 0.0
    %1347 = vmatprep.subr.mxu0 0.0
    %1348 = vmatpush1.msra.mxu0 0.0
    %1349 = vmatprep.subr.mxu0 0.0
    %1350 = vmatpush1.msra.mxu0 0.0
    %1351 = vmatprep.subr.mxu0 0.0
    %1352 = vmatpush1.msra.mxu0 0.0
    %1353 = vmatprep.subr.mxu0 0.0
    %1354 = vmatpush1.msra.mxu0 0.0
    %1355 = vmatprep.subr.mxu0 0.0
    %1356 = vmatpush1.msra.mxu0 0.0
    %1357 = vmatprep.subr.mxu0 0.0
    %1358 = vmatpush1.msra.mxu0 0.0
    %1359 = vmatprep.subr.mxu0 0.0
    %1360 = vmatpush1.msra.mxu0 0.0
    %1361 = vmatprep.subr.mxu0 0.0
    %1362 = vmatpush1.msra.mxu0 0.0
    %1363 = vmatprep.subr.mxu0 0.0
    %1364 = vmatpush1.msra.mxu0 0.0
    %1365 = vmatprep.mubr.f32.mxu0 0.0
    %1366 = vmatmul.mubr.f32.gmra.mrb[0].mxu0 %v1296
    %v1367 = vpop.f32.mrb[0].mxu0
    %v1368 = vadd.f32 %v1290, %v1367
    %v1369 = vpop.f32.mrb[0].mxu0
    %v1370 = vadd.f32 %v1294, %v1369
    %1371 = vmatprep.mubr.f32.mxu0 0.0
    %1372 = vmatmul.mubr.f32.gmra.mrb[0].mxu0 %v1299
    %v1373 = vpop.f32.mrb[0].mxu0
    %v1374 = vadd.f32 %v1290, %v1373
    %v1375 = vpop.f32.mrb[0].mxu0
    %v1376 = vadd.f32 %v1294, %v1375
    %1377 = vdwg.mxu0
    %v1378 = vmul.f32 %v1368, 0.5
    %v1379 = vmul.f32 %v1370, 0.5
    %v1380 = vmul.f32 %v1374, 0.5
    %v1381 = vmul.f32 %v1376, 0.5
    %v1382 = vmul.f32 %v1368, 0.70710677
    %v1383 = vmul.f32 %v1370, 0.70710677
    %v1384 = vmul.f32 %v1374, 0.70710677
    %v1385 = vmul.f32 %v1376, 0.70710677
    %v1386 = verf.f32.pop %v1382
    %v1387 = verf.f32.pop %v1383
    %v1388 = verf.f32.pop %v1384
    %v1389 = verf.f32.pop %v1385
    %v1390 = vadd.f32 %v1386, 1.0
    %v1391 = vadd.f32 %v1387, 1.0
    %v1392 = vadd.f32 %v1388, 1.0
    %v1393 = vadd.f32 %v1389, 1.0
    %v1394 = vmul.f32 %v1378, %v1390
    %v1395 = vmul.f32 %v1379, %v1391
    %v1396 = vmul.f32 %v1380, %v1392
    %v1397 = vmul.f32 %v1381, %v1393
    %v1398 = vld [vmem:[%s5] sm:$0xff]
    %v1399 = vld [vmem:[%s5 + $0x8] sm:$0xff]
    %v1400 = vld [vmem:[%s5 + $0x10] sm:$0xff]
    %v1401 = vld [vmem:[%s5 + $0x18] sm:$0xff]
    %v1402 = vld [vmem:[%s5 + $0x20] sm:$0xff]
    %v1403 = vld [vmem:[%s5 + $0x28] sm:$0xff]
    %v1404 = vld [vmem:[%s5 + $0x30] sm:$0xff]
    %v1405 = vld [vmem:[%s5 + $0x38] sm:$0xff]
    %v1406 = vld [vmem:[%s5 + $0x40] sm:$0xff]
    %v1407 = vld [vmem:[%s5 + $0x48] sm:$0xff]
    %v1408 = vld [vmem:[%s5 + $0x50] sm:$0xff]
    %v1409 = vld [vmem:[%s5 + $0x58] sm:$0xff]
    %v1410 = vld [vmem:[%s5 + $0x60] sm:$0xff]
    %v1411 = vld [vmem:[%s5 + $0x68] sm:$0xff]
    %v1412 = vld [vmem:[%s5 + $0x70] sm:$0xff]
    %v1413 = vld [vmem:[%s5 + $0x78] sm:$0xff]
    %v1414 = vld [vmem:[%s5 + $0x80] sm:$0xff]
    %v1415 = vld [vmem:[%s5 + $0x88] sm:$0xff]
    %v1416 = vld [vmem:[%s5 + $0x90] sm:$0xff]
    %v1417 = vld [vmem:[%s5 + $0x98] sm:$0xff]
    %v1418 = vld [vmem:[%s5 + $0xa0] sm:$0xff]
    %v1419 = vld [vmem:[%s5 + $0xa8] sm:$0xff]
    %v1420 = vld [vmem:[%s5 + $0xb0] sm:$0xff]
    %v1421 = vld [vmem:[%s5 + $0xb8] sm:$0xff]
    %v1422 = vlaneseq
    %v1423 = vshrl.u32 %v1422, 7
    %v1424 = vsub.s32 3, %v1423
    %v1425 = vrot.slane %v87, %v1424
    %vm1426 = vcmask 523264
    %v1428 = vsel %vm1426, %v1395, 0
    %v1431 = vsel %vm1426, %v1397, 0
    %1433 = vmatprep.subr.mxu0 0.0
    %1434 = vmatpush1.msra.mxu0 %v1398
    %1435 = vmatprep.subr.mxu0 0.0
    %1436 = vmatpush1.msra.mxu0 %v1399
    %1437 = vmatprep.subr.mxu0 0.0
    %1438 = vmatpush1.msra.mxu0 %v1400
    %1439 = vmatprep.subr.mxu0 0.0
    %1440 = vmatpush1.msra.mxu0 %v1401
    %1441 = vmatprep.subr.mxu0 0.0
    %1442 = vmatpush1.msra.mxu0 %v1402
    %1443 = vmatprep.subr.mxu0 0.0
    %1444 = vmatpush1.msra.mxu0 %v1403
    %1445 = vmatprep.subr.mxu0 0.0
    %1446 = vmatpush1.msra.mxu0 %v1404
    %1447 = vmatprep.subr.mxu0 0.0
    %1448 = vmatpush1.msra.mxu0 %v1405
    %1449 = vmatprep.subr.mxu0 0.0
    %1450 = vmatpush1.msra.mxu0 %v1406
    %1451 = vmatprep.subr.mxu0 0.0
    %1452 = vmatpush1.msra.mxu0 %v1407
    %1453 = vmatprep.subr.mxu0 0.0
    %1454 = vmatpush1.msra.mxu0 %v1408
    %1455 = vmatprep.subr.mxu0 0.0
    %1456 = vmatpush1.msra.mxu0 %v1409
    %1457 = vmatprep.subr.mxu0 0.0
    %1458 = vmatpush1.msra.mxu0 %v1410
    %1459 = vmatprep.subr.mxu0 0.0
    %1460 = vmatpush1.msra.mxu0 %v1411
    %1461 = vmatprep.subr.mxu0 0.0
    %1462 = vmatpush1.msra.mxu0 %v1412
    %1463 = vmatprep.subr.mxu0 0.0
    %1464 = vmatpush1.msra.mxu0 %v1413
    %1465 = vmatprep.subr.mxu0 0.0
    %1466 = vmatpush1.msra.mxu0 %v1414
    %1467 = vmatprep.subr.mxu0 0.0
    %1468 = vmatpush1.msra.mxu0 %v1415
    %1469 = vmatprep.subr.mxu0 0.0
    %1470 = vmatpush1.msra.mxu0 %v1416
    %1471 = vmatprep.subr.mxu0 0.0
    %1472 = vmatpush1.msra.mxu0 %v1417
    %1473 = vmatprep.subr.mxu0 0.0
    %1474 = vmatpush1.msra.mxu0 %v1418
    %1475 = vmatprep.subr.mxu0 0.0
    %1476 = vmatpush1.msra.mxu0 %v1419
    %1477 = vmatprep.subr.mxu0 0.0
    %1478 = vmatpush1.msra.mxu0 %v1420
    %1479 = vmatprep.subr.mxu0 0.0
    %1480 = vmatpush1.msra.mxu0 %v1421
    %1481 = vmatprep.subr.mxu0 0.0
    %1482 = vmatpush1.msra.mxu0 0.0
    %1483 = vmatprep.subr.mxu0 0.0
    %1484 = vmatpush1.msra.mxu0 0.0
    %1485 = vmatprep.subr.mxu0 0.0
    %1486 = vmatpush1.msra.mxu0 0.0
    %1487 = vmatprep.subr.mxu0 0.0
    %1488 = vmatpush1.msra.mxu0 0.0
    %1489 = vmatprep.subr.mxu0 0.0
    %1490 = vmatpush1.msra.mxu0 0.0
    %1491 = vmatprep.subr.mxu0 0.0
    %1492 = vmatpush1.msra.mxu0 0.0
    %1493 = vmatprep.subr.mxu0 0.0
    %1494 = vmatpush1.msra.mxu0 0.0
    %1495 = vmatprep.subr.mxu0 0.0
    %1496 = vmatpush1.msra.mxu0 0.0
    %1497 = vmatprep.mubr.f32.mxu0 %v1428
    %1498 = vmatmul.mubr.f32.gmra.mrb[0].mxu0 %v1394
    %v1499 = vpop.f32.mrb[0].mxu0
    %v1500 = vadd.f32 %v1425, %v1499
    %v1501 = vpop.f32.mrb[0].mxu0
    %1502 = vmatprep.mubr.f32.mxu0 %v1431
    %1503 = vmatmul.mubr.f32.gmra.mrb[0].mxu0 %v1396
    %v1504 = vpop.f32.mrb[0].mxu0
    %v1505 = vadd.f32 %v1425, %v1504
    %v1506 = vpop.f32.mrb[0].mxu0
    %1507 = vdwg.mxu0
    %v1508 = vadd.f32 %v1235, %v1500
    %v1509 = vadd.f32 %v1236, %v1505
    %s1510 = scalar_lea.vmem [#allocation5], 24
    %v1511 = vld [vmem:[%s1510] sm:$0xff]
    %v1512 = vld [vmem:[%s1510 + $0x8] sm:$0xff]
    %v1513 = vld [vmem:[%s1510 + $0x10] sm:$0xff]
    %v1514 = vsel %vm90, %v1508, 0.0
    %1515 = vadd.xlane.f32.xlu0 %v1514
    %v1516 = vpop.xlane.xlu0 %1515
    %v1517 = vsel %vm90, %v1509, 0.0
    %1518 = vadd.xlane.f32.xlu0 %v1517
    %v1519 = vpop.xlane.xlu0 %1518
    %v1520 = vmul.f32 %v1516, %v97
    %v1521 = vmul.f32 %v1519, %v97
    %v1522 = vsub.f32 %v1508, %v1520
    %v1523 = vsub.f32 %v1509, %v1521
    %v1524 = vmul.f32 %v1522, %v1522
    %v1525 = vmul.f32 %v1523, %v1523
    %v1526 = vsel %vm90, %v1524, 0.0
    %1527 = vadd.xlane.f32.xlu0 %v1526
    %v1528 = vpop.xlane.xlu0 %1527
    %v1529 = vsel %vm90, %v1525, 0.0
    %1530 = vadd.xlane.f32.xlu0 %v1529
    %v1531 = vpop.xlane.xlu0 %1530
    %v1532 = vmul.f32 %v1528, %v97
    %v1533 = vmul.f32 %v1531, %v97
    %v1534 = vadd.f32 %v1532, 1e-05
    %v1535 = vadd.f32 %v1533, 1e-05
    %v1536 = vrsqrt.pop %v1534
    %v1537 = vrsqrt.pop %v1535
    %v1538 = vmul.f32 %v1522, %v1536
    %v1539 = vmul.f32 %v1523, %v1537
    %v1540 = vlaneseq
    %v1541 = vshrl.u32 %v1540, 7
    %v1542 = vsub.s32 4, %v1541
    %v1543 = vrot.slane %v1511, %v1542
    %v1544 = vmul.f32 %v1538, %v1543
    %v1545 = vmul.f32 %v1539, %v1543
    %v1546 = vlaneseq
    %v1547 = vshrl.u32 %v1546, 7
    %v1548 = vsub.s32 5, %v1547
    %v1549 = vrot.slane %v1511, %v1548
    %v1550 = vadd.f32 %v1544, %v1549
    %v1551 = vadd.f32 %v1545, %v1549
    %s1552 = scalar_lea.vmem %s2, 144
    %v1553 = vld [vmem:[%s1552] sm:$0xff]
    %v1554 = vld [vmem:[%s1552 + $0x8] sm:$0xff]
    %v1555 = vld [vmem:[%s1552 + $0x10] sm:$0xff]
    %v1556 = vld [vmem:[%s1552 + $0x18] sm:$0xff]
    %v1557 = vld [vmem:[%s1552 + $0x20] sm:$0xff]
    %v1558 = vld [vmem:[%s1552 + $0x28] sm:$0xff]
    %v1559 = vld [vmem:[%s1552 + $0x30] sm:$0xff]
    %v1560 = vld [vmem:[%s1552 + $0x38] sm:$0xff]
    %v1561 = vld [vmem:[%s1552 + $0x40] sm:$0xff]
    %v1562 = vld [vmem:[%s1552 + $0x48] sm:$0xff]
    %v1563 = vld [vmem:[%s1552 + $0x50] sm:$0xff]
    %v1564 = vld [vmem:[%s1552 + $0x58] sm:$0xff]
    %v1565 = vld [vmem:[%s1552 + $0x60] sm:$0xff]
    %v1566 = vld [vmem:[%s1552 + $0x68] sm:$0xff]
    %v1567 = vld [vmem:[%s1552 + $0x70] sm:$0xff]
    %v1568 = vld [vmem:[%s1552 + $0x78] sm:$0xff]
    %v1569 = vld [vmem:[%s1552 + $0x80] sm:$0xff]
    %v1570 = vld [vmem:[%s1552 + $0x88] sm:$0xff]
    %v1571 = vlaneseq
    %v1572 = vshrl.u32 %v1571, 7
    %v1573 = vsub.s32 0, %v1572
    %v1574 = vrot.slane %v1511, %v1573
    %v1575 = vlaneseq
    %v1576 = vshrl.u32 %v1575, 7
    %v1577 = vsub.s32 0, %v1576
    %v1578 = vrot.slane %v1512, %v1577
    %v1579 = vlaneseq
    %v1580 = vshrl.u32 %v1579, 7
    %v1581 = vsub.s32 0, %v1580
    %v1582 = vrot.slane %v1513, %v1581
    %v1584 = vsel %vm90, %v1550, 0
    %v1587 = vsel %vm90, %v1551, 0
    %1589 = vmatprep.subr.mxu0 %v1554
    %1590 = vmatpush1.msra.mxu0 %v1553
    %1591 = vmatprep.subr.mxu0 %v1557
    %1592 = vmatpush1.msra.mxu0 %v1556
    %1593 = vmatprep.subr.mxu0 %v1560
    %1594 = vmatpush1.msra.mxu0 %v1559
    %1595 = vmatprep.subr.mxu0 %v1563
    %1596 = vmatpush1.msra.mxu0 %v1562
    %1597 = vmatprep.subr.mxu0 %v1566
    %1598 = vmatpush1.msra.mxu0 %v1565
    %1599 = vmatprep.subr.mxu0 %v1569
    %1600 = vmatpush1.msra.mxu0 %v1568
    %1601 = vmatprep.subr.mxu0 0.0
    %1602 = vmatpush1.msra.mxu0 0.0
    %1603 = vmatprep.subr.mxu0 0.0
    %1604 = vmatpush1.msra.mxu0 0.0
    %1605 = vmatprep.subr.mxu0 0.0
    %1606 = vmatpush1.msra.mxu0 0.0
    %1607 = vmatprep.subr.mxu0 0.0
    %1608 = vmatpush1.msra.mxu0 0.0
    %1609 = vmatprep.subr.mxu0 0.0
    %1610 = vmatpush1.msra.mxu0 0.0
    %1611 = vmatprep.subr.mxu0 0.0
    %1612 = vmatpush1.msra.mxu0 0.0
    %1613 = vmatprep.subr.mxu0 0.0
    %1614 = vmatpush1.msra.mxu0 0.0
    %1615 = vmatprep.subr.mxu0 0.0
    %1616 = vmatpush1.msra.mxu0 0.0
    %1617 = vmatprep.subr.mxu0 0.0
    %1618 = vmatpush1.msra.mxu0 0.0
    %1619 = vmatprep.subr.mxu0 0.0
    %1620 = vmatpush1.msra.mxu0 0.0
    %1621 = vmatprep.subr.mxu0 0.0
    %1622 = vmatpush1.msra.mxu0 0.0
    %1623 = vmatprep.subr.mxu0 0.0
    %1624 = vmatpush1.msra.mxu0 0.0
    %1625 = vmatprep.subr.mxu0 0.0
    %1626 = vmatpush1.msra.mxu0 0.0
    %1627 = vmatprep.subr.mxu0 0.0
    %1628 = vmatpush1.msra.mxu0 0.0
    %1629 = vmatprep.subr.mxu0 0.0
    %1630 = vmatpush1.msra.mxu0 0.0
    %1631 = vmatprep.subr.mxu0 0.0
    %1632 = vmatpush1.msra.mxu0 0.0
    %1633 = vmatprep.subr.mxu0 0.0
    %1634 = vmatpush1.msra.mxu0 0.0
    %1635 = vmatprep.subr.mxu0 0.0
    %1636 = vmatpush1.msra.mxu0 0.0
    %1637 = vmatprep.subr.mxu0 0.0
    %1638 = vmatpush1.msra.mxu0 0.0
    %1639 = vmatprep.subr.mxu0 0.0
    %1640 = vmatpush1.msra.mxu0 0.0
    %1641 = vmatprep.subr.mxu0 0.0
    %1642 = vmatpush1.msra.mxu0 0.0
    %1643 = vmatprep.subr.mxu0 0.0
    %1644 = vmatpush1.msra.mxu0 0.0
    %1645 = vmatprep.subr.mxu0 0.0
    %1646 = vmatpush1.msra.mxu0 0.0
    %1647 = vmatprep.subr.mxu0 0.0
    %1648 = vmatpush1.msra.mxu0 0.0
    %1649 = vmatprep.subr.mxu0 0.0
    %1650 = vmatpush1.msra.mxu0 0.0
    %1651 = vmatprep.subr.mxu0 0.0
    %1652 = vmatpush1.msra.mxu0 0.0
    %1653 = vmatprep.mubr.f32.mxu0 0.0
    %1654 = vmatmul.mubr.f32.gmra.mrb[0].mxu0 %v1584
    %v1655 = vpop.f32.mrb[0].mxu0
    %v1656 = vadd.f32 %v1574, %v1655
    %v1657 = vpop.f32.mrb[0].mxu0
    %v1658 = vadd.f32 %v1578, %v1657
    %1659 = vmatprep.mubr.f32.mxu0 0.0
    %1660 = vmatmul.mubr.f32.gmra.mrb[0].mxu0 %v1587
    %v1661 = vpop.f32.mrb[0].mxu0
    %v1662 = vadd.f32 %v1574, %v1661
    %v1663 = vpop.f32.mrb[0].mxu0
    %v1664 = vadd.f32 %v1578, %v1663
    %1665 = vdwg.mxu0
    %1666 = vmatprep.subr.mxu0 0.0
    %1667 = vmatpush1.msra.mxu0 %v1555
    %1668 = vmatprep.subr.mxu0 0.0
    %1669 = vmatpush1.msra.mxu0 %v1558
    %1670 = vmatprep.subr.mxu0 0.0
    %1671 = vmatpush1.msra.mxu0 %v1561
    %1672 = vmatprep.subr.mxu0 0.0
    %1673 = vmatpush1.msra.mxu0 %v1564
    %1674 = vmatprep.subr.mxu0 0.0
    %1675 = vmatpush1.msra.mxu0 %v1567
    %1676 = vmatprep.subr.mxu0 0.0
    %1677 = vmatpush1.msra.mxu0 %v1570
    %1678 = vmatprep.subr.mxu0 0.0
    %1679 = vmatpush1.msra.mxu0 0.0
    %1680 = vmatprep.subr.mxu0 0.0
    %1681 = vmatpush1.msra.mxu0 0.0
    %1682 = vmatprep.subr.mxu0 0.0
    %1683 = vmatpush1.msra.mxu0 0.0
    %1684 = vmatprep.subr.mxu0 0.0
    %1685 = vmatpush1.msra.mxu0 0.0
    %1686 = vmatprep.subr.mxu0 0.0
    %1687 = vmatpush1.msra.mxu0 0.0
    %1688 = vmatprep.subr.mxu0 0.0
    %1689 = vmatpush1.msra.mxu0 0.0
    %1690 = vmatprep.subr.mxu0 0.0
    %1691 = vmatpush1.msra.mxu0 0.0
    %1692 = vmatprep.subr.mxu0 0.0
    %1693 = vmatpush1.msra.mxu0 0.0
    %1694 = vmatprep.subr.mxu0 0.0
    %1695 = vmatpush1.msra.mxu0 0.0
    %1696 = vmatprep.subr.mxu0 0.0
    %1697 = vmatpush1.msra.mxu0 0.0
    %1698 = vmatprep.subr.mxu0 0.0
    %1699 = vmatpush1.msra.mxu0 0.0
    %1700 = vmatprep.subr.mxu0 0.0
    %1701 = vmatpush1.msra.mxu0 0.0
    %1702 = vmatprep.subr.mxu0 0.0
    %1703 = vmatpush1.msra.mxu0 0.0
    %1704 = vmatprep.subr.mxu0 0.0
    %1705 = vmatpush1.msra.mxu0 0.0
    %1706 = vmatprep.subr.mxu0 0.0
    %1707 = vmatpush1.msra.mxu0 0.0
    %1708 = vmatprep.subr.mxu0 0.0
    %1709 = vmatpush1.msra.mxu0 0.0
    %1710 = vmatprep.subr.mxu0 0.0
    %1711 = vmatpush1.msra.mxu0 0.0
    %1712 = vmatprep.subr.mxu0 0.0
    %1713 = vmatpush1.msra.mxu0 0.0
    %1714 = vmatprep.subr.mxu0 0.0
    %1715 = vmatpush1.msra.mxu0 0.0
    %1716 = vmatprep.subr.mxu0 0.0
    %1717 = vmatpush1.msra.mxu0 0.0
    %1718 = vmatprep.subr.mxu0 0.0
    %1719 = vmatpush1.msra.mxu0 0.0
    %1720 = vmatprep.subr.mxu0 0.0
    %1721 = vmatpush1.msra.mxu0 0.0
    %1722 = vmatprep.subr.mxu0 0.0
    %1723 = vmatpush1.msra.mxu0 0.0
    %1724 = vmatprep.subr.mxu0 0.0
    %1725 = vmatpush1.msra.mxu0 0.0
    %1726 = vmatprep.subr.mxu0 0.0
    %1727 = vmatpush1.msra.mxu0 0.0
    %1728 = vmatprep.subr.mxu0 0.0
    %1729 = vmatpush1.msra.mxu0 0.0
    %1730 = vmatprep.mubr.f32.mxu0 0.0
    %1731 = vmatmul.mubr.f32.gmra.mrb[0].mxu0 %v1584
    %v1732 = vpop.f32.mrb[0].mxu0
    %v1733 = vadd.f32 %v1582, %v1732
    %v1734 = vpop.f32.mrb[0].mxu0
    %1735 = vmatprep.mubr.f32.mxu0 0.0
    %1736 = vmatmul.mubr.f32.gmra.mrb[0].mxu0 %v1587
    %v1737 = vpop.f32.mrb[0].mxu0
    %v1738 = vadd.f32 %v1582, %v1737
    %v1739 = vpop.f32.mrb[0].mxu0
    %1740 = vdwg.mxu0
    %v1742 = vsel %vm318, %v1656, 0
    %v1745 = vsel %vm318, %v1662, 0
    %v1748 = vsel %vm318, %v1658, 0
    %v1751 = vsel %vm318, %v1664, 0
    %1753 = vmatprep.subr.mxu0 0.0
    %1754 = vmatpush1.xpose.msra.mxu0 %v1748
    %1755 = vmatprep.subr.mxu0 0.0
    %1756 = vmatpush1.xpose.msra.mxu0 %v1751
    %1757 = vmatprep.subr.mxu0 0.0
    %1758 = vmatpush1.xpose.msra.mxu0 0.0
    %1759 = vmatprep.subr.mxu0 0.0
    %1760 = vmatpush1.xpose.msra.mxu0 0.0
    %1761 = vmatprep.subr.mxu0 0.0
    %1762 = vmatpush1.xpose.msra.mxu0 0.0
    %1763 = vmatprep.subr.mxu0 0.0
    %1764 = vmatpush1.xpose.msra.mxu0 0.0
    %1765 = vmatprep.subr.mxu0 0.0
    %1766 = vmatpush1.xpose.msra.mxu0 0.0
    %1767 = vmatprep.subr.mxu0 0.0
    %1768 = vmatpush1.xpose.msra.mxu0 0.0
    %1769 = vmatprep.subr.mxu0 0.0
    %1770 = vmatpush1.xpose.msra.mxu0 0.0
    %1771 = vmatprep.subr.mxu0 0.0
    %1772 = vmatpush1.xpose.msra.mxu0 0.0
    %1773 = vmatprep.subr.mxu0 0.0
    %1774 = vmatpush1.xpose.msra.mxu0 0.0
    %1775 = vmatprep.subr.mxu0 0.0
    %1776 = vmatpush1.xpose.msra.mxu0 0.0
    %1777 = vmatprep.subr.mxu0 0.0
    %1778 = vmatpush1.xpose.msra.mxu0 0.0
    %1779 = vmatprep.subr.mxu0 0.0
    %1780 = vmatpush1.xpose.msra.mxu0 0.0
    %1781 = vmatprep.subr.mxu0 0.0
    %1782 = vmatpush1.xpose.msra.mxu0 0.0
    %1783 = vmatprep.subr.mxu0 0.0
    %1784 = vmatpush1.xpose.msra.mxu0 0.0
    %1785 = vmatprep.subr.mxu0 0.0
    %1786 = vmatpush1.xpose.msra.mxu0 0.0
    %1787 = vmatprep.subr.mxu0 0.0
    %1788 = vmatpush1.xpose.msra.mxu0 0.0
    %1789 = vmatprep.subr.mxu0 0.0
    %1790 = vmatpush1.xpose.msra.mxu0 0.0
    %1791 = vmatprep.subr.mxu0 0.0
    %1792 = vmatpush1.xpose.msra.mxu0 0.0
    %1793 = vmatprep.subr.mxu0 0.0
    %1794 = vmatpush1.xpose.msra.mxu0 0.0
    %1795 = vmatprep.subr.mxu0 0.0
    %1796 = vmatpush1.xpose.msra.mxu0 0.0
    %1797 = vmatprep.subr.mxu0 0.0
    %1798 = vmatpush1.xpose.msra.mxu0 0.0
    %1799 = vmatprep.subr.mxu0 0.0
    %1800 = vmatpush1.xpose.msra.mxu0 0.0
    %1801 = vmatprep.subr.mxu0 0.0
    %1802 = vmatpush1.xpose.msra.mxu0 0.0
    %1803 = vmatprep.subr.mxu0 0.0
    %1804 = vmatpush1.xpose.msra.mxu0 0.0
    %1805 = vmatprep.subr.mxu0 0.0
    %1806 = vmatpush1.xpose.msra.mxu0 0.0
    %1807 = vmatprep.subr.mxu0 0.0
    %1808 = vmatpush1.xpose.msra.mxu0 0.0
    %1809 = vmatprep.subr.mxu0 0.0
    %1810 = vmatpush1.xpose.msra.mxu0 0.0
    %1811 = vmatprep.subr.mxu0 0.0
    %1812 = vmatpush1.xpose.msra.mxu0 0.0
    %1813 = vmatprep.subr.mxu0 0.0
    %1814 = vmatpush1.xpose.msra.mxu0 0.0
    %1815 = vmatprep.subr.mxu0 0.0
    %1816 = vmatpush1.xpose.msra.mxu0 0.0
    %1817 = vmatprep.mubr.f32.mxu0 0.0
    %1818 = vmatmul.mubr.f32.gmra.mrb[0].mxu0 %v1742
    %v1819 = vpop.f32.mrb[0].mxu0
    %v1820 = vadd.f32 %v85, %v1819
    %v1821 = vpop.f32.mrb[0].mxu0
    %1822 = vmatprep.mubr.f32.mxu0 0.0
    %1823 = vmatmul.mubr.f32.gmra.mrb[0].mxu0 %v1745
    %v1824 = vpop.f32.mrb[0].mxu0
    %v1825 = vadd.f32 %v86, %v1824
    %v1826 = vpop.f32.mrb[0].mxu0
    %1827 = vdwg.mxu0
    %v1828 = vsel %vm406, %v1820, -inf
    %1829 = vmax.xlane.f32.xlu0 %v1828
    %v1830 = vpop.xlane.xlu0 %1829
    %v1831 = vsel %vm406, %v1825, -inf
    %1832 = vmax.xlane.f32.xlu0 %v1831
    %v1833 = vpop.xlane.xlu0 %1832
    %v1834 = vsub.f32 %v1820, %v1830
    %v1835 = vsub.f32 %v1825, %v1833
    %v1836 = vmul.f32 %v1834, 1.442695
    %v1837 = vpow.pop %v1836
    %v1838 = vmul.f32 %v1835, 1.442695
    %v1839 = vpow.pop %v1838
    %v1840 = vsel %vm406, %v1837, 0.0
    %1841 = vadd.xlane.f32.xlu0 %v1840
    %v1842 = vpop.xlane.xlu0 %1841
    %v1843 = vsel %vm406, %v1839, 0.0
    %1844 = vadd.xlane.f32.xlu0 %v1843
    %v1845 = vpop.xlane.xlu0 %1844
    %v1846 = vrcp.pop %v1842
    %v1847 = vrcp.pop %v1845
    %v1848 = vmul.f32 %v1837, %v1846
    %v1849 = vmul.f32 %v1839, %v1847
    %v1851 = vsel %vm406, %v1848, 0
    %v1854 = vsel %vm406, %v1849, 0
    %1856 = vmatprep.subr.mxu0 0.0
    %1857 = vmatpush1.msra.mxu0 %v1733
    %1858 = vmatprep.subr.mxu0 0.0
    %1859 = vmatpush1.msra.mxu0 %v1738
    %1860 = vmatprep.subr.mxu0 0.0
    %1861 = vmatpush1.msra.mxu0 0.0
    %1862 = vmatprep.subr.mxu0 0.0
    %1863 = vmatpush1.msra.mxu0 0.0
    %1864 = vmatprep.subr.mxu0 0.0
    %1865 = vmatpush1.msra.mxu0 0.0
    %1866 = vmatprep.subr.mxu0 0.0
    %1867 = vmatpush1.msra.mxu0 0.0
    %1868 = vmatprep.subr.mxu0 0.0
    %1869 = vmatpush1.msra.mxu0 0.0
    %1870 = vmatprep.subr.mxu0 0.0
    %1871 = vmatpush1.msra.mxu0 0.0
    %1872 = vmatprep.subr.mxu0 0.0
    %1873 = vmatpush1.msra.mxu0 0.0
    %1874 = vmatprep.subr.mxu0 0.0
    %1875 = vmatpush1.msra.mxu0 0.0
    %1876 = vmatprep.subr.mxu0 0.0
    %1877 = vmatpush1.msra.mxu0 0.0
    %1878 = vmatprep.subr.mxu0 0.0
    %1879 = vmatpush1.msra.mxu0 0.0
    %1880 = vmatprep.subr.mxu0 0.0
    %1881 = vmatpush1.msra.mxu0 0.0
    %1882 = vmatprep.subr.mxu0 0.0
    %1883 = vmatpush1.msra.mxu0 0.0
    %1884 = vmatprep.subr.mxu0 0.0
    %1885 = vmatpush1.msra.mxu0 0.0
    %1886 = vmatprep.subr.mxu0 0.0
    %1887 = vmatpush1.msra.mxu0 0.0
    %1888 = vmatprep.subr.mxu0 0.0
    %1889 = vmatpush1.msra.mxu0 0.0
    %1890 = vmatprep.subr.mxu0 0.0
    %1891 = vmatpush1.msra.mxu0 0.0
    %1892 = vmatprep.subr.mxu0 0.0
    %1893 = vmatpush1.msra.mxu0 0.0
    %1894 = vmatprep.subr.mxu0 0.0
    %1895 = vmatpush1.msra.mxu0 0.0
    %1896 = vmatprep.subr.mxu0 0.0
    %1897 = vmatpush1.msra.mxu0 0.0
    %1898 = vmatprep.subr.mxu0 0.0
    %1899 = vmatpush1.msra.mxu0 0.0
    %1900 = vmatprep.subr.mxu0 0.0
    %1901 = vmatpush1.msra.mxu0 0.0
    %1902 = vmatprep.subr.mxu0 0.0
    %1903 = vmatpush1.msra.mxu0 0.0
    %1904 = vmatprep.subr.mxu0 0.0
    %1905 = vmatpush1.msra.mxu0 0.0
    %1906 = vmatprep.subr.mxu0 0.0
    %1907 = vmatpush1.msra.mxu0 0.0
    %1908 = vmatprep.subr.mxu0 0.0
    %1909 = vmatpush1.msra.mxu0 0.0
    %1910 = vmatprep.subr.mxu0 0.0
    %1911 = vmatpush1.msra.mxu0 0.0
    %1912 = vmatprep.subr.mxu0 0.0
    %1913 = vmatpush1.msra.mxu0 0.0
    %1914 = vmatprep.subr.mxu0 0.0
    %1915 = vmatpush1.msra.mxu0 0.0
    %1916 = vmatprep.subr.mxu0 0.0
    %1917 = vmatpush1.msra.mxu0 0.0
    %1918 = vmatprep.subr.mxu0 0.0
    %1919 = vmatpush1.msra.mxu0 0.0
    %1920 = vmatprep.mubr.f32.mxu0 0.0
    %1921 = vmatmul.mubr.f32.gmra.mrb[0].mxu0 %v1851
    %v1922 = vpop.f32.mrb[0].mxu0
    %v1923 = vadd.f32 0.0, %v1922
    %v1924 = vpop.f32.mrb[0].mxu0
    %1925 = vmatprep.mubr.f32.mxu0 0.0
    %1926 = vmatmul.mubr.f32.gmra.mrb[0].mxu0 %v1854
    %v1927 = vpop.f32.mrb[0].mxu0
    %v1928 = vadd.f32 0.0, %v1927
    %v1929 = vpop.f32.mrb[0].mxu0
    %1930 = vdwg.mxu0
    %1931 = vrot.lane.b32.xlu0 %v1656, 116
    %v1932 = vpop.permute.xlu0 %1931
    %1933 = vrot.lane.b32.xlu0 %v1662, 116
    %v1934 = vpop.permute.xlu0 %1933
    %1935 = vrot.lane.b32.xlu0 %v1658, 116
    %v1936 = vpop.permute.xlu0 %1935
    %1937 = vrot.lane.b32.xlu0 %v1664, 116
    %v1938 = vpop.permute.xlu0 %1937
    %v1939 = vsel %vm318, %v1932, 0
    %v1941 = vsel %vm318, %v1934, 0
    %v1943 = vsel %vm318, %v1936, 0
    %v1945 = vsel %vm318, %v1938, 0
    %1947 = vmatprep.subr.mxu0 0.0
    %1948 = vmatpush1.xpose.msra.mxu0 %v1943
    %1949 = vmatprep.subr.mxu0 0.0
    %1950 = vmatpush1.xpose.msra.mxu0 %v1945
    %1951 = vmatprep.subr.mxu0 0.0
    %1952 = vmatpush1.xpose.msra.mxu0 0.0
    %1953 = vmatprep.subr.mxu0 0.0
    %1954 = vmatpush1.xpose.msra.mxu0 0.0
    %1955 = vmatprep.subr.mxu0 0.0
    %1956 = vmatpush1.xpose.msra.mxu0 0.0
    %1957 = vmatprep.subr.mxu0 0.0
    %1958 = vmatpush1.xpose.msra.mxu0 0.0
    %1959 = vmatprep.subr.mxu0 0.0
    %1960 = vmatpush1.xpose.msra.mxu0 0.0
    %1961 = vmatprep.subr.mxu0 0.0
    %1962 = vmatpush1.xpose.msra.mxu0 0.0
    %1963 = vmatprep.subr.mxu0 0.0
    %1964 = vmatpush1.xpose.msra.mxu0 0.0
    %1965 = vmatprep.subr.mxu0 0.0
    %1966 = vmatpush1.xpose.msra.mxu0 0.0
    %1967 = vmatprep.subr.mxu0 0.0
    %1968 = vmatpush1.xpose.msra.mxu0 0.0
    %1969 = vmatprep.subr.mxu0 0.0
    %1970 = vmatpush1.xpose.msra.mxu0 0.0
    %1971 = vmatprep.subr.mxu0 0.0
    %1972 = vmatpush1.xpose.msra.mxu0 0.0
    %1973 = vmatprep.subr.mxu0 0.0
    %1974 = vmatpush1.xpose.msra.mxu0 0.0
    %1975 = vmatprep.subr.mxu0 0.0
    %1976 = vmatpush1.xpose.msra.mxu0 0.0
    %1977 = vmatprep.subr.mxu0 0.0
    %1978 = vmatpush1.xpose.msra.mxu0 0.0
    %1979 = vmatprep.subr.mxu0 0.0
    %1980 = vmatpush1.xpose.msra.mxu0 0.0
    %1981 = vmatprep.subr.mxu0 0.0
    %1982 = vmatpush1.xpose.msra.mxu0 0.0
    %1983 = vmatprep.subr.mxu0 0.0
    %1984 = vmatpush1.xpose.msra.mxu0 0.0
    %1985 = vmatprep.subr.mxu0 0.0
    %1986 = vmatpush1.xpose.msra.mxu0 0.0
    %1987 = vmatprep.subr.mxu0 0.0
    %1988 = vmatpush1.xpose.msra.mxu0 0.0
    %1989 = vmatprep.subr.mxu0 0.0
    %1990 = vmatpush1.xpose.msra.mxu0 0.0
    %1991 = vmatprep.subr.mxu0 0.0
    %1992 = vmatpush1.xpose.msra.mxu0 0.0
    %1993 = vmatprep.subr.mxu0 0.0
    %1994 = vmatpush1.xpose.msra.mxu0 0.0
    %1995 = vmatprep.subr.mxu0 0.0
    %1996 = vmatpush1.xpose.msra.mxu0 0.0
    %1997 = vmatprep.subr.mxu0 0.0
    %1998 = vmatpush1.xpose.msra.mxu0 0.0
    %1999 = vmatprep.subr.mxu0 0.0
    %2000 = vmatpush1.xpose.msra.mxu0 0.0
    %2001 = vmatprep.subr.mxu0 0.0
    %2002 = vmatpush1.xpose.msra.mxu0 0.0
    %2003 = vmatprep.subr.mxu0 0.0
    %2004 = vmatpush1.xpose.msra.mxu0 0.0
    %2005 = vmatprep.subr.mxu0 0.0
    %2006 = vmatpush1.xpose.msra.mxu0 0.0
    %2007 = vmatprep.subr.mxu0 0.0
    %2008 = vmatpush1.xpose.msra.mxu0 0.0
    %2009 = vmatprep.subr.mxu0 0.0
    %2010 = vmatpush1.xpose.msra.mxu0 0.0
    %2011 = vmatprep.mubr.f32.mxu0 0.0
    %2012 = vmatmul.mubr.f32.gmra.mrb[0].mxu0 %v1939
    %v2013 = vpop.f32.mrb[0].mxu0
    %v2014 = vadd.f32 %v85, %v2013
    %v2015 = vpop.f32.mrb[0].mxu0
    %2016 = vmatprep.mubr.f32.mxu0 0.0
    %2017 = vmatmul.mubr.f32.gmra.mrb[0].mxu0 %v1941
    %v2018 = vpop.f32.mrb[0].mxu0
    %v2019 = vadd.f32 %v86, %v2018
    %v2020 = vpop.f32.mrb[0].mxu0
    %2021 = vdwg.mxu0
    %v2022 = vsel %vm406, %v2014, -inf
    %2023 = vmax.xlane.f32.xlu0 %v2022
    %v2024 = vpop.xlane.xlu0 %2023
    %v2025 = vsel %vm406, %v2019, -inf
    %2026 = vmax.xlane.f32.xlu0 %v2025
    %v2027 = vpop.xlane.xlu0 %2026
    %v2028 = vsub.f32 %v2014, %v2024
    %v2029 = vsub.f32 %v2019, %v2027
    %v2030 = vmul.f32 %v2028, 1.442695
    %v2031 = vpow.pop %v2030
    %v2032 = vmul.f32 %v2029, 1.442695
    %v2033 = vpow.pop %v2032
    %v2034 = vsel %vm406, %v2031, 0.0
    %2035 = vadd.xlane.f32.xlu0 %v2034
    %v2036 = vpop.xlane.xlu0 %2035
    %v2037 = vsel %vm406, %v2033, 0.0
    %2038 = vadd.xlane.f32.xlu0 %v2037
    %v2039 = vpop.xlane.xlu0 %2038
    %v2040 = vrcp.pop %v2036
    %v2041 = vrcp.pop %v2039
    %v2042 = vmul.f32 %v2031, %v2040
    %v2043 = vmul.f32 %v2033, %v2041
    %2046 = vrot.lane.b32.xlu0 %v1733, 116
    %v2047 = vpop.permute.xlu0 %2046
    %2048 = vrot.lane.b32.xlu0 %v1738, 116
    %v2049 = vpop.permute.xlu0 %2048
    %v2053 = vsel %vm406, %v2042, 0
    %v2056 = vsel %vm406, %v2043, 0
    %2058 = vmatprep.subr.mxu0 0.0
    %2059 = vmatpush1.msra.mxu0 %v2047
    %2060 = vmatprep.subr.mxu0 0.0
    %2061 = vmatpush1.msra.mxu0 %v2049
    %2062 = vmatprep.subr.mxu0 0.0
    %2063 = vmatpush1.msra.mxu0 0.0
    %2064 = vmatprep.subr.mxu0 0.0
    %2065 = vmatpush1.msra.mxu0 0.0
    %2066 = vmatprep.subr.mxu0 0.0
    %2067 = vmatpush1.msra.mxu0 0.0
    %2068 = vmatprep.subr.mxu0 0.0
    %2069 = vmatpush1.msra.mxu0 0.0
    %2070 = vmatprep.subr.mxu0 0.0
    %2071 = vmatpush1.msra.mxu0 0.0
    %2072 = vmatprep.subr.mxu0 0.0
    %2073 = vmatpush1.msra.mxu0 0.0
    %2074 = vmatprep.subr.mxu0 0.0
    %2075 = vmatpush1.msra.mxu0 0.0
    %2076 = vmatprep.subr.mxu0 0.0
    %2077 = vmatpush1.msra.mxu0 0.0
    %2078 = vmatprep.subr.mxu0 0.0
    %2079 = vmatpush1.msra.mxu0 0.0
    %2080 = vmatprep.subr.mxu0 0.0
    %2081 = vmatpush1.msra.mxu0 0.0
    %2082 = vmatprep.subr.mxu0 0.0
    %2083 = vmatpush1.msra.mxu0 0.0
    %2084 = vmatprep.subr.mxu0 0.0
    %2085 = vmatpush1.msra.mxu0 0.0
    %2086 = vmatprep.subr.mxu0 0.0
    %2087 = vmatpush1.msra.mxu0 0.0
    %2088 = vmatprep.subr.mxu0 0.0
    %2089 = vmatpush1.msra.mxu0 0.0
    %2090 = vmatprep.subr.mxu0 0.0
    %2091 = vmatpush1.msra.mxu0 0.0
    %2092 = vmatprep.subr.mxu0 0.0
    %2093 = vmatpush1.msra.mxu0 0.0
    %2094 = vmatprep.subr.mxu0 0.0
    %2095 = vmatpush1.msra.mxu0 0.0
    %2096 = vmatprep.subr.mxu0 0.0
    %2097 = vmatpush1.msra.mxu0 0.0
    %2098 = vmatprep.subr.mxu0 0.0
    %2099 = vmatpush1.msra.mxu0 0.0
    %2100 = vmatprep.subr.mxu0 0.0
    %2101 = vmatpush1.msra.mxu0 0.0
    %2102 = vmatprep.subr.mxu0 0.0
    %2103 = vmatpush1.msra.mxu0 0.0
    %2104 = vmatprep.subr.mxu0 0.0
    %2105 = vmatpush1.msra.mxu0 0.0
    %2106 = vmatprep.subr.mxu0 0.0
    %2107 = vmatpush1.msra.mxu0 0.0
    %2108 = vmatprep.subr.mxu0 0.0
    %2109 = vmatpush1.msra.mxu0 0.0
    %2110 = vmatprep.subr.mxu0 0.0
    %2111 = vmatpush1.msra.mxu0 0.0
    %2112 = vmatprep.subr.mxu0 0.0
    %2113 = vmatpush1.msra.mxu0 0.0
    %2114 = vmatprep.subr.mxu0 0.0
    %2115 = vmatpush1.msra.mxu0 0.0
    %2116 = vmatprep.subr.mxu0 0.0
    %2117 = vmatpush1.msra.mxu0 0.0
    %2118 = vmatprep.subr.mxu0 0.0
    %2119 = vmatpush1.msra.mxu0 0.0
    %2120 = vmatprep.subr.mxu0 0.0
    %2121 = vmatpush1.msra.mxu0 0.0
    %2122 = vmatprep.mubr.f32.mxu0 0.0
    %2123 = vmatmul.mubr.f32.gmra.mrb[0].mxu0 %v2053
    %v2124 = vpop.f32.mrb[0].mxu0
    %v2125 = vadd.f32 0.0, %v2124
    %v2126 = vpop.f32.mrb[0].mxu0
    %2127 = vmatprep.mubr.f32.mxu0 0.0
    %2128 = vmatmul.mubr.f32.gmra.mrb[0].mxu0 %v2056
    %v2129 = vpop.f32.mrb[0].mxu0
    %v2130 = vadd.f32 0.0, %v2129
    %v2131 = vpop.f32.mrb[0].mxu0
    %2132 = vdwg.mxu0
    %2133 = vrot.lane.b32.xlu0 %v1656, 104
    %v2134 = vpop.permute.xlu0 %2133
    %2135 = vrot.lane.b32.xlu0 %v1662, 104
    %v2136 = vpop.permute.xlu0 %2135
    %2137 = vrot.lane.b32.xlu0 %v1658, 104
    %v2138 = vpop.permute.xlu0 %2137
    %2139 = vrot.lane.b32.xlu0 %v1664, 104
    %v2140 = vpop.permute.xlu0 %2139
    %v2141 = vsel %vm318, %v2134, 0
    %v2143 = vsel %vm318, %v2136, 0
    %v2145 = vsel %vm318, %v2138, 0
    %v2147 = vsel %vm318, %v2140, 0
    %2149 = vmatprep.subr.mxu0 0.0
    %2150 = vmatpush1.xpose.msra.mxu0 %v2145
    %2151 = vmatprep.subr.mxu0 0.0
    %2152 = vmatpush1.xpose.msra.mxu0 %v2147
    %2153 = vmatprep.subr.mxu0 0.0
    %2154 = vmatpush1.xpose.msra.mxu0 0.0
    %2155 = vmatprep.subr.mxu0 0.0
    %2156 = vmatpush1.xpose.msra.mxu0 0.0
    %2157 = vmatprep.subr.mxu0 0.0
    %2158 = vmatpush1.xpose.msra.mxu0 0.0
    %2159 = vmatprep.subr.mxu0 0.0
    %2160 = vmatpush1.xpose.msra.mxu0 0.0
    %2161 = vmatprep.subr.mxu0 0.0
    %2162 = vmatpush1.xpose.msra.mxu0 0.0
    %2163 = vmatprep.subr.mxu0 0.0
    %2164 = vmatpush1.xpose.msra.mxu0 0.0
    %2165 = vmatprep.subr.mxu0 0.0
    %2166 = vmatpush1.xpose.msra.mxu0 0.0
    %2167 = vmatprep.subr.mxu0 0.0
    %2168 = vmatpush1.xpose.msra.mxu0 0.0
    %2169 = vmatprep.subr.mxu0 0.0
    %2170 = vmatpush1.xpose.msra.mxu0 0.0
    %2171 = vmatprep.subr.mxu0 0.0
    %2172 = vmatpush1.xpose.msra.mxu0 0.0
    %2173 = vmatprep.subr.mxu0 0.0
    %2174 = vmatpush1.xpose.msra.mxu0 0.0
    %2175 = vmatprep.subr.mxu0 0.0
    %2176 = vmatpush1.xpose.msra.mxu0 0.0
    %2177 = vmatprep.subr.mxu0 0.0
    %2178 = vmatpush1.xpose.msra.mxu0 0.0
    %2179 = vmatprep.subr.mxu0 0.0
    %2180 = vmatpush1.xpose.msra.mxu0 0.0
    %2181 = vmatprep.subr.mxu0 0.0
    %2182 = vmatpush1.xpose.msra.mxu0 0.0
    %2183 = vmatprep.subr.mxu0 0.0
    %2184 = vmatpush1.xpose.msra.mxu0 0.0
    %2185 = vmatprep.subr.mxu0 0.0
    %2186 = vmatpush1.xpose.msra.mxu0 0.0
    %2187 = vmatprep.subr.mxu0 0.0
    %2188 = vmatpush1.xpose.msra.mxu0 0.0
    %2189 = vmatprep.subr.mxu0 0.0
    %2190 = vmatpush1.xpose.msra.mxu0 0.0
    %2191 = vmatprep.subr.mxu0 0.0
    %2192 = vmatpush1.xpose.msra.mxu0 0.0
    %2193 = vmatprep.subr.mxu0 0.0
    %2194 = vmatpush1.xpose.msra.mxu0 0.0
    %2195 = vmatprep.subr.mxu0 0.0
    %2196 = vmatpush1.xpose.msra.mxu0 0.0
    %2197 = vmatprep.subr.mxu0 0.0
    %2198 = vmatpush1.xpose.msra.mxu0 0.0
    %2199 = vmatprep.subr.mxu0 0.0
    %2200 = vmatpush1.xpose.msra.mxu0 0.0
    %2201 = vmatprep.subr.mxu0 0.0
    %2202 = vmatpush1.xpose.msra.mxu0 0.0
    %2203 = vmatprep.subr.mxu0 0.0
    %2204 = vmatpush1.xpose.msra.mxu0 0.0
    %2205 = vmatprep.subr.mxu0 0.0
    %2206 = vmatpush1.xpose.msra.mxu0 0.0
    %2207 = vmatprep.subr.mxu0 0.0
    %2208 = vmatpush1.xpose.msra.mxu0 0.0
    %2209 = vmatprep.subr.mxu0 0.0
    %2210 = vmatpush1.xpose.msra.mxu0 0.0
    %2211 = vmatprep.subr.mxu0 0.0
    %2212 = vmatpush1.xpose.msra.mxu0 0.0
    %2213 = vmatprep.mubr.f32.mxu0 0.0
    %2214 = vmatmul.mubr.f32.gmra.mrb[0].mxu0 %v2141
    %v2215 = vpop.f32.mrb[0].mxu0
    %v2216 = vadd.f32 %v85, %v2215
    %v2217 = vpop.f32.mrb[0].mxu0
    %2218 = vmatprep.mubr.f32.mxu0 0.0
    %2219 = vmatmul.mubr.f32.gmra.mrb[0].mxu0 %v2143
    %v2220 = vpop.f32.mrb[0].mxu0
    %v2221 = vadd.f32 %v86, %v2220
    %v2222 = vpop.f32.mrb[0].mxu0
    %2223 = vdwg.mxu0
    %v2224 = vsel %vm406, %v2216, -inf
    %2225 = vmax.xlane.f32.xlu0 %v2224
    %v2226 = vpop.xlane.xlu0 %2225
    %v2227 = vsel %vm406, %v2221, -inf
    %2228 = vmax.xlane.f32.xlu0 %v2227
    %v2229 = vpop.xlane.xlu0 %2228
    %v2230 = vsub.f32 %v2216, %v2226
    %v2231 = vsub.f32 %v2221, %v2229
    %v2232 = vmul.f32 %v2230, 1.442695
    %v2233 = vpow.pop %v2232
    %v2234 = vmul.f32 %v2231, 1.442695
    %v2235 = vpow.pop %v2234
    %v2236 = vsel %vm406, %v2233, 0.0
    %2237 = vadd.xlane.f32.xlu0 %v2236
    %v2238 = vpop.xlane.xlu0 %2237
    %v2239 = vsel %vm406, %v2235, 0.0
    %2240 = vadd.xlane.f32.xlu0 %v2239
    %v2241 = vpop.xlane.xlu0 %2240
    %v2242 = vrcp.pop %v2238
    %v2243 = vrcp.pop %v2241
    %v2244 = vmul.f32 %v2233, %v2242
    %v2245 = vmul.f32 %v2235, %v2243
    %2246 = vrot.lane.b32.xlu0 %v1733, 104
    %v2247 = vpop.permute.xlu0 %2246
    %2248 = vrot.lane.b32.xlu0 %v1738, 104
    %v2249 = vpop.permute.xlu0 %2248
    %v2253 = vsel %vm406, %v2244, 0
    %v2256 = vsel %vm406, %v2245, 0
    %2258 = vmatprep.subr.mxu0 0.0
    %2259 = vmatpush1.msra.mxu0 %v2247
    %2260 = vmatprep.subr.mxu0 0.0
    %2261 = vmatpush1.msra.mxu0 %v2249
    %2262 = vmatprep.subr.mxu0 0.0
    %2263 = vmatpush1.msra.mxu0 0.0
    %2264 = vmatprep.subr.mxu0 0.0
    %2265 = vmatpush1.msra.mxu0 0.0
    %2266 = vmatprep.subr.mxu0 0.0
    %2267 = vmatpush1.msra.mxu0 0.0
    %2268 = vmatprep.subr.mxu0 0.0
    %2269 = vmatpush1.msra.mxu0 0.0
    %2270 = vmatprep.subr.mxu0 0.0
    %2271 = vmatpush1.msra.mxu0 0.0
    %2272 = vmatprep.subr.mxu0 0.0
    %2273 = vmatpush1.msra.mxu0 0.0
    %2274 = vmatprep.subr.mxu0 0.0
    %2275 = vmatpush1.msra.mxu0 0.0
    %2276 = vmatprep.subr.mxu0 0.0
    %2277 = vmatpush1.msra.mxu0 0.0
    %2278 = vmatprep.subr.mxu0 0.0
    %2279 = vmatpush1.msra.mxu0 0.0
    %2280 = vmatprep.subr.mxu0 0.0
    %2281 = vmatpush1.msra.mxu0 0.0
    %2282 = vmatprep.subr.mxu0 0.0
    %2283 = vmatpush1.msra.mxu0 0.0
    %2284 = vmatprep.subr.mxu0 0.0
    %2285 = vmatpush1.msra.mxu0 0.0
    %2286 = vmatprep.subr.mxu0 0.0
    %2287 = vmatpush1.msra.mxu0 0.0
    %2288 = vmatprep.subr.mxu0 0.0
    %2289 = vmatpush1.msra.mxu0 0.0
    %2290 = vmatprep.subr.mxu0 0.0
    %2291 = vmatpush1.msra.mxu0 0.0
    %2292 = vmatprep.subr.mxu0 0.0
    %2293 = vmatpush1.msra.mxu0 0.0
    %2294 = vmatprep.subr.mxu0 0.0
    %2295 = vmatpush1.msra.mxu0 0.0
    %2296 = vmatprep.subr.mxu0 0.0
    %2297 = vmatpush1.msra.mxu0 0.0
    %2298 = vmatprep.subr.mxu0 0.0
    %2299 = vmatpush1.msra.mxu0 0.0
    %2300 = vmatprep.subr.mxu0 0.0
    %2301 = vmatpush1.msra.mxu0 0.0
    %2302 = vmatprep.subr.mxu0 0.0
    %2303 = vmatpush1.msra.mxu0 0.0
    %2304 = vmatprep.subr.mxu0 0.0
    %2305 = vmatpush1.msra.mxu0 0.0
    %2306 = vmatprep.subr.mxu0 0.0
    %2307 = vmatpush1.msra.mxu0 0.0
    %2308 = vmatprep.subr.mxu0 0.0
    %2309 = vmatpush1.msra.mxu0 0.0
    %2310 = vmatprep.subr.mxu0 0.0
    %2311 = vmatpush1.msra.mxu0 0.0
    %2312 = vmatprep.subr.mxu0 0.0
    %2313 = vmatpush1.msra.mxu0 0.0
    %2314 = vmatprep.subr.mxu0 0.0
    %2315 = vmatpush1.msra.mxu0 0.0
    %2316 = vmatprep.subr.mxu0 0.0
    %2317 = vmatpush1.msra.mxu0 0.0
    %2318 = vmatprep.subr.mxu0 0.0
    %2319 = vmatpush1.msra.mxu0 0.0
    %2320 = vmatprep.subr.mxu0 0.0
    %2321 = vmatpush1.msra.mxu0 0.0
    %2322 = vmatprep.mubr.f32.mxu0 0.0
    %2323 = vmatmul.mubr.f32.gmra.mrb[0].mxu0 %v2253
    %v2324 = vpop.f32.mrb[0].mxu0
    %v2325 = vadd.f32 0.0, %v2324
    %v2326 = vpop.f32.mrb[0].mxu0
    %2327 = vmatprep.mubr.f32.mxu0 0.0
    %2328 = vmatmul.mubr.f32.gmra.mrb[0].mxu0 %v2256
    %v2329 = vpop.f32.mrb[0].mxu0
    %v2330 = vadd.f32 0.0, %v2329
    %v2331 = vpop.f32.mrb[0].mxu0
    %2332 = vdwg.mxu0
    %2333 = vrot.lane.b32.xlu0 %v1656, 92
    %v2334 = vpop.permute.xlu0 %2333
    %2335 = vrot.lane.b32.xlu0 %v1662, 92
    %v2336 = vpop.permute.xlu0 %2335
    %2337 = vrot.lane.b32.xlu0 %v1658, 92
    %v2338 = vpop.permute.xlu0 %2337
    %2339 = vrot.lane.b32.xlu0 %v1664, 92
    %v2340 = vpop.permute.xlu0 %2339
    %v2341 = vsel %vm318, %v2334, 0
    %v2343 = vsel %vm318, %v2336, 0
    %v2345 = vsel %vm318, %v2338, 0
    %v2347 = vsel %vm318, %v2340, 0
    %2349 = vmatprep.subr.mxu0 0.0
    %2350 = vmatpush1.xpose.msra.mxu0 %v2345
    %2351 = vmatprep.subr.mxu0 0.0
    %2352 = vmatpush1.xpose.msra.mxu0 %v2347
    %2353 = vmatprep.subr.mxu0 0.0
    %2354 = vmatpush1.xpose.msra.mxu0 0.0
    %2355 = vmatprep.subr.mxu0 0.0
    %2356 = vmatpush1.xpose.msra.mxu0 0.0
    %2357 = vmatprep.subr.mxu0 0.0
    %2358 = vmatpush1.xpose.msra.mxu0 0.0
    %2359 = vmatprep.subr.mxu0 0.0
    %2360 = vmatpush1.xpose.msra.mxu0 0.0
    %2361 = vmatprep.subr.mxu0 0.0
    %2362 = vmatpush1.xpose.msra.mxu0 0.0
    %2363 = vmatprep.subr.mxu0 0.0
    %2364 = vmatpush1.xpose.msra.mxu0 0.0
    %2365 = vmatprep.subr.mxu0 0.0
    %2366 = vmatpush1.xpose.msra.mxu0 0.0
    %2367 = vmatprep.subr.mxu0 0.0
    %2368 = vmatpush1.xpose.msra.mxu0 0.0
    %2369 = vmatprep.subr.mxu0 0.0
    %2370 = vmatpush1.xpose.msra.mxu0 0.0
    %2371 = vmatprep.subr.mxu0 0.0
    %2372 = vmatpush1.xpose.msra.mxu0 0.0
    %2373 = vmatprep.subr.mxu0 0.0
    %2374 = vmatpush1.xpose.msra.mxu0 0.0
    %2375 = vmatprep.subr.mxu0 0.0
    %2376 = vmatpush1.xpose.msra.mxu0 0.0
    %2377 = vmatprep.subr.mxu0 0.0
    %2378 = vmatpush1.xpose.msra.mxu0 0.0
    %2379 = vmatprep.subr.mxu0 0.0
    %2380 = vmatpush1.xpose.msra.mxu0 0.0
    %2381 = vmatprep.subr.mxu0 0.0
    %2382 = vmatpush1.xpose.msra.mxu0 0.0
    %2383 = vmatprep.subr.mxu0 0.0
    %2384 = vmatpush1.xpose.msra.mxu0 0.0
    %2385 = vmatprep.subr.mxu0 0.0
    %2386 = vmatpush1.xpose.msra.mxu0 0.0
    %2387 = vmatprep.subr.mxu0 0.0
    %2388 = vmatpush1.xpose.msra.mxu0 0.0
    %2389 = vmatprep.subr.mxu0 0.0
    %2390 = vmatpush1.xpose.msra.mxu0 0.0
    %2391 = vmatprep.subr.mxu0 0.0
    %2392 = vmatpush1.xpose.msra.mxu0 0.0
    %2393 = vmatprep.subr.mxu0 0.0
    %2394 = vmatpush1.xpose.msra.mxu0 0.0
    %2395 = vmatprep.subr.mxu0 0.0
    %2396 = vmatpush1.xpose.msra.mxu0 0.0
    %2397 = vmatprep.subr.mxu0 0.0
    %2398 = vmatpush1.xpose.msra.mxu0 0.0
    %2399 = vmatprep.subr.mxu0 0.0
    %2400 = vmatpush1.xpose.msra.mxu0 0.0
    %2401 = vmatprep.subr.mxu0 0.0
    %2402 = vmatpush1.xpose.msra.mxu0 0.0
    %2403 = vmatprep.subr.mxu0 0.0
    %2404 = vmatpush1.xpose.msra.mxu0 0.0
    %2405 = vmatprep.subr.mxu0 0.0
    %2406 = vmatpush1.xpose.msra.mxu0 0.0
    %2407 = vmatprep.subr.mxu0 0.0
    %2408 = vmatpush1.xpose.msra.mxu0 0.0
    %2409 = vmatprep.subr.mxu0 0.0
    %2410 = vmatpush1.xpose.msra.mxu0 0.0
    %2411 = vmatprep.subr.mxu0 0.0
    %2412 = vmatpush1.xpose.msra.mxu0 0.0
    %2413 = vmatprep.mubr.f32.mxu0 0.0
    %2414 = vmatmul.mubr.f32.gmra.mrb[0].mxu0 %v2341
    %v2415 = vpop.f32.mrb[0].mxu0
    %v2416 = vadd.f32 %v85, %v2415
    %v2417 = vpop.f32.mrb[0].mxu0
    %2418 = vmatprep.mubr.f32.mxu0 0.0
    %2419 = vmatmul.mubr.f32.gmra.mrb[0].mxu0 %v2343
    %v2420 = vpop.f32.mrb[0].mxu0
    %v2421 = vadd.f32 %v86, %v2420
    %v2422 = vpop.f32.mrb[0].mxu0
    %2423 = vdwg.mxu0
    %v2424 = vsel %vm406, %v2416, -inf
    %2425 = vmax.xlane.f32.xlu0 %v2424
    %v2426 = vpop.xlane.xlu0 %2425
    %v2427 = vsel %vm406, %v2421, -inf
    %2428 = vmax.xlane.f32.xlu0 %v2427
    %v2429 = vpop.xlane.xlu0 %2428
    %v2430 = vsub.f32 %v2416, %v2426
    %v2431 = vsub.f32 %v2421, %v2429
    %v2432 = vmul.f32 %v2430, 1.442695
    %v2433 = vpow.pop %v2432
    %v2434 = vmul.f32 %v2431, 1.442695
    %v2435 = vpow.pop %v2434
    %v2436 = vsel %vm406, %v2433, 0.0
    %2437 = vadd.xlane.f32.xlu0 %v2436
    %v2438 = vpop.xlane.xlu0 %2437
    %v2439 = vsel %vm406, %v2435, 0.0
    %2440 = vadd.xlane.f32.xlu0 %v2439
    %v2441 = vpop.xlane.xlu0 %2440
    %v2442 = vrcp.pop %v2438
    %v2443 = vrcp.pop %v2441
    %v2444 = vmul.f32 %v2433, %v2442
    %v2445 = vmul.f32 %v2435, %v2443
    %2446 = vrot.lane.b32.xlu0 %v1733, 92
    %v2447 = vpop.permute.xlu0 %2446
    %2448 = vrot.lane.b32.xlu0 %v1738, 92
    %v2449 = vpop.permute.xlu0 %2448
    %v2453 = vsel %vm406, %v2444, 0
    %v2456 = vsel %vm406, %v2445, 0
    %2458 = vmatprep.subr.mxu0 0.0
    %2459 = vmatpush1.msra.mxu0 %v2447
    %2460 = vmatprep.subr.mxu0 0.0
    %2461 = vmatpush1.msra.mxu0 %v2449
    %2462 = vmatprep.subr.mxu0 0.0
    %2463 = vmatpush1.msra.mxu0 0.0
    %2464 = vmatprep.subr.mxu0 0.0
    %2465 = vmatpush1.msra.mxu0 0.0
    %2466 = vmatprep.subr.mxu0 0.0
    %2467 = vmatpush1.msra.mxu0 0.0
    %2468 = vmatprep.subr.mxu0 0.0
    %2469 = vmatpush1.msra.mxu0 0.0
    %2470 = vmatprep.subr.mxu0 0.0
    %2471 = vmatpush1.msra.mxu0 0.0
    %2472 = vmatprep.subr.mxu0 0.0
    %2473 = vmatpush1.msra.mxu0 0.0
    %2474 = vmatprep.subr.mxu0 0.0
    %2475 = vmatpush1.msra.mxu0 0.0
    %2476 = vmatprep.subr.mxu0 0.0
    %2477 = vmatpush1.msra.mxu0 0.0
    %2478 = vmatprep.subr.mxu0 0.0
    %2479 = vmatpush1.msra.mxu0 0.0
    %2480 = vmatprep.subr.mxu0 0.0
    %2481 = vmatpush1.msra.mxu0 0.0
    %2482 = vmatprep.subr.mxu0 0.0
    %2483 = vmatpush1.msra.mxu0 0.0
    %2484 = vmatprep.subr.mxu0 0.0
    %2485 = vmatpush1.msra.mxu0 0.0
    %2486 = vmatprep.subr.mxu0 0.0
    %2487 = vmatpush1.msra.mxu0 0.0
    %2488 = vmatprep.subr.mxu0 0.0
    %2489 = vmatpush1.msra.mxu0 0.0
    %2490 = vmatprep.subr.mxu0 0.0
    %2491 = vmatpush1.msra.mxu0 0.0
    %2492 = vmatprep.subr.mxu0 0.0
    %2493 = vmatpush1.msra.mxu0 0.0
    %2494 = vmatprep.subr.mxu0 0.0
    %2495 = vmatpush1.msra.mxu0 0.0
    %2496 = vmatprep.subr.mxu0 0.0
    %2497 = vmatpush1.msra.mxu0 0.0
    %2498 = vmatprep.subr.mxu0 0.0
    %2499 = vmatpush1.msra.mxu0 0.0
    %2500 = vmatprep.subr.mxu0 0.0
    %2501 = vmatpush1.msra.mxu0 0.0
    %2502 = vmatprep.subr.mxu0 0.0
    %2503 = vmatpush1.msra.mxu0 0.0
    %2504 = vmatprep.subr.mxu0 0.0
    %2505 = vmatpush1.msra.mxu0 0.0
    %2506 = vmatprep.subr.mxu0 0.0
    %2507 = vmatpush1.msra.mxu0 0.0
    %2508 = vmatprep.subr.mxu0 0.0
    %2509 = vmatpush1.msra.mxu0 0.0
    %2510 = vmatprep.subr.mxu0 0.0
    %2511 = vmatpush1.msra.mxu0 0.0
    %2512 = vmatprep.subr.mxu0 0.0
    %2513 = vmatpush1.msra.mxu0 0.0
    %2514 = vmatprep.subr.mxu0 0.0
    %2515 = vmatpush1.msra.mxu0 0.0
    %2516 = vmatprep.subr.mxu0 0.0
    %2517 = vmatpush1.msra.mxu0 0.0
    %2518 = vmatprep.subr.mxu0 0.0
    %2519 = vmatpush1.msra.mxu0 0.0
    %2520 = vmatprep.subr.mxu0 0.0
    %2521 = vmatpush1.msra.mxu0 0.0
    %2522 = vmatprep.mubr.f32.mxu0 0.0
    %2523 = vmatmul.mubr.f32.gmra.mrb[0].mxu0 %v2453
    %v2524 = vpop.f32.mrb[0].mxu0
    %v2525 = vadd.f32 0.0, %v2524
    %v2526 = vpop.f32.mrb[0].mxu0
    %2527 = vmatprep.mubr.f32.mxu0 0.0
    %2528 = vmatmul.mubr.f32.gmra.mrb[0].mxu0 %v2456
    %v2529 = vpop.f32.mrb[0].mxu0
    %v2530 = vadd.f32 0.0, %v2529
    %v2531 = vpop.f32.mrb[0].mxu0
    %2532 = vdwg.mxu0
    %2535 = vrot.lane.b32.xlu0 %v2125, 12
    %v2536 = vpop.permute.xlu0 %2535
    %2537 = vrot.lane.b32.xlu0 %v2130, 12
    %v2538 = vpop.permute.xlu0 %2537
    %2543 = vrot.lane.b32.xlu0 %v2325, 24
    %v2544 = vpop.permute.xlu0 %2543
    %2545 = vrot.lane.b32.xlu0 %v2330, 24
    %v2546 = vpop.permute.xlu0 %2545
    %2551 = vrot.lane.b32.xlu0 %v2525, 36
    %v2552 = vpop.permute.xlu0 %2551
    %2553 = vrot.lane.b32.xlu0 %v2530, 36
    %v2554 = vpop.permute.xlu0 %2553
    %v2557 = vsel %vm318, %v1923, %v2536
    %v2558 = vsel %vm318, %v1928, %v2538
    %v2559 = vsel %vm1138, %v2557, %v2544
    %v2560 = vsel %vm1138, %v2558, %v2546
    %v2561 = vsel %vm1141, %v2559, %v2552
    %v2562 = vsel %vm1141, %v2560, %v2554
    %s2563 = scalar_lea.vmem %s3, 48
    %v2564 = vld [vmem:[%s2563] sm:$0xff]
    %v2565 = vld [vmem:[%s2563 + $0x8] sm:$0xff]
    %v2566 = vld [vmem:[%s2563 + $0x10] sm:$0xff]
    %v2567 = vld [vmem:[%s2563 + $0x18] sm:$0xff]
    %v2568 = vld [vmem:[%s2563 + $0x20] sm:$0xff]
    %v2569 = vld [vmem:[%s2563 + $0x28] sm:$0xff]
    %v2570 = vlaneseq
    %v2571 = vshrl.u32 %v2570, 7
    %v2572 = vsub.s32 1, %v2571
    %v2573 = vrot.slane %v1511, %v2572
    %v2575 = vsel %vm90, %v2561, 0
    %v2578 = vsel %vm90, %v2562, 0
    %2580 = vmatprep.subr.mxu0 0.0
    %2581 = vmatpush1.msra.mxu0 %v2564
    %2582 = vmatprep.subr.mxu0 0.0
    %2583 = vmatpush1.msra.mxu0 %v2565
    %2584 = vmatprep.subr.mxu0 0.0
    %2585 = vmatpush1.msra.mxu0 %v2566
    %2586 = vmatprep.subr.mxu0 0.0
    %2587 = vmatpush1.msra.mxu0 %v2567
    %2588 = vmatprep.subr.mxu0 0.0
    %2589 = vmatpush1.msra.mxu0 %v2568
    %2590 = vmatprep.subr.mxu0 0.0
    %2591 = vmatpush1.msra.mxu0 %v2569
    %2592 = vmatprep.subr.mxu0 0.0
    %2593 = vmatpush1.msra.mxu0 0.0
    %2594 = vmatprep.subr.mxu0 0.0
    %2595 = vmatpush1.msra.mxu0 0.0
    %2596 = vmatprep.subr.mxu0 0.0
    %2597 = vmatpush1.msra.mxu0 0.0
    %2598 = vmatprep.subr.mxu0 0.0
    %2599 = vmatpush1.msra.mxu0 0.0
    %2600 = vmatprep.subr.mxu0 0.0
    %2601 = vmatpush1.msra.mxu0 0.0
    %2602 = vmatprep.subr.mxu0 0.0
    %2603 = vmatpush1.msra.mxu0 0.0
    %2604 = vmatprep.subr.mxu0 0.0
    %2605 = vmatpush1.msra.mxu0 0.0
    %2606 = vmatprep.subr.mxu0 0.0
    %2607 = vmatpush1.msra.mxu0 0.0
    %2608 = vmatprep.subr.mxu0 0.0
    %2609 = vmatpush1.msra.mxu0 0.0
    %2610 = vmatprep.subr.mxu0 0.0
    %2611 = vmatpush1.msra.mxu0 0.0
    %2612 = vmatprep.subr.mxu0 0.0
    %2613 = vmatpush1.msra.mxu0 0.0
    %2614 = vmatprep.subr.mxu0 0.0
    %2615 = vmatpush1.msra.mxu0 0.0
    %2616 = vmatprep.subr.mxu0 0.0
    %2617 = vmatpush1.msra.mxu0 0.0
    %2618 = vmatprep.subr.mxu0 0.0
    %2619 = vmatpush1.msra.mxu0 0.0
    %2620 = vmatprep.subr.mxu0 0.0
    %2621 = vmatpush1.msra.mxu0 0.0
    %2622 = vmatprep.subr.mxu0 0.0
    %2623 = vmatpush1.msra.mxu0 0.0
    %2624 = vmatprep.subr.mxu0 0.0
    %2625 = vmatpush1.msra.mxu0 0.0
    %2626 = vmatprep.subr.mxu0 0.0
    %2627 = vmatpush1.msra.mxu0 0.0
    %2628 = vmatprep.subr.mxu0 0.0
    %2629 = vmatpush1.msra.mxu0 0.0
    %2630 = vmatprep.subr.mxu0 0.0
    %2631 = vmatpush1.msra.mxu0 0.0
    %2632 = vmatprep.subr.mxu0 0.0
    %2633 = vmatpush1.msra.mxu0 0.0
    %2634 = vmatprep.subr.mxu0 0.0
    %2635 = vmatpush1.msra.mxu0 0.0
    %2636 = vmatprep.subr.mxu0 0.0
    %2637 = vmatpush1.msra.mxu0 0.0
    %2638 = vmatprep.subr.mxu0 0.0
    %2639 = vmatpush1.msra.mxu0 0.0
    %2640 = vmatprep.subr.mxu0 0.0
    %2641 = vmatpush1.msra.mxu0 0.0
    %2642 = vmatprep.subr.mxu0 0.0
    %2643 = vmatpush1.msra.mxu0 0.0
    %2644 = vmatprep.mubr.f32.mxu0 0.0
    %2645 = vmatmul.mubr.f32.gmra.mrb[0].mxu0 %v2575
    %v2646 = vpop.f32.mrb[0].mxu0
    %v2647 = vadd.f32 %v2573, %v2646
    %v2648 = vpop.f32.mrb[0].mxu0
    %2649 = vmatprep.mubr.f32.mxu0 0.0
    %2650 = vmatmul.mubr.f32.gmra.mrb[0].mxu0 %v2578
    %v2651 = vpop.f32.mrb[0].mxu0
    %v2652 = vadd.f32 %v2573, %v2651
    %v2653 = vpop.f32.mrb[0].mxu0
    %2654 = vdwg.mxu0
    %v2655 = vadd.f32 %v1508, %v2647
    %v2656 = vadd.f32 %v1509, %v2652
    %v2657 = vsel %vm90, %v2655, 0.0
    %2658 = vadd.xlane.f32.xlu0 %v2657
    %v2659 = vpop.xlane.xlu0 %2658
    %v2660 = vsel %vm90, %v2656, 0.0
    %2661 = vadd.xlane.f32.xlu0 %v2660
    %v2662 = vpop.xlane.xlu0 %2661
    %v2663 = vmul.f32 %v2659, %v97
    %v2664 = vmul.f32 %v2662, %v97
    %v2665 = vsub.f32 %v2655, %v2663
    %v2666 = vsub.f32 %v2656, %v2664
    %v2667 = vmul.f32 %v2665, %v2665
    %v2668 = vmul.f32 %v2666, %v2666
    %v2669 = vsel %vm90, %v2667, 0.0
    %2670 = vadd.xlane.f32.xlu0 %v2669
    %v2671 = vpop.xlane.xlu0 %2670
    %v2672 = vsel %vm90, %v2668, 0.0
    %2673 = vadd.xlane.f32.xlu0 %v2672
    %v2674 = vpop.xlane.xlu0 %2673
    %v2675 = vmul.f32 %v2671, %v97
    %v2676 = vmul.f32 %v2674, %v97
    %v2677 = vadd.f32 %v2675, 1e-05
    %v2678 = vadd.f32 %v2676, 1e-05
    %v2679 = vrsqrt.pop %v2677
    %v2680 = vrsqrt.pop %v2678
    %v2681 = vmul.f32 %v2665, %v2679
    %v2682 = vmul.f32 %v2666, %v2680
    %v2683 = vlaneseq
    %v2684 = vshrl.u32 %v2683, 7
    %v2685 = vsub.s32 6, %v2684
    %v2686 = vrot.slane %v1511, %v2685
    %v2687 = vmul.f32 %v2681, %v2686
    %v2688 = vmul.f32 %v2682, %v2686
    %v2689 = vlaneseq
    %v2690 = vshrl.u32 %v2689, 7
    %v2691 = vsub.s32 7, %v2690
    %v2692 = vrot.slane %v1511, %v2691
    %v2693 = vadd.f32 %v2687, %v2692
    %v2694 = vadd.f32 %v2688, %v2692
    %s2695 = scalar_lea.vmem %s4, 96
    %v2696 = vld [vmem:[%s2695] sm:$0xff]
    %v2697 = vld [vmem:[%s2695 + $0x8] sm:$0xff]
    %v2698 = vld [vmem:[%s2695 + $0x10] sm:$0xff]
    %v2699 = vld [vmem:[%s2695 + $0x18] sm:$0xff]
    %v2700 = vld [vmem:[%s2695 + $0x20] sm:$0xff]
    %v2701 = vld [vmem:[%s2695 + $0x28] sm:$0xff]
    %v2702 = vld [vmem:[%s2695 + $0x30] sm:$0xff]
    %v2703 = vld [vmem:[%s2695 + $0x38] sm:$0xff]
    %v2704 = vld [vmem:[%s2695 + $0x40] sm:$0xff]
    %v2705 = vld [vmem:[%s2695 + $0x48] sm:$0xff]
    %v2706 = vld [vmem:[%s2695 + $0x50] sm:$0xff]
    %v2707 = vld [vmem:[%s2695 + $0x58] sm:$0xff]
    %v2708 = vlaneseq
    %v2709 = vshrl.u32 %v2708, 7
    %v2710 = vsub.s32 2, %v2709
    %v2711 = vrot.slane %v1511, %v2710
    %v2712 = vlaneseq
    %v2713 = vshrl.u32 %v2712, 7
    %v2714 = vsub.s32 2, %v2713
    %v2715 = vrot.slane %v1512, %v2714
    %v2717 = vsel %vm90, %v2693, 0
    %v2720 = vsel %vm90, %v2694, 0
    %2722 = vmatprep.subr.mxu0 %v2697
    %2723 = vmatpush1.msra.mxu0 %v2696
    %2724 = vmatprep.subr.mxu0 %v2699
    %2725 = vmatpush1.msra.mxu0 %v2698
    %2726 = vmatprep.subr.mxu0 %v2701
    %2727 = vmatpush1.msra.mxu0 %v2700
    %2728 = vmatprep.subr.mxu0 %v2703
    %2729 = vmatpush1.msra.mxu0 %v2702
    %2730 = vmatprep.subr.mxu0 %v2705
    %2731 = vmatpush1.msra.mxu0 %v2704
    %2732 = vmatprep.subr.mxu0 %v2707
    %2733 = vmatpush1.msra.mxu0 %v2706
    %2734 = vmatprep.subr.mxu0 0.0
    %2735 = vmatpush1.msra.mxu0 0.0
    %2736 = vmatprep.subr.mxu0 0.0
    %2737 = vmatpush1.msra.mxu0 0.0
    %2738 = vmatprep.subr.mxu0 0.0
    %2739 = vmatpush1.msra.mxu0 0.0
    %2740 = vmatprep.subr.mxu0 0.0
    %2741 = vmatpush1.msra.mxu0 0.0
    %2742 = vmatprep.subr.mxu0 0.0
    %2743 = vmatpush1.msra.mxu0 0.0
    %2744 = vmatprep.subr.mxu0 0.0
    %2745 = vmatpush1.msra.mxu0 0.0
    %2746 = vmatprep.subr.mxu0 0.0
    %2747 = vmatpush1.msra.mxu0 0.0
    %2748 = vmatprep.subr.mxu0 0.0
    %2749 = vmatpush1.msra.mxu0 0.0
    %2750 = vmatprep.subr.mxu0 0.0
    %2751 = vmatpush1.msra.mxu0 0.0
    %2752 = vmatprep.subr.mxu0 0.0
    %2753 = vmatpush1.msra.mxu0 0.0
    %2754 = vmatprep.subr.mxu0 0.0
    %2755 = vmatpush1.msra.mxu0 0.0
    %2756 = vmatprep.subr.mxu0 0.0
    %2757 = vmatpush1.msra.mxu0 0.0
    %2758 = vmatprep.subr.mxu0 0.0
    %2759 = vmatpush1.msra.mxu0 0.0
    %2760 = vmatprep.subr.mxu0 0.0
    %2761 = vmatpush1.msra.mxu0 0.0
    %2762 = vmatprep.subr.mxu0 0.0
    %2763 = vmatpush1.msra.mxu0 0.0
    %2764 = vmatprep.subr.mxu0 0.0
    %2765 = vmatpush1.msra.mxu0 0.0
    %2766 = vmatprep.subr.mxu0 0.0
    %2767 = vmatpush1.msra.mxu0 0.0
    %2768 = vmatprep.subr.mxu0 0.0
    %2769 = vmatpush1.msra.mxu0 0.0
    %2770 = vmatprep.subr.mxu0 0.0
    %2771 = vmatpush1.msra.mxu0 0.0
    %2772 = vmatprep.subr.mxu0 0.0
    %2773 = vmatpush1.msra.mxu0 0.0
    %2774 = vmatprep.subr.mxu0 0.0
    %2775 = vmatpush1.msra.mxu0 0.0
    %2776 = vmatprep.subr.mxu0 0.0
    %2777 = vmatpush1.msra.mxu0 0.0
    %2778 = vmatprep.subr.mxu0 0.0
    %2779 = vmatpush1.msra.mxu0 0.0
    %2780 = vmatprep.subr.mxu0 0.0
    %2781 = vmatpush1.msra.mxu0 0.0
    %2782 = vmatprep.subr.mxu0 0.0
    %2783 = vmatpush1.msra.mxu0 0.0
    %2784 = vmatprep.subr.mxu0 0.0
    %2785 = vmatpush1.msra.mxu0 0.0
    %2786 = vmatprep.mubr.f32.mxu0 0.0
    %2787 = vmatmul.mubr.f32.gmra.mrb[0].mxu0 %v2717
    %v2788 = vpop.f32.mrb[0].mxu0
    %v2789 = vadd.f32 %v2711, %v2788
    %v2790 = vpop.f32.mrb[0].mxu0
    %v2791 = vadd.f32 %v2715, %v2790
    %2792 = vmatprep.mubr.f32.mxu0 0.0
    %2793 = vmatmul.mubr.f32.gmra.mrb[0].mxu0 %v2720
    %v2794 = vpop.f32.mrb[0].mxu0
    %v2795 = vadd.f32 %v2711, %v2794
    %v2796 = vpop.f32.mrb[0].mxu0
    %v2797 = vadd.f32 %v2715, %v2796
    %2798 = vdwg.mxu0
    %v2799 = vmul.f32 %v2789, 0.5
    %v2800 = vmul.f32 %v2791, 0.5
    %v2801 = vmul.f32 %v2795, 0.5
    %v2802 = vmul.f32 %v2797, 0.5
    %v2803 = vmul.f32 %v2789, 0.70710677
    %v2804 = vmul.f32 %v2791, 0.70710677
    %v2805 = vmul.f32 %v2795, 0.70710677
    %v2806 = vmul.f32 %v2797, 0.70710677
    %v2807 = verf.f32.pop %v2803
    %v2808 = verf.f32.pop %v2804
    %v2809 = verf.f32.pop %v2805
    %v2810 = verf.f32.pop %v2806
    %v2811 = vadd.f32 %v2807, 1.0
    %v2812 = vadd.f32 %v2808, 1.0
    %v2813 = vadd.f32 %v2809, 1.0
    %v2814 = vadd.f32 %v2810, 1.0
    %v2815 = vmul.f32 %v2799, %v2811
    %v2816 = vmul.f32 %v2800, %v2812
    %v2817 = vmul.f32 %v2801, %v2813
    %v2818 = vmul.f32 %v2802, %v2814
    %s2819 = scalar_lea.vmem %s5, 192
    %v2820 = vld [vmem:[%s2819] sm:$0xff]
    %v2821 = vld [vmem:[%s2819 + $0x8] sm:$0xff]
    %v2822 = vld [vmem:[%s2819 + $0x10] sm:$0xff]
    %v2823 = vld [vmem:[%s2819 + $0x18] sm:$0xff]
    %v2824 = vld [vmem:[%s2819 + $0x20] sm:$0xff]
    %v2825 = vld [vmem:[%s2819 + $0x28] sm:$0xff]
    %v2826 = vld [vmem:[%s2819 + $0x30] sm:$0xff]
    %v2827 = vld [vmem:[%s2819 + $0x38] sm:$0xff]
    %v2828 = vld [vmem:[%s2819 + $0x40] sm:$0xff]
    %v2829 = vld [vmem:[%s2819 + $0x48] sm:$0xff]
    %v2830 = vld [vmem:[%s2819 + $0x50] sm:$0xff]
    %v2831 = vld [vmem:[%s2819 + $0x58] sm:$0xff]
    %v2832 = vld [vmem:[%s2819 + $0x60] sm:$0xff]
    %v2833 = vld [vmem:[%s2819 + $0x68] sm:$0xff]
    %v2834 = vld [vmem:[%s2819 + $0x70] sm:$0xff]
    %v2835 = vld [vmem:[%s2819 + $0x78] sm:$0xff]
    %v2836 = vld [vmem:[%s2819 + $0x80] sm:$0xff]
    %v2837 = vld [vmem:[%s2819 + $0x88] sm:$0xff]
    %v2838 = vld [vmem:[%s2819 + $0x90] sm:$0xff]
    %v2839 = vld [vmem:[%s2819 + $0x98] sm:$0xff]
    %v2840 = vld [vmem:[%s2819 + $0xa0] sm:$0xff]
    %v2841 = vld [vmem:[%s2819 + $0xa8] sm:$0xff]
    %v2842 = vld [vmem:[%s2819 + $0xb0] sm:$0xff]
    %v2843 = vld [vmem:[%s2819 + $0xb8] sm:$0xff]
    %v2844 = vlaneseq
    %v2845 = vshrl.u32 %v2844, 7
    %v2846 = vsub.s32 3, %v2845
    %v2847 = vrot.slane %v1511, %v2846
    %v2849 = vsel %vm1426, %v2816, 0
    %v2852 = vsel %vm1426, %v2818, 0
    %2854 = vmatprep.subr.mxu0 0.0
    %2855 = vmatpush1.msra.mxu0 %v2820
    %2856 = vmatprep.subr.mxu0 0.0
    %2857 = vmatpush1.msra.mxu0 %v2821
    %2858 = vmatprep.subr.mxu0 0.0
    %2859 = vmatpush1.msra.mxu0 %v2822
    %2860 = vmatprep.subr.mxu0 0.0
    %2861 = vmatpush1.msra.mxu0 %v2823
    %2862 = vmatprep.subr.mxu0 0.0
    %2863 = vmatpush1.msra.mxu0 %v2824
    %2864 = vmatprep.subr.mxu0 0.0
    %2865 = vmatpush1.msra.mxu0 %v2825
    %2866 = vmatprep.subr.mxu0 0.0
    %2867 = vmatpush1.msra.mxu0 %v2826
    %2868 = vmatprep.subr.mxu0 0.0
    %2869 = vmatpush1.msra.mxu0 %v2827
    %2870 = vmatprep.subr.mxu0 0.0
    %2871 = vmatpush1.msra.mxu0 %v2828
    %2872 = vmatprep.subr.mxu0 0.0
    %2873 = vmatpush1.msra.mxu0 %v2829
    %2874 = vmatprep.subr.mxu0 0.0
    %2875 = vmatpush1.msra.mxu0 %v2830
    %2876 = vmatprep.subr.mxu0 0.0
    %2877 = vmatpush1.msra.mxu0 %v2831
    %2878 = vmatprep.subr.mxu0 0.0
    %2879 = vmatpush1.msra.mxu0 %v2832
    %2880 = vmatprep.subr.mxu0 0.0
    %2881 = vmatpush1.msra.mxu0 %v2833
    %2882 = vmatprep.subr.mxu0 0.0
    %2883 = vmatpush1.msra.mxu0 %v2834
    %2884 = vmatprep.subr.mxu0 0.0
    %2885 = vmatpush1.msra.mxu0 %v2835
    %2886 = vmatprep.subr.mxu0 0.0
    %2887 = vmatpush1.msra.mxu0 %v2836
    %2888 = vmatprep.subr.mxu0 0.0
    %2889 = vmatpush1.msra.mxu0 %v2837
    %2890 = vmatprep.subr.mxu0 0.0
    %2891 = vmatpush1.msra.mxu0 %v2838
    %2892 = vmatprep.subr.mxu0 0.0
    %2893 = vmatpush1.msra.mxu0 %v2839
    %2894 = vmatprep.subr.mxu0 0.0
    %2895 = vmatpush1.msra.mxu0 %v2840
    %2896 = vmatprep.subr.mxu0 0.0
    %2897 = vmatpush1.msra.mxu0 %v2841
    %2898 = vmatprep.subr.mxu0 0.0
    %2899 = vmatpush1.msra.mxu0 %v2842
    %2900 = vmatprep.subr.mxu0 0.0
    %2901 = vmatpush1.msra.mxu0 %v2843
    %2902 = vmatprep.subr.mxu0 0.0
    %2903 = vmatpush1.msra.mxu0 0.0
    %2904 = vmatprep.subr.mxu0 0.0
    %2905 = vmatpush1.msra.mxu0 0.0
    %2906 = vmatprep.subr.mxu0 0.0
    %2907 = vmatpush1.msra.mxu0 0.0
    %2908 = vmatprep.subr.mxu0 0.0
    %2909 = vmatpush1.msra.mxu0 0.0
    %2910 = vmatprep.subr.mxu0 0.0
    %2911 = vmatpush1.msra.mxu0 0.0
    %2912 = vmatprep.subr.mxu0 0.0
    %2913 = vmatpush1.msra.mxu0 0.0
    %2914 = vmatprep.subr.mxu0 0.0
    %2915 = vmatpush1.msra.mxu0 0.0
    %2916 = vmatprep.subr.mxu0 0.0
    %2917 = vmatpush1.msra.mxu0 0.0
    %2918 = vmatprep.mubr.f32.mxu0 %v2849
    %2919 = vmatmul.mubr.f32.gmra.mrb[0].mxu0 %v2815
    %v2920 = vpop.f32.mrb[0].mxu0
    %v2921 = vadd.f32 %v2847, %v2920
    %v2922 = vpop.f32.mrb[0].mxu0
    %2923 = vmatprep.mubr.f32.mxu0 %v2852
    %2924 = vmatmul.mubr.f32.gmra.mrb[0].mxu0 %v2817
    %v2925 = vpop.f32.mrb[0].mxu0
    %v2926 = vadd.f32 %v2847, %v2925
    %v2927 = vpop.f32.mrb[0].mxu0
    %2928 = vdwg.mxu0
    %v2929 = vadd.f32 %v2655, %v2921
    %v2930 = vadd.f32 %v2656, %v2926
    %s2931 = scalar_lea.vmem [#allocation5], 48
    %v2932 = vld [vmem:[%s2931] sm:$0xff]
    %v2933 = vld [vmem:[%s2931 + $0x8] sm:$0xff]
    %v2934 = vld [vmem:[%s2931 + $0x10] sm:$0xff]
    %v2935 = vsel %vm90, %v2929, 0.0
    %2936 = vadd.xlane.f32.xlu0 %v2935
    %v2937 = vpop.xlane.xlu0 %2936
    %v2938 = vsel %vm90, %v2930, 0.0
    %2939 = vadd.xlane.f32.xlu0 %v2938
    %v2940 = vpop.xlane.xlu0 %2939
    %v2941 = vmul.f32 %v2937, %v97
    %v2942 = vmul.f32 %v2940, %v97
    %v2943 = vsub.f32 %v2929, %v2941
    %v2944 = vsub.f32 %v2930, %v2942
    %v2945 = vmul.f32 %v2943, %v2943
    %v2946 = vmul.f32 %v2944, %v2944
    %v2947 = vsel %vm90, %v2945, 0.0
    %2948 = vadd.xlane.f32.xlu0 %v2947
    %v2949 = vpop.xlane.xlu0 %2948
    %v2950 = vsel %vm90, %v2946, 0.0
    %2951 = vadd.xlane.f32.xlu0 %v2950
    %v2952 = vpop.xlane.xlu0 %2951
    %v2953 = vmul.f32 %v2949, %v97
    %v2954 = vmul.f32 %v2952, %v97
    %v2955 = vadd.f32 %v2953, 1e-05
    %v2956 = vadd.f32 %v2954, 1e-05
    %v2957 = vrsqrt.pop %v2955
    %v2958 = vrsqrt.pop %v2956
    %v2959 = vmul.f32 %v2943, %v2957
    %v2960 = vmul.f32 %v2944, %v2958
    %v2961 = vlaneseq
    %v2962 = vshrl.u32 %v2961, 7
    %v2963 = vsub.s32 4, %v2962
    %v2964 = vrot.slane %v2932, %v2963
    %v2965 = vmul.f32 %v2959, %v2964
    %v2966 = vmul.f32 %v2960, %v2964
    %v2967 = vlaneseq
    %v2968 = vshrl.u32 %v2967, 7
    %v2969 = vsub.s32 5, %v2968
    %v2970 = vrot.slane %v2932, %v2969
    %v2971 = vadd.f32 %v2965, %v2970
    %v2972 = vadd.f32 %v2966, %v2970
    %s2973 = scalar_lea.vmem %s2, 288
    %v2974 = vld [vmem:[%s2973] sm:$0xff]
    %v2975 = vld [vmem:[%s2973 + $0x8] sm:$0xff]
    %v2976 = vld [vmem:[%s2973 + $0x10] sm:$0xff]
    %v2977 = vld [vmem:[%s2973 + $0x18] sm:$0xff]
    %v2978 = vld [vmem:[%s2973 + $0x20] sm:$0xff]
    %v2979 = vld [vmem:[%s2973 + $0x28] sm:$0xff]
    %v2980 = vld [vmem:[%s2973 + $0x30] sm:$0xff]
    %v2981 = vld [vmem:[%s2973 + $0x38] sm:$0xff]
    %v2982 = vld [vmem:[%s2973 + $0x40] sm:$0xff]
    %v2983 = vld [vmem:[%s2973 + $0x48] sm:$0xff]
    %v2984 = vld [vmem:[%s2973 + $0x50] sm:$0xff]
    %v2985 = vld [vmem:[%s2973 + $0x58] sm:$0xff]
    %v2986 = vld [vmem:[%s2973 + $0x60] sm:$0xff]
    %v2987 = vld [vmem:[%s2973 + $0x68] sm:$0xff]
    %v2988 = vld [vmem:[%s2973 + $0x70] sm:$0xff]
    %v2989 = vld [vmem:[%s2973 + $0x78] sm:$0xff]
    %v2990 = vld [vmem:[%s2973 + $0x80] sm:$0xff]
    %v2991 = vld [vmem:[%s2973 + $0x88] sm:$0xff]
    %v2992 = vlaneseq
    %v2993 = vshrl.u32 %v2992, 7
    %v2994 = vsub.s32 0, %v2993
    %v2995 = vrot.slane %v2932, %v2994
    %v2996 = vlaneseq
    %v2997 = vshrl.u32 %v2996, 7
    %v2998 = vsub.s32 0, %v2997
    %v2999 = vrot.slane %v2933, %v2998
    %v3000 = vlaneseq
    %v3001 = vshrl.u32 %v3000, 7
    %v3002 = vsub.s32 0, %v3001
    %v3003 = vrot.slane %v2934, %v3002
    %v3005 = vsel %vm90, %v2971, 0
    %v3008 = vsel %vm90, %v2972, 0
    %3010 = vmatprep.subr.mxu0 %v2975
    %3011 = vmatpush1.msra.mxu0 %v2974
    %3012 = vmatprep.subr.mxu0 %v2978
    %3013 = vmatpush1.msra.mxu0 %v2977
    %3014 = vmatprep.subr.mxu0 %v2981
    %3015 = vmatpush1.msra.mxu0 %v2980
    %3016 = vmatprep.subr.mxu0 %v2984
    %3017 = vmatpush1.msra.mxu0 %v2983
    %3018 = vmatprep.subr.mxu0 %v2987
    %3019 = vmatpush1.msra.mxu0 %v2986
    %3020 = vmatprep.subr.mxu0 %v2990
    %3021 = vmatpush1.msra.mxu0 %v2989
    %3022 = vmatprep.subr.mxu0 0.0
    %3023 = vmatpush1.msra.mxu0 0.0
    %3024 = vmatprep.subr.mxu0 0.0
    %3025 = vmatpush1.msra.mxu0 0.0
    %3026 = vmatprep.subr.mxu0 0.0
    %3027 = vmatpush1.msra.mxu0 0.0
    %3028 = vmatprep.subr.mxu0 0.0
    %3029 = vmatpush1.msra.mxu0 0.0
    %3030 = vmatprep.subr.mxu0 0.0
    %3031 = vmatpush1.msra.mxu0 0.0
    %3032 = vmatprep.subr.mxu0 0.0
    %3033 = vmatpush1.msra.mxu0 0.0
    %3034 = vmatprep.subr.mxu0 0.0
    %3035 = vmatpush1.msra.mxu0 0.0
    %3036 = vmatprep.subr.mxu0 0.0
    %3037 = vmatpush1.msra.mxu0 0.0
    %3038 = vmatprep.subr.mxu0 0.0
    %3039 = vmatpush1.msra.mxu0 0.0
    %3040 = vmatprep.subr.mxu0 0.0
    %3041 = vmatpush1.msra.mxu0 0.0
    %3042 = vmatprep.subr.mxu0 0.0
    %3043 = vmatpush1.msra.mxu0 0.0
    %3044 = vmatprep.subr.mxu0 0.0
    %3045 = vmatpush1.msra.mxu0 0.0
    %3046 = vmatprep.subr.mxu0 0.0
    %3047 = vmatpush1.msra.mxu0 0.0
    %3048 = vmatprep.subr.mxu0 0.0
    %3049 = vmatpush1.msra.mxu0 0.0
    %3050 = vmatprep.subr.mxu0 0.0
    %3051 = vmatpush1.msra.mxu0 0.0
    %3052 = vmatprep.subr.mxu0 0.0
    %3053 = vmatpush1.msra.mxu0 0.0
    %3054 = vmatprep.subr.mxu0 0.0
    %3055 = vmatpush1.msra.mxu0 0.0
    %3056 = vmatprep.subr.mxu0 0.0
    %3057 = vmatpush1.msra.mxu0 0.0
    %3058 = vmatprep.subr.mxu0 0.0
    %3059 = vmatpush1.msra.mxu0 0.0
    %3060 = vmatprep.subr.mxu0 0.0
    %3061 = vmatpush1.msra.mxu0 0.0
    %3062 = vmatprep.subr.mxu0 0.0
    %3063 = vmatpush1.msra.mxu0 0.0
    %3064 = vmatprep.subr.mxu0 0.0
    %3065 = vmatpush1.msra.mxu0 0.0
    %3066 = vmatprep.subr.mxu0 0.0
    %3067 = vmatpush1.msra.mxu0 0.0
    %3068 = vmatprep.subr.mxu0 0.0
    %3069 = vmatpush1.msra.mxu0 0.0
    %3070 = vmatprep.subr.mxu0 0.0
    %3071 = vmatpush1.msra.mxu0 0.0
    %3072 = vmatprep.subr.mxu0 0.0
    %3073 = vmatpush1.msra.mxu0 0.0
    %3074 = vmatprep.mubr.f32.mxu0 0.0
    %3075 = vmatmul.mubr.f32.gmra.mrb[0].mxu0 %v3005
    %v3076 = vpop.f32.mrb[0].mxu0
    %v3077 = vadd.f32 %v2995, %v3076
    %v3078 = vpop.f32.mrb[0].mxu0
    %v3079 = vadd.f32 %v2999, %v3078
    %3080 = vmatprep.mubr.f32.mxu0 0.0
    %3081 = vmatmul.mubr.f32.gmra.mrb[0].mxu0 %v3008
    %v3082 = vpop.f32.mrb[0].mxu0
    %v3083 = vadd.f32 %v2995, %v3082
    %v3084 = vpop.f32.mrb[0].mxu0
    %v3085 = vadd.f32 %v2999, %v3084
    %3086 = vdwg.mxu0
    %3087 = vmatprep.subr.mxu0 0.0
    %3088 = vmatpush1.msra.mxu0 %v2976
    %3089 = vmatprep.subr.mxu0 0.0
    %3090 = vmatpush1.msra.mxu0 %v2979
    %3091 = vmatprep.subr.mxu0 0.0
    %3092 = vmatpush1.msra.mxu0 %v2982
    %3093 = vmatprep.subr.mxu0 0.0
    %3094 = vmatpush1.msra.mxu0 %v2985
    %3095 = vmatprep.subr.mxu0 0.0
    %3096 = vmatpush1.msra.mxu0 %v2988
    %3097 = vmatprep.subr.mxu0 0.0
    %3098 = vmatpush1.msra.mxu0 %v2991
    %3099 = vmatprep.subr.mxu0 0.0
    %3100 = vmatpush1.msra.mxu0 0.0
    %3101 = vmatprep.subr.mxu0 0.0
    %3102 = vmatpush1.msra.mxu0 0.0
    %3103 = vmatprep.subr.mxu0 0.0
    %3104 = vmatpush1.msra.mxu0 0.0
    %3105 = vmatprep.subr.mxu0 0.0
    %3106 = vmatpush1.msra.mxu0 0.0
    %3107 = vmatprep.subr.mxu0 0.0
    %3108 = vmatpush1.msra.mxu0 0.0
    %3109 = vmatprep.subr.mxu0 0.0
    %3110 = vmatpush1.msra.mxu0 0.0
    %3111 = vmatprep.subr.mxu0 0.0
    %3112 = vmatpush1.msra.mxu0 0.0
    %3113 = vmatprep.subr.mxu0 0.0
    %3114 = vmatpush1.msra.mxu0 0.0
    %3115 = vmatprep.subr.mxu0 0.0
    %3116 = vmatpush1.msra.mxu0 0.0
    %3117 = vmatprep.subr.mxu0 0.0
    %3118 = vmatpush1.msra.mxu0 0.0
    %3119 = vmatprep.subr.mxu0 0.0
    %3120 = vmatpush1.msra.mxu0 0.0
    %3121 = vmatprep.subr.mxu0 0.0
    %3122 = vmatpush1.msra.mxu0 0.0
    %3123 = vmatprep.subr.mxu0 0.0
    %3124 = vmatpush1.msra.mxu0 0.0
    %3125 = vmatprep.subr.mxu0 0.0
    %3126 = vmatpush1.msra.mxu0 0.0
    %3127 = vmatprep.subr.mxu0 0.0
    %3128 = vmatpush1.msra.mxu0 0.0
    %3129 = vmatprep.subr.mxu0 0.0
    %3130 = vmatpush1.msra.mxu0 0.0
    %3131 = vmatprep.subr.mxu0 0.0
    %3132 = vmatpush1.msra.mxu0 0.0
    %3133 = vmatprep.subr.mxu0 0.0
    %3134 = vmatpush1.msra.mxu0 0.0
    %3135 = vmatprep.subr.mxu0 0.0
    %3136 = vmatpush1.msra.mxu0 0.0
    %3137 = vmatprep.subr.mxu0 0.0
    %3138 = vmatpush1.msra.mxu0 0.0
    %3139 = vmatprep.subr.mxu0 0.0
    %3140 = vmatpush1.msra.mxu0 0.0
    %3141 = vmatprep.subr.mxu0 0.0
    %3142 = vmatpush1.msra.mxu0 0.0
    %3143 = vmatprep.subr.mxu0 0.0
    %3144 = vmatpush1.msra.mxu0 0.0
    %3145 = vmatprep.subr.mxu0 0.0
    %3146 = vmatpush1.msra.mxu0 0.0
    %3147 = vmatprep.subr.mxu0 0.0
    %3148 = vmatpush1.msra.mxu0 0.0
    %3149 = vmatprep.subr.mxu0 0.0
    %3150 = vmatpush1.msra.mxu0 0.0
    %3151 = vmatprep.mubr.f32.mxu0 0.0
    %3152 = vmatmul.mubr.f32.gmra.mrb[0].mxu0 %v3005
    %v3153 = vpop.f32.mrb[0].mxu0
    %v3154 = vadd.f32 %v3003, %v3153
    %v3155 = vpop.f32.mrb[0].mxu0
    %3156 = vmatprep.mubr.f32.mxu0 0.0
    %3157 = vmatmul.mubr.f32.gmra.mrb[0].mxu0 %v3008
    %v3158 = vpop.f32.mrb[0].mxu0
    %v3159 = vadd.f32 %v3003, %v3158
    %v3160 = vpop.f32.mrb[0].mxu0
    %3161 = vdwg.mxu0
    %v3163 = vsel %vm318, %v3077, 0
    %v3166 = vsel %vm318, %v3083, 0
    %v3169 = vsel %vm318, %v3079, 0
    %v3172 = vsel %vm318, %v3085, 0
    %3174 = vmatprep.subr.mxu0 0.0
    %3175 = vmatpush1.xpose.msra.mxu0 %v3169
    %3176 = vmatprep.subr.mxu0 0.0
    %3177 = vmatpush1.xpose.msra.mxu0 %v3172
    %3178 = vmatprep.subr.mxu0 0.0
    %3179 = vmatpush1.xpose.msra.mxu0 0.0
    %3180 = vmatprep.subr.mxu0 0.0
    %3181 = vmatpush1.xpose.msra.mxu0 0.0
    %3182 = vmatprep.subr.mxu0 0.0
    %3183 = vmatpush1.xpose.msra.mxu0 0.0
    %3184 = vmatprep.subr.mxu0 0.0
    %3185 = vmatpush1.xpose.msra.mxu0 0.0
    %3186 = vmatprep.subr.mxu0 0.0
    %3187 = vmatpush1.xpose.msra.mxu0 0.0
    %3188 = vmatprep.subr.mxu0 0.0
    %3189 = vmatpush1.xpose.msra.mxu0 0.0
    %3190 = vmatprep.subr.mxu0 0.0
    %3191 = vmatpush1.xpose.msra.mxu0 0.0
    %3192 = vmatprep.subr.mxu0 0.0
    %3193 = vmatpush1.xpose.msra.mxu0 0.0
    %3194 = vmatprep.subr.mxu0 0.0
    %3195 = vmatpush1.xpose.msra.mxu0 0.0
    %3196 = vmatprep.subr.mxu0 0.0
    %3197 = vmatpush1.xpose.msra.mxu0 0.0
    %3198 = vmatprep.subr.mxu0 0.0
    %3199 = vmatpush1.xpose.msra.mxu0 0.0
    %3200 = vmatprep.subr.mxu0 0.0
    %3201 = vmatpush1.xpose.msra.mxu0 0.0
    %3202 = vmatprep.subr.mxu0 0.0
    %3203 = vmatpush1.xpose.msra.mxu0 0.0
    %3204 = vmatprep.subr.mxu0 0.0
    %3205 = vmatpush1.xpose.msra.mxu0 0.0
    %3206 = vmatprep.subr.mxu0 0.0
    %3207 = vmatpush1.xpose.msra.mxu0 0.0
    %3208 = vmatprep.subr.mxu0 0.0
    %3209 = vmatpush1.xpose.msra.mxu0 0.0
    %3210 = vmatprep.subr.mxu0 0.0
    %3211 = vmatpush1.xpose.msra.mxu0 0.0
    %3212 = vmatprep.subr.mxu0 0.0
    %3213 = vmatpush1.xpose.msra.mxu0 0.0
    %3214 = vmatprep.subr.mxu0 0.0
    %3215 = vmatpush1.xpose.msra.mxu0 0.0
    %3216 = vmatprep.subr.mxu0 0.0
    %3217 = vmatpush1.xpose.msra.mxu0 0.0
    %3218 = vmatprep.subr.mxu0 0.0
    %3219 = vmatpush1.xpose.msra.mxu0 0.0
    %3220 = vmatprep.subr.mxu0 0.0
    %3221 = vmatpush1.xpose.msra.mxu0 0.0
    %3222 = vmatprep.subr.mxu0 0.0
    %3223 = vmatpush1.xpose.msra.mxu0 0.0
    %3224 = vmatprep.subr.mxu0 0.0
    %3225 = vmatpush1.xpose.msra.mxu0 0.0
    %3226 = vmatprep.subr.mxu0 0.0
    %3227 = vmatpush1.xpose.msra.mxu0 0.0
    %3228 = vmatprep.subr.mxu0 0.0
    %3229 = vmatpush1.xpose.msra.mxu0 0.0
    %3230 = vmatprep.subr.mxu0 0.0
    %3231 = vmatpush1.xpose.msra.mxu0 0.0
    %3232 = vmatprep.subr.mxu0 0.0
    %3233 = vmatpush1.xpose.msra.mxu0 0.0
    %3234 = vmatprep.subr.mxu0 0.0
    %3235 = vmatpush1.xpose.msra.mxu0 0.0
    %3236 = vmatprep.subr.mxu0 0.0
    %3237 = vmatpush1.xpose.msra.mxu0 0.0
    %3238 = vmatprep.mubr.f32.mxu0 0.0
    %3239 = vmatmul.mubr.f32.gmra.mrb[0].mxu0 %v3163
    %v3240 = vpop.f32.mrb[0].mxu0
    %v3241 = vadd.f32 %v85, %v3240
    %v3242 = vpop.f32.mrb[0].mxu0
    %3243 = vmatprep.mubr.f32.mxu0 0.0
    %3244 = vmatmul.mubr.f32.gmra.mrb[0].mxu0 %v3166
    %v3245 = vpop.f32.mrb[0].mxu0
    %v3246 = vadd.f32 %v86, %v3245
    %v3247 = vpop.f32.mrb[0].mxu0
    %3248 = vdwg.mxu0
    %v3249 = vsel %vm406, %v3241, -inf
    %3250 = vmax.xlane.f32.xlu0 %v3249
    %v3251 = vpop.xlane.xlu0 %3250
    %v3252 = vsel %vm406, %v3246, -inf
    %3253 = vmax.xlane.f32.xlu0 %v3252
    %v3254 = vpop.xlane.xlu0 %3253
    %v3255 = vsub.f32 %v3241, %v3251
    %v3256 = vsub.f32 %v3246, %v3254
    %v3257 = vmul.f32 %v3255, 1.442695
    %v3258 = vpow.pop %v3257
    %v3259 = vmul.f32 %v3256, 1.442695
    %v3260 = vpow.pop %v3259
    %v3261 = vsel %vm406, %v3258, 0.0
    %3262 = vadd.xlane.f32.xlu0 %v3261
    %v3263 = vpop.xlane.xlu0 %3262
    %v3264 = vsel %vm406, %v3260, 0.0
    %3265 = vadd.xlane.f32.xlu0 %v3264
    %v3266 = vpop.xlane.xlu0 %3265
    %v3267 = vrcp.pop %v3263
    %v3268 = vrcp.pop %v3266
    %v3269 = vmul.f32 %v3258, %v3267
    %v3270 = vmul.f32 %v3260, %v3268
    %v3272 = vsel %vm406, %v3269, 0
    %v3275 = vsel %vm406, %v3270, 0
    %3277 = vmatprep.subr.mxu0 0.0
    %3278 = vmatpush1.msra.mxu0 %v3154
    %3279 = vmatprep.subr.mxu0 0.0
    %3280 = vmatpush1.msra.mxu0 %v3159
    %3281 = vmatprep.subr.mxu0 0.0
    %3282 = vmatpush1.msra.mxu0 0.0
    %3283 = vmatprep.subr.mxu0 0.0
    %3284 = vmatpush1.msra.mxu0 0.0
    %3285 = vmatprep.subr.mxu0 0.0
    %3286 = vmatpush1.msra.mxu0 0.0
    %3287 = vmatprep.subr.mxu0 0.0
    %3288 = vmatpush1.msra.mxu0 0.0
    %3289 = vmatprep.subr.mxu0 0.0
    %3290 = vmatpush1.msra.mxu0 0.0
    %3291 = vmatprep.subr.mxu0 0.0
    %3292 = vmatpush1.msra.mxu0 0.0
    %3293 = vmatprep.subr.mxu0 0.0
    %3294 = vmatpush1.msra.mxu0 0.0
    %3295 = vmatprep.subr.mxu0 0.0
    %3296 = vmatpush1.msra.mxu0 0.0
    %3297 = vmatprep.subr.mxu0 0.0
    %3298 = vmatpush1.msra.mxu0 0.0
    %3299 = vmatprep.subr.mxu0 0.0
    %3300 = vmatpush1.msra.mxu0 0.0
    %3301 = vmatprep.subr.mxu0 0.0
    %3302 = vmatpush1.msra.mxu0 0.0
    %3303 = vmatprep.subr.mxu0 0.0
    %3304 = vmatpush1.msra.mxu0 0.0
    %3305 = vmatprep.subr.mxu0 0.0
    %3306 = vmatpush1.msra.mxu0 0.0
    %3307 = vmatprep.subr.mxu0 0.0
    %3308 = vmatpush1.msra.mxu0 0.0
    %3309 = vmatprep.subr.mxu0 0.0
    %3310 = vmatpush1.msra.mxu0 0.0
    %3311 = vmatprep.subr.mxu0 0.0
    %3312 = vmatpush1.msra.mxu0 0.0
    %3313 = vmatprep.subr.mxu0 0.0
    %3314 = vmatpush1.msra.mxu0 0.0
    %3315 = vmatprep.subr.mxu0 0.0
    %3316 = vmatpush1.msra.mxu0 0.0
    %3317 = vmatprep.subr.mxu0 0.0
    %3318 = vmatpush1.msra.mxu0 0.0
    %3319 = vmatprep.subr.mxu0 0.0
    %3320 = vmatpush1.msra.mxu0 0.0
    %3321 = vmatprep.subr.mxu0 0.0
    %3322 = vmatpush1.msra.mxu0 0.0
    %3323 = vmatprep.subr.mxu0 0.0
    %3324 = vmatpush1.msra.mxu0 0.0
    %3325 = vmatprep.subr.mxu0 0.0
    %3326 = vmatpush1.msra.mxu0 0.0
    %3327 = vmatprep.subr.mxu0 0.0
    %3328 = vmatpush1.msra.mxu0 0.0
    %3329 = vmatprep.subr.mxu0 0.0
    %3330 = vmatpush1.msra.mxu0 0.0
    %3331 = vmatprep.subr.mxu0 0.0
    %3332 = vmatpush1.msra.mxu0 0.0
    %3333 = vmatprep.subr.mxu0 0.0
    %3334 = vmatpush1.msra.mxu0 0.0
    %3335 = vmatprep.subr.mxu0 0.0
    %3336 = vmatpush1.msra.mxu0 0.0
    %3337 = vmatprep.subr.mxu0 0.0
    %3338 = vmatpush1.msra.mxu0 0.0
    %3339 = vmatprep.subr.mxu0 0.0
    %3340 = vmatpush1.msra.mxu0 0.0
    %3341 = vmatprep.mubr.f32.mxu0 0.0
    %3342 = vmatmul.mubr.f32.gmra.mrb[0].mxu0 %v3272
    %v3343 = vpop.f32.mrb[0].mxu0
    %v3344 = vadd.f32 0.0, %v3343
    %v3345 = vpop.f32.mrb[0].mxu0
    %3346 = vmatprep.mubr.f32.mxu0 0.0
    %3347 = vmatmul.mubr.f32.gmra.mrb[0].mxu0 %v3275
    %v3348 = vpop.f32.mrb[0].mxu0
    %v3349 = vadd.f32 0.0, %v3348
    %v3350 = vpop.f32.mrb[0].mxu0
    %3351 = vdwg.mxu0
    %3352 = vrot.lane.b32.xlu0 %v3077, 116
    %v3353 = vpop.permute.xlu0 %3352
    %3354 = vrot.lane.b32.xlu0 %v3083, 116
    %v3355 = vpop.permute.xlu0 %3354
    %3356 = vrot.lane.b32.xlu0 %v3079, 116
    %v3357 = vpop.permute.xlu0 %3356
    %3358 = vrot.lane.b32.xlu0 %v3085, 116
    %v3359 = vpop.permute.xlu0 %3358
    %v3360 = vsel %vm318, %v3353, 0
    %v3362 = vsel %vm318, %v3355, 0
    %v3364 = vsel %vm318, %v3357, 0
    %v3366 = vsel %vm318, %v3359, 0
    %3368 = vmatprep.subr.mxu0 0.0
    %3369 = vmatpush1.xpose.msra.mxu0 %v3364
    %3370 = vmatprep.subr.mxu0 0.0
    %3371 = vmatpush1.xpose.msra.mxu0 %v3366
    %3372 = vmatprep.subr.mxu0 0.0
    %3373 = vmatpush1.xpose.msra.mxu0 0.0
    %3374 = vmatprep.subr.mxu0 0.0
    %3375 = vmatpush1.xpose.msra.mxu0 0.0
    %3376 = vmatprep.subr.mxu0 0.0
    %3377 = vmatpush1.xpose.msra.mxu0 0.0
    %3378 = vmatprep.subr.mxu0 0.0
    %3379 = vmatpush1.xpose.msra.mxu0 0.0
    %3380 = vmatprep.subr.mxu0 0.0
    %3381 = vmatpush1.xpose.msra.mxu0 0.0
    %3382 = vmatprep.subr.mxu0 0.0
    %3383 = vmatpush1.xpose.msra.mxu0 0.0
    %3384 = vmatprep.subr.mxu0 0.0
    %3385 = vmatpush1.xpose.msra.mxu0 0.0
    %3386 = vmatprep.subr.mxu0 0.0
    %3387 = vmatpush1.xpose.msra.mxu0 0.0
    %3388 = vmatprep.subr.mxu0 0.0
    %3389 = vmatpush1.xpose.msra.mxu0 0.0
    %3390 = vmatprep.subr.mxu0 0.0
    %3391 = vmatpush1.xpose.msra.mxu0 0.0
    %3392 = vmatprep.subr.mxu0 0.0
    %3393 = vmatpush1.xpose.msra.mxu0 0.0
    %3394 = vmatprep.subr.mxu0 0.0
    %3395 = vmatpush1.xpose.msra.mxu0 0.0
    %3396 = vmatprep.subr.mxu0 0.0
    %3397 = vmatpush1.xpose.msra.mxu0 0.0
    %3398 = vmatprep.subr.mxu0 0.0
    %3399 = vmatpush1.xpose.msra.mxu0 0.0
    %3400 = vmatprep.subr.mxu0 0.0
    %3401 = vmatpush1.xpose.msra.mxu0 0.0
    %3402 = vmatprep.subr.mxu0 0.0
    %3403 = vmatpush1.xpose.msra.mxu0 0.0
    %3404 = vmatprep.subr.mxu0 0.0
    %3405 = vmatpush1.xpose.msra.mxu0 0.0
    %3406 = vmatprep.subr.mxu0 0.0
    %3407 = vmatpush1.xpose.msra.mxu0 0.0
    %3408 = vmatprep.subr.mxu0 0.0
    %3409 = vmatpush1.xpose.msra.mxu0 0.0
    %3410 = vmatprep.subr.mxu0 0.0
    %3411 = vmatpush1.xpose.msra.mxu0 0.0
    %3412 = vmatprep.subr.mxu0 0.0
    %3413 = vmatpush1.xpose.msra.mxu0 0.0
    %3414 = vmatprep.subr.mxu0 0.0
    %3415 = vmatpush1.xpose.msra.mxu0 0.0
    %3416 = vmatprep.subr.mxu0 0.0
    %3417 = vmatpush1.xpose.msra.mxu0 0.0
    %3418 = vmatprep.subr.mxu0 0.0
    %3419 = vmatpush1.xpose.msra.mxu0 0.0
    %3420 = vmatprep.subr.mxu0 0.0
    %3421 = vmatpush1.xpose.msra.mxu0 0.0
    %3422 = vmatprep.subr.mxu0 0.0
    %3423 = vmatpush1.xpose.msra.mxu0 0.0
    %3424 = vmatprep.subr.mxu0 0.0
    %3425 = vmatpush1.xpose.msra.mxu0 0.0
    %3426 = vmatprep.subr.mxu0 0.0
    %3427 = vmatpush1.xpose.msra.mxu0 0.0
    %3428 = vmatprep.subr.mxu0 0.0
    %3429 = vmatpush1.xpose.msra.mxu0 0.0
    %3430 = vmatprep.subr.mxu0 0.0
    %3431 = vmatpush1.xpose.msra.mxu0 0.0
    %3432 = vmatprep.mubr.f32.mxu0 0.0
    %3433 = vmatmul.mubr.f32.gmra.mrb[0].mxu0 %v3360
    %v3434 = vpop.f32.mrb[0].mxu0
    %v3435 = vadd.f32 %v85, %v3434
    %v3436 = vpop.f32.mrb[0].mxu0
    %3437 = vmatprep.mubr.f32.mxu0 0.0
    %3438 = vmatmul.mubr.f32.gmra.mrb[0].mxu0 %v3362
    %v3439 = vpop.f32.mrb[0].mxu0
    %v3440 = vadd.f32 %v86, %v3439
    %v3441 = vpop.f32.mrb[0].mxu0
    %3442 = vdwg.mxu0
    %v3443 = vsel %vm406, %v3435, -inf
    %3444 = vmax.xlane.f32.xlu0 %v3443
    %v3445 = vpop.xlane.xlu0 %3444
    %v3446 = vsel %vm406, %v3440, -inf
    %3447 = vmax.xlane.f32.xlu0 %v3446
    %v3448 = vpop.xlane.xlu0 %3447
    %v3449 = vsub.f32 %v3435, %v3445
    %v3450 = vsub.f32 %v3440, %v3448
    %v3451 = vmul.f32 %v3449, 1.442695
    %v3452 = vpow.pop %v3451
    %v3453 = vmul.f32 %v3450, 1.442695
    %v3454 = vpow.pop %v3453
    %v3455 = vsel %vm406, %v3452, 0.0
    %3456 = vadd.xlane.f32.xlu0 %v3455
    %v3457 = vpop.xlane.xlu0 %3456
    %v3458 = vsel %vm406, %v3454, 0.0
    %3459 = vadd.xlane.f32.xlu0 %v3458
    %v3460 = vpop.xlane.xlu0 %3459
    %v3461 = vrcp.pop %v3457
    %v3462 = vrcp.pop %v3460
    %v3463 = vmul.f32 %v3452, %v3461
    %v3464 = vmul.f32 %v3454, %v3462
    %3467 = vrot.lane.b32.xlu0 %v3154, 116
    %v3468 = vpop.permute.xlu0 %3467
    %3469 = vrot.lane.b32.xlu0 %v3159, 116
    %v3470 = vpop.permute.xlu0 %3469
    %v3474 = vsel %vm406, %v3463, 0
    %v3477 = vsel %vm406, %v3464, 0
    %3479 = vmatprep.subr.mxu0 0.0
    %3480 = vmatpush1.msra.mxu0 %v3468
    %3481 = vmatprep.subr.mxu0 0.0
    %3482 = vmatpush1.msra.mxu0 %v3470
    %3483 = vmatprep.subr.mxu0 0.0
    %3484 = vmatpush1.msra.mxu0 0.0
    %3485 = vmatprep.subr.mxu0 0.0
    %3486 = vmatpush1.msra.mxu0 0.0
    %3487 = vmatprep.subr.mxu0 0.0
    %3488 = vmatpush1.msra.mxu0 0.0
    %3489 = vmatprep.subr.mxu0 0.0
    %3490 = vmatpush1.msra.mxu0 0.0
    %3491 = vmatprep.subr.mxu0 0.0
    %3492 = vmatpush1.msra.mxu0 0.0
    %3493 = vmatprep.subr.mxu0 0.0
    %3494 = vmatpush1.msra.mxu0 0.0
    %3495 = vmatprep.subr.mxu0 0.0
    %3496 = vmatpush1.msra.mxu0 0.0
    %3497 = vmatprep.subr.mxu0 0.0
    %3498 = vmatpush1.msra.mxu0 0.0
    %3499 = vmatprep.subr.mxu0 0.0
    %3500 = vmatpush1.msra.mxu0 0.0
    %3501 = vmatprep.subr.mxu0 0.0
    %3502 = vmatpush1.msra.mxu0 0.0
    %3503 = vmatprep.subr.mxu0 0.0
    %3504 = vmatpush1.msra.mxu0 0.0
    %3505 = vmatprep.subr.mxu0 0.0
    %3506 = vmatpush1.msra.mxu0 0.0
    %3507 = vmatprep.subr.mxu0 0.0
    %3508 = vmatpush1.msra.mxu0 0.0
    %3509 = vmatprep.subr.mxu0 0.0
    %3510 = vmatpush1.msra.mxu0 0.0
    %3511 = vmatprep.subr.mxu0 0.0
    %3512 = vmatpush1.msra.mxu0 0.0
    %3513 = vmatprep.subr.mxu0 0.0
    %3514 = vmatpush1.msra.mxu0 0.0
    %3515 = vmatprep.subr.mxu0 0.0
    %3516 = vmatpush1.msra.mxu0 0.0
    %3517 = vmatprep.subr.mxu0 0.0
    %3518 = vmatpush1.msra.mxu0 0.0
    %3519 = vmatprep.subr.mxu0 0.0
    %3520 = vmatpush1.msra.mxu0 0.0
    %3521 = vmatprep.subr.mxu0 0.0
    %3522 = vmatpush1.msra.mxu0 0.0
    %3523 = vmatprep.subr.mxu0 0.0
    %3524 = vmatpush1.msra.mxu0 0.0
    %3525 = vmatprep.subr.mxu0 0.0
    %3526 = vmatpush1.msra.mxu0 0.0
    %3527 = vmatprep.subr.mxu0 0.0
    %3528 = vmatpush1.msra.mxu0 0.0
    %3529 = vmatprep.subr.mxu0 0.0
    %3530 = vmatpush1.msra.mxu0 0.0
    %3531 = vmatprep.subr.mxu0 0.0
    %3532 = vmatpush1.msra.mxu0 0.0
    %3533 = vmatprep.subr.mxu0 0.0
    %3534 = vmatpush1.msra.mxu0 0.0
    %3535 = vmatprep.subr.mxu0 0.0
    %3536 = vmatpush1.msra.mxu0 0.0
    %3537 = vmatprep.subr.mxu0 0.0
    %3538 = vmatpush1.msra.mxu0 0.0
    %3539 = vmatprep.subr.mxu0 0.0
    %3540 = vmatpush1.msra.mxu0 0.0
    %3541 = vmatprep.subr.mxu0 0.0
    %3542 = vmatpush1.msra.mxu0 0.0
    %3543 = vmatprep.mubr.f32.mxu0 0.0
    %3544 = vmatmul.mubr.f32.gmra.mrb[0].mxu0 %v3474
    %v3545 = vpop.f32.mrb[0].mxu0
    %v3546 = vadd.f32 0.0, %v3545
    %v3547 = vpop.f32.mrb[0].mxu0
    %3548 = vmatprep.mubr.f32.mxu0 0.0
    %3549 = vmatmul.mubr.f32.gmra.mrb[0].mxu0 %v3477
    %v3550 = vpop.f32.mrb[0].mxu0
    %v3551 = vadd.f32 0.0, %v3550
    %v3552 = vpop.f32.mrb[0].mxu0
    %3553 = vdwg.mxu0
    %3554 = vrot.lane.b32.xlu0 %v3077, 104
    %v3555 = vpop.permute.xlu0 %3554
    %3556 = vrot.lane.b32.xlu0 %v3083, 104
    %v3557 = vpop.permute.xlu0 %3556
    %3558 = vrot.lane.b32.xlu0 %v3079, 104
    %v3559 = vpop.permute.xlu0 %3558
    %3560 = vrot.lane.b32.xlu0 %v3085, 104
    %v3561 = vpop.permute.xlu0 %3560
    %v3562 = vsel %vm318, %v3555, 0
    %v3564 = vsel %vm318, %v3557, 0
    %v3566 = vsel %vm318, %v3559, 0
    %v3568 = vsel %vm318, %v3561, 0
    %3570 = vmatprep.subr.mxu0 0.0
    %3571 = vmatpush1.xpose.msra.mxu0 %v3566
    %3572 = vmatprep.subr.mxu0 0.0
    %3573 = vmatpush1.xpose.msra.mxu0 %v3568
    %3574 = vmatprep.subr.mxu0 0.0
    %3575 = vmatpush1.xpose.msra.mxu0 0.0
    %3576 = vmatprep.subr.mxu0 0.0
    %3577 = vmatpush1.xpose.msra.mxu0 0.0
    %3578 = vmatprep.subr.mxu0 0.0
    %3579 = vmatpush1.xpose.msra.mxu0 0.0
    %3580 = vmatprep.subr.mxu0 0.0
    %3581 = vmatpush1.xpose.msra.mxu0 0.0
    %3582 = vmatprep.subr.mxu0 0.0
    %3583 = vmatpush1.xpose.msra.mxu0 0.0
    %3584 = vmatprep.subr.mxu0 0.0
    %3585 = vmatpush1.xpose.msra.mxu0 0.0
    %3586 = vmatprep.subr.mxu0 0.0
    %3587 = vmatpush1.xpose.msra.mxu0 0.0
    %3588 = vmatprep.subr.mxu0 0.0
    %3589 = vmatpush1.xpose.msra.mxu0 0.0
    %3590 = vmatprep.subr.mxu0 0.0
    %3591 = vmatpush1.xpose.msra.mxu0 0.0
    %3592 = vmatprep.subr.mxu0 0.0
    %3593 = vmatpush1.xpose.msra.mxu0 0.0
    %3594 = vmatprep.subr.mxu0 0.0
    %3595 = vmatpush1.xpose.msra.mxu0 0.0
    %3596 = vmatprep.subr.mxu0 0.0
    %3597 = vmatpush1.xpose.msra.mxu0 0.0
    %3598 = vmatprep.subr.mxu0 0.0
    %3599 = vmatpush1.xpose.msra.mxu0 0.0
    %3600 = vmatprep.subr.mxu0 0.0
    %3601 = vmatpush1.xpose.msra.mxu0 0.0
    %3602 = vmatprep.subr.mxu0 0.0
    %3603 = vmatpush1.xpose.msra.mxu0 0.0
    %3604 = vmatprep.subr.mxu0 0.0
    %3605 = vmatpush1.xpose.msra.mxu0 0.0
    %3606 = vmatprep.subr.mxu0 0.0
    %3607 = vmatpush1.xpose.msra.mxu0 0.0
    %3608 = vmatprep.subr.mxu0 0.0
    %3609 = vmatpush1.xpose.msra.mxu0 0.0
    %3610 = vmatprep.subr.mxu0 0.0
    %3611 = vmatpush1.xpose.msra.mxu0 0.0
    %3612 = vmatprep.subr.mxu0 0.0
    %3613 = vmatpush1.xpose.msra.mxu0 0.0
    %3614 = vmatprep.subr.mxu0 0.0
    %3615 = vmatpush1.xpose.msra.mxu0 0.0
    %3616 = vmatprep.subr.mxu0 0.0
    %3617 = vmatpush1.xpose.msra.mxu0 0.0
    %3618 = vmatprep.subr.mxu0 0.0
    %3619 = vmatpush1.xpose.msra.mxu0 0.0
    %3620 = vmatprep.subr.mxu0 0.0
    %3621 = vmatpush1.xpose.msra.mxu0 0.0
    %3622 = vmatprep.subr.mxu0 0.0
    %3623 = vmatpush1.xpose.msra.mxu0 0.0
    %3624 = vmatprep.subr.mxu0 0.0
    %3625 = vmatpush1.xpose.msra.mxu0 0.0
    %3626 = vmatprep.subr.mxu0 0.0
    %3627 = vmatpush1.xpose.msra.mxu0 0.0
    %3628 = vmatprep.subr.mxu0 0.0
    %3629 = vmatpush1.xpose.msra.mxu0 0.0
    %3630 = vmatprep.subr.mxu0 0.0
    %3631 = vmatpush1.xpose.msra.mxu0 0.0
    %3632 = vmatprep.subr.mxu0 0.0
    %3633 = vmatpush1.xpose.msra.mxu0 0.0
    %3634 = vmatprep.mubr.f32.mxu0 0.0
    %3635 = vmatmul.mubr.f32.gmra.mrb[0].mxu0 %v3562
    %v3636 = vpop.f32.mrb[0].mxu0
    %v3637 = vadd.f32 %v85, %v3636
    %v3638 = vpop.f32.mrb[0].mxu0
    %3639 = vmatprep.mubr.f32.mxu0 0.0
    %3640 = vmatmul.mubr.f32.gmra.mrb[0].mxu0 %v3564
    %v3641 = vpop.f32.mrb[0].mxu0
    %v3642 = vadd.f32 %v86, %v3641
    %v3643 = vpop.f32.mrb[0].mxu0
    %3644 = vdwg.mxu0
    %v3645 = vsel %vm406, %v3637, -inf
    %3646 = vmax.xlane.f32.xlu0 %v3645
    %v3647 = vpop.xlane.xlu0 %3646
    %v3648 = vsel %vm406, %v3642, -inf
    %3649 = vmax.xlane.f32.xlu0 %v3648
    %v3650 = vpop.xlane.xlu0 %3649
    %v3651 = vsub.f32 %v3637, %v3647
    %v3652 = vsub.f32 %v3642, %v3650
    %v3653 = vmul.f32 %v3651, 1.442695
    %v3654 = vpow.pop %v3653
    %v3655 = vmul.f32 %v3652, 1.442695
    %v3656 = vpow.pop %v3655
    %v3657 = vsel %vm406, %v3654, 0.0
    %3658 = vadd.xlane.f32.xlu0 %v3657
    %v3659 = vpop.xlane.xlu0 %3658
    %v3660 = vsel %vm406, %v3656, 0.0
    %3661 = vadd.xlane.f32.xlu0 %v3660
    %v3662 = vpop.xlane.xlu0 %3661
    %v3663 = vrcp.pop %v3659
    %v3664 = vrcp.pop %v3662
    %v3665 = vmul.f32 %v3654, %v3663
    %v3666 = vmul.f32 %v3656, %v3664
    %3667 = vrot.lane.b32.xlu0 %v3154, 104
    %v3668 = vpop.permute.xlu0 %3667
    %3669 = vrot.lane.b32.xlu0 %v3159, 104
    %v3670 = vpop.permute.xlu0 %3669
    %v3674 = vsel %vm406, %v3665, 0
    %v3677 = vsel %vm406, %v3666, 0
    %3679 = vmatprep.subr.mxu0 0.0
    %3680 = vmatpush1.msra.mxu0 %v3668
    %3681 = vmatprep.subr.mxu0 0.0
    %3682 = vmatpush1.msra.mxu0 %v3670
    %3683 = vmatprep.subr.mxu0 0.0
    %3684 = vmatpush1.msra.mxu0 0.0
    %3685 = vmatprep.subr.mxu0 0.0
    %3686 = vmatpush1.msra.mxu0 0.0
    %3687 = vmatprep.subr.mxu0 0.0
    %3688 = vmatpush1.msra.mxu0 0.0
    %3689 = vmatprep.subr.mxu0 0.0
    %3690 = vmatpush1.msra.mxu0 0.0
    %3691 = vmatprep.subr.mxu0 0.0
    %3692 = vmatpush1.msra.mxu0 0.0
    %3693 = vmatprep.subr.mxu0 0.0
    %3694 = vmatpush1.msra.mxu0 0.0
    %3695 = vmatprep.subr.mxu0 0.0
    %3696 = vmatpush1.msra.mxu0 0.0
    %3697 = vmatprep.subr.mxu0 0.0
    %3698 = vmatpush1.msra.mxu0 0.0
    %3699 = vmatprep.subr.mxu0 0.0
    %3700 = vmatpush1.msra.mxu0 0.0
    %3701 = vmatprep.subr.mxu0 0.0
    %3702 = vmatpush1.msra.mxu0 0.0
    %3703 = vmatprep.subr.mxu0 0.0
    %3704 = vmatpush1.msra.mxu0 0.0
    %3705 = vmatprep.subr.mxu0 0.0
    %3706 = vmatpush1.msra.mxu0 0.0
    %3707 = vmatprep.subr.mxu0 0.0
    %3708 = vmatpush1.msra.mxu0 0.0
    %3709 = vmatprep.subr.mxu0 0.0
    %3710 = vmatpush1.msra.mxu0 0.0
    %3711 = vmatprep.subr.mxu0 0.0
    %3712 = vmatpush1.msra.mxu0 0.0
    %3713 = vmatprep.subr.mxu0 0.0
    %3714 = vmatpush1.msra.mxu0 0.0
    %3715 = vmatprep.subr.mxu0 0.0
    %3716 = vmatpush1.msra.mxu0 0.0
    %3717 = vmatprep.subr.mxu0 0.0
    %3718 = vmatpush1.msra.mxu0 0.0
    %3719 = vmatprep.subr.mxu0 0.0
    %3720 = vmatpush1.msra.mxu0 0.0
    %3721 = vmatprep.subr.mxu0 0.0
    %3722 = vmatpush1.msra.mxu0 0.0
    %3723 = vmatprep.subr.mxu0 0.0
    %3724 = vmatpush1.msra.mxu0 0.0
    %3725 = vmatprep.subr.mxu0 0.0
    %3726 = vmatpush1.msra.mxu0 0.0
    %3727 = vmatprep.subr.mxu0 0.0
    %3728 = vmatpush1.msra.mxu0 0.0
    %3729 = vmatprep.subr.mxu0 0.0
    %3730 = vmatpush1.msra.mxu0 0.0
    %3731 = vmatprep.subr.mxu0 0.0
    %3732 = vmatpush1.msra.mxu0 0.0
    %3733 = vmatprep.subr.mxu0 0.0
    %3734 = vmatpush1.msra.mxu0 0.0
    %3735 = vmatprep.subr.mxu0 0.0
    %3736 = vmatpush1.msra.mxu0 0.0
    %3737 = vmatprep.subr.mxu0 0.0
    %3738 = vmatpush1.msra.mxu0 0.0
    %3739 = vmatprep.subr.mxu0 0.0
    %3740 = vmatpush1.msra.mxu0 0.0
    %3741 = vmatprep.subr.mxu0 0.0
    %3742 = vmatpush1.msra.mxu0 0.0
    %3743 = vmatprep.mubr.f32.mxu0 0.0
    %3744 = vmatmul.mubr.f32.gmra.mrb[0].mxu0 %v3674
    %v3745 = vpop.f32.mrb[0].mxu0
    %v3746 = vadd.f32 0.0, %v3745
    %v3747 = vpop.f32.mrb[0].mxu0
    %3748 = vmatprep.mubr.f32.mxu0 0.0
    %3749 = vmatmul.mubr.f32.gmra.mrb[0].mxu0 %v3677
    %v3750 = vpop.f32.mrb[0].mxu0
    %v3751 = vadd.f32 0.0, %v3750
    %v3752 = vpop.f32.mrb[0].mxu0
    %3753 = vdwg.mxu0
    %3754 = vrot.lane.b32.xlu0 %v3077, 92
    %v3755 = vpop.permute.xlu0 %3754
    %3756 = vrot.lane.b32.xlu0 %v3083, 92
    %v3757 = vpop.permute.xlu0 %3756
    %3758 = vrot.lane.b32.xlu0 %v3079, 92
    %v3759 = vpop.permute.xlu0 %3758
    %3760 = vrot.lane.b32.xlu0 %v3085, 92
    %v3761 = vpop.permute.xlu0 %3760
    %v3762 = vsel %vm318, %v3755, 0
    %v3764 = vsel %vm318, %v3757, 0
    %v3766 = vsel %vm318, %v3759, 0
    %v3768 = vsel %vm318, %v3761, 0
    %3770 = vmatprep.subr.mxu0 0.0
    %3771 = vmatpush1.xpose.msra.mxu0 %v3766
    %3772 = vmatprep.subr.mxu0 0.0
    %3773 = vmatpush1.xpose.msra.mxu0 %v3768
    %3774 = vmatprep.subr.mxu0 0.0
    %3775 = vmatpush1.xpose.msra.mxu0 0.0
    %3776 = vmatprep.subr.mxu0 0.0
    %3777 = vmatpush1.xpose.msra.mxu0 0.0
    %3778 = vmatprep.subr.mxu0 0.0
    %3779 = vmatpush1.xpose.msra.mxu0 0.0
    %3780 = vmatprep.subr.mxu0 0.0
    %3781 = vmatpush1.xpose.msra.mxu0 0.0
    %3782 = vmatprep.subr.mxu0 0.0
    %3783 = vmatpush1.xpose.msra.mxu0 0.0
    %3784 = vmatprep.subr.mxu0 0.0
    %3785 = vmatpush1.xpose.msra.mxu0 0.0
    %3786 = vmatprep.subr.mxu0 0.0
    %3787 = vmatpush1.xpose.msra.mxu0 0.0
    %3788 = vmatprep.subr.mxu0 0.0
    %3789 = vmatpush1.xpose.msra.mxu0 0.0
    %3790 = vmatprep.subr.mxu0 0.0
    %3791 = vmatpush1.xpose.msra.mxu0 0.0
    %3792 = vmatprep.subr.mxu0 0.0
    %3793 = vmatpush1.xpose.msra.mxu0 0.0
    %3794 = vmatprep.subr.mxu0 0.0
    %3795 = vmatpush1.xpose.msra.mxu0 0.0
    %3796 = vmatprep.subr.mxu0 0.0
    %3797 = vmatpush1.xpose.msra.mxu0 0.0
    %3798 = vmatprep.subr.mxu0 0.0
    %3799 = vmatpush1.xpose.msra.mxu0 0.0
    %3800 = vmatprep.subr.mxu0 0.0
    %3801 = vmatpush1.xpose.msra.mxu0 0.0
    %3802 = vmatprep.subr.mxu0 0.0
    %3803 = vmatpush1.xpose.msra.mxu0 0.0
    %3804 = vmatprep.subr.mxu0 0.0
    %3805 = vmatpush1.xpose.msra.mxu0 0.0
    %3806 = vmatprep.subr.mxu0 0.0
    %3807 = vmatpush1.xpose.msra.mxu0 0.0
    %3808 = vmatprep.subr.mxu0 0.0
    %3809 = vmatpush1.xpose.msra.mxu0 0.0
    %3810 = vmatprep.subr.mxu0 0.0
    %3811 = vmatpush1.xpose.msra.mxu0 0.0
    %3812 = vmatprep.subr.mxu0 0.0
    %3813 = vmatpush1.xpose.msra.mxu0 0.0
    %3814 = vmatprep.subr.mxu0 0.0
    %3815 = vmatpush1.xpose.msra.mxu0 0.0
    %3816 = vmatprep.subr.mxu0 0.0
    %3817 = vmatpush1.xpose.msra.mxu0 0.0
    %3818 = vmatprep.subr.mxu0 0.0
    %3819 = vmatpush1.xpose.msra.mxu0 0.0
    %3820 = vmatprep.subr.mxu0 0.0
    %3821 = vmatpush1.xpose.msra.mxu0 0.0
    %3822 = vmatprep.subr.mxu0 0.0
    %3823 = vmatpush1.xpose.msra.mxu0 0.0
    %3824 = vmatprep.subr.mxu0 0.0
    %3825 = vmatpush1.xpose.msra.mxu0 0.0
    %3826 = vmatprep.subr.mxu0 0.0
    %3827 = vmatpush1.xpose.msra.mxu0 0.0
    %3828 = vmatprep.subr.mxu0 0.0
    %3829 = vmatpush1.xpose.msra.mxu0 0.0
    %3830 = vmatprep.subr.mxu0 0.0
    %3831 = vmatpush1.xpose.msra.mxu0 0.0
    %3832 = vmatprep.subr.mxu0 0.0
    %3833 = vmatpush1.xpose.msra.mxu0 0.0
    %3834 = vmatprep.mubr.f32.mxu0 0.0
    %3835 = vmatmul.mubr.f32.gmra.mrb[0].mxu0 %v3762
    %v3836 = vpop.f32.mrb[0].mxu0
    %v3837 = vadd.f32 %v85, %v3836
    %v3838 = vpop.f32.mrb[0].mxu0
    %3839 = vmatprep.mubr.f32.mxu0 0.0
    %3840 = vmatmul.mubr.f32.gmra.mrb[0].mxu0 %v3764
    %v3841 = vpop.f32.mrb[0].mxu0
    %v3842 = vadd.f32 %v86, %v3841
    %v3843 = vpop.f32.mrb[0].mxu0
    %3844 = vdwg.mxu0
    %v3845 = vsel %vm406, %v3837, -inf
    %3846 = vmax.xlane.f32.xlu0 %v3845
    %v3847 = vpop.xlane.xlu0 %3846
    %v3848 = vsel %vm406, %v3842, -inf
    %3849 = vmax.xlane.f32.xlu0 %v3848
    %v3850 = vpop.xlane.xlu0 %3849
    %v3851 = vsub.f32 %v3837, %v3847
    %v3852 = vsub.f32 %v3842, %v3850
    %v3853 = vmul.f32 %v3851, 1.442695
    %v3854 = vpow.pop %v3853
    %v3855 = vmul.f32 %v3852, 1.442695
    %v3856 = vpow.pop %v3855
    %v3857 = vsel %vm406, %v3854, 0.0
    %3858 = vadd.xlane.f32.xlu0 %v3857
    %v3859 = vpop.xlane.xlu0 %3858
    %v3860 = vsel %vm406, %v3856, 0.0
    %3861 = vadd.xlane.f32.xlu0 %v3860
    %v3862 = vpop.xlane.xlu0 %3861
    %v3863 = vrcp.pop %v3859
    %v3864 = vrcp.pop %v3862
    %v3865 = vmul.f32 %v3854, %v3863
    %v3866 = vmul.f32 %v3856, %v3864
    %3867 = vrot.lane.b32.xlu0 %v3154, 92
    %v3868 = vpop.permute.xlu0 %3867
    %3869 = vrot.lane.b32.xlu0 %v3159, 92
    %v3870 = vpop.permute.xlu0 %3869
    %v3874 = vsel %vm406, %v3865, 0
    %v3877 = vsel %vm406, %v3866, 0
    %3879 = vmatprep.subr.mxu0 0.0
    %3880 = vmatpush1.msra.mxu0 %v3868
    %3881 = vmatprep.subr.mxu0 0.0
    %3882 = vmatpush1.msra.mxu0 %v3870
    %3883 = vmatprep.subr.mxu0 0.0
    %3884 = vmatpush1.msra.mxu0 0.0
    %3885 = vmatprep.subr.mxu0 0.0
    %3886 = vmatpush1.msra.mxu0 0.0
    %3887 = vmatprep.subr.mxu0 0.0
    %3888 = vmatpush1.msra.mxu0 0.0
    %3889 = vmatprep.subr.mxu0 0.0
    %3890 = vmatpush1.msra.mxu0 0.0
    %3891 = vmatprep.subr.mxu0 0.0
    %3892 = vmatpush1.msra.mxu0 0.0
    %3893 = vmatprep.subr.mxu0 0.0
    %3894 = vmatpush1.msra.mxu0 0.0
    %3895 = vmatprep.subr.mxu0 0.0
    %3896 = vmatpush1.msra.mxu0 0.0
    %3897 = vmatprep.subr.mxu0 0.0
    %3898 = vmatpush1.msra.mxu0 0.0
    %3899 = vmatprep.subr.mxu0 0.0
    %3900 = vmatpush1.msra.mxu0 0.0
    %3901 = vmatprep.subr.mxu0 0.0
    %3902 = vmatpush1.msra.mxu0 0.0
    %3903 = vmatprep.subr.mxu0 0.0
    %3904 = vmatpush1.msra.mxu0 0.0
    %3905 = vmatprep.subr.mxu0 0.0
    %3906 = vmatpush1.msra.mxu0 0.0
    %3907 = vmatprep.subr.mxu0 0.0
    %3908 = vmatpush1.msra.mxu0 0.0
    %3909 = vmatprep.subr.mxu0 0.0
    %3910 = vmatpush1.msra.mxu0 0.0
    %3911 = vmatprep.subr.mxu0 0.0
    %3912 = vmatpush1.msra.mxu0 0.0
    %3913 = vmatprep.subr.mxu0 0.0
    %3914 = vmatpush1.msra.mxu0 0.0
    %3915 = vmatprep.subr.mxu0 0.0
    %3916 = vmatpush1.msra.mxu0 0.0
    %3917 = vmatprep.subr.mxu0 0.0
    %3918 = vmatpush1.msra.mxu0 0.0
    %3919 = vmatprep.subr.mxu0 0.0
    %3920 = vmatpush1.msra.mxu0 0.0
    %3921 = vmatprep.subr.mxu0 0.0
    %3922 = vmatpush1.msra.mxu0 0.0
    %3923 = vmatprep.subr.mxu0 0.0
    %3924 = vmatpush1.msra.mxu0 0.0
    %3925 = vmatprep.subr.mxu0 0.0
    %3926 = vmatpush1.msra.mxu0 0.0
    %3927 = vmatprep.subr.mxu0 0.0
    %3928 = vmatpush1.msra.mxu0 0.0
    %3929 = vmatprep.subr.mxu0 0.0
    %3930 = vmatpush1.msra.mxu0 0.0
    %3931 = vmatprep.subr.mxu0 0.0
    %3932 = vmatpush1.msra.mxu0 0.0
    %3933 = vmatprep.subr.mxu0 0.0
    %3934 = vmatpush1.msra.mxu0 0.0
    %3935 = vmatprep.subr.mxu0 0.0
    %3936 = vmatpush1.msra.mxu0 0.0
    %3937 = vmatprep.subr.mxu0 0.0
    %3938 = vmatpush1.msra.mxu0 0.0
    %3939 = vmatprep.subr.mxu0 0.0
    %3940 = vmatpush1.msra.mxu0 0.0
    %3941 = vmatprep.subr.mxu0 0.0
    %3942 = vmatpush1.msra.mxu0 0.0
    %3943 = vmatprep.mubr.f32.mxu0 0.0
    %3944 = vmatmul.mubr.f32.gmra.mrb[0].mxu0 %v3874
    %v3945 = vpop.f32.mrb[0].mxu0
    %v3946 = vadd.f32 0.0, %v3945
    %v3947 = vpop.f32.mrb[0].mxu0
    %3948 = vmatprep.mubr.f32.mxu0 0.0
    %3949 = vmatmul.mubr.f32.gmra.mrb[0].mxu0 %v3877
    %v3950 = vpop.f32.mrb[0].mxu0
    %v3951 = vadd.f32 0.0, %v3950
    %v3952 = vpop.f32.mrb[0].mxu0
    %3953 = vdwg.mxu0
    %3956 = vrot.lane.b32.xlu0 %v3546, 12
    %v3957 = vpop.permute.xlu0 %3956
    %3958 = vrot.lane.b32.xlu0 %v3551, 12
    %v3959 = vpop.permute.xlu0 %3958
    %3964 = vrot.lane.b32.xlu0 %v3746, 24
    %v3965 = vpop.permute.xlu0 %3964
    %3966 = vrot.lane.b32.xlu0 %v3751, 24
    %v3967 = vpop.permute.xlu0 %3966
    %3972 = vrot.lane.b32.xlu0 %v3946, 36
    %v3973 = vpop.permute.xlu0 %3972
    %3974 = vrot.lane.b32.xlu0 %v3951, 36
    %v3975 = vpop.permute.xlu0 %3974
    %v3978 = vsel %vm318, %v3344, %v3957
    %v3979 = vsel %vm318, %v3349, %v3959
    %v3980 = vsel %vm1138, %v3978, %v3965
    %v3981 = vsel %vm1138, %v3979, %v3967
    %v3982 = vsel %vm1141, %v3980, %v3973
    %v3983 = vsel %vm1141, %v3981, %v3975
    %s3984 = scalar_lea.vmem %s3, 96
    %v3985 = vld [vmem:[%s3984] sm:$0xff]
    %v3986 = vld [vmem:[%s3984 + $0x8] sm:$0xff]
    %v3987 = vld [vmem:[%s3984 + $0x10] sm:$0xff]
    %v3988 = vld [vmem:[%s3984 + $0x18] sm:$0xff]
    %v3989 = vld [vmem:[%s3984 + $0x20] sm:$0xff]
    %v3990 = vld [vmem:[%s3984 + $0x28] sm:$0xff]
    %v3991 = vlaneseq
    %v3992 = vshrl.u32 %v3991, 7
    %v3993 = vsub.s32 1, %v3992
    %v3994 = vrot.slane %v2932, %v3993
    %v3996 = vsel %vm90, %v3982, 0
    %v3999 = vsel %vm90, %v3983, 0
    %4001 = vmatprep.subr.mxu0 0.0
    %4002 = vmatpush1.msra.mxu0 %v3985
    %4003 = vmatprep.subr.mxu0 0.0
    %4004 = vmatpush1.msra.mxu0 %v3986
    %4005 = vmatprep.subr.mxu0 0.0
    %4006 = vmatpush1.msra.mxu0 %v3987
    %4007 = vmatprep.subr.mxu0 0.0
    %4008 = vmatpush1.msra.mxu0 %v3988
    %4009 = vmatprep.subr.mxu0 0.0
    %4010 = vmatpush1.msra.mxu0 %v3989
    %4011 = vmatprep.subr.mxu0 0.0
    %4012 = vmatpush1.msra.mxu0 %v3990
    %4013 = vmatprep.subr.mxu0 0.0
    %4014 = vmatpush1.msra.mxu0 0.0
    %4015 = vmatprep.subr.mxu0 0.0
    %4016 = vmatpush1.msra.mxu0 0.0
    %4017 = vmatprep.subr.mxu0 0.0
    %4018 = vmatpush1.msra.mxu0 0.0
    %4019 = vmatprep.subr.mxu0 0.0
    %4020 = vmatpush1.msra.mxu0 0.0
    %4021 = vmatprep.subr.mxu0 0.0
    %4022 = vmatpush1.msra.mxu0 0.0
    %4023 = vmatprep.subr.mxu0 0.0
    %4024 = vmatpush1.msra.mxu0 0.0
    %4025 = vmatprep.subr.mxu0 0.0
    %4026 = vmatpush1.msra.mxu0 0.0
    %4027 = vmatprep.subr.mxu0 0.0
    %4028 = vmatpush1.msra.mxu0 0.0
    %4029 = vmatprep.subr.mxu0 0.0
    %4030 = vmatpush1.msra.mxu0 0.0
    %4031 = vmatprep.subr.mxu0 0.0
    %4032 = vmatpush1.msra.mxu0 0.0
    %4033 = vmatprep.subr.mxu0 0.0
    %4034 = vmatpush1.msra.mxu0 0.0
    %4035 = vmatprep.subr.mxu0 0.0
    %4036 = vmatpush1.msra.mxu0 0.0
    %4037 = vmatprep.subr.mxu0 0.0
    %4038 = vmatpush1.msra.mxu0 0.0
    %4039 = vmatprep.subr.mxu0 0.0
    %4040 = vmatpush1.msra.mxu0 0.0
    %4041 = vmatprep.subr.mxu0 0.0
    %4042 = vmatpush1.msra.mxu0 0.0
    %4043 = vmatprep.subr.mxu0 0.0
    %4044 = vmatpush1.msra.mxu0 0.0
    %4045 = vmatprep.subr.mxu0 0.0
    %4046 = vmatpush1.msra.mxu0 0.0
    %4047 = vmatprep.subr.mxu0 0.0
    %4048 = vmatpush1.msra.mxu0 0.0
    %4049 = vmatprep.subr.mxu0 0.0
    %4050 = vmatpush1.msra.mxu0 0.0
    %4051 = vmatprep.subr.mxu0 0.0
    %4052 = vmatpush1.msra.mxu0 0.0
    %4053 = vmatprep.subr.mxu0 0.0
    %4054 = vmatpush1.msra.mxu0 0.0
    %4055 = vmatprep.subr.mxu0 0.0
    %4056 = vmatpush1.msra.mxu0 0.0
    %4057 = vmatprep.subr.mxu0 0.0
    %4058 = vmatpush1.msra.mxu0 0.0
    %4059 = vmatprep.subr.mxu0 0.0
    %4060 = vmatpush1.msra.mxu0 0.0
    %4061 = vmatprep.subr.mxu0 0.0
    %4062 = vmatpush1.msra.mxu0 0.0
    %4063 = vmatprep.subr.mxu0 0.0
    %4064 = vmatpush1.msra.mxu0 0.0
    %4065 = vmatprep.mubr.f32.mxu0 0.0
    %4066 = vmatmul.mubr.f32.gmra.mrb[0].mxu0 %v3996
    %v4067 = vpop.f32.mrb[0].mxu0
    %v4068 = vadd.f32 %v3994, %v4067
    %v4069 = vpop.f32.mrb[0].mxu0
    %4070 = vmatprep.mubr.f32.mxu0 0.0
    %4071 = vmatmul.mubr.f32.gmra.mrb[0].mxu0 %v3999
    %v4072 = vpop.f32.mrb[0].mxu0
    %v4073 = vadd.f32 %v3994, %v4072
    %v4074 = vpop.f32.mrb[0].mxu0
    %4075 = vdwg.mxu0
    %v4076 = vadd.f32 %v2929, %v4068
    %v4077 = vadd.f32 %v2930, %v4073
    %v4078 = vsel %vm90, %v4076, 0.0
    %4079 = vadd.xlane.f32.xlu0 %v4078
    %v4080 = vpop.xlane.xlu0 %4079
    %v4081 = vsel %vm90, %v4077, 0.0
    %4082 = vadd.xlane.f32.xlu0 %v4081
    %v4083 = vpop.xlane.xlu0 %4082
    %v4084 = vmul.f32 %v4080, %v97
    %v4085 = vmul.f32 %v4083, %v97
    %v4086 = vsub.f32 %v4076, %v4084
    %v4087 = vsub.f32 %v4077, %v4085
    %v4088 = vmul.f32 %v4086, %v4086
    %v4089 = vmul.f32 %v4087, %v4087
    %v4090 = vsel %vm90, %v4088, 0.0
    %4091 = vadd.xlane.f32.xlu0 %v4090
    %v4092 = vpop.xlane.xlu0 %4091
    %v4093 = vsel %vm90, %v4089, 0.0
    %4094 = vadd.xlane.f32.xlu0 %v4093
    %v4095 = vpop.xlane.xlu0 %4094
    %v4096 = vmul.f32 %v4092, %v97
    %v4097 = vmul.f32 %v4095, %v97
    %v4098 = vadd.f32 %v4096, 1e-05
    %v4099 = vadd.f32 %v4097, 1e-05
    %v4100 = vrsqrt.pop %v4098
    %v4101 = vrsqrt.pop %v4099
    %v4102 = vmul.f32 %v4086, %v4100
    %v4103 = vmul.f32 %v4087, %v4101
    %v4104 = vlaneseq
    %v4105 = vshrl.u32 %v4104, 7
    %v4106 = vsub.s32 6, %v4105
    %v4107 = vrot.slane %v2932, %v4106
    %v4108 = vmul.f32 %v4102, %v4107
    %v4109 = vmul.f32 %v4103, %v4107
    %v4110 = vlaneseq
    %v4111 = vshrl.u32 %v4110, 7
    %v4112 = vsub.s32 7, %v4111
    %v4113 = vrot.slane %v2932, %v4112
    %v4114 = vadd.f32 %v4108, %v4113
    %v4115 = vadd.f32 %v4109, %v4113
    %s4116 = scalar_lea.vmem %s4, 192
    %v4117 = vld [vmem:[%s4116] sm:$0xff]
    %v4118 = vld [vmem:[%s4116 + $0x8] sm:$0xff]
    %v4119 = vld [vmem:[%s4116 + $0x10] sm:$0xff]
    %v4120 = vld [vmem:[%s4116 + $0x18] sm:$0xff]
    %v4121 = vld [vmem:[%s4116 + $0x20] sm:$0xff]
    %v4122 = vld [vmem:[%s4116 + $0x28] sm:$0xff]
    %v4123 = vld [vmem:[%s4116 + $0x30] sm:$0xff]
    %v4124 = vld [vmem:[%s4116 + $0x38] sm:$0xff]
    %v4125 = vld [vmem:[%s4116 + $0x40] sm:$0xff]
    %v4126 = vld [vmem:[%s4116 + $0x48] sm:$0xff]
    %v4127 = vld [vmem:[%s4116 + $0x50] sm:$0xff]
    %v4128 = vld [vmem:[%s4116 + $0x58] sm:$0xff]
    %v4129 = vlaneseq
    %v4130 = vshrl.u32 %v4129, 7
    %v4131 = vsub.s32 2, %v4130
    %v4132 = vrot.slane %v2932, %v4131
    %v4133 = vlaneseq
    %v4134 = vshrl.u32 %v4133, 7
    %v4135 = vsub.s32 2, %v4134
    %v4136 = vrot.slane %v2933, %v4135
    %v4138 = vsel %vm90, %v4114, 0
    %v4141 = vsel %vm90, %v4115, 0
    %4143 = vmatprep.subr.mxu0 %v4118
    %4144 = vmatpush1.msra.mxu0 %v4117
    %4145 = vmatprep.subr.mxu0 %v4120
    %4146 = vmatpush1.msra.mxu0 %v4119
    %4147 = vmatprep.subr.mxu0 %v4122
    %4148 = vmatpush1.msra.mxu0 %v4121
    %4149 = vmatprep.subr.mxu0 %v4124
    %4150 = vmatpush1.msra.mxu0 %v4123
    %4151 = vmatprep.subr.mxu0 %v4126
    %4152 = vmatpush1.msra.mxu0 %v4125
    %4153 = vmatprep.subr.mxu0 %v4128
    %4154 = vmatpush1.msra.mxu0 %v4127
    %4155 = vmatprep.subr.mxu0 0.0
    %4156 = vmatpush1.msra.mxu0 0.0
    %4157 = vmatprep.subr.mxu0 0.0
    %4158 = vmatpush1.msra.mxu0 0.0
    %4159 = vmatprep.subr.mxu0 0.0
    %4160 = vmatpush1.msra.mxu0 0.0
    %4161 = vmatprep.subr.mxu0 0.0
    %4162 = vmatpush1.msra.mxu0 0.0
    %4163 = vmatprep.subr.mxu0 0.0
    %4164 = vmatpush1.msra.mxu0 0.0
    %4165 = vmatprep.subr.mxu0 0.0
    %4166 = vmatpush1.msra.mxu0 0.0
    %4167 = vmatprep.subr.mxu0 0.0
    %4168 = vmatpush1.msra.mxu0 0.0
    %4169 = vmatprep.subr.mxu0 0.0
    %4170 = vmatpush1.msra.mxu0 0.0
    %4171 = vmatprep.subr.mxu0 0.0
    %4172 = vmatpush1.msra.mxu0 0.0
    %4173 = vmatprep.subr.mxu0 0.0
    %4174 = vmatpush1.msra.mxu0 0.0
    %4175 = vmatprep.subr.mxu0 0.0
    %4176 = vmatpush1.msra.mxu0 0.0
    %4177 = vmatprep.subr.mxu0 0.0
    %4178 = vmatpush1.msra.mxu0 0.0
    %4179 = vmatprep.subr.mxu0 0.0
    %4180 = vmatpush1.msra.mxu0 0.0
    %4181 = vmatprep.subr.mxu0 0.0
    %4182 = vmatpush1.msra.mxu0 0.0
    %4183 = vmatprep.subr.mxu0 0.0
    %4184 = vmatpush1.msra.mxu0 0.0
    %4185 = vmatprep.subr.mxu0 0.0
    %4186 = vmatpush1.msra.mxu0 0.0
    %4187 = vmatprep.subr.mxu0 0.0
    %4188 = vmatpush1.msra.mxu0 0.0
    %4189 = vmatprep.subr.mxu0 0.0
    %4190 = vmatpush1.msra.mxu0 0.0
    %4191 = vmatprep.subr.mxu0 0.0
    %4192 = vmatpush1.msra.mxu0 0.0
    %4193 = vmatprep.subr.mxu0 0.0
    %4194 = vmatpush1.msra.mxu0 0.0
    %4195 = vmatprep.subr.mxu0 0.0
    %4196 = vmatpush1.msra.mxu0 0.0
    %4197 = vmatprep.subr.mxu0 0.0
    %4198 = vmatpush1.msra.mxu0 0.0
    %4199 = vmatprep.subr.mxu0 0.0
    %4200 = vmatpush1.msra.mxu0 0.0
    %4201 = vmatprep.subr.mxu0 0.0
    %4202 = vmatpush1.msra.mxu0 0.0
    %4203 = vmatprep.subr.mxu0 0.0
    %4204 = vmatpush1.msra.mxu0 0.0
    %4205 = vmatprep.subr.mxu0 0.0
    %4206 = vmatpush1.msra.mxu0 0.0
    %4207 = vmatprep.mubr.f32.mxu0 0.0
    %4208 = vmatmul.mubr.f32.gmra.mrb[0].mxu0 %v4138
    %v4209 = vpop.f32.mrb[0].mxu0
    %v4210 = vadd.f32 %v4132, %v4209
    %v4211 = vpop.f32.mrb[0].mxu0
    %v4212 = vadd.f32 %v4136, %v4211
    %4213 = vmatprep.mubr.f32.mxu0 0.0
    %4214 = vmatmul.mubr.f32.gmra.mrb[0].mxu0 %v4141
    %v4215 = vpop.f32.mrb[0].mxu0
    %v4216 = vadd.f32 %v4132, %v4215
    %v4217 = vpop.f32.mrb[0].mxu0
    %v4218 = vadd.f32 %v4136, %v4217
    %4219 = vdwg.mxu0
    %v4220 = vmul.f32 %v4210, 0.5
    %v4221 = vmul.f32 %v4212, 0.5
    %v4222 = vmul.f32 %v4216, 0.5
    %v4223 = vmul.f32 %v4218, 0.5
    %v4224 = vmul.f32 %v4210, 0.70710677
    %v4225 = vmul.f32 %v4212, 0.70710677
    %v4226 = vmul.f32 %v4216, 0.70710677
    %v4227 = vmul.f32 %v4218, 0.70710677
    %v4228 = verf.f32.pop %v4224
    %v4229 = verf.f32.pop %v4225
    %v4230 = verf.f32.pop %v4226
    %v4231 = verf.f32.pop %v4227
    %v4232 = vadd.f32 %v4228, 1.0
    %v4233 = vadd.f32 %v4229, 1.0
    %v4234 = vadd.f32 %v4230, 1.0
    %v4235 = vadd.f32 %v4231, 1.0
    %v4236 = vmul.f32 %v4220, %v4232
    %v4237 = vmul.f32 %v4221, %v4233
    %v4238 = vmul.f32 %v4222, %v4234
    %v4239 = vmul.f32 %v4223, %v4235
    %s4240 = scalar_lea.vmem %s5, 384
    %v4241 = vld [vmem:[%s4240] sm:$0xff]
    %v4242 = vld [vmem:[%s4240 + $0x8] sm:$0xff]
    %v4243 = vld [vmem:[%s4240 + $0x10] sm:$0xff]
    %v4244 = vld [vmem:[%s4240 + $0x18] sm:$0xff]
    %v4245 = vld [vmem:[%s4240 + $0x20] sm:$0xff]
    %v4246 = vld [vmem:[%s4240 + $0x28] sm:$0xff]
    %v4247 = vld [vmem:[%s4240 + $0x30] sm:$0xff]
    %v4248 = vld [vmem:[%s4240 + $0x38] sm:$0xff]
    %v4249 = vld [vmem:[%s4240 + $0x40] sm:$0xff]
    %v4250 = vld [vmem:[%s4240 + $0x48] sm:$0xff]
    %v4251 = vld [vmem:[%s4240 + $0x50] sm:$0xff]
    %v4252 = vld [vmem:[%s4240 + $0x58] sm:$0xff]
    %v4253 = vld [vmem:[%s4240 + $0x60] sm:$0xff]
    %v4254 = vld [vmem:[%s4240 + $0x68] sm:$0xff]
    %v4255 = vld [vmem:[%s4240 + $0x70] sm:$0xff]
    %v4256 = vld [vmem:[%s4240 + $0x78] sm:$0xff]
    %v4257 = vld [vmem:[%s4240 + $0x80] sm:$0xff]
    %v4258 = vld [vmem:[%s4240 + $0x88] sm:$0xff]
    %v4259 = vld [vmem:[%s4240 + $0x90] sm:$0xff]
    %v4260 = vld [vmem:[%s4240 + $0x98] sm:$0xff]
    %v4261 = vld [vmem:[%s4240 + $0xa0] sm:$0xff]
    %v4262 = vld [vmem:[%s4240 + $0xa8] sm:$0xff]
    %v4263 = vld [vmem:[%s4240 + $0xb0] sm:$0xff]
    %v4264 = vld [vmem:[%s4240 + $0xb8] sm:$0xff]
    %v4265 = vlaneseq
    %v4266 = vshrl.u32 %v4265, 7
    %v4267 = vsub.s32 3, %v4266
    %v4268 = vrot.slane %v2932, %v4267
    %v4270 = vsel %vm1426, %v4237, 0
    %v4273 = vsel %vm1426, %v4239, 0
    %4275 = vmatprep.subr.mxu0 0.0
    %4276 = vmatpush1.msra.mxu0 %v4241
    %4277 = vmatprep.subr.mxu0 0.0
    %4278 = vmatpush1.msra.mxu0 %v4242
    %4279 = vmatprep.subr.mxu0 0.0
    %4280 = vmatpush1.msra.mxu0 %v4243
    %4281 = vmatprep.subr.mxu0 0.0
    %4282 = vmatpush1.msra.mxu0 %v4244
    %4283 = vmatprep.subr.mxu0 0.0
    %4284 = vmatpush1.msra.mxu0 %v4245
    %4285 = vmatprep.subr.mxu0 0.0
    %4286 = vmatpush1.msra.mxu0 %v4246
    %4287 = vmatprep.subr.mxu0 0.0
    %4288 = vmatpush1.msra.mxu0 %v4247
    %4289 = vmatprep.subr.mxu0 0.0
    %4290 = vmatpush1.msra.mxu0 %v4248
    %4291 = vmatprep.subr.mxu0 0.0
    %4292 = vmatpush1.msra.mxu0 %v4249
    %4293 = vmatprep.subr.mxu0 0.0
    %4294 = vmatpush1.msra.mxu0 %v4250
    %4295 = vmatprep.subr.mxu0 0.0
    %4296 = vmatpush1.msra.mxu0 %v4251
    %4297 = vmatprep.subr.mxu0 0.0
    %4298 = vmatpush1.msra.mxu0 %v4252
    %4299 = vmatprep.subr.mxu0 0.0
    %4300 = vmatpush1.msra.mxu0 %v4253
    %4301 = vmatprep.subr.mxu0 0.0
    %4302 = vmatpush1.msra.mxu0 %v4254
    %4303 = vmatprep.subr.mxu0 0.0
    %4304 = vmatpush1.msra.mxu0 %v4255
    %4305 = vmatprep.subr.mxu0 0.0
    %4306 = vmatpush1.msra.mxu0 %v4256
    %4307 = vmatprep.subr.mxu0 0.0
    %4308 = vmatpush1.msra.mxu0 %v4257
    %4309 = vmatprep.subr.mxu0 0.0
    %4310 = vmatpush1.msra.mxu0 %v4258
    %4311 = vmatprep.subr.mxu0 0.0
    %4312 = vmatpush1.msra.mxu0 %v4259
    %4313 = vmatprep.subr.mxu0 0.0
    %4314 = vmatpush1.msra.mxu0 %v4260
    %4315 = vmatprep.subr.mxu0 0.0
    %4316 = vmatpush1.msra.mxu0 %v4261
    %4317 = vmatprep.subr.mxu0 0.0
    %4318 = vmatpush1.msra.mxu0 %v4262
    %4319 = vmatprep.subr.mxu0 0.0
    %4320 = vmatpush1.msra.mxu0 %v4263
    %4321 = vmatprep.subr.mxu0 0.0
    %4322 = vmatpush1.msra.mxu0 %v4264
    %4323 = vmatprep.subr.mxu0 0.0
    %4324 = vmatpush1.msra.mxu0 0.0
    %4325 = vmatprep.subr.mxu0 0.0
    %4326 = vmatpush1.msra.mxu0 0.0
    %4327 = vmatprep.subr.mxu0 0.0
    %4328 = vmatpush1.msra.mxu0 0.0
    %4329 = vmatprep.subr.mxu0 0.0
    %4330 = vmatpush1.msra.mxu0 0.0
    %4331 = vmatprep.subr.mxu0 0.0
    %4332 = vmatpush1.msra.mxu0 0.0
    %4333 = vmatprep.subr.mxu0 0.0
    %4334 = vmatpush1.msra.mxu0 0.0
    %4335 = vmatprep.subr.mxu0 0.0
    %4336 = vmatpush1.msra.mxu0 0.0
    %4337 = vmatprep.subr.mxu0 0.0
    %4338 = vmatpush1.msra.mxu0 0.0
    %4339 = vmatprep.mubr.f32.mxu0 %v4270
    %4340 = vmatmul.mubr.f32.gmra.mrb[0].mxu0 %v4236
    %v4341 = vpop.f32.mrb[0].mxu0
    %v4342 = vadd.f32 %v4268, %v4341
    %v4343 = vpop.f32.mrb[0].mxu0
    %4344 = vmatprep.mubr.f32.mxu0 %v4273
    %4345 = vmatmul.mubr.f32.gmra.mrb[0].mxu0 %v4238
    %v4346 = vpop.f32.mrb[0].mxu0
    %v4347 = vadd.f32 %v4268, %v4346
    %v4348 = vpop.f32.mrb[0].mxu0
    %4349 = vdwg.mxu0
    %v4350 = vadd.f32 %v4076, %v4342
    %v4351 = vadd.f32 %v4077, %v4347
    %s4352 = scalar_lea.vmem [#allocation5], 72
    %v4353 = vld [vmem:[%s4352] sm:$0xff]
    %v4354 = vld [vmem:[%s4352 + $0x8] sm:$0xff]
    %v4355 = vld [vmem:[%s4352 + $0x10] sm:$0xff]
    %v4356 = vsel %vm90, %v4350, 0.0
    %4357 = vadd.xlane.f32.xlu0 %v4356
    %v4358 = vpop.xlane.xlu0 %4357
    %v4359 = vsel %vm90, %v4351, 0.0
    %4360 = vadd.xlane.f32.xlu0 %v4359
    %v4361 = vpop.xlane.xlu0 %4360
    %v4362 = vmul.f32 %v4358, %v97
    %v4363 = vmul.f32 %v4361, %v97
    %v4364 = vsub.f32 %v4350, %v4362
    %v4365 = vsub.f32 %v4351, %v4363
    %v4366 = vmul.f32 %v4364, %v4364
    %v4367 = vmul.f32 %v4365, %v4365
    %v4368 = vsel %vm90, %v4366, 0.0
    %4369 = vadd.xlane.f32.xlu0 %v4368
    %v4370 = vpop.xlane.xlu0 %4369
    %v4371 = vsel %vm90, %v4367, 0.0
    %4372 = vadd.xlane.f32.xlu0 %v4371
    %v4373 = vpop.xlane.xlu0 %4372
    %v4374 = vmul.f32 %v4370, %v97
    %v4375 = vmul.f32 %v4373, %v97
    %v4376 = vadd.f32 %v4374, 1e-05
    %v4377 = vadd.f32 %v4375, 1e-05
    %v4378 = vrsqrt.pop %v4376
    %v4379 = vrsqrt.pop %v4377
    %v4380 = vmul.f32 %v4364, %v4378
    %v4381 = vmul.f32 %v4365, %v4379
    %v4382 = vlaneseq
    %v4383 = vshrl.u32 %v4382, 7
    %v4384 = vsub.s32 4, %v4383
    %v4385 = vrot.slane %v4353, %v4384
    %v4386 = vmul.f32 %v4380, %v4385
    %v4387 = vmul.f32 %v4381, %v4385
    %v4388 = vlaneseq
    %v4389 = vshrl.u32 %v4388, 7
    %v4390 = vsub.s32 5, %v4389
    %v4391 = vrot.slane %v4353, %v4390
    %v4392 = vadd.f32 %v4386, %v4391
    %v4393 = vadd.f32 %v4387, %v4391
    %s4394 = scalar_lea.vmem %s2, 432
    %v4395 = vld [vmem:[%s4394] sm:$0xff]
    %v4396 = vld [vmem:[%s4394 + $0x8] sm:$0xff]
    %v4397 = vld [vmem:[%s4394 + $0x10] sm:$0xff]
    %v4398 = vld [vmem:[%s4394 + $0x18] sm:$0xff]
    %v4399 = vld [vmem:[%s4394 + $0x20] sm:$0xff]
    %v4400 = vld [vmem:[%s4394 + $0x28] sm:$0xff]
    %v4401 = vld [vmem:[%s4394 + $0x30] sm:$0xff]
    %v4402 = vld [vmem:[%s4394 + $0x38] sm:$0xff]
    %v4403 = vld [vmem:[%s4394 + $0x40] sm:$0xff]
    %v4404 = vld [vmem:[%s4394 + $0x48] sm:$0xff]
    %v4405 = vld [vmem:[%s4394 + $0x50] sm:$0xff]
    %v4406 = vld [vmem:[%s4394 + $0x58] sm:$0xff]
    %v4407 = vld [vmem:[%s4394 + $0x60] sm:$0xff]
    %v4408 = vld [vmem:[%s4394 + $0x68] sm:$0xff]
    %v4409 = vld [vmem:[%s4394 + $0x70] sm:$0xff]
    %v4410 = vld [vmem:[%s4394 + $0x78] sm:$0xff]
    %v4411 = vld [vmem:[%s4394 + $0x80] sm:$0xff]
    %v4412 = vld [vmem:[%s4394 + $0x88] sm:$0xff]
    %v4413 = vlaneseq
    %v4414 = vshrl.u32 %v4413, 7
    %v4415 = vsub.s32 0, %v4414
    %v4416 = vrot.slane %v4353, %v4415
    %v4417 = vlaneseq
    %v4418 = vshrl.u32 %v4417, 7
    %v4419 = vsub.s32 0, %v4418
    %v4420 = vrot.slane %v4354, %v4419
    %v4421 = vlaneseq
    %v4422 = vshrl.u32 %v4421, 7
    %v4423 = vsub.s32 0, %v4422
    %v4424 = vrot.slane %v4355, %v4423
    %v4426 = vsel %vm90, %v4392, 0
    %v4429 = vsel %vm90, %v4393, 0
    %4431 = vmatprep.subr.mxu0 %v4396
    %4432 = vmatpush1.msra.mxu0 %v4395
    %4433 = vmatprep.subr.mxu0 %v4399
    %4434 = vmatpush1.msra.mxu0 %v4398
    %4435 = vmatprep.subr.mxu0 %v4402
    %4436 = vmatpush1.msra.mxu0 %v4401
    %4437 = vmatprep.subr.mxu0 %v4405
    %4438 = vmatpush1.msra.mxu0 %v4404
    %4439 = vmatprep.subr.mxu0 %v4408
    %4440 = vmatpush1.msra.mxu0 %v4407
    %4441 = vmatprep.subr.mxu0 %v4411
    %4442 = vmatpush1.msra.mxu0 %v4410
    %4443 = vmatprep.subr.mxu0 0.0
    %4444 = vmatpush1.msra.mxu0 0.0
    %4445 = vmatprep.subr.mxu0 0.0
    %4446 = vmatpush1.msra.mxu0 0.0
    %4447 = vmatprep.subr.mxu0 0.0
    %4448 = vmatpush1.msra.mxu0 0.0
    %4449 = vmatprep.subr.mxu0 0.0
    %4450 = vmatpush1.msra.mxu0 0.0
    %4451 = vmatprep.subr.mxu0 0.0
    %4452 = vmatpush1.msra.mxu0 0.0
    %4453 = vmatprep.subr.mxu0 0.0
    %4454 = vmatpush1.msra.mxu0 0.0
    %4455 = vmatprep.subr.mxu0 0.0
    %4456 = vmatpush1.msra.mxu0 0.0
    %4457 = vmatprep.subr.mxu0 0.0
    %4458 = vmatpush1.msra.mxu0 0.0
    %4459 = vmatprep.subr.mxu0 0.0
    %4460 = vmatpush1.msra.mxu0 0.0
    %4461 = vmatprep.subr.mxu0 0.0
    %4462 = vmatpush1.msra.mxu0 0.0
    %4463 = vmatprep.subr.mxu0 0.0
    %4464 = vmatpush1.msra.mxu0 0.0
    %4465 = vmatprep.subr.mxu0 0.0
    %4466 = vmatpush1.msra.mxu0 0.0
    %4467 = vmatprep.subr.mxu0 0.0
    %4468 = vmatpush1.msra.mxu0 0.0
    %4469 = vmatprep.subr.mxu0 0.0
    %4470 = vmatpush1.msra.mxu0 0.0
    %4471 = vmatprep.subr.mxu0 0.0
    %4472 = vmatpush1.msra.mxu0 0.0
    %4473 = vmatprep.subr.mxu0 0.0
    %4474 = vmatpush1.msra.mxu0 0.0
    %4475 = vmatprep.subr.mxu0 0.0
    %4476 = vmatpush1.msra.mxu0 0.0
    %4477 = vmatprep.subr.mxu0 0.0
    %4478 = vmatpush1.msra.mxu0 0.0
    %4479 = vmatprep.subr.mxu0 0.0
    %4480 = vmatpush1.msra.mxu0 0.0
    %4481 = vmatprep.subr.mxu0 0.0
    %4482 = vmatpush1.msra.mxu0 0.0
    %4483 = vmatprep.subr.mxu0 0.0
    %4484 = vmatpush1.msra.mxu0 0.0
    %4485 = vmatprep.subr.mxu0 0.0
    %4486 = vmatpush1.msra.mxu0 0.0
    %4487 = vmatprep.subr.mxu0 0.0
    %4488 = vmatpush1.msra.mxu0 0.0
    %4489 = vmatprep.subr.mxu0 0.0
    %4490 = vmatpush1.msra.mxu0 0.0
    %4491 = vmatprep.subr.mxu0 0.0
    %4492 = vmatpush1.msra.mxu0 0.0
    %4493 = vmatprep.subr.mxu0 0.0
    %4494 = vmatpush1.msra.mxu0 0.0
    %4495 = vmatprep.mubr.f32.mxu0 0.0
    %4496 = vmatmul.mubr.f32.gmra.mrb[0].mxu0 %v4426
    %v4497 = vpop.f32.mrb[0].mxu0
    %v4498 = vadd.f32 %v4416, %v4497
    %v4499 = vpop.f32.mrb[0].mxu0
    %v4500 = vadd.f32 %v4420, %v4499
    %4501 = vmatprep.mubr.f32.mxu0 0.0
    %4502 = vmatmul.mubr.f32.gmra.mrb[0].mxu0 %v4429
    %v4503 = vpop.f32.mrb[0].mxu0
    %v4504 = vadd.f32 %v4416, %v4503
    %v4505 = vpop.f32.mrb[0].mxu0
    %v4506 = vadd.f32 %v4420, %v4505
    %4507 = vdwg.mxu0
    %4508 = vmatprep.subr.mxu0 0.0
    %4509 = vmatpush1.msra.mxu0 %v4397
    %4510 = vmatprep.subr.mxu0 0.0
    %4511 = vmatpush1.msra.mxu0 %v4400
    %4512 = vmatprep.subr.mxu0 0.0
    %4513 = vmatpush1.msra.mxu0 %v4403
    %4514 = vmatprep.subr.mxu0 0.0
    %4515 = vmatpush1.msra.mxu0 %v4406
    %4516 = vmatprep.subr.mxu0 0.0
    %4517 = vmatpush1.msra.mxu0 %v4409
    %4518 = vmatprep.subr.mxu0 0.0
    %4519 = vmatpush1.msra.mxu0 %v4412
    %4520 = vmatprep.subr.mxu0 0.0
    %4521 = vmatpush1.msra.mxu0 0.0
    %4522 = vmatprep.subr.mxu0 0.0
    %4523 = vmatpush1.msra.mxu0 0.0
    %4524 = vmatprep.subr.mxu0 0.0
    %4525 = vmatpush1.msra.mxu0 0.0
    %4526 = vmatprep.subr.mxu0 0.0
    %4527 = vmatpush1.msra.mxu0 0.0
    %4528 = vmatprep.subr.mxu0 0.0
    %4529 = vmatpush1.msra.mxu0 0.0
    %4530 = vmatprep.subr.mxu0 0.0
    %4531 = vmatpush1.msra.mxu0 0.0
    %4532 = vmatprep.subr.mxu0 0.0
    %4533 = vmatpush1.msra.mxu0 0.0
    %4534 = vmatprep.subr.mxu0 0.0
    %4535 = vmatpush1.msra.mxu0 0.0
    %4536 = vmatprep.subr.mxu0 0.0
    %4537 = vmatpush1.msra.mxu0 0.0
    %4538 = vmatprep.subr.mxu0 0.0
    %4539 = vmatpush1.msra.mxu0 0.0
    %4540 = vmatprep.subr.mxu0 0.0
    %4541 = vmatpush1.msra.mxu0 0.0
    %4542 = vmatprep.subr.mxu0 0.0
    %4543 = vmatpush1.msra.mxu0 0.0
    %4544 = vmatprep.subr.mxu0 0.0
    %4545 = vmatpush1.msra.mxu0 0.0
    %4546 = vmatprep.subr.mxu0 0.0
    %4547 = vmatpush1.msra.mxu0 0.0
    %4548 = vmatprep.subr.mxu0 0.0
    %4549 = vmatpush1.msra.mxu0 0.0
    %4550 = vmatprep.subr.mxu0 0.0
    %4551 = vmatpush1.msra.mxu0 0.0
    %4552 = vmatprep.subr.mxu0 0.0
    %4553 = vmatpush1.msra.mxu0 0.0
    %4554 = vmatprep.subr.mxu0 0.0
    %4555 = vmatpush1.msra.mxu0 0.0
    %4556 = vmatprep.subr.mxu0 0.0
    %4557 = vmatpush1.msra.mxu0 0.0
    %4558 = vmatprep.subr.mxu0 0.0
    %4559 = vmatpush1.msra.mxu0 0.0
    %4560 = vmatprep.subr.mxu0 0.0
    %4561 = vmatpush1.msra.mxu0 0.0
    %4562 = vmatprep.subr.mxu0 0.0
    %4563 = vmatpush1.msra.mxu0 0.0
    %4564 = vmatprep.subr.mxu0 0.0
    %4565 = vmatpush1.msra.mxu0 0.0
    %4566 = vmatprep.subr.mxu0 0.0
    %4567 = vmatpush1.msra.mxu0 0.0
    %4568 = vmatprep.subr.mxu0 0.0
    %4569 = vmatpush1.msra.mxu0 0.0
    %4570 = vmatprep.subr.mxu0 0.0
    %4571 = vmatpush1.msra.mxu0 0.0
    %4572 = vmatprep.mubr.f32.mxu0 0.0
    %4573 = vmatmul.mubr.f32.gmra.mrb[0].mxu0 %v4426
    %v4574 = vpop.f32.mrb[0].mxu0
    %v4575 = vadd.f32 %v4424, %v4574
    %v4576 = vpop.f32.mrb[0].mxu0
    %4577 = vmatprep.mubr.f32.mxu0 0.0
    %4578 = vmatmul.mubr.f32.gmra.mrb[0].mxu0 %v4429
    %v4579 = vpop.f32.mrb[0].mxu0
    %v4580 = vadd.f32 %v4424, %v4579
    %v4581 = vpop.f32.mrb[0].mxu0
    %4582 = vdwg.mxu0
    %v4584 = vsel %vm318, %v4498, 0
    %v4587 = vsel %vm318, %v4504, 0
    %v4590 = vsel %vm318, %v4500, 0
    %v4593 = vsel %vm318, %v4506, 0
    %4595 = vmatprep.subr.mxu0 0.0
    %4596 = vmatpush1.xpose.msra.mxu0 %v4590
    %4597 = vmatprep.subr.mxu0 0.0
    %4598 = vmatpush1.xpose.msra.mxu0 %v4593
    %4599 = vmatprep.subr.mxu0 0.0
    %4600 = vmatpush1.xpose.msra.mxu0 0.0
    %4601 = vmatprep.subr.mxu0 0.0
    %4602 = vmatpush1.xpose.msra.mxu0 0.0
    %4603 = vmatprep.subr.mxu0 0.0
    %4604 = vmatpush1.xpose.msra.mxu0 0.0
    %4605 = vmatprep.subr.mxu0 0.0
    %4606 = vmatpush1.xpose.msra.mxu0 0.0
    %4607 = vmatprep.subr.mxu0 0.0
    %4608 = vmatpush1.xpose.msra.mxu0 0.0
    %4609 = vmatprep.subr.mxu0 0.0
    %4610 = vmatpush1.xpose.msra.mxu0 0.0
    %4611 = vmatprep.subr.mxu0 0.0
    %4612 = vmatpush1.xpose.msra.mxu0 0.0
    %4613 = vmatprep.subr.mxu0 0.0
    %4614 = vmatpush1.xpose.msra.mxu0 0.0
    %4615 = vmatprep.subr.mxu0 0.0
    %4616 = vmatpush1.xpose.msra.mxu0 0.0
    %4617 = vmatprep.subr.mxu0 0.0
    %4618 = vmatpush1.xpose.msra.mxu0 0.0
    %4619 = vmatprep.subr.mxu0 0.0
    %4620 = vmatpush1.xpose.msra.mxu0 0.0
    %4621 = vmatprep.subr.mxu0 0.0
    %4622 = vmatpush1.xpose.msra.mxu0 0.0
    %4623 = vmatprep.subr.mxu0 0.0
    %4624 = vmatpush1.xpose.msra.mxu0 0.0
    %4625 = vmatprep.subr.mxu0 0.0
    %4626 = vmatpush1.xpose.msra.mxu0 0.0
    %4627 = vmatprep.subr.mxu0 0.0
    %4628 = vmatpush1.xpose.msra.mxu0 0.0
    %4629 = vmatprep.subr.mxu0 0.0
    %4630 = vmatpush1.xpose.msra.mxu0 0.0
    %4631 = vmatprep.subr.mxu0 0.0
    %4632 = vmatpush1.xpose.msra.mxu0 0.0
    %4633 = vmatprep.subr.mxu0 0.0
    %4634 = vmatpush1.xpose.msra.mxu0 0.0
    %4635 = vmatprep.subr.mxu0 0.0
    %4636 = vmatpush1.xpose.msra.mxu0 0.0
    %4637 = vmatprep.subr.mxu0 0.0
    %4638 = vmatpush1.xpose.msra.mxu0 0.0
    %4639 = vmatprep.subr.mxu0 0.0
    %4640 = vmatpush1.xpose.msra.mxu0 0.0
    %4641 = vmatprep.subr.mxu0 0.0
    %4642 = vmatpush1.xpose.msra.mxu0 0.0
    %4643 = vmatprep.subr.mxu0 0.0
    %4644 = vmatpush1.xpose.msra.mxu0 0.0
    %4645 = vmatprep.subr.mxu0 0.0
    %4646 = vmatpush1.xpose.msra.mxu0 0.0
    %4647 = vmatprep.subr.mxu0 0.0
    %4648 = vmatpush1.xpose.msra.mxu0 0.0
    %4649 = vmatprep.subr.mxu0 0.0
    %4650 = vmatpush1.xpose.msra.mxu0 0.0
    %4651 = vmatprep.subr.mxu0 0.0
    %4652 = vmatpush1.xpose.msra.mxu0 0.0
    %4653 = vmatprep.subr.mxu0 0.0
    %4654 = vmatpush1.xpose.msra.mxu0 0.0
    %4655 = vmatprep.subr.mxu0 0.0
    %4656 = vmatpush1.xpose.msra.mxu0 0.0
    %4657 = vmatprep.subr.mxu0 0.0
    %4658 = vmatpush1.xpose.msra.mxu0 0.0
    %4659 = vmatprep.mubr.f32.mxu0 0.0
    %4660 = vmatmul.mubr.f32.gmra.mrb[0].mxu0 %v4584
    %v4661 = vpop.f32.mrb[0].mxu0
    %v4662 = vadd.f32 %v85, %v4661
    %v4663 = vpop.f32.mrb[0].mxu0
    %4664 = vmatprep.mubr.f32.mxu0 0.0
    %4665 = vmatmul.mubr.f32.gmra.mrb[0].mxu0 %v4587
    %v4666 = vpop.f32.mrb[0].mxu0
    %v4667 = vadd.f32 %v86, %v4666
    %v4668 = vpop.f32.mrb[0].mxu0
    %4669 = vdwg.mxu0
    %v4670 = vsel %vm406, %v4662, -inf
    %4671 = vmax.xlane.f32.xlu0 %v4670
    %v4672 = vpop.xlane.xlu0 %4671
    %v4673 = vsel %vm406, %v4667, -inf
    %4674 = vmax.xlane.f32.xlu0 %v4673
    %v4675 = vpop.xlane.xlu0 %4674
    %v4676 = vsub.f32 %v4662, %v4672
    %v4677 = vsub.f32 %v4667, %v4675
    %v4678 = vmul.f32 %v4676, 1.442695
    %v4679 = vpow.pop %v4678
    %v4680 = vmul.f32 %v4677, 1.442695
    %v4681 = vpow.pop %v4680
    %v4682 = vsel %vm406, %v4679, 0.0
    %4683 = vadd.xlane.f32.xlu0 %v4682
    %v4684 = vpop.xlane.xlu0 %4683
    %v4685 = vsel %vm406, %v4681, 0.0
    %4686 = vadd.xlane.f32.xlu0 %v4685
    %v4687 = vpop.xlane.xlu0 %4686
    %v4688 = vrcp.pop %v4684
    %v4689 = vrcp.pop %v4687
    %v4690 = vmul.f32 %v4679, %v4688
    %v4691 = vmul.f32 %v4681, %v4689
    %v4693 = vsel %vm406, %v4690, 0
    %v4696 = vsel %vm406, %v4691, 0
    %4698 = vmatprep.subr.mxu0 0.0
    %4699 = vmatpush1.msra.mxu0 %v4575
    %4700 = vmatprep.subr.mxu0 0.0
    %4701 = vmatpush1.msra.mxu0 %v4580
    %4702 = vmatprep.subr.mxu0 0.0
    %4703 = vmatpush1.msra.mxu0 0.0
    %4704 = vmatprep.subr.mxu0 0.0
    %4705 = vmatpush1.msra.mxu0 0.0
    %4706 = vmatprep.subr.mxu0 0.0
    %4707 = vmatpush1.msra.mxu0 0.0
    %4708 = vmatprep.subr.mxu0 0.0
    %4709 = vmatpush1.msra.mxu0 0.0
    %4710 = vmatprep.subr.mxu0 0.0
    %4711 = vmatpush1.msra.mxu0 0.0
    %4712 = vmatprep.subr.mxu0 0.0
    %4713 = vmatpush1.msra.mxu0 0.0
    %4714 = vmatprep.subr.mxu0 0.0
    %4715 = vmatpush1.msra.mxu0 0.0
    %4716 = vmatprep.subr.mxu0 0.0
    %4717 = vmatpush1.msra.mxu0 0.0
    %4718 = vmatprep.subr.mxu0 0.0
    %4719 = vmatpush1.msra.mxu0 0.0
    %4720 = vmatprep.subr.mxu0 0.0
    %4721 = vmatpush1.msra.mxu0 0.0
    %4722 = vmatprep.subr.mxu0 0.0
    %4723 = vmatpush1.msra.mxu0 0.0
    %4724 = vmatprep.subr.mxu0 0.0
    %4725 = vmatpush1.msra.mxu0 0.0
    %4726 = vmatprep.subr.mxu0 0.0
    %4727 = vmatpush1.msra.mxu0 0.0
    %4728 = vmatprep.subr.mxu0 0.0
    %4729 = vmatpush1.msra.mxu0 0.0
    %4730 = vmatprep.subr.mxu0 0.0
    %4731 = vmatpush1.msra.mxu0 0.0
    %4732 = vmatprep.subr.mxu0 0.0
    %4733 = vmatpush1.msra.mxu0 0.0
    %4734 = vmatprep.subr.mxu0 0.0
    %4735 = vmatpush1.msra.mxu0 0.0
    %4736 = vmatprep.subr.mxu0 0.0
    %4737 = vmatpush1.msra.mxu0 0.0
    %4738 = vmatprep.subr.mxu0 0.0
    %4739 = vmatpush1.msra.mxu0 0.0
    %4740 = vmatprep.subr.mxu0 0.0
    %4741 = vmatpush1.msra.mxu0 0.0
    %4742 = vmatprep.subr.mxu0 0.0
    %4743 = vmatpush1.msra.mxu0 0.0
    %4744 = vmatprep.subr.mxu0 0.0
    %4745 = vmatpush1.msra.mxu0 0.0
    %4746 = vmatprep.subr.mxu0 0.0
    %4747 = vmatpush1.msra.mxu0 0.0
    %4748 = vmatprep.subr.mxu0 0.0
    %4749 = vmatpush1.msra.mxu0 0.0
    %4750 = vmatprep.subr.mxu0 0.0
    %4751 = vmatpush1.msra.mxu0 0.0
    %4752 = vmatprep.subr.mxu0 0.0
    %4753 = vmatpush1.msra.mxu0 0.0
    %4754 = vmatprep.subr.mxu0 0.0
    %4755 = vmatpush1.msra.mxu0 0.0
    %4756 = vmatprep.subr.mxu0 0.0
    %4757 = vmatpush1.msra.mxu0 0.0
    %4758 = vmatprep.subr.mxu0 0.0
    %4759 = vmatpush1.msra.mxu0 0.0
    %4760 = vmatprep.subr.mxu0 0.0
    %4761 = vmatpush1.msra.mxu0 0.0
    %4762 = vmatprep.mubr.f32.mxu0 0.0
    %4763 = vmatmul.mubr.f32.gmra.mrb[0].mxu0 %v4693
    %v4764 = vpop.f32.mrb[0].mxu0
    %v4765 = vadd.f32 0.0, %v4764
    %v4766 = vpop.f32.mrb[0].mxu0
    %4767 = vmatprep.mubr.f32.mxu0 0.0
    %4768 = vmatmul.mubr.f32.gmra.mrb[0].mxu0 %v4696
    %v4769 = vpop.f32.mrb[0].mxu0
    %v4770 = vadd.f32 0.0, %v4769
    %v4771 = vpop.f32.mrb[0].mxu0
    %4772 = vdwg.mxu0
    %4773 = vrot.lane.b32.xlu0 %v4498, 116
    %v4774 = vpop.permute.xlu0 %4773
    %4775 = vrot.lane.b32.xlu0 %v4504, 116
    %v4776 = vpop.permute.xlu0 %4775
    %4777 = vrot.lane.b32.xlu0 %v4500, 116
    %v4778 = vpop.permute.xlu0 %4777
    %4779 = vrot.lane.b32.xlu0 %v4506, 116
    %v4780 = vpop.permute.xlu0 %4779
    %v4781 = vsel %vm318, %v4774, 0
    %v4783 = vsel %vm318, %v4776, 0
    %v4785 = vsel %vm318, %v4778, 0
    %v4787 = vsel %vm318, %v4780, 0
    %4789 = vmatprep.subr.mxu0 0.0
    %4790 = vmatpush1.xpose.msra.mxu0 %v4785
    %4791 = vmatprep.subr.mxu0 0.0
    %4792 = vmatpush1.xpose.msra.mxu0 %v4787
    %4793 = vmatprep.subr.mxu0 0.0
    %4794 = vmatpush1.xpose.msra.mxu0 0.0
    %4795 = vmatprep.subr.mxu0 0.0
    %4796 = vmatpush1.xpose.msra.mxu0 0.0
    %4797 = vmatprep.subr.mxu0 0.0
    %4798 = vmatpush1.xpose.msra.mxu0 0.0
    %4799 = vmatprep.subr.mxu0 0.0
    %4800 = vmatpush1.xpose.msra.mxu0 0.0
    %4801 = vmatprep.subr.mxu0 0.0
    %4802 = vmatpush1.xpose.msra.mxu0 0.0
    %4803 = vmatprep.subr.mxu0 0.0
    %4804 = vmatpush1.xpose.msra.mxu0 0.0
    %4805 = vmatprep.subr.mxu0 0.0
    %4806 = vmatpush1.xpose.msra.mxu0 0.0
    %4807 = vmatprep.subr.mxu0 0.0
    %4808 = vmatpush1.xpose.msra.mxu0 0.0
    %4809 = vmatprep.subr.mxu0 0.0
    %4810 = vmatpush1.xpose.msra.mxu0 0.0
    %4811 = vmatprep.subr.mxu0 0.0
    %4812 = vmatpush1.xpose.msra.mxu0 0.0
    %4813 = vmatprep.subr.mxu0 0.0
    %4814 = vmatpush1.xpose.msra.mxu0 0.0
    %4815 = vmatprep.subr.mxu0 0.0
    %4816 = vmatpush1.xpose.msra.mxu0 0.0
    %4817 = vmatprep.subr.mxu0 0.0
    %4818 = vmatpush1.xpose.msra.mxu0 0.0
    %4819 = vmatprep.subr.mxu0 0.0
    %4820 = vmatpush1.xpose.msra.mxu0 0.0
    %4821 = vmatprep.subr.mxu0 0.0
    %4822 = vmatpush1.xpose.msra.mxu0 0.0
    %4823 = vmatprep.subr.mxu0 0.0
    %4824 = vmatpush1.xpose.msra.mxu0 0.0
    %4825 = vmatprep.subr.mxu0 0.0
    %4826 = vmatpush1.xpose.msra.mxu0 0.0
    %4827 = vmatprep.subr.mxu0 0.0
    %4828 = vmatpush1.xpose.msra.mxu0 0.0
    %4829 = vmatprep.subr.mxu0 0.0
    %4830 = vmatpush1.xpose.msra.mxu0 0.0
    %4831 = vmatprep.subr.mxu0 0.0
    %4832 = vmatpush1.xpose.msra.mxu0 0.0
    %4833 = vmatprep.subr.mxu0 0.0
    %4834 = vmatpush1.xpose.msra.mxu0 0.0
    %4835 = vmatprep.subr.mxu0 0.0
    %4836 = vmatpush1.xpose.msra.mxu0 0.0
    %4837 = vmatprep.subr.mxu0 0.0
    %4838 = vmatpush1.xpose.msra.mxu0 0.0
    %4839 = vmatprep.subr.mxu0 0.0
    %4840 = vmatpush1.xpose.msra.mxu0 0.0
    %4841 = vmatprep.subr.mxu0 0.0
    %4842 = vmatpush1.xpose.msra.mxu0 0.0
    %4843 = vmatprep.subr.mxu0 0.0
    %4844 = vmatpush1.xpose.msra.mxu0 0.0
    %4845 = vmatprep.subr.mxu0 0.0
    %4846 = vmatpush1.xpose.msra.mxu0 0.0
    %4847 = vmatprep.subr.mxu0 0.0
    %4848 = vmatpush1.xpose.msra.mxu0 0.0
    %4849 = vmatprep.subr.mxu0 0.0
    %4850 = vmatpush1.xpose.msra.mxu0 0.0
    %4851 = vmatprep.subr.mxu0 0.0
    %4852 = vmatpush1.xpose.msra.mxu0 0.0
    %4853 = vmatprep.mubr.f32.mxu0 0.0
    %4854 = vmatmul.mubr.f32.gmra.mrb[0].mxu0 %v4781
    %v4855 = vpop.f32.mrb[0].mxu0
    %v4856 = vadd.f32 %v85, %v4855
    %v4857 = vpop.f32.mrb[0].mxu0
    %4858 = vmatprep.mubr.f32.mxu0 0.0
    %4859 = vmatmul.mubr.f32.gmra.mrb[0].mxu0 %v4783
    %v4860 = vpop.f32.mrb[0].mxu0
    %v4861 = vadd.f32 %v86, %v4860
    %v4862 = vpop.f32.mrb[0].mxu0
    %4863 = vdwg.mxu0
    %v4864 = vsel %vm406, %v4856, -inf
    %4865 = vmax.xlane.f32.xlu0 %v4864
    %v4866 = vpop.xlane.xlu0 %4865
    %v4867 = vsel %vm406, %v4861, -inf
    %4868 = vmax.xlane.f32.xlu0 %v4867
    %v4869 = vpop.xlane.xlu0 %4868
    %v4870 = vsub.f32 %v4856, %v4866
    %v4871 = vsub.f32 %v4861, %v4869
    %v4872 = vmul.f32 %v4870, 1.442695
    %v4873 = vpow.pop %v4872
    %v4874 = vmul.f32 %v4871, 1.442695
    %v4875 = vpow.pop %v4874
    %v4876 = vsel %vm406, %v4873, 0.0
    %4877 = vadd.xlane.f32.xlu0 %v4876
    %v4878 = vpop.xlane.xlu0 %4877
    %v4879 = vsel %vm406, %v4875, 0.0
    %4880 = vadd.xlane.f32.xlu0 %v4879
    %v4881 = vpop.xlane.xlu0 %4880
    %v4882 = vrcp.pop %v4878
    %v4883 = vrcp.pop %v4881
    %v4884 = vmul.f32 %v4873, %v4882
    %v4885 = vmul.f32 %v4875, %v4883
    %4888 = vrot.lane.b32.xlu0 %v4575, 116
    %v4889 = vpop.permute.xlu0 %4888
    %4890 = vrot.lane.b32.xlu0 %v4580, 116
    %v4891 = vpop.permute.xlu0 %4890
    %v4895 = vsel %vm406, %v4884, 0
    %v4898 = vsel %vm406, %v4885, 0
    %4900 = vmatprep.subr.mxu0 0.0
    %4901 = vmatpush1.msra.mxu0 %v4889
    %4902 = vmatprep.subr.mxu0 0.0
    %4903 = vmatpush1.msra.mxu0 %v4891
    %4904 = vmatprep.subr.mxu0 0.0
    %4905 = vmatpush1.msra.mxu0 0.0
    %4906 = vmatprep.subr.mxu0 0.0
    %4907 = vmatpush1.msra.mxu0 0.0
    %4908 = vmatprep.subr.mxu0 0.0
    %4909 = vmatpush1.msra.mxu0 0.0
    %4910 = vmatprep.subr.mxu0 0.0
    %4911 = vmatpush1.msra.mxu0 0.0
    %4912 = vmatprep.subr.mxu0 0.0
    %4913 = vmatpush1.msra.mxu0 0.0
    %4914 = vmatprep.subr.mxu0 0.0
    %4915 = vmatpush1.msra.mxu0 0.0
    %4916 = vmatprep.subr.mxu0 0.0
    %4917 = vmatpush1.msra.mxu0 0.0
    %4918 = vmatprep.subr.mxu0 0.0
    %4919 = vmatpush1.msra.mxu0 0.0
    %4920 = vmatprep.subr.mxu0 0.0
    %4921 = vmatpush1.msra.mxu0 0.0
    %4922 = vmatprep.subr.mxu0 0.0
    %4923 = vmatpush1.msra.mxu0 0.0
    %4924 = vmatprep.subr.mxu0 0.0
    %4925 = vmatpush1.msra.mxu0 0.0
    %4926 = vmatprep.subr.mxu0 0.0
    %4927 = vmatpush1.msra.mxu0 0.0
    %4928 = vmatprep.subr.mxu0 0.0
    %4929 = vmatpush1.msra.mxu0 0.0
    %4930 = vmatprep.subr.mxu0 0.0
    %4931 = vmatpush1.msra.mxu0 0.0
    %4932 = vmatprep.subr.mxu0 0.0
    %4933 = vmatpush1.msra.mxu0 0.0
    %4934 = vmatprep.subr.mxu0 0.0
    %4935 = vmatpush1.msra.mxu0 0.0
    %4936 = vmatprep.subr.mxu0 0.0
    %4937 = vmatpush1.msra.mxu0 0.0
    %4938 = vmatprep.subr.mxu0 0.0
    %4939 = vmatpush1.msra.mxu0 0.0
    %4940 = vmatprep.subr.mxu0 0.0
    %4941 = vmatpush1.msra.mxu0 0.0
    %4942 = vmatprep.subr.mxu0 0.0
    %4943 = vmatpush1.msra.mxu0 0.0
    %4944 = vmatprep.subr.mxu0 0.0
    %4945 = vmatpush1.msra.mxu0 0.0
    %4946 = vmatprep.subr.mxu0 0.0
    %4947 = vmatpush1.msra.mxu0 0.0
    %4948 = vmatprep.subr.mxu0 0.0
    %4949 = vmatpush1.msra.mxu0 0.0
    %4950 = vmatprep.subr.mxu0 0.0
    %4951 = vmatpush1.msra.mxu0 0.0
    %4952 = vmatprep.subr.mxu0 0.0
    %4953 = vmatpush1.msra.mxu0 0.0
    %4954 = vmatprep.subr.mxu0 0.0
    %4955 = vmatpush1.msra.mxu0 0.0
    %4956 = vmatprep.subr.mxu0 0.0
    %4957 = vmatpush1.msra.mxu0 0.0
    %4958 = vmatprep.subr.mxu0 0.0
    %4959 = vmatpush1.msra.mxu0 0.0
    %4960 = vmatprep.subr.mxu0 0.0
    %4961 = vmatpush1.msra.mxu0 0.0
    %4962 = vmatprep.subr.mxu0 0.0
    %4963 = vmatpush1.msra.mxu0 0.0
    %4964 = vmatprep.mubr.f32.mxu0 0.0
    %4965 = vmatmul.mubr.f32.gmra.mrb[0].mxu0 %v4895
    %v4966 = vpop.f32.mrb[0].mxu0
    %v4967 = vadd.f32 0.0, %v4966
    %v4968 = vpop.f32.mrb[0].mxu0
    %4969 = vmatprep.mubr.f32.mxu0 0.0
    %4970 = vmatmul.mubr.f32.gmra.mrb[0].mxu0 %v4898
    %v4971 = vpop.f32.mrb[0].mxu0
    %v4972 = vadd.f32 0.0, %v4971
    %v4973 = vpop.f32.mrb[0].mxu0
    %4974 = vdwg.mxu0
    %4975 = vrot.lane.b32.xlu0 %v4498, 104
    %v4976 = vpop.permute.xlu0 %4975
    %4977 = vrot.lane.b32.xlu0 %v4504, 104
    %v4978 = vpop.permute.xlu0 %4977
    %4979 = vrot.lane.b32.xlu0 %v4500, 104
    %v4980 = vpop.permute.xlu0 %4979
    %4981 = vrot.lane.b32.xlu0 %v4506, 104
    %v4982 = vpop.permute.xlu0 %4981
    %v4983 = vsel %vm318, %v4976, 0
    %v4985 = vsel %vm318, %v4978, 0
    %v4987 = vsel %vm318, %v4980, 0
    %v4989 = vsel %vm318, %v4982, 0
    %4991 = vmatprep.subr.mxu0 0.0
    %4992 = vmatpush1.xpose.msra.mxu0 %v4987
    %4993 = vmatprep.subr.mxu0 0.0
    %4994 = vmatpush1.xpose.msra.mxu0 %v4989
    %4995 = vmatprep.subr.mxu0 0.0
    %4996 = vmatpush1.xpose.msra.mxu0 0.0
    %4997 = vmatprep.subr.mxu0 0.0
    %4998 = vmatpush1.xpose.msra.mxu0 0.0
    %4999 = vmatprep.subr.mxu0 0.0
    %5000 = vmatpush1.xpose.msra.mxu0 0.0
    %5001 = vmatprep.subr.mxu0 0.0
    %5002 = vmatpush1.xpose.msra.mxu0 0.0
    %5003 = vmatprep.subr.mxu0 0.0
    %5004 = vmatpush1.xpose.msra.mxu0 0.0
    %5005 = vmatprep.subr.mxu0 0.0
    %5006 = vmatpush1.xpose.msra.mxu0 0.0
    %5007 = vmatprep.subr.mxu0 0.0
    %5008 = vmatpush1.xpose.msra.mxu0 0.0
    %5009 = vmatprep.subr.mxu0 0.0
    %5010 = vmatpush1.xpose.msra.mxu0 0.0
    %5011 = vmatprep.subr.mxu0 0.0
    %5012 = vmatpush1.xpose.msra.mxu0 0.0
    %5013 = vmatprep.subr.mxu0 0.0
    %5014 = vmatpush1.xpose.msra.mxu0 0.0
    %5015 = vmatprep.subr.mxu0 0.0
    %5016 = vmatpush1.xpose.msra.mxu0 0.0
    %5017 = vmatprep.subr.mxu0 0.0
    %5018 = vmatpush1.xpose.msra.mxu0 0.0
    %5019 = vmatprep.subr.mxu0 0.0
    %5020 = vmatpush1.xpose.msra.mxu0 0.0
    %5021 = vmatprep.subr.mxu0 0.0
    %5022 = vmatpush1.xpose.msra.mxu0 0.0
    %5023 = vmatprep.subr.mxu0 0.0
    %5024 = vmatpush1.xpose.msra.mxu0 0.0
    %5025 = vmatprep.subr.mxu0 0.0
    %5026 = vmatpush1.xpose.msra.mxu0 0.0
    %5027 = vmatprep.subr.mxu0 0.0
    %5028 = vmatpush1.xpose.msra.mxu0 0.0
    %5029 = vmatprep.subr.mxu0 0.0
    %5030 = vmatpush1.xpose.msra.mxu0 0.0
    %5031 = vmatprep.subr.mxu0 0.0
    %5032 = vmatpush1.xpose.msra.mxu0 0.0
    %5033 = vmatprep.subr.mxu0 0.0
    %5034 = vmatpush1.xpose.msra.mxu0 0.0
    %5035 = vmatprep.subr.mxu0 0.0
    %5036 = vmatpush1.xpose.msra.mxu0 0.0
    %5037 = vmatprep.subr.mxu0 0.0
    %5038 = vmatpush1.xpose.msra.mxu0 0.0
    %5039 = vmatprep.subr.mxu0 0.0
    %5040 = vmatpush1.xpose.msra.mxu0 0.0
    %5041 = vmatprep.subr.mxu0 0.0
    %5042 = vmatpush1.xpose.msra.mxu0 0.0
    %5043 = vmatprep.subr.mxu0 0.0
    %5044 = vmatpush1.xpose.msra.mxu0 0.0
    %5045 = vmatprep.subr.mxu0 0.0
    %5046 = vmatpush1.xpose.msra.mxu0 0.0
    %5047 = vmatprep.subr.mxu0 0.0
    %5048 = vmatpush1.xpose.msra.mxu0 0.0
    %5049 = vmatprep.subr.mxu0 0.0
    %5050 = vmatpush1.xpose.msra.mxu0 0.0
    %5051 = vmatprep.subr.mxu0 0.0
    %5052 = vmatpush1.xpose.msra.mxu0 0.0
    %5053 = vmatprep.subr.mxu0 0.0
    %5054 = vmatpush1.xpose.msra.mxu0 0.0
    %5055 = vmatprep.mubr.f32.mxu0 0.0
    %5056 = vmatmul.mubr.f32.gmra.mrb[0].mxu0 %v4983
    %v5057 = vpop.f32.mrb[0].mxu0
    %v5058 = vadd.f32 %v85, %v5057
    %v5059 = vpop.f32.mrb[0].mxu0
    %5060 = vmatprep.mubr.f32.mxu0 0.0
    %5061 = vmatmul.mubr.f32.gmra.mrb[0].mxu0 %v4985
    %v5062 = vpop.f32.mrb[0].mxu0
    %v5063 = vadd.f32 %v86, %v5062
    %v5064 = vpop.f32.mrb[0].mxu0
    %5065 = vdwg.mxu0
    %v5066 = vsel %vm406, %v5058, -inf
    %5067 = vmax.xlane.f32.xlu0 %v5066
    %v5068 = vpop.xlane.xlu0 %5067
    %v5069 = vsel %vm406, %v5063, -inf
    %5070 = vmax.xlane.f32.xlu0 %v5069
    %v5071 = vpop.xlane.xlu0 %5070
    %v5072 = vsub.f32 %v5058, %v5068
    %v5073 = vsub.f32 %v5063, %v5071
    %v5074 = vmul.f32 %v5072, 1.442695
    %v5075 = vpow.pop %v5074
    %v5076 = vmul.f32 %v5073, 1.442695
    %v5077 = vpow.pop %v5076
    %v5078 = vsel %vm406, %v5075, 0.0
    %5079 = vadd.xlane.f32.xlu0 %v5078
    %v5080 = vpop.xlane.xlu0 %5079
    %v5081 = vsel %vm406, %v5077, 0.0
    %5082 = vadd.xlane.f32.xlu0 %v5081
    %v5083 = vpop.xlane.xlu0 %5082
    %v5084 = vrcp.pop %v5080
    %v5085 = vrcp.pop %v5083
    %v5086 = vmul.f32 %v5075, %v5084
    %v5087 = vmul.f32 %v5077, %v5085
    %5088 = vrot.lane.b32.xlu0 %v4575, 104
    %v5089 = vpop.permute.xlu0 %5088
    %5090 = vrot.lane.b32.xlu0 %v4580, 104
    %v5091 = vpop.permute.xlu0 %5090
    %v5095 = vsel %vm406, %v5086, 0
    %v5098 = vsel %vm406, %v5087, 0
    %5100 = vmatprep.subr.mxu0 0.0
    %5101 = vmatpush1.msra.mxu0 %v5089
    %5102 = vmatprep.subr.mxu0 0.0
    %5103 = vmatpush1.msra.mxu0 %v5091
    %5104 = vmatprep.subr.mxu0 0.0
    %5105 = vmatpush1.msra.mxu0 0.0
    %5106 = vmatprep.subr.mxu0 0.0
    %5107 = vmatpush1.msra.mxu0 0.0
    %5108 = vmatprep.subr.mxu0 0.0
    %5109 = vmatpush1.msra.mxu0 0.0
    %5110 = vmatprep.subr.mxu0 0.0
    %5111 = vmatpush1.msra.mxu0 0.0
    %5112 = vmatprep.subr.mxu0 0.0
    %5113 = vmatpush1.msra.mxu0 0.0
    %5114 = vmatprep.subr.mxu0 0.0
    %5115 = vmatpush1.msra.mxu0 0.0
    %5116 = vmatprep.subr.mxu0 0.0
    %5117 = vmatpush1.msra.mxu0 0.0
    %5118 = vmatprep.subr.mxu0 0.0
    %5119 = vmatpush1.msra.mxu0 0.0
    %5120 = vmatprep.subr.mxu0 0.0
    %5121 = vmatpush1.msra.mxu0 0.0
    %5122 = vmatprep.subr.mxu0 0.0
    %5123 = vmatpush1.msra.mxu0 0.0
    %5124 = vmatprep.subr.mxu0 0.0
    %5125 = vmatpush1.msra.mxu0 0.0
    %5126 = vmatprep.subr.mxu0 0.0
    %5127 = vmatpush1.msra.mxu0 0.0
    %5128 = vmatprep.subr.mxu0 0.0
    %5129 = vmatpush1.msra.mxu0 0.0
    %5130 = vmatprep.subr.mxu0 0.0
    %5131 = vmatpush1.msra.mxu0 0.0
    %5132 = vmatprep.subr.mxu0 0.0
    %5133 = vmatpush1.msra.mxu0 0.0
    %5134 = vmatprep.subr.mxu0 0.0
    %5135 = vmatpush1.msra.mxu0 0.0
    %5136 = vmatprep.subr.mxu0 0.0
    %5137 = vmatpush1.msra.mxu0 0.0
    %5138 = vmatprep.subr.mxu0 0.0
    %5139 = vmatpush1.msra.mxu0 0.0
    %5140 = vmatprep.subr.mxu0 0.0
    %5141 = vmatpush1.msra.mxu0 0.0
    %5142 = vmatprep.subr.mxu0 0.0
    %5143 = vmatpush1.msra.mxu0 0.0
    %5144 = vmatprep.subr.mxu0 0.0
    %5145 = vmatpush1.msra.mxu0 0.0
    %5146 = vmatprep.subr.mxu0 0.0
    %5147 = vmatpush1.msra.mxu0 0.0
    %5148 = vmatprep.subr.mxu0 0.0
    %5149 = vmatpush1.msra.mxu0 0.0
    %5150 = vmatprep.subr.mxu0 0.0
    %5151 = vmatpush1.msra.mxu0 0.0
    %5152 = vmatprep.subr.mxu0 0.0
    %5153 = vmatpush1.msra.mxu0 0.0
    %5154 = vmatprep.subr.mxu0 0.0
    %5155 = vmatpush1.msra.mxu0 0.0
    %5156 = vmatprep.subr.mxu0 0.0
    %5157 = vmatpush1.msra.mxu0 0.0
    %5158 = vmatprep.subr.mxu0 0.0
    %5159 = vmatpush1.msra.mxu0 0.0
    %5160 = vmatprep.subr.mxu0 0.0
    %5161 = vmatpush1.msra.mxu0 0.0
    %5162 = vmatprep.subr.mxu0 0.0
    %5163 = vmatpush1.msra.mxu0 0.0
    %5164 = vmatprep.mubr.f32.mxu0 0.0
    %5165 = vmatmul.mubr.f32.gmra.mrb[0].mxu0 %v5095
    %v5166 = vpop.f32.mrb[0].mxu0
    %v5167 = vadd.f32 0.0, %v5166
    %v5168 = vpop.f32.mrb[0].mxu0
    %5169 = vmatprep.mubr.f32.mxu0 0.0
    %5170 = vmatmul.mubr.f32.gmra.mrb[0].mxu0 %v5098
    %v5171 = vpop.f32.mrb[0].mxu0
    %v5172 = vadd.f32 0.0, %v5171
    %v5173 = vpop.f32.mrb[0].mxu0
    %5174 = vdwg.mxu0
    %5175 = vrot.lane.b32.xlu0 %v4498, 92
    %v5176 = vpop.permute.xlu0 %5175
    %5177 = vrot.lane.b32.xlu0 %v4504, 92
    %v5178 = vpop.permute.xlu0 %5177
    %5179 = vrot.lane.b32.xlu0 %v4500, 92
    %v5180 = vpop.permute.xlu0 %5179
    %5181 = vrot.lane.b32.xlu0 %v4506, 92
    %v5182 = vpop.permute.xlu0 %5181
    %v5183 = vsel %vm318, %v5176, 0
    %v5185 = vsel %vm318, %v5178, 0
    %v5187 = vsel %vm318, %v5180, 0
    %v5189 = vsel %vm318, %v5182, 0
    %5191 = vmatprep.subr.mxu0 0.0
    %5192 = vmatpush1.xpose.msra.mxu0 %v5187
    %5193 = vmatprep.subr.mxu0 0.0
    %5194 = vmatpush1.xpose.msra.mxu0 %v5189
    %5195 = vmatprep.subr.mxu0 0.0
    %5196 = vmatpush1.xpose.msra.mxu0 0.0
    %5197 = vmatprep.subr.mxu0 0.0
    %5198 = vmatpush1.xpose.msra.mxu0 0.0
    %5199 = vmatprep.subr.mxu0 0.0
    %5200 = vmatpush1.xpose.msra.mxu0 0.0
    %5201 = vmatprep.subr.mxu0 0.0
    %5202 = vmatpush1.xpose.msra.mxu0 0.0
    %5203 = vmatprep.subr.mxu0 0.0
    %5204 = vmatpush1.xpose.msra.mxu0 0.0
    %5205 = vmatprep.subr.mxu0 0.0
    %5206 = vmatpush1.xpose.msra.mxu0 0.0
    %5207 = vmatprep.subr.mxu0 0.0
    %5208 = vmatpush1.xpose.msra.mxu0 0.0
    %5209 = vmatprep.subr.mxu0 0.0
    %5210 = vmatpush1.xpose.msra.mxu0 0.0
    %5211 = vmatprep.subr.mxu0 0.0
    %5212 = vmatpush1.xpose.msra.mxu0 0.0
    %5213 = vmatprep.subr.mxu0 0.0
    %5214 = vmatpush1.xpose.msra.mxu0 0.0
    %5215 = vmatprep.subr.mxu0 0.0
    %5216 = vmatpush1.xpose.msra.mxu0 0.0
    %5217 = vmatprep.subr.mxu0 0.0
    %5218 = vmatpush1.xpose.msra.mxu0 0.0
    %5219 = vmatprep.subr.mxu0 0.0
    %5220 = vmatpush1.xpose.msra.mxu0 0.0
    %5221 = vmatprep.subr.mxu0 0.0
    %5222 = vmatpush1.xpose.msra.mxu0 0.0
    %5223 = vmatprep.subr.mxu0 0.0
    %5224 = vmatpush1.xpose.msra.mxu0 0.0
    %5225 = vmatprep.subr.mxu0 0.0
    %5226 = vmatpush1.xpose.msra.mxu0 0.0
    %5227 = vmatprep.subr.mxu0 0.0
    %5228 = vmatpush1.xpose.msra.mxu0 0.0
    %5229 = vmatprep.subr.mxu0 0.0
    %5230 = vmatpush1.xpose.msra.mxu0 0.0
    %5231 = vmatprep.subr.mxu0 0.0
    %5232 = vmatpush1.xpose.msra.mxu0 0.0
    %5233 = vmatprep.subr.mxu0 0.0
    %5234 = vmatpush1.xpose.msra.mxu0 0.0
    %5235 = vmatprep.subr.mxu0 0.0
    %5236 = vmatpush1.xpose.msra.mxu0 0.0
    %5237 = vmatprep.subr.mxu0 0.0
    %5238 = vmatpush1.xpose.msra.mxu0 0.0
    %5239 = vmatprep.subr.mxu0 0.0
    %5240 = vmatpush1.xpose.msra.mxu0 0.0
    %5241 = vmatprep.subr.mxu0 0.0
    %5242 = vmatpush1.xpose.msra.mxu0 0.0
    %5243 = vmatprep.subr.mxu0 0.0
    %5244 = vmatpush1.xpose.msra.mxu0 0.0
    %5245 = vmatprep.subr.mxu0 0.0
    %5246 = vmatpush1.xpose.msra.mxu0 0.0
    %5247 = vmatprep.subr.mxu0 0.0
    %5248 = vmatpush1.xpose.msra.mxu0 0.0
    %5249 = vmatprep.subr.mxu0 0.0
    %5250 = vmatpush1.xpose.msra.mxu0 0.0
    %5251 = vmatprep.subr.mxu0 0.0
    %5252 = vmatpush1.xpose.msra.mxu0 0.0
    %5253 = vmatprep.subr.mxu0 0.0
    %5254 = vmatpush1.xpose.msra.mxu0 0.0
    %5255 = vmatprep.mubr.f32.mxu0 0.0
    %5256 = vmatmul.mubr.f32.gmra.mrb[0].mxu0 %v5183
    %v5257 = vpop.f32.mrb[0].mxu0
    %v5258 = vadd.f32 %v85, %v5257
    %v5259 = vpop.f32.mrb[0].mxu0
    %5260 = vmatprep.mubr.f32.mxu0 0.0
    %5261 = vmatmul.mubr.f32.gmra.mrb[0].mxu0 %v5185
    %v5262 = vpop.f32.mrb[0].mxu0
    %v5263 = vadd.f32 %v86, %v5262
    %v5264 = vpop.f32.mrb[0].mxu0
    %5265 = vdwg.mxu0
    %v5266 = vsel %vm406, %v5258, -inf
    %5267 = vmax.xlane.f32.xlu0 %v5266
    %v5268 = vpop.xlane.xlu0 %5267
    %v5269 = vsel %vm406, %v5263, -inf
    %5270 = vmax.xlane.f32.xlu0 %v5269
    %v5271 = vpop.xlane.xlu0 %5270
    %v5272 = vsub.f32 %v5258, %v5268
    %v5273 = vsub.f32 %v5263, %v5271
    %v5274 = vmul.f32 %v5272, 1.442695
    %v5275 = vpow.pop %v5274
    %v5276 = vmul.f32 %v5273, 1.442695
    %v5277 = vpow.pop %v5276
    %v5278 = vsel %vm406, %v5275, 0.0
    %5279 = vadd.xlane.f32.xlu0 %v5278
    %v5280 = vpop.xlane.xlu0 %5279
    %v5281 = vsel %vm406, %v5277, 0.0
    %5282 = vadd.xlane.f32.xlu0 %v5281
    %v5283 = vpop.xlane.xlu0 %5282
    %v5284 = vrcp.pop %v5280
    %v5285 = vrcp.pop %v5283
    %v5286 = vmul.f32 %v5275, %v5284
    %v5287 = vmul.f32 %v5277, %v5285
    %5288 = vrot.lane.b32.xlu0 %v4575, 92
    %v5289 = vpop.permute.xlu0 %5288
    %5290 = vrot.lane.b32.xlu0 %v4580, 92
    %v5291 = vpop.permute.xlu0 %5290
    %v5295 = vsel %vm406, %v5286, 0
    %v5298 = vsel %vm406, %v5287, 0
    %5300 = vmatprep.subr.mxu0 0.0
    %5301 = vmatpush1.msra.mxu0 %v5289
    %5302 = vmatprep.subr.mxu0 0.0
    %5303 = vmatpush1.msra.mxu0 %v5291
    %5304 = vmatprep.subr.mxu0 0.0
    %5305 = vmatpush1.msra.mxu0 0.0
    %5306 = vmatprep.subr.mxu0 0.0
    %5307 = vmatpush1.msra.mxu0 0.0
    %5308 = vmatprep.subr.mxu0 0.0
    %5309 = vmatpush1.msra.mxu0 0.0
    %5310 = vmatprep.subr.mxu0 0.0
    %5311 = vmatpush1.msra.mxu0 0.0
    %5312 = vmatprep.subr.mxu0 0.0
    %5313 = vmatpush1.msra.mxu0 0.0
    %5314 = vmatprep.subr.mxu0 0.0
    %5315 = vmatpush1.msra.mxu0 0.0
    %5316 = vmatprep.subr.mxu0 0.0
    %5317 = vmatpush1.msra.mxu0 0.0
    %5318 = vmatprep.subr.mxu0 0.0
    %5319 = vmatpush1.msra.mxu0 0.0
    %5320 = vmatprep.subr.mxu0 0.0
    %5321 = vmatpush1.msra.mxu0 0.0
    %5322 = vmatprep.subr.mxu0 0.0
    %5323 = vmatpush1.msra.mxu0 0.0
    %5324 = vmatprep.subr.mxu0 0.0
    %5325 = vmatpush1.msra.mxu0 0.0
    %5326 = vmatprep.subr.mxu0 0.0
    %5327 = vmatpush1.msra.mxu0 0.0
    %5328 = vmatprep.subr.mxu0 0.0
    %5329 = vmatpush1.msra.mxu0 0.0
    %5330 = vmatprep.subr.mxu0 0.0
    %5331 = vmatpush1.msra.mxu0 0.0
    %5332 = vmatprep.subr.mxu0 0.0
    %5333 = vmatpush1.msra.mxu0 0.0
    %5334 = vmatprep.subr.mxu0 0.0
    %5335 = vmatpush1.msra.mxu0 0.0
    %5336 = vmatprep.subr.mxu0 0.0
    %5337 = vmatpush1.msra.mxu0 0.0
    %5338 = vmatprep.subr.mxu0 0.0
    %5339 = vmatpush1.msra.mxu0 0.0
    %5340 = vmatprep.subr.mxu0 0.0
    %5341 = vmatpush1.msra.mxu0 0.0
    %5342 = vmatprep.subr.mxu0 0.0
    %5343 = vmatpush1.msra.mxu0 0.0
    %5344 = vmatprep.subr.mxu0 0.0
    %5345 = vmatpush1.msra.mxu0 0.0
    %5346 = vmatprep.subr.mxu0 0.0
    %5347 = vmatpush1.msra.mxu0 0.0
    %5348 = vmatprep.subr.mxu0 0.0
    %5349 = vmatpush1.msra.mxu0 0.0
    %5350 = vmatprep.subr.mxu0 0.0
    %5351 = vmatpush1.msra.mxu0 0.0
    %5352 = vmatprep.subr.mxu0 0.0
    %5353 = vmatpush1.msra.mxu0 0.0
    %5354 = vmatprep.subr.mxu0 0.0
    %5355 = vmatpush1.msra.mxu0 0.0
    %5356 = vmatprep.subr.mxu0 0.0
    %5357 = vmatpush1.msra.mxu0 0.0
    %5358 = vmatprep.subr.mxu0 0.0
    %5359 = vmatpush1.msra.mxu0 0.0
    %5360 = vmatprep.subr.mxu0 0.0
    %5361 = vmatpush1.msra.mxu0 0.0
    %5362 = vmatprep.subr.mxu0 0.0
    %5363 = vmatpush1.msra.mxu0 0.0
    %5364 = vmatprep.mubr.f32.mxu0 0.0
    %5365 = vmatmul.mubr.f32.gmra.mrb[0].mxu0 %v5295
    %v5366 = vpop.f32.mrb[0].mxu0
    %v5367 = vadd.f32 0.0, %v5366
    %v5368 = vpop.f32.mrb[0].mxu0
    %5369 = vmatprep.mubr.f32.mxu0 0.0
    %5370 = vmatmul.mubr.f32.gmra.mrb[0].mxu0 %v5298
    %v5371 = vpop.f32.mrb[0].mxu0
    %v5372 = vadd.f32 0.0, %v5371
    %v5373 = vpop.f32.mrb[0].mxu0
    %5374 = vdwg.mxu0
    %5377 = vrot.lane.b32.xlu0 %v4967, 12
    %v5378 = vpop.permute.xlu0 %5377
    %5379 = vrot.lane.b32.xlu0 %v4972, 12
    %v5380 = vpop.permute.xlu0 %5379
    %5385 = vrot.lane.b32.xlu0 %v5167, 24
    %v5386 = vpop.permute.xlu0 %5385
    %5387 = vrot.lane.b32.xlu0 %v5172, 24
    %v5388 = vpop.permute.xlu0 %5387
    %5393 = vrot.lane.b32.xlu0 %v5367, 36
    %v5394 = vpop.permute.xlu0 %5393
    %5395 = vrot.lane.b32.xlu0 %v5372, 36
    %v5396 = vpop.permute.xlu0 %5395
    %v5399 = vsel %vm318, %v4765, %v5378
    %v5400 = vsel %vm318, %v4770, %v5380
    %v5401 = vsel %vm1138, %v5399, %v5386
    %v5402 = vsel %vm1138, %v5400, %v5388
    %v5403 = vsel %vm1141, %v5401, %v5394
    %v5404 = vsel %vm1141, %v5402, %v5396
    %s5405 = scalar_lea.vmem %s3, 144
    %v5406 = vld [vmem:[%s5405] sm:$0xff]
    %v5407 = vld [vmem:[%s5405 + $0x8] sm:$0xff]
    %v5408 = vld [vmem:[%s5405 + $0x10] sm:$0xff]
    %v5409 = vld [vmem:[%s5405 + $0x18] sm:$0xff]
    %v5410 = vld [vmem:[%s5405 + $0x20] sm:$0xff]
    %v5411 = vld [vmem:[%s5405 + $0x28] sm:$0xff]
    %v5412 = vlaneseq
    %v5413 = vshrl.u32 %v5412, 7
    %v5414 = vsub.s32 1, %v5413
    %v5415 = vrot.slane %v4353, %v5414
    %v5417 = vsel %vm90, %v5403, 0
    %v5420 = vsel %vm90, %v5404, 0
    %5422 = vmatprep.subr.mxu0 0.0
    %5423 = vmatpush1.msra.mxu0 %v5406
    %5424 = vmatprep.subr.mxu0 0.0
    %5425 = vmatpush1.msra.mxu0 %v5407
    %5426 = vmatprep.subr.mxu0 0.0
    %5427 = vmatpush1.msra.mxu0 %v5408
    %5428 = vmatprep.subr.mxu0 0.0
    %5429 = vmatpush1.msra.mxu0 %v5409
    %5430 = vmatprep.subr.mxu0 0.0
    %5431 = vmatpush1.msra.mxu0 %v5410
    %5432 = vmatprep.subr.mxu0 0.0
    %5433 = vmatpush1.msra.mxu0 %v5411
    %5434 = vmatprep.subr.mxu0 0.0
    %5435 = vmatpush1.msra.mxu0 0.0
    %5436 = vmatprep.subr.mxu0 0.0
    %5437 = vmatpush1.msra.mxu0 0.0
    %5438 = vmatprep.subr.mxu0 0.0
    %5439 = vmatpush1.msra.mxu0 0.0
    %5440 = vmatprep.subr.mxu0 0.0
    %5441 = vmatpush1.msra.mxu0 0.0
    %5442 = vmatprep.subr.mxu0 0.0
    %5443 = vmatpush1.msra.mxu0 0.0
    %5444 = vmatprep.subr.mxu0 0.0
    %5445 = vmatpush1.msra.mxu0 0.0
    %5446 = vmatprep.subr.mxu0 0.0
    %5447 = vmatpush1.msra.mxu0 0.0
    %5448 = vmatprep.subr.mxu0 0.0
    %5449 = vmatpush1.msra.mxu0 0.0
    %5450 = vmatprep.subr.mxu0 0.0
    %5451 = vmatpush1.msra.mxu0 0.0
    %5452 = vmatprep.subr.mxu0 0.0
    %5453 = vmatpush1.msra.mxu0 0.0
    %5454 = vmatprep.subr.mxu0 0.0
    %5455 = vmatpush1.msra.mxu0 0.0
    %5456 = vmatprep.subr.mxu0 0.0
    %5457 = vmatpush1.msra.mxu0 0.0
    %5458 = vmatprep.subr.mxu0 0.0
    %5459 = vmatpush1.msra.mxu0 0.0
    %5460 = vmatprep.subr.mxu0 0.0
    %5461 = vmatpush1.msra.mxu0 0.0
    %5462 = vmatprep.subr.mxu0 0.0
    %5463 = vmatpush1.msra.mxu0 0.0
    %5464 = vmatprep.subr.mxu0 0.0
    %5465 = vmatpush1.msra.mxu0 0.0
    %5466 = vmatprep.subr.mxu0 0.0
    %5467 = vmatpush1.msra.mxu0 0.0
    %5468 = vmatprep.subr.mxu0 0.0
    %5469 = vmatpush1.msra.mxu0 0.0
    %5470 = vmatprep.subr.mxu0 0.0
    %5471 = vmatpush1.msra.mxu0 0.0
    %5472 = vmatprep.subr.mxu0 0.0
    %5473 = vmatpush1.msra.mxu0 0.0
    %5474 = vmatprep.subr.mxu0 0.0
    %5475 = vmatpush1.msra.mxu0 0.0
    %5476 = vmatprep.subr.mxu0 0.0
    %5477 = vmatpush1.msra.mxu0 0.0
    %5478 = vmatprep.subr.mxu0 0.0
    %5479 = vmatpush1.msra.mxu0 0.0
    %5480 = vmatprep.subr.mxu0 0.0
    %5481 = vmatpush1.msra.mxu0 0.0
    %5482 = vmatprep.subr.mxu0 0.0
    %5483 = vmatpush1.msra.mxu0 0.0
    %5484 = vmatprep.subr.mxu0 0.0
    %5485 = vmatpush1.msra.mxu0 0.0
    %5486 = vmatprep.mubr.f32.mxu0 0.0
    %5487 = vmatmul.mubr.f32.gmra.mrb[0].mxu0 %v5417
    %v5488 = vpop.f32.mrb[0].mxu0
    %v5489 = vadd.f32 %v5415, %v5488
    %v5490 = vpop.f32.mrb[0].mxu0
    %5491 = vmatprep.mubr.f32.mxu0 0.0
    %5492 = vmatmul.mubr.f32.gmra.mrb[0].mxu0 %v5420
    %v5493 = vpop.f32.mrb[0].mxu0
    %v5494 = vadd.f32 %v5415, %v5493
    %v5495 = vpop.f32.mrb[0].mxu0
    %5496 = vdwg.mxu0
    %v5497 = vadd.f32 %v4350, %v5489
    %v5498 = vadd.f32 %v4351, %v5494
    %v5499 = vsel %vm90, %v5497, 0.0
    %5500 = vadd.xlane.f32.xlu0 %v5499
    %v5501 = vpop.xlane.xlu0 %5500
    %v5502 = vsel %vm90, %v5498, 0.0
    %5503 = vadd.xlane.f32.xlu0 %v5502
    %v5504 = vpop.xlane.xlu0 %5503
    %v5505 = vmul.f32 %v5501, %v97
    %v5506 = vmul.f32 %v5504, %v97
    %v5507 = vsub.f32 %v5497, %v5505
    %v5508 = vsub.f32 %v5498, %v5506
    %v5509 = vmul.f32 %v5507, %v5507
    %v5510 = vmul.f32 %v5508, %v5508
    %v5511 = vsel %vm90, %v5509, 0.0
    %5512 = vadd.xlane.f32.xlu0 %v5511
    %v5513 = vpop.xlane.xlu0 %5512
    %v5514 = vsel %vm90, %v5510, 0.0
    %5515 = vadd.xlane.f32.xlu0 %v5514
    %v5516 = vpop.xlane.xlu0 %5515
    %v5517 = vmul.f32 %v5513, %v97
    %v5518 = vmul.f32 %v5516, %v97
    %v5519 = vadd.f32 %v5517, 1e-05
    %v5520 = vadd.f32 %v5518, 1e-05
    %v5521 = vrsqrt.pop %v5519
    %v5522 = vrsqrt.pop %v5520
    %v5523 = vmul.f32 %v5507, %v5521
    %v5524 = vmul.f32 %v5508, %v5522
    %v5525 = vlaneseq
    %v5526 = vshrl.u32 %v5525, 7
    %v5527 = vsub.s32 6, %v5526
    %v5528 = vrot.slane %v4353, %v5527
    %v5529 = vmul.f32 %v5523, %v5528
    %v5530 = vmul.f32 %v5524, %v5528
    %v5531 = vlaneseq
    %v5532 = vshrl.u32 %v5531, 7
    %v5533 = vsub.s32 7, %v5532
    %v5534 = vrot.slane %v4353, %v5533
    %v5535 = vadd.f32 %v5529, %v5534
    %v5536 = vadd.f32 %v5530, %v5534
    %s5537 = scalar_lea.vmem %s4, 288
    %v5538 = vld [vmem:[%s5537] sm:$0xff]
    %v5539 = vld [vmem:[%s5537 + $0x8] sm:$0xff]
    %v5540 = vld [vmem:[%s5537 + $0x10] sm:$0xff]
    %v5541 = vld [vmem:[%s5537 + $0x18] sm:$0xff]
    %v5542 = vld [vmem:[%s5537 + $0x20] sm:$0xff]
    %v5543 = vld [vmem:[%s5537 + $0x28] sm:$0xff]
    %v5544 = vld [vmem:[%s5537 + $0x30] sm:$0xff]
    %v5545 = vld [vmem:[%s5537 + $0x38] sm:$0xff]
    %v5546 = vld [vmem:[%s5537 + $0x40] sm:$0xff]
    %v5547 = vld [vmem:[%s5537 + $0x48] sm:$0xff]
    %v5548 = vld [vmem:[%s5537 + $0x50] sm:$0xff]
    %v5549 = vld [vmem:[%s5537 + $0x58] sm:$0xff]
    %v5550 = vlaneseq
    %v5551 = vshrl.u32 %v5550, 7
    %v5552 = vsub.s32 2, %v5551
    %v5553 = vrot.slane %v4353, %v5552
    %v5554 = vlaneseq
    %v5555 = vshrl.u32 %v5554, 7
    %v5556 = vsub.s32 2, %v5555
    %v5557 = vrot.slane %v4354, %v5556
    %v5559 = vsel %vm90, %v5535, 0
    %v5562 = vsel %vm90, %v5536, 0
    %5564 = vmatprep.subr.mxu0 %v5539
    %5565 = vmatpush1.msra.mxu0 %v5538
    %5566 = vmatprep.subr.mxu0 %v5541
    %5567 = vmatpush1.msra.mxu0 %v5540
    %5568 = vmatprep.subr.mxu0 %v5543
    %5569 = vmatpush1.msra.mxu0 %v5542
    %5570 = vmatprep.subr.mxu0 %v5545
    %5571 = vmatpush1.msra.mxu0 %v5544
    %5572 = vmatprep.subr.mxu0 %v5547
    %5573 = vmatpush1.msra.mxu0 %v5546
    %5574 = vmatprep.subr.mxu0 %v5549
    %5575 = vmatpush1.msra.mxu0 %v5548
    %5576 = vmatprep.subr.mxu0 0.0
    %5577 = vmatpush1.msra.mxu0 0.0
    %5578 = vmatprep.subr.mxu0 0.0
    %5579 = vmatpush1.msra.mxu0 0.0
    %5580 = vmatprep.subr.mxu0 0.0
    %5581 = vmatpush1.msra.mxu0 0.0
    %5582 = vmatprep.subr.mxu0 0.0
    %5583 = vmatpush1.msra.mxu0 0.0
    %5584 = vmatprep.subr.mxu0 0.0
    %5585 = vmatpush1.msra.mxu0 0.0
    %5586 = vmatprep.subr.mxu0 0.0
    %5587 = vmatpush1.msra.mxu0 0.0
    %5588 = vmatprep.subr.mxu0 0.0
    %5589 = vmatpush1.msra.mxu0 0.0
    %5590 = vmatprep.subr.mxu0 0.0
    %5591 = vmatpush1.msra.mxu0 0.0
    %5592 = vmatprep.subr.mxu0 0.0
    %5593 = vmatpush1.msra.mxu0 0.0
    %5594 = vmatprep.subr.mxu0 0.0
    %5595 = vmatpush1.msra.mxu0 0.0
    %5596 = vmatprep.subr.mxu0 0.0
    %5597 = vmatpush1.msra.mxu0 0.0
    %5598 = vmatprep.subr.mxu0 0.0
    %5599 = vmatpush1.msra.mxu0 0.0
    %5600 = vmatprep.subr.mxu0 0.0
    %5601 = vmatpush1.msra.mxu0 0.0
    %5602 = vmatprep.subr.mxu0 0.0
    %5603 = vmatpush1.msra.mxu0 0.0
    %5604 = vmatprep.subr.mxu0 0.0
    %5605 = vmatpush1.msra.mxu0 0.0
    %5606 = vmatprep.subr.mxu0 0.0
    %5607 = vmatpush1.msra.mxu0 0.0
    %5608 = vmatprep.subr.mxu0 0.0
    %5609 = vmatpush1.msra.mxu0 0.0
    %5610 = vmatprep.subr.mxu0 0.0
    %5611 = vmatpush1.msra.mxu0 0.0
    %5612 = vmatprep.subr.mxu0 0.0
    %5613 = vmatpush1.msra.mxu0 0.0
    %5614 = vmatprep.subr.mxu0 0.0
    %5615 = vmatpush1.msra.mxu0 0.0
    %5616 = vmatprep.subr.mxu0 0.0
    %5617 = vmatpush1.msra.mxu0 0.0
    %5618 = vmatprep.subr.mxu0 0.0
    %5619 = vmatpush1.msra.mxu0 0.0
    %5620 = vmatprep.subr.mxu0 0.0
    %5621 = vmatpush1.msra.mxu0 0.0
    %5622 = vmatprep.subr.mxu0 0.0
    %5623 = vmatpush1.msra.mxu0 0.0
    %5624 = vmatprep.subr.mxu0 0.0
    %5625 = vmatpush1.msra.mxu0 0.0
    %5626 = vmatprep.subr.mxu0 0.0
    %5627 = vmatpush1.msra.mxu0 0.0
    %5628 = vmatprep.mubr.f32.mxu0 0.0
    %5629 = vmatmul.mubr.f32.gmra.mrb[0].mxu0 %v5559
    %v5630 = vpop.f32.mrb[0].mxu0
    %v5631 = vadd.f32 %v5553, %v5630
    %v5632 = vpop.f32.mrb[0].mxu0
    %v5633 = vadd.f32 %v5557, %v5632
    %5634 = vmatprep.mubr.f32.mxu0 0.0
    %5635 = vmatmul.mubr.f32.gmra.mrb[0].mxu0 %v5562
    %v5636 = vpop.f32.mrb[0].mxu0
    %v5637 = vadd.f32 %v5553, %v5636
    %v5638 = vpop.f32.mrb[0].mxu0
    %v5639 = vadd.f32 %v5557, %v5638
    %5640 = vdwg.mxu0
    %v5641 = vmul.f32 %v5631, 0.5
    %v5642 = vmul.f32 %v5633, 0.5
    %v5643 = vmul.f32 %v5637, 0.5
    %v5644 = vmul.f32 %v5639, 0.5
    %v5645 = vmul.f32 %v5631, 0.70710677
    %v5646 = vmul.f32 %v5633, 0.70710677
    %v5647 = vmul.f32 %v5637, 0.70710677
    %v5648 = vmul.f32 %v5639, 0.70710677
    %v5649 = verf.f32.pop %v5645
    %v5650 = verf.f32.pop %v5646
    %v5651 = verf.f32.pop %v5647
    %v5652 = verf.f32.pop %v5648
    %v5653 = vadd.f32 %v5649, 1.0
    %v5654 = vadd.f32 %v5650, 1.0
    %v5655 = vadd.f32 %v5651, 1.0
    %v5656 = vadd.f32 %v5652, 1.0
    %v5657 = vmul.f32 %v5641, %v5653
    %v5658 = vmul.f32 %v5642, %v5654
    %v5659 = vmul.f32 %v5643, %v5655
    %v5660 = vmul.f32 %v5644, %v5656
    %s5661 = scalar_lea.vmem %s5, 576
    %v5662 = vld [vmem:[%s5661] sm:$0xff]
    %v5663 = vld [vmem:[%s5661 + $0x8] sm:$0xff]
    %v5664 = vld [vmem:[%s5661 + $0x10] sm:$0xff]
    %v5665 = vld [vmem:[%s5661 + $0x18] sm:$0xff]
    %v5666 = vld [vmem:[%s5661 + $0x20] sm:$0xff]
    %v5667 = vld [vmem:[%s5661 + $0x28] sm:$0xff]
    %v5668 = vld [vmem:[%s5661 + $0x30] sm:$0xff]
    %v5669 = vld [vmem:[%s5661 + $0x38] sm:$0xff]
    %v5670 = vld [vmem:[%s5661 + $0x40] sm:$0xff]
    %v5671 = vld [vmem:[%s5661 + $0x48] sm:$0xff]
    %v5672 = vld [vmem:[%s5661 + $0x50] sm:$0xff]
    %v5673 = vld [vmem:[%s5661 + $0x58] sm:$0xff]
    %v5674 = vld [vmem:[%s5661 + $0x60] sm:$0xff]
    %v5675 = vld [vmem:[%s5661 + $0x68] sm:$0xff]
    %v5676 = vld [vmem:[%s5661 + $0x70] sm:$0xff]
    %v5677 = vld [vmem:[%s5661 + $0x78] sm:$0xff]
    %v5678 = vld [vmem:[%s5661 + $0x80] sm:$0xff]
    %v5679 = vld [vmem:[%s5661 + $0x88] sm:$0xff]
    %v5680 = vld [vmem:[%s5661 + $0x90] sm:$0xff]
    %v5681 = vld [vmem:[%s5661 + $0x98] sm:$0xff]
    %v5682 = vld [vmem:[%s5661 + $0xa0] sm:$0xff]
    %v5683 = vld [vmem:[%s5661 + $0xa8] sm:$0xff]
    %v5684 = vld [vmem:[%s5661 + $0xb0] sm:$0xff]
    %v5685 = vld [vmem:[%s5661 + $0xb8] sm:$0xff]
    %v5686 = vlaneseq
    %v5687 = vshrl.u32 %v5686, 7
    %v5688 = vsub.s32 3, %v5687
    %v5689 = vrot.slane %v4353, %v5688
    %v5691 = vsel %vm1426, %v5658, 0
    %v5694 = vsel %vm1426, %v5660, 0
    %5696 = vmatprep.subr.mxu0 0.0
    %5697 = vmatpush1.msra.mxu0 %v5662
    %5698 = vmatprep.subr.mxu0 0.0
    %5699 = vmatpush1.msra.mxu0 %v5663
    %5700 = vmatprep.subr.mxu0 0.0
    %5701 = vmatpush1.msra.mxu0 %v5664
    %5702 = vmatprep.subr.mxu0 0.0
    %5703 = vmatpush1.msra.mxu0 %v5665
    %5704 = vmatprep.subr.mxu0 0.0
    %5705 = vmatpush1.msra.mxu0 %v5666
    %5706 = vmatprep.subr.mxu0 0.0
    %5707 = vmatpush1.msra.mxu0 %v5667
    %5708 = vmatprep.subr.mxu0 0.0
    %5709 = vmatpush1.msra.mxu0 %v5668
    %5710 = vmatprep.subr.mxu0 0.0
    %5711 = vmatpush1.msra.mxu0 %v5669
    %5712 = vmatprep.subr.mxu0 0.0
    %5713 = vmatpush1.msra.mxu0 %v5670
    %5714 = vmatprep.subr.mxu0 0.0
    %5715 = vmatpush1.msra.mxu0 %v5671
    %5716 = vmatprep.subr.mxu0 0.0
    %5717 = vmatpush1.msra.mxu0 %v5672
    %5718 = vmatprep.subr.mxu0 0.0
    %5719 = vmatpush1.msra.mxu0 %v5673
    %5720 = vmatprep.subr.mxu0 0.0
    %5721 = vmatpush1.msra.mxu0 %v5674
    %5722 = vmatprep.subr.mxu0 0.0
    %5723 = vmatpush1.msra.mxu0 %v5675
    %5724 = vmatprep.subr.mxu0 0.0
    %5725 = vmatpush1.msra.mxu0 %v5676
    %5726 = vmatprep.subr.mxu0 0.0
    %5727 = vmatpush1.msra.mxu0 %v5677
    %5728 = vmatprep.subr.mxu0 0.0
    %5729 = vmatpush1.msra.mxu0 %v5678
    %5730 = vmatprep.subr.mxu0 0.0
    %5731 = vmatpush1.msra.mxu0 %v5679
    %5732 = vmatprep.subr.mxu0 0.0
    %5733 = vmatpush1.msra.mxu0 %v5680
    %5734 = vmatprep.subr.mxu0 0.0
    %5735 = vmatpush1.msra.mxu0 %v5681
    %5736 = vmatprep.subr.mxu0 0.0
    %5737 = vmatpush1.msra.mxu0 %v5682
    %5738 = vmatprep.subr.mxu0 0.0
    %5739 = vmatpush1.msra.mxu0 %v5683
    %5740 = vmatprep.subr.mxu0 0.0
    %5741 = vmatpush1.msra.mxu0 %v5684
    %5742 = vmatprep.subr.mxu0 0.0
    %5743 = vmatpush1.msra.mxu0 %v5685
    %5744 = vmatprep.subr.mxu0 0.0
    %5745 = vmatpush1.msra.mxu0 0.0
    %5746 = vmatprep.subr.mxu0 0.0
    %5747 = vmatpush1.msra.mxu0 0.0
    %5748 = vmatprep.subr.mxu0 0.0
    %5749 = vmatpush1.msra.mxu0 0.0
    %5750 = vmatprep.subr.mxu0 0.0
    %5751 = vmatpush1.msra.mxu0 0.0
    %5752 = vmatprep.subr.mxu0 0.0
    %5753 = vmatpush1.msra.mxu0 0.0
    %5754 = vmatprep.subr.mxu0 0.0
    %5755 = vmatpush1.msra.mxu0 0.0
    %5756 = vmatprep.subr.mxu0 0.0
    %5757 = vmatpush1.msra.mxu0 0.0
    %5758 = vmatprep.subr.mxu0 0.0
    %5759 = vmatpush1.msra.mxu0 0.0
    %5760 = vmatprep.mubr.f32.mxu0 %v5691
    %5761 = vmatmul.mubr.f32.gmra.mrb[0].mxu0 %v5657
    %v5762 = vpop.f32.mrb[0].mxu0
    %v5763 = vadd.f32 %v5689, %v5762
    %v5764 = vpop.f32.mrb[0].mxu0
    %5765 = vmatprep.mubr.f32.mxu0 %v5694
    %5766 = vmatmul.mubr.f32.gmra.mrb[0].mxu0 %v5659
    %v5767 = vpop.f32.mrb[0].mxu0
    %v5768 = vadd.f32 %v5689, %v5767
    %v5769 = vpop.f32.mrb[0].mxu0
    %5770 = vdwg.mxu0
    %v5771 = vadd.f32 %v5497, %v5763
    %v5772 = vadd.f32 %v5498, %v5768
    %5773 = vst.msk [vmem:[#allocation7] sm:$0xff] %vm90, %v5771
    %5774 = vst.msk [vmem:[#allocation7 + $0x8] sm:$0xff] %vm90, %v5772
    // Predicated region
    $region34: #{tpu_custom_call.1} parent=1 // pred_check
      _
    $region35: #{tpu_custom_call.1} parent=1 // pred_check_branch
      %5776 = sbr.rel (0) target = $region37
    $region36: #{tpu_custom_call.1} parent=1 // pred_region
      %s5778 = ssub.s32 256, 256
      %5779 = vsyncadd [#allocation4], %s5778
      %s5780 = sshll.u32 [#allocation7], 4
      %s5781 = int_to_ptr.vmem [resolvable:$true] %s5780
      %5786 = dma.vmem_to_hbm [thread:$0]  %s5781, 256, %s6, [#allocation4], 128, 128, 8
    $region37: #{tpu_custom_call.1} parent=1 // pred_fallthru
      _
    // Predicated region
    $region38: #{tpu_custom_call.1} parent=1 // pred_check
      _
    $region39: #{tpu_custom_call.1} parent=1 // pred_check_branch
      %5788 = sbr.rel (0) target = $region41
    $region40: #{tpu_custom_call.1} parent=1 // pred_region
      %5789 = dma.done [#allocation4], 256
    $region41: #{tpu_custom_call.1} parent=1 // pred_fallthru
      _
    %5790 = vsyncpa [#allocation3], 1
    %5791 = vsyncpa [#allocation6], 1
    %5792 = vsyncpa [#allocation4], 1

</llo_original>
